<compile_context>
chip_gen: v7x
topology: tpu7x:2x2x1
jax: 0.10.0
libtpu: 0.0.40
codegen_flags: <defaults>
</compile_context>

<pallas_src>
import math

import numpy as np
import jax
import jax.numpy as jnp
from jax import lax
from jax.experimental import pallas as pl
from jax.experimental.pallas import tpu as pltpu

# ----------------------------- config (small) --------------------------------
SEQ_LEN = 64
PATCH_SIZE = 8
IN_CHANS = 1
EMBED_DIM = 32
DEPTH = 2
NUM_HEADS = 4
DEC_EMBED_DIM = 32
DEC_DEPTH = 2
DEC_NUM_HEADS = 4
MLP_RATIO = 4.0
MASK_RATIO = 0.75
LN_EPS = 1e-6

NUM_PATCHES = SEQ_LEN // PATCH_SIZE
P = PATCH_SIZE * IN_CHANS
LEN_KEEP = int(NUM_PATCHES * (1 - MASK_RATIO))
S_ENC = 1 + LEN_KEEP                      # cls + kept tokens (valid encoder rows)
S_DEC = NUM_PATCHES + 1                   # cls + all patches (valid decoder rows)
HIDDEN = int(EMBED_DIM * MLP_RATIO)
DEC_HIDDEN = int(DEC_EMBED_DIM * MLP_RATIO)


def _rup(x, m):
    return ((x + m - 1) // m) * m


S_PAD = _rup(S_ENC, 8)                    # padded encoder token rows
SD_PAD = _rup(S_DEC, 8)                   # padded decoder token rows
OUT_ROWS = _rup(NUM_PATCHES, 8)
SLAB_W = 128

_INV_SQRT2 = 0.7071067811865476
NEG_INF = -1e30


# ----------------------------- packed-weight layout ---------------------------
def _block_entries(pre, dim, hidden):
    return [
        (pre + "_ln1_g", 1, dim), (pre + "_ln1_b", 1, dim),
        (pre + "_wq", dim, dim), (pre + "_bq", 1, dim),
        (pre + "_wk", dim, dim), (pre + "_bk", 1, dim),
        (pre + "_wv", dim, dim), (pre + "_bv", 1, dim),
        (pre + "_proj_w", dim, dim), (pre + "_proj_b", 1, dim),
        (pre + "_ln2_g", 1, dim), (pre + "_ln2_b", 1, dim),
        (pre + "_fc1_w", dim, hidden), (pre + "_fc1_b", 1, hidden),
        (pre + "_fc2_w", hidden, dim), (pre + "_fc2_b", 1, dim),
    ]


def _build_layout():
    entries = [
        ("pe_w", P, EMBED_DIM),
        ("pos_patch_add", NUM_PATCHES, EMBED_DIM),   # patch-embed bias + pos[1:]
        ("cls_add", S_PAD, EMBED_DIM),               # row0 = cls_token + pos[0]
    ]
    for d in range(DEPTH):
        entries += _block_entries(f"enc{d}", EMBED_DIM, HIDDEN)
    entries += [
        ("norm_g", 1, EMBED_DIM), ("norm_b", 1, EMBED_DIM),
        ("dec_embed_w", EMBED_DIM, DEC_EMBED_DIM), ("dec_embed_b", 1, DEC_EMBED_DIM),
        ("mask_token", 1, DEC_EMBED_DIM),
        ("dec_pos_pad", SD_PAD, DEC_EMBED_DIM),
    ]
    for d in range(DEC_DEPTH):
        entries += _block_entries(f"dec{d}", DEC_EMBED_DIM, DEC_HIDDEN)
    entries += [
        ("dec_norm_g", 1, DEC_EMBED_DIM), ("dec_norm_b", 1, DEC_EMBED_DIM),
        ("dec_pred_w", DEC_EMBED_DIM, P), ("dec_pred_b", 1, P),
    ]
    layout, off = {}, 0
    for name, r, c in entries:
        assert c <= SLAB_W
        layout[name] = (off, r, c)
        off += _rup(r, 8)                 # every entry starts at an 8-row boundary
    return layout, off


LAYOUT, SLAB_ROWS = _build_layout()


# ----------------------------- in-kernel helpers ------------------------------
def _layer_norm(x, g, b, eps=LN_EPS):
    mu = jnp.mean(x, axis=-1, keepdims=True)
    var = jnp.mean((x - mu) ** 2, axis=-1, keepdims=True)
    return (x - mu) * lax.rsqrt(var + eps) * g + b


def _col_bias(size, n_valid):
    # additive attention bias masking out padded key columns
    col = lax.broadcasted_iota(jnp.int32, (1, size), 1)
    return jnp.where(col < n_valid, 0.0, NEG_INF).astype(jnp.float32)


def _transformer_block(x, col_bias, num_heads, get, pre):
    """timm-style Block on a (S_pad, D) token slab (padded rows masked in attn)."""
    w = lambda n: get(pre + "_" + n)
    S, D = x.shape
    hd = D // num_heads
    scale = hd ** -0.5

    # --- attention ---
    h = _layer_norm(x, w("ln1_g"), w("ln1_b"))
    q = jnp.dot(h, w("wq"), preferred_element_type=jnp.float32) + w("bq")
    k = jnp.dot(h, w("wk"), preferred_element_type=jnp.float32) + w("bk")
    v = jnp.dot(h, w("wv"), preferred_element_type=jnp.float32) + w("bv")

    heads = []
    for hi in range(num_heads):
        sl = slice(hi * hd, (hi + 1) * hd)
        s = lax.dot_general(q[:, sl], k[:, sl], (((1,), (1,)), ((), ())),
                            preferred_element_type=jnp.float32) * scale   # (S, S)
        s = s + col_bias
        s = s - jnp.max(s, axis=-1, keepdims=True)
        p = jnp.exp(s)
        p = p / jnp.sum(p, axis=-1, keepdims=True)                        # exact softmax
        heads.append(jnp.dot(p, v[:, sl], preferred_element_type=jnp.float32))
    o = jnp.concatenate(heads, axis=1)                                    # (S, D)
    x = x + jnp.dot(o, w("proj_w"), preferred_element_type=jnp.float32) + w("proj_b")

    # --- MLP (exact erf GELU, like nn.GELU) ---
    h2 = _layer_norm(x, w("ln2_g"), w("ln2_b"))
    h2 = jnp.dot(h2, w("fc1_w"), preferred_element_type=jnp.float32) + w("fc1_b")
    h2 = 0.5 * h2 * (1.0 + lax.erf(h2 * _INV_SQRT2))
    h2 = jnp.dot(h2, w("fc2_w"), preferred_element_type=jnp.float32) + w("fc2_b")
    return x + h2


# ----------------------------- fused kernel ----------------------------------
def _mae_kernel(patches_ref, keep_g_ref, full_g_ref, slab_ref, out_ref):
    def get(name):
        off, r, c = LAYOUT[name]
        return slab_ref[off:off + r, 0:c]

    patches = patches_ref[...]                  # (NP, P)    raw patches (= loss target)
    keep_g = keep_g_ref[...]                    # (S_PAD, NP) one-hot keep-gather
    full_g = full_g_ref[...]                    # (SD_PAD, S_PAD) one-hot restore-gather

    # ---- patch embed + pos, keep-gather + cls row (one-hot matmul gather) ----
    emb = jnp.dot(patches, get("pe_w"), preferred_element_type=jnp.float32) + get("pos_patch_add")
    x = jnp.dot(keep_g, emb, preferred_element_type=jnp.float32) + get("cls_add")   # (S_PAD, D)

    # ---- encoder ----
    enc_bias = _col_bias(S_PAD, S_ENC)
    for d in range(DEPTH):
        x = _transformer_block(x, enc_bias, NUM_HEADS, get, f"enc{d}")
    x = _layer_norm(x, get("norm_g"), get("norm_b"))
    x = jnp.dot(x, get("dec_embed_w"), preferred_element_type=jnp.float32) + get("dec_embed_b")

    # ---- un-shuffle (restore gather) + mask-token fill + decoder pos ----
    xd = jnp.dot(full_g, x, preferred_element_type=jnp.float32)           # (SD_PAD, Dd)
    is_masked = 1.0 - jnp.sum(full_g, axis=-1, keepdims=True)             # (SD_PAD, 1)
    xd = xd + is_masked * get("mask_token") + get("dec_pos_pad")

    # ---- decoder ----
    dec_bias = _col_bias(SD_PAD, S_DEC)
    for d in range(DEC_DEPTH):
        xd = _transformer_block(xd, dec_bias, DEC_NUM_HEADS, get, f"dec{d}")
    xd = _layer_norm(xd, get("dec_norm_g"), get("dec_norm_b"))
    pred = jnp.dot(xd, get("dec_pred_w"), preferred_element_type=jnp.float32) + get("dec_pred_b")

    # ---- masked-MSE loss parts (vectorized, per-sample) ----
    pred_patch = pred[1:1 + NUM_PATCHES, :]                               # drop cls row -> (NP, P)
    diff = pred_patch - patches
    mse = jnp.mean(diff * diff, axis=-1, keepdims=True)                   # (NP, 1)
    mask_col = is_masked[1:1 + NUM_PATCHES, :]                            # (NP, 1)
    num = jnp.sum(mse * mask_col, axis=0, keepdims=True)                  # (1, 1)
    den = jnp.sum(mask_col, axis=0, keepdims=True)                        # (1, 1)

    # ---- single unmasked (OUT_ROWS, 128) tile store:
    #      pred rows in lanes [0,P); num/den at row 0, lanes P and P+1 ----
    row0_extra = jnp.concatenate(
        [num, den, jnp.zeros((1, SLAB_W - P - 2), jnp.float32)], axis=1)
    extra = jnp.concatenate(
        [row0_extra, jnp.zeros((NUM_PATCHES - 1, SLAB_W - P), jnp.float32)], axis=0)
    out_tile = jnp.concatenate([pred_patch, extra], axis=1)               # (NP, 128)
    if OUT_ROWS > NUM_PATCHES:
        out_tile = jnp.concatenate(
            [out_tile, jnp.zeros((OUT_ROWS - NUM_PATCHES, SLAB_W), jnp.float32)], axis=0)
    out_ref[...] = out_tile


def mae_pallas_call(slab, patches2d, keep_g2d, full_g2d, batch):
    return pl.pallas_call(
        _mae_kernel,
        out_shape=jax.ShapeDtypeStruct((batch * OUT_ROWS, SLAB_W), jnp.float32),
        grid=(batch,),
        in_specs=[
            pl.BlockSpec((NUM_PATCHES, P), lambda b: (b, 0)),
            pl.BlockSpec((S_PAD, NUM_PATCHES), lambda b: (b, 0)),
            pl.BlockSpec((SD_PAD, S_PAD), lambda b: (b, 0)),
            pl.BlockSpec((SLAB_ROWS, SLAB_W), lambda b: (0, 0)),   # broadcast weight slab
        ],
        out_specs=pl.BlockSpec((OUT_ROWS, SLAB_W), lambda b: (b, 0)),
        compiler_params=pltpu.CompilerParams(dimension_semantics=("parallel",)),
    )(patches2d, keep_g2d, full_g2d, slab)


# ----------------------------- parameter init --------------------------------
def get_1d_sincos_pos_embed(embed_dim, length, cls_token=False):
    pos = np.arange(length, dtype=np.float32)
    omega = np.arange(embed_dim // 2, dtype=np.float32) / (embed_dim / 2.0)
    omega = 1.0 / (10000.0 ** omega)
    out = np.einsum("p,d->pd", pos, omega)
    emb = np.concatenate([np.sin(out), np.cos(out)], axis=1)
    if cls_token:
        emb = np.concatenate([np.zeros((1, embed_dim), dtype=np.float32), emb], axis=0)
    return emb.astype(np.float32)


def _xavier(key, fan_in, fan_out):
    limit = math.sqrt(6.0 / (fan_in + fan_out))
    return jax.random.uniform(key, (fan_in, fan_out), jnp.float32, -limit, limit)


def _init_block(key, pre, dim, hidden):
    ks = jax.random.split(key, 4)
    qkv = _xavier(ks[0], dim, 3 * dim)              # torch nn.Linear(dim, 3*dim), stored (in,out)
    zd = jnp.zeros((1, dim), jnp.float32)
    return {
        pre + "_ln1_g": jnp.ones((1, dim), jnp.float32), pre + "_ln1_b": zd,
        pre + "_wq": qkv[:, 0:dim], pre + "_bq": zd,
        pre + "_wk": qkv[:, dim:2 * dim], pre + "_bk": zd,
        pre + "_wv": qkv[:, 2 * dim:], pre + "_bv": zd,
        pre + "_proj_w": _xavier(ks[1], dim, dim), pre + "_proj_b": zd,
        pre + "_ln2_g": jnp.ones((1, dim), jnp.float32), pre + "_ln2_b": zd,
        pre + "_fc1_w": _xavier(ks[2], dim, hidden),
        pre + "_fc1_b": jnp.zeros((1, hidden), jnp.float32),
        pre + "_fc2_w": _xavier(ks[3], hidden, dim), pre + "_fc2_b": zd,
    }


def init_params(key):
    keys = jax.random.split(key, 5 + DEPTH + DEC_DEPTH)
    it = iter(keys)
    pos = jnp.asarray(get_1d_sincos_pos_embed(EMBED_DIM, NUM_PATCHES, cls_token=True))
    dpos = jnp.asarray(get_1d_sincos_pos_embed(DEC_EMBED_DIM, NUM_PATCHES, cls_token=True))

    pe_w = _xavier(next(it), P, EMBED_DIM)
    pe_b = jnp.zeros((1, EMBED_DIM), jnp.float32)
    cls_token = 0.02 * jax.random.normal(next(it), (1, EMBED_DIM), jnp.float32)
    mask_token = 0.02 * jax.random.normal(next(it), (1, DEC_EMBED_DIM), jnp.float32)

    params = {
        "pe_w": pe_w,
        "pos_patch_add": pos[1:] + pe_b,
        "cls_add": jnp.zeros((S_PAD, EMBED_DIM), jnp.float32).at[0].set(cls_token[0] + pos[0]),
        "norm_g": jnp.ones((1, EMBED_DIM), jnp.float32),
        "norm_b": jnp.zeros((1, EMBED_DIM), jnp.float32),
        "dec_embed_w": _xavier(next(it), EMBED_DIM, DEC_EMBED_DIM),
        "dec_embed_b": jnp.zeros((1, DEC_EMBED_DIM), jnp.float32),
        "mask_token": mask_token,
        "dec_pos_pad": jnp.zeros((SD_PAD, DEC_EMBED_DIM), jnp.float32).at[:S_DEC].set(dpos),
        "dec_norm_g": jnp.ones((1, DEC_EMBED_DIM), jnp.float32),
        "dec_norm_b": jnp.zeros((1, DEC_EMBED_DIM), jnp.float32),
        "dec_pred_w": _xavier(next(it), DEC_EMBED_DIM, P),
        "dec_pred_b": jnp.zeros((1, P), jnp.float32),
    }
    for d in range(DEPTH):
        params.update(_init_block(next(it), f"enc{d}", EMBED_DIM, HIDDEN))
    for d in range(DEC_DEPTH):
        params.update(_init_block(next(it), f"dec{d}", DEC_EMBED_DIM, DEC_HIDDEN))
    return params


def pack_params(params):
    """Pack all weights/biases/pos-tables into one lane-dense (SLAB_ROWS, 128) slab."""
    slab = jnp.zeros((SLAB_ROWS, SLAB_W), jnp.float32)
    for name, (off, r, c) in LAYOUT.items():
        arr = jnp.asarray(params[name], jnp.float32).reshape(r, c)
        slab = slab.at[off:off + r, 0:c].set(arr)
    return slab


# ----------------------------- model forward --------------------------------
def mae_forward(slab, seqs, mask_key):
    assert IN_CHANS == 1  # patchify-as-reshape requires a single channel (as in the torch model)
    N = seqs.shape[0]
    patches = seqs.reshape(N, NUM_PATCHES, P)

    # ---- per-sample random masking (argsort stays in tiny JAX glue) ----
    noise = jax.random.uniform(mask_key, (N, NUM_PATCHES))
    ids_shuffle = jnp.argsort(noise, axis=1)
    ids_restore = jnp.argsort(ids_shuffle, axis=1)
    ids_keep = ids_shuffle[:, :LEN_KEEP]
    mask = jnp.ones((N, NUM_PATCHES), jnp.float32).at[:, :LEN_KEEP].set(0.0)
    mask = jnp.take_along_axis(mask, ids_restore, axis=1)

    # one-hot gather operators consumed inside the kernel
    keep_oh = jax.nn.one_hot(ids_keep, NUM_PATCHES, dtype=jnp.float32)           # (N, K, NP)
    keep_g = jnp.zeros((N, S_PAD, NUM_PATCHES), jnp.float32)
    keep_g = keep_g.at[:, 1:1 + LEN_KEEP, :].set(keep_oh)                        # row0 = cls slot
    rest_oh = jax.nn.one_hot(ids_restore + 1, S_PAD, dtype=jnp.float32)          # (N, NP, S_PAD)
    rest_oh = rest_oh * (ids_restore < LEN_KEEP)[..., None].astype(jnp.float32)  # zero row -> mask token
    full_g = jnp.zeros((N, SD_PAD, S_PAD), jnp.float32).at[:, 0, 0].set(1.0)
    full_g = full_g.at[:, 1:1 + NUM_PATCHES, :].set(rest_oh)

    out = mae_pallas_call(
        slab,
        patches.reshape(N * NUM_PATCHES, P),
        keep_g.reshape(N * S_PAD, NUM_PATCHES),
        full_g.reshape(N * SD_PAD, S_PAD),
        N,
    ).reshape(N, OUT_ROWS, SLAB_W)

    pred = out[:, :NUM_PATCHES, :P]                                              # (N, NP, P)
    loss = jnp.sum(out[:, 0, P]) / jnp.sum(out[:, 0, P + 1])                     # masked MSE
    return loss, pred, mask


# ----------------------------- main --------------------------------
if __name__ == "__main__":
    root = jax.random.PRNGKey(0)
    k_param, k_input, k_mask = jax.random.split(root, 3)

    params = init_params(k_param)
    slab = pack_params(params)
    seqs = jax.random.normal(k_input, (2, IN_CHANS, SEQ_LEN), jnp.float32)

    fwd = jax.jit(mae_forward)
    loss, pred, mask = fwd(slab, seqs, k_mask)
    jax.block_until_ready((loss, pred, mask))

    assert pred.shape == (2, NUM_PATCHES, P)
    assert mask.shape == (2, NUM_PATCHES)
    assert loss.shape == ()
    assert bool(jnp.isfinite(loss))
    print("KERNEL_OK")
</pallas_src>

<mosaic_0001>
module attributes {stable_mosaic.version = 11 : i64} {
  func.func @_mae_kernel(%arg0: i32, %arg1: memref<8x8xf32, #tpu.memory_space<vmem>>, %arg2: memref<8x8xf32, #tpu.memory_space<vmem>>, %arg3: memref<16x8xf32, #tpu.memory_space<vmem>>, %arg4: memref<1632x128xf32, #tpu.memory_space<vmem>>, %arg5: memref<8x128xf32, #tpu.memory_space<vmem>>) attributes {dimension_semantics = [#tpu.dimension_semantics<parallel>], iteration_bounds = array<i64: 2>, scalar_prefetch = 0 : i64, scratch_operands = 0 : i64, tpu.core_type = #tpu.core_type<tc>, window_params = [{transform_indices = @transform_0, window_bounds = array<i64: 8, 8>}, {transform_indices = @transform_1, window_bounds = array<i64: 8, 8>}, {transform_indices = @transform_2, window_bounds = array<i64: 16, 8>}, {pipeline_mode = #tpu.pipeline_mode<synchronous>, transform_indices = @transform_3, window_bounds = array<i64: 1632, 128>}, {transform_indices = @transform_4, window_bounds = array<i64: 8, 128>}]} {
    %c0 = arith.constant 0 : index
    %c0_0 = arith.constant 0 : index
    %0 = vector.load %arg1[%c0, %c0_0] : memref<8x8xf32, #tpu.memory_space<vmem>>, vector<8x8xf32>
    %c0_1 = arith.constant 0 : index
    %c0_2 = arith.constant 0 : index
    %1 = vector.load %arg2[%c0_1, %c0_2] : memref<8x8xf32, #tpu.memory_space<vmem>>, vector<8x8xf32>
    %c0_3 = arith.constant 0 : index
    %c0_4 = arith.constant 0 : index
    %2 = vector.load %arg3[%c0_3, %c0_4] : memref<16x8xf32, #tpu.memory_space<vmem>>, vector<16x8xf32>
    %c0_5 = arith.constant 0 : index
    %c0_6 = arith.constant 0 : index
    %3 = vector.load %arg4[%c0_5, %c0_6] : memref<1632x128xf32, #tpu.memory_space<vmem>>, vector<8x32xf32>
    %cst = arith.constant dense<0.000000e+00> : vector<8x32xf32>
    %4 = tpu.matmul %0, %3, %cst {dimension_numbers = #tpu.dot_dimension_numbers<[1], [0], [0], [1], [0, 0, 1, 1], [], []>} : vector<8x8xf32>, vector<8x32xf32>, vector<8x32xf32> -> vector<8x32xf32>
    %c8 = arith.constant 8 : index
    %c0_7 = arith.constant 0 : index
    %5 = vector.load %arg4[%c8, %c0_7] : memref<1632x128xf32, #tpu.memory_space<vmem>>, vector<8x32xf32>
    %6 = arith.addf %4, %5 : vector<8x32xf32>
    %cst_8 = arith.constant dense<0.000000e+00> : vector<8x32xf32>
    %7 = tpu.matmul %1, %6, %cst_8 {dimension_numbers = #tpu.dot_dimension_numbers<[1], [0], [0], [1], [0, 0, 1, 1], [], []>} : vector<8x8xf32>, vector<8x32xf32>, vector<8x32xf32> -> vector<8x32xf32>
    %c16 = arith.constant 16 : index
    %c0_9 = arith.constant 0 : index
    %8 = vector.load %arg4[%c16, %c0_9] : memref<1632x128xf32, #tpu.memory_space<vmem>>, vector<8x32xf32>
    %9 = arith.addf %7, %8 : vector<8x32xf32>
    %10 = tpu.iota {dimensions = array<i32: 1>} : vector<1x8xi32>
    %c3_i32 = arith.constant 3 : i32
    %11 = vector.broadcast %c3_i32 : i32 to vector<1x8xi32>
    %12 = arith.cmpi slt, %10, %11 : vector<1x8xi32>
    %cst_10 = arith.constant 0.000000e+00 : f32
    %cst_11 = arith.constant -1.000000e+30 : f32
    %13 = vector.broadcast %cst_10 : f32 to vector<1x8xf32>
    %14 = vector.broadcast %cst_11 : f32 to vector<1x8xf32>
    %15 = arith.select %12, %13, %14 : vector<1x8xi1>, vector<1x8xf32>
    %c24 = arith.constant 24 : index
    %c0_12 = arith.constant 0 : index
    %16 = vector.load %arg4[%c24, %c0_12] : memref<1632x128xf32, #tpu.memory_space<vmem>>, vector<1x32xf32>
    %c32 = arith.constant 32 : index
    %c0_13 = arith.constant 0 : index
    %17 = vector.load %arg4[%c32, %c0_13] : memref<1632x128xf32, #tpu.memory_space<vmem>>, vector<1x32xf32>
    %cst_14 = arith.constant dense<0.000000e+00> : vector<8xf32>
    %18 = vector.multi_reduction <add>, %9, %cst_14 [1] : vector<8x32xf32> to vector<8xf32>
    %19 = vector.shape_cast %18 : vector<8xf32> to vector<8x1xf32>
    %cst_15 = arith.constant 3.200000e+01 : f32
    %20 = vector.broadcast %cst_15 : f32 to vector<8x1xf32>
    %21 = arith.divf %19, %20 : vector<8x1xf32>
    %22 = vector.broadcast %21 : vector<8x1xf32> to vector<8x32xf32>
    %23 = arith.subf %9, %22 : vector<8x32xf32>
    %24 = arith.mulf %23, %23 : vector<8x32xf32>
    %cst_16 = arith.constant dense<0.000000e+00> : vector<8xf32>
    %25 = vector.multi_reduction <add>, %24, %cst_16 [1] : vector<8x32xf32> to vector<8xf32>
    %26 = vector.shape_cast %25 : vector<8xf32> to vector<8x1xf32>
    %cst_17 = arith.constant 3.200000e+01 : f32
    %27 = vector.broadcast %cst_17 : f32 to vector<8x1xf32>
    %28 = arith.divf %26, %27 : vector<8x1xf32>
    %29 = vector.broadcast %21 : vector<8x1xf32> to vector<8x32xf32>
    %30 = arith.subf %9, %29 : vector<8x32xf32>
    %cst_18 = arith.constant 9.99999997E-7 : f32
    %31 = vector.broadcast %cst_18 : f32 to vector<8x1xf32>
    %32 = arith.addf %28, %31 : vector<8x1xf32>
    %33 = math.rsqrt %32 : vector<8x1xf32>
    %34 = vector.broadcast %33 : vector<8x1xf32> to vector<8x32xf32>
    %35 = arith.mulf %30, %34 : vector<8x32xf32>
    %36 = vector.broadcast %16 : vector<1x32xf32> to vector<8x32xf32>
    %37 = arith.mulf %35, %36 : vector<8x32xf32>
    %38 = vector.broadcast %17 : vector<1x32xf32> to vector<8x32xf32>
    %39 = arith.addf %37, %38 : vector<8x32xf32>
    %c40 = arith.constant 40 : index
    %c0_19 = arith.constant 0 : index
    %40 = vector.load %arg4[%c40, %c0_19] : memref<1632x128xf32, #tpu.memory_space<vmem>>, vector<32x32xf32>
    %cst_20 = arith.constant dense<0.000000e+00> : vector<8x32xf32>
    %41 = tpu.matmul %39, %40, %cst_20 {dimension_numbers = #tpu.dot_dimension_numbers<[1], [0], [0], [1], [0, 0, 1, 1], [], []>} : vector<8x32xf32>, vector<32x32xf32>, vector<8x32xf32> -> vector<8x32xf32>
    %c72 = arith.constant 72 : index
    %c0_21 = arith.constant 0 : index
    %42 = vector.load %arg4[%c72, %c0_21] : memref<1632x128xf32, #tpu.memory_space<vmem>>, vector<1x32xf32>
    %43 = vector.broadcast %42 : vector<1x32xf32> to vector<8x32xf32>
    %44 = arith.addf %41, %43 : vector<8x32xf32>
    %c80 = arith.constant 80 : index
    %c0_22 = arith.constant 0 : index
    %45 = vector.load %arg4[%c80, %c0_22] : memref<1632x128xf32, #tpu.memory_space<vmem>>, vector<32x32xf32>
    %cst_23 = arith.constant dense<0.000000e+00> : vector<8x32xf32>
    %46 = tpu.matmul %39, %45, %cst_23 {dimension_numbers = #tpu.dot_dimension_numbers<[1], [0], [0], [1], [0, 0, 1, 1], [], []>} : vector<8x32xf32>, vector<32x32xf32>, vector<8x32xf32> -> vector<8x32xf32>
    %c112 = arith.constant 112 : index
    %c0_24 = arith.constant 0 : index
    %47 = vector.load %arg4[%c112, %c0_24] : memref<1632x128xf32, #tpu.memory_space<vmem>>, vector<1x32xf32>
    %48 = vector.broadcast %47 : vector<1x32xf32> to vector<8x32xf32>
    %49 = arith.addf %46, %48 : vector<8x32xf32>
    %c120 = arith.constant 120 : index
    %c0_25 = arith.constant 0 : index
    %50 = vector.load %arg4[%c120, %c0_25] : memref<1632x128xf32, #tpu.memory_space<vmem>>, vector<32x32xf32>
    %cst_26 = arith.constant dense<0.000000e+00> : vector<8x32xf32>
    %51 = tpu.matmul %39, %50, %cst_26 {dimension_numbers = #tpu.dot_dimension_numbers<[1], [0], [0], [1], [0, 0, 1, 1], [], []>} : vector<8x32xf32>, vector<32x32xf32>, vector<8x32xf32> -> vector<8x32xf32>
    %c152 = arith.constant 152 : index
    %c0_27 = arith.constant 0 : index
    %52 = vector.load %arg4[%c152, %c0_27] : memref<1632x128xf32, #tpu.memory_space<vmem>>, vector<1x32xf32>
    %53 = vector.broadcast %52 : vector<1x32xf32> to vector<8x32xf32>
    %54 = arith.addf %51, %53 : vector<8x32xf32>
    %55 = vector.extract_strided_slice %44 {offsets = [0, 0], sizes = [8, 8], strides = [1, 1]} : vector<8x32xf32> to vector<8x8xf32>
    %56 = vector.extract_strided_slice %49 {offsets = [0, 0], sizes = [8, 8], strides = [1, 1]} : vector<8x32xf32> to vector<8x8xf32>
    %cst_28 = arith.constant dense<0.000000e+00> : vector<8x8xf32>
    %57 = tpu.matmul %55, %56, %cst_28 {dimension_numbers = #tpu.dot_dimension_numbers<[1], [1], [0], [0], [0, 0, 1, 0], [], []>} : vector<8x8xf32>, vector<8x8xf32>, vector<8x8xf32> -> vector<8x8xf32>
    %cst_29 = arith.constant 0.353553385 : f32
    %58 = vector.broadcast %cst_29 : f32 to vector<8x8xf32>
    %59 = arith.mulf %57, %58 : vector<8x8xf32>
    %60 = vector.broadcast %15 : vector<1x8xf32> to vector<8x8xf32>
    %61 = arith.addf %59, %60 : vector<8x8xf32>
    %cst_30 = arith.constant dense<0xFF800000> : vector<8xf32>
    %62 = vector.multi_reduction <maximumf>, %61, %cst_30 [1] : vector<8x8xf32> to vector<8xf32>
    %63 = vector.shape_cast %62 : vector<8xf32> to vector<8x1xf32>
    %64 = vector.broadcast %63 : vector<8x1xf32> to vector<8x8xf32>
    %65 = arith.subf %61, %64 : vector<8x8xf32>
    %66 = math.exp %65 : vector<8x8xf32>
    %cst_31 = arith.constant dense<0.000000e+00> : vector<8xf32>
    %67 = vector.multi_reduction <add>, %66, %cst_31 [1] : vector<8x8xf32> to vector<8xf32>
    %68 = vector.shape_cast %67 : vector<8xf32> to vector<8x1xf32>
    %69 = vector.broadcast %68 : vector<8x1xf32> to vector<8x8xf32>
    %70 = arith.divf %66, %69 : vector<8x8xf32>
    %71 = vector.extract_strided_slice %54 {offsets = [0, 0], sizes = [8, 8], strides = [1, 1]} : vector<8x32xf32> to vector<8x8xf32>
    %cst_32 = arith.constant dense<0.000000e+00> : vector<8x8xf32>
    %72 = tpu.matmul %70, %71, %cst_32 {dimension_numbers = #tpu.dot_dimension_numbers<[1], [0], [0], [1], [0, 0, 1, 1], [], []>} : vector<8x8xf32>, vector<8x8xf32>, vector<8x8xf32> -> vector<8x8xf32>
    %73 = vector.extract_strided_slice %44 {offsets = [0, 8], sizes = [8, 8], strides = [1, 1]} : vector<8x32xf32> to vector<8x8xf32>
    %74 = vector.extract_strided_slice %49 {offsets = [0, 8], sizes = [8, 8], strides = [1, 1]} : vector<8x32xf32> to vector<8x8xf32>
    %cst_33 = arith.constant dense<0.000000e+00> : vector<8x8xf32>
    %75 = tpu.matmul %73, %74, %cst_33 {dimension_numbers = #tpu.dot_dimension_numbers<[1], [1], [0], [0], [0, 0, 1, 0], [], []>} : vector<8x8xf32>, vector<8x8xf32>, vector<8x8xf32> -> vector<8x8xf32>
    %cst_34 = arith.constant 0.353553385 : f32
    %76 = vector.broadcast %cst_34 : f32 to vector<8x8xf32>
    %77 = arith.mulf %75, %76 : vector<8x8xf32>
    %78 = vector.broadcast %15 : vector<1x8xf32> to vector<8x8xf32>
    %79 = arith.addf %77, %78 : vector<8x8xf32>
    %cst_35 = arith.constant dense<0xFF800000> : vector<8xf32>
    %80 = vector.multi_reduction <maximumf>, %79, %cst_35 [1] : vector<8x8xf32> to vector<8xf32>
    %81 = vector.shape_cast %80 : vector<8xf32> to vector<8x1xf32>
    %82 = vector.broadcast %81 : vector<8x1xf32> to vector<8x8xf32>
    %83 = arith.subf %79, %82 : vector<8x8xf32>
    %84 = math.exp %83 : vector<8x8xf32>
    %cst_36 = arith.constant dense<0.000000e+00> : vector<8xf32>
    %85 = vector.multi_reduction <add>, %84, %cst_36 [1] : vector<8x8xf32> to vector<8xf32>
    %86 = vector.shape_cast %85 : vector<8xf32> to vector<8x1xf32>
    %87 = vector.broadcast %86 : vector<8x1xf32> to vector<8x8xf32>
    %88 = arith.divf %84, %87 : vector<8x8xf32>
    %89 = vector.extract_strided_slice %54 {offsets = [0, 8], sizes = [8, 8], strides = [1, 1]} : vector<8x32xf32> to vector<8x8xf32>
    %cst_37 = arith.constant dense<0.000000e+00> : vector<8x8xf32>
    %90 = tpu.matmul %88, %89, %cst_37 {dimension_numbers = #tpu.dot_dimension_numbers<[1], [0], [0], [1], [0, 0, 1, 1], [], []>} : vector<8x8xf32>, vector<8x8xf32>, vector<8x8xf32> -> vector<8x8xf32>
    %91 = vector.extract_strided_slice %44 {offsets = [0, 16], sizes = [8, 8], strides = [1, 1]} : vector<8x32xf32> to vector<8x8xf32>
    %92 = vector.extract_strided_slice %49 {offsets = [0, 16], sizes = [8, 8], strides = [1, 1]} : vector<8x32xf32> to vector<8x8xf32>
    %cst_38 = arith.constant dense<0.000000e+00> : vector<8x8xf32>
    %93 = tpu.matmul %91, %92, %cst_38 {dimension_numbers = #tpu.dot_dimension_numbers<[1], [1], [0], [0], [0, 0, 1, 0], [], []>} : vector<8x8xf32>, vector<8x8xf32>, vector<8x8xf32> -> vector<8x8xf32>
    %cst_39 = arith.constant 0.353553385 : f32
    %94 = vector.broadcast %cst_39 : f32 to vector<8x8xf32>
    %95 = arith.mulf %93, %94 : vector<8x8xf32>
    %96 = vector.broadcast %15 : vector<1x8xf32> to vector<8x8xf32>
    %97 = arith.addf %95, %96 : vector<8x8xf32>
    %cst_40 = arith.constant dense<0xFF800000> : vector<8xf32>
    %98 = vector.multi_reduction <maximumf>, %97, %cst_40 [1] : vector<8x8xf32> to vector<8xf32>
    %99 = vector.shape_cast %98 : vector<8xf32> to vector<8x1xf32>
    %100 = vector.broadcast %99 : vector<8x1xf32> to vector<8x8xf32>
    %101 = arith.subf %97, %100 : vector<8x8xf32>
    %102 = math.exp %101 : vector<8x8xf32>
    %cst_41 = arith.constant dense<0.000000e+00> : vector<8xf32>
    %103 = vector.multi_reduction <add>, %102, %cst_41 [1] : vector<8x8xf32> to vector<8xf32>
    %104 = vector.shape_cast %103 : vector<8xf32> to vector<8x1xf32>
    %105 = vector.broadcast %104 : vector<8x1xf32> to vector<8x8xf32>
    %106 = arith.divf %102, %105 : vector<8x8xf32>
    %107 = vector.extract_strided_slice %54 {offsets = [0, 16], sizes = [8, 8], strides = [1, 1]} : vector<8x32xf32> to vector<8x8xf32>
    %cst_42 = arith.constant dense<0.000000e+00> : vector<8x8xf32>
    %108 = tpu.matmul %106, %107, %cst_42 {dimension_numbers = #tpu.dot_dimension_numbers<[1], [0], [0], [1], [0, 0, 1, 1], [], []>} : vector<8x8xf32>, vector<8x8xf32>, vector<8x8xf32> -> vector<8x8xf32>
    %109 = vector.extract_strided_slice %44 {offsets = [0, 24], sizes = [8, 8], strides = [1, 1]} : vector<8x32xf32> to vector<8x8xf32>
    %110 = vector.extract_strided_slice %49 {offsets = [0, 24], sizes = [8, 8], strides = [1, 1]} : vector<8x32xf32> to vector<8x8xf32>
    %cst_43 = arith.constant dense<0.000000e+00> : vector<8x8xf32>
    %111 = tpu.matmul %109, %110, %cst_43 {dimension_numbers = #tpu.dot_dimension_numbers<[1], [1], [0], [0], [0, 0, 1, 0], [], []>} : vector<8x8xf32>, vector<8x8xf32>, vector<8x8xf32> -> vector<8x8xf32>
    %cst_44 = arith.constant 0.353553385 : f32
    %112 = vector.broadcast %cst_44 : f32 to vector<8x8xf32>
    %113 = arith.mulf %111, %112 : vector<8x8xf32>
    %114 = vector.broadcast %15 : vector<1x8xf32> to vector<8x8xf32>
    %115 = arith.addf %113, %114 : vector<8x8xf32>
    %cst_45 = arith.constant dense<0xFF800000> : vector<8xf32>
    %116 = vector.multi_reduction <maximumf>, %115, %cst_45 [1] : vector<8x8xf32> to vector<8xf32>
    %117 = vector.shape_cast %116 : vector<8xf32> to vector<8x1xf32>
    %118 = vector.broadcast %117 : vector<8x1xf32> to vector<8x8xf32>
    %119 = arith.subf %115, %118 : vector<8x8xf32>
    %120 = math.exp %119 : vector<8x8xf32>
    %cst_46 = arith.constant dense<0.000000e+00> : vector<8xf32>
    %121 = vector.multi_reduction <add>, %120, %cst_46 [1] : vector<8x8xf32> to vector<8xf32>
    %122 = vector.shape_cast %121 : vector<8xf32> to vector<8x1xf32>
    %123 = vector.broadcast %122 : vector<8x1xf32> to vector<8x8xf32>
    %124 = arith.divf %120, %123 : vector<8x8xf32>
    %125 = vector.extract_strided_slice %54 {offsets = [0, 24], sizes = [8, 8], strides = [1, 1]} : vector<8x32xf32> to vector<8x8xf32>
    %cst_47 = arith.constant dense<0.000000e+00> : vector<8x8xf32>
    %126 = tpu.matmul %124, %125, %cst_47 {dimension_numbers = #tpu.dot_dimension_numbers<[1], [0], [0], [1], [0, 0, 1, 1], [], []>} : vector<8x8xf32>, vector<8x8xf32>, vector<8x8xf32> -> vector<8x8xf32>
    %127 = tpu.concatenate %72, %90, %108, %126 in 1 : vector<8x8xf32>, vector<8x8xf32>, vector<8x8xf32>, vector<8x8xf32> -> vector<8x32xf32>
    %c160 = arith.constant 160 : index
    %c0_48 = arith.constant 0 : index
    %128 = vector.load %arg4[%c160, %c0_48] : memref<1632x128xf32, #tpu.memory_space<vmem>>, vector<32x32xf32>
    %cst_49 = arith.constant dense<0.000000e+00> : vector<8x32xf32>
    %129 = tpu.matmul %127, %128, %cst_49 {dimension_numbers = #tpu.dot_dimension_numbers<[1], [0], [0], [1], [0, 0, 1, 1], [], []>} : vector<8x32xf32>, vector<32x32xf32>, vector<8x32xf32> -> vector<8x32xf32>
    %130 = arith.addf %9, %129 : vector<8x32xf32>
    %c192 = arith.constant 192 : index
    %c0_50 = arith.constant 0 : index
    %131 = vector.load %arg4[%c192, %c0_50] : memref<1632x128xf32, #tpu.memory_space<vmem>>, vector<1x32xf32>
    %132 = vector.broadcast %131 : vector<1x32xf32> to vector<8x32xf32>
    %133 = arith.addf %130, %132 : vector<8x32xf32>
    %c200 = arith.constant 200 : index
    %c0_51 = arith.constant 0 : index
    %134 = vector.load %arg4[%c200, %c0_51] : memref<1632x128xf32, #tpu.memory_space<vmem>>, vector<1x32xf32>
    %c208 = arith.constant 208 : index
    %c0_52 = arith.constant 0 : index
    %135 = vector.load %arg4[%c208, %c0_52] : memref<1632x128xf32, #tpu.memory_space<vmem>>, vector<1x32xf32>
    %cst_53 = arith.constant dense<0.000000e+00> : vector<8xf32>
    %136 = vector.multi_reduction <add>, %133, %cst_53 [1] : vector<8x32xf32> to vector<8xf32>
    %137 = vector.shape_cast %136 : vector<8xf32> to vector<8x1xf32>
    %cst_54 = arith.constant 3.200000e+01 : f32
    %138 = vector.broadcast %cst_54 : f32 to vector<8x1xf32>
    %139 = arith.divf %137, %138 : vector<8x1xf32>
    %140 = vector.broadcast %139 : vector<8x1xf32> to vector<8x32xf32>
    %141 = arith.subf %133, %140 : vector<8x32xf32>
    %142 = arith.mulf %141, %141 : vector<8x32xf32>
    %cst_55 = arith.constant dense<0.000000e+00> : vector<8xf32>
    %143 = vector.multi_reduction <add>, %142, %cst_55 [1] : vector<8x32xf32> to vector<8xf32>
    %144 = vector.shape_cast %143 : vector<8xf32> to vector<8x1xf32>
    %cst_56 = arith.constant 3.200000e+01 : f32
    %145 = vector.broadcast %cst_56 : f32 to vector<8x1xf32>
    %146 = arith.divf %144, %145 : vector<8x1xf32>
    %147 = vector.broadcast %139 : vector<8x1xf32> to vector<8x32xf32>
    %148 = arith.subf %133, %147 : vector<8x32xf32>
    %cst_57 = arith.constant 9.99999997E-7 : f32
    %149 = vector.broadcast %cst_57 : f32 to vector<8x1xf32>
    %150 = arith.addf %146, %149 : vector<8x1xf32>
    %151 = math.rsqrt %150 : vector<8x1xf32>
    %152 = vector.broadcast %151 : vector<8x1xf32> to vector<8x32xf32>
    %153 = arith.mulf %148, %152 : vector<8x32xf32>
    %154 = vector.broadcast %134 : vector<1x32xf32> to vector<8x32xf32>
    %155 = arith.mulf %153, %154 : vector<8x32xf32>
    %156 = vector.broadcast %135 : vector<1x32xf32> to vector<8x32xf32>
    %157 = arith.addf %155, %156 : vector<8x32xf32>
    %c216 = arith.constant 216 : index
    %c0_58 = arith.constant 0 : index
    %158 = vector.load %arg4[%c216, %c0_58] : memref<1632x128xf32, #tpu.memory_space<vmem>>, vector<32x128xf32>
    %cst_59 = arith.constant dense<0.000000e+00> : vector<8x128xf32>
    %159 = tpu.matmul %157, %158, %cst_59 {dimension_numbers = #tpu.dot_dimension_numbers<[1], [0], [0], [1], [0, 0, 1, 1], [], []>} : vector<8x32xf32>, vector<32x128xf32>, vector<8x128xf32> -> vector<8x128xf32>
    %c248 = arith.constant 248 : index
    %c0_60 = arith.constant 0 : index
    %160 = vector.load %arg4[%c248, %c0_60] : memref<1632x128xf32, #tpu.memory_space<vmem>>, vector<1x128xf32>
    %161 = vector.broadcast %160 : vector<1x128xf32> to vector<8x128xf32>
    %162 = arith.addf %159, %161 : vector<8x128xf32>
    %cst_61 = arith.constant 5.000000e-01 : f32
    %163 = vector.broadcast %cst_61 : f32 to vector<8x128xf32>
    %164 = arith.mulf %163, %162 : vector<8x128xf32>
    %cst_62 = arith.constant 0.707106769 : f32
    %165 = vector.broadcast %cst_62 : f32 to vector<8x128xf32>
    %166 = arith.mulf %162, %165 : vector<8x128xf32>
    %167 = math.erf %166 : vector<8x128xf32>
    %cst_63 = arith.constant 1.000000e+00 : f32
    %168 = vector.broadcast %cst_63 : f32 to vector<8x128xf32>
    %169 = arith.addf %168, %167 : vector<8x128xf32>
    %170 = arith.mulf %164, %169 : vector<8x128xf32>
    %c256 = arith.constant 256 : index
    %c0_64 = arith.constant 0 : index
    %171 = vector.load %arg4[%c256, %c0_64] : memref<1632x128xf32, #tpu.memory_space<vmem>>, vector<128x32xf32>
    %cst_65 = arith.constant dense<0.000000e+00> : vector<8x32xf32>
    %172 = tpu.matmul %170, %171, %cst_65 {dimension_numbers = #tpu.dot_dimension_numbers<[1], [0], [0], [1], [0, 0, 1, 1], [], []>} : vector<8x128xf32>, vector<128x32xf32>, vector<8x32xf32> -> vector<8x32xf32>
    %c384 = arith.constant 384 : index
    %c0_66 = arith.constant 0 : index
    %173 = vector.load %arg4[%c384, %c0_66] : memref<1632x128xf32, #tpu.memory_space<vmem>>, vector<1x32xf32>
    %174 = vector.broadcast %173 : vector<1x32xf32> to vector<8x32xf32>
    %175 = arith.addf %172, %174 : vector<8x32xf32>
    %176 = arith.addf %133, %175 : vector<8x32xf32>
    %c392 = arith.constant 392 : index
    %c0_67 = arith.constant 0 : index
    %177 = vector.load %arg4[%c392, %c0_67] : memref<1632x128xf32, #tpu.memory_space<vmem>>, vector<1x32xf32>
    %c400 = arith.constant 400 : index
    %c0_68 = arith.constant 0 : index
    %178 = vector.load %arg4[%c400, %c0_68] : memref<1632x128xf32, #tpu.memory_space<vmem>>, vector<1x32xf32>
    %cst_69 = arith.constant dense<0.000000e+00> : vector<8xf32>
    %179 = vector.multi_reduction <add>, %176, %cst_69 [1] : vector<8x32xf32> to vector<8xf32>
    %180 = vector.shape_cast %179 : vector<8xf32> to vector<8x1xf32>
    %cst_70 = arith.constant 3.200000e+01 : f32
    %181 = vector.broadcast %cst_70 : f32 to vector<8x1xf32>
    %182 = arith.divf %180, %181 : vector<8x1xf32>
    %183 = vector.broadcast %182 : vector<8x1xf32> to vector<8x32xf32>
    %184 = arith.subf %176, %183 : vector<8x32xf32>
    %185 = arith.mulf %184, %184 : vector<8x32xf32>
    %cst_71 = arith.constant dense<0.000000e+00> : vector<8xf32>
    %186 = vector.multi_reduction <add>, %185, %cst_71 [1] : vector<8x32xf32> to vector<8xf32>
    %187 = vector.shape_cast %186 : vector<8xf32> to vector<8x1xf32>
    %cst_72 = arith.constant 3.200000e+01 : f32
    %188 = vector.broadcast %cst_72 : f32 to vector<8x1xf32>
    %189 = arith.divf %187, %188 : vector<8x1xf32>
    %190 = vector.broadcast %182 : vector<8x1xf32> to vector<8x32xf32>
    %191 = arith.subf %176, %190 : vector<8x32xf32>
    %cst_73 = arith.constant 9.99999997E-7 : f32
    %192 = vector.broadcast %cst_73 : f32 to vector<8x1xf32>
    %193 = arith.addf %189, %192 : vector<8x1xf32>
    %194 = math.rsqrt %193 : vector<8x1xf32>
    %195 = vector.broadcast %194 : vector<8x1xf32> to vector<8x32xf32>
    %196 = arith.mulf %191, %195 : vector<8x32xf32>
    %197 = vector.broadcast %177 : vector<1x32xf32> to vector<8x32xf32>
    %198 = arith.mulf %196, %197 : vector<8x32xf32>
    %199 = vector.broadcast %178 : vector<1x32xf32> to vector<8x32xf32>
    %200 = arith.addf %198, %199 : vector<8x32xf32>
    %c408 = arith.constant 408 : index
    %c0_74 = arith.constant 0 : index
    %201 = vector.load %arg4[%c408, %c0_74] : memref<1632x128xf32, #tpu.memory_space<vmem>>, vector<32x32xf32>
    %cst_75 = arith.constant dense<0.000000e+00> : vector<8x32xf32>
    %202 = tpu.matmul %200, %201, %cst_75 {dimension_numbers = #tpu.dot_dimension_numbers<[1], [0], [0], [1], [0, 0, 1, 1], [], []>} : vector<8x32xf32>, vector<32x32xf32>, vector<8x32xf32> -> vector<8x32xf32>
    %c440 = arith.constant 440 : index
    %c0_76 = arith.constant 0 : index
    %203 = vector.load %arg4[%c440, %c0_76] : memref<1632x128xf32, #tpu.memory_space<vmem>>, vector<1x32xf32>
    %204 = vector.broadcast %203 : vector<1x32xf32> to vector<8x32xf32>
    %205 = arith.addf %202, %204 : vector<8x32xf32>
    %c448 = arith.constant 448 : index
    %c0_77 = arith.constant 0 : index
    %206 = vector.load %arg4[%c448, %c0_77] : memref<1632x128xf32, #tpu.memory_space<vmem>>, vector<32x32xf32>
    %cst_78 = arith.constant dense<0.000000e+00> : vector<8x32xf32>
    %207 = tpu.matmul %200, %206, %cst_78 {dimension_numbers = #tpu.dot_dimension_numbers<[1], [0], [0], [1], [0, 0, 1, 1], [], []>} : vector<8x32xf32>, vector<32x32xf32>, vector<8x32xf32> -> vector<8x32xf32>
    %c480 = arith.constant 480 : index
    %c0_79 = arith.constant 0 : index
    %208 = vector.load %arg4[%c480, %c0_79] : memref<1632x128xf32, #tpu.memory_space<vmem>>, vector<1x32xf32>
    %209 = vector.broadcast %208 : vector<1x32xf32> to vector<8x32xf32>
    %210 = arith.addf %207, %209 : vector<8x32xf32>
    %c488 = arith.constant 488 : index
    %c0_80 = arith.constant 0 : index
    %211 = vector.load %arg4[%c488, %c0_80] : memref<1632x128xf32, #tpu.memory_space<vmem>>, vector<32x32xf32>
    %cst_81 = arith.constant dense<0.000000e+00> : vector<8x32xf32>
    %212 = tpu.matmul %200, %211, %cst_81 {dimension_numbers = #tpu.dot_dimension_numbers<[1], [0], [0], [1], [0, 0, 1, 1], [], []>} : vector<8x32xf32>, vector<32x32xf32>, vector<8x32xf32> -> vector<8x32xf32>
    %c520 = arith.constant 520 : index
    %c0_82 = arith.constant 0 : index
    %213 = vector.load %arg4[%c520, %c0_82] : memref<1632x128xf32, #tpu.memory_space<vmem>>, vector<1x32xf32>
    %214 = vector.broadcast %213 : vector<1x32xf32> to vector<8x32xf32>
    %215 = arith.addf %212, %214 : vector<8x32xf32>
    %216 = vector.extract_strided_slice %205 {offsets = [0, 0], sizes = [8, 8], strides = [1, 1]} : vector<8x32xf32> to vector<8x8xf32>
    %217 = vector.extract_strided_slice %210 {offsets = [0, 0], sizes = [8, 8], strides = [1, 1]} : vector<8x32xf32> to vector<8x8xf32>
    %cst_83 = arith.constant dense<0.000000e+00> : vector<8x8xf32>
    %218 = tpu.matmul %216, %217, %cst_83 {dimension_numbers = #tpu.dot_dimension_numbers<[1], [1], [0], [0], [0, 0, 1, 0], [], []>} : vector<8x8xf32>, vector<8x8xf32>, vector<8x8xf32> -> vector<8x8xf32>
    %cst_84 = arith.constant 0.353553385 : f32
    %219 = vector.broadcast %cst_84 : f32 to vector<8x8xf32>
    %220 = arith.mulf %218, %219 : vector<8x8xf32>
    %221 = vector.broadcast %15 : vector<1x8xf32> to vector<8x8xf32>
    %222 = arith.addf %220, %221 : vector<8x8xf32>
    %cst_85 = arith.constant dense<0xFF800000> : vector<8xf32>
    %223 = vector.multi_reduction <maximumf>, %222, %cst_85 [1] : vector<8x8xf32> to vector<8xf32>
    %224 = vector.shape_cast %223 : vector<8xf32> to vector<8x1xf32>
    %225 = vector.broadcast %224 : vector<8x1xf32> to vector<8x8xf32>
    %226 = arith.subf %222, %225 : vector<8x8xf32>
    %227 = math.exp %226 : vector<8x8xf32>
    %cst_86 = arith.constant dense<0.000000e+00> : vector<8xf32>
    %228 = vector.multi_reduction <add>, %227, %cst_86 [1] : vector<8x8xf32> to vector<8xf32>
    %229 = vector.shape_cast %228 : vector<8xf32> to vector<8x1xf32>
    %230 = vector.broadcast %229 : vector<8x1xf32> to vector<8x8xf32>
    %231 = arith.divf %227, %230 : vector<8x8xf32>
    %232 = vector.extract_strided_slice %215 {offsets = [0, 0], sizes = [8, 8], strides = [1, 1]} : vector<8x32xf32> to vector<8x8xf32>
    %cst_87 = arith.constant dense<0.000000e+00> : vector<8x8xf32>
    %233 = tpu.matmul %231, %232, %cst_87 {dimension_numbers = #tpu.dot_dimension_numbers<[1], [0], [0], [1], [0, 0, 1, 1], [], []>} : vector<8x8xf32>, vector<8x8xf32>, vector<8x8xf32> -> vector<8x8xf32>
    %234 = vector.extract_strided_slice %205 {offsets = [0, 8], sizes = [8, 8], strides = [1, 1]} : vector<8x32xf32> to vector<8x8xf32>
    %235 = vector.extract_strided_slice %210 {offsets = [0, 8], sizes = [8, 8], strides = [1, 1]} : vector<8x32xf32> to vector<8x8xf32>
    %cst_88 = arith.constant dense<0.000000e+00> : vector<8x8xf32>
    %236 = tpu.matmul %234, %235, %cst_88 {dimension_numbers = #tpu.dot_dimension_numbers<[1], [1], [0], [0], [0, 0, 1, 0], [], []>} : vector<8x8xf32>, vector<8x8xf32>, vector<8x8xf32> -> vector<8x8xf32>
    %cst_89 = arith.constant 0.353553385 : f32
    %237 = vector.broadcast %cst_89 : f32 to vector<8x8xf32>
    %238 = arith.mulf %236, %237 : vector<8x8xf32>
    %239 = vector.broadcast %15 : vector<1x8xf32> to vector<8x8xf32>
    %240 = arith.addf %238, %239 : vector<8x8xf32>
    %cst_90 = arith.constant dense<0xFF800000> : vector<8xf32>
    %241 = vector.multi_reduction <maximumf>, %240, %cst_90 [1] : vector<8x8xf32> to vector<8xf32>
    %242 = vector.shape_cast %241 : vector<8xf32> to vector<8x1xf32>
    %243 = vector.broadcast %242 : vector<8x1xf32> to vector<8x8xf32>
    %244 = arith.subf %240, %243 : vector<8x8xf32>
    %245 = math.exp %244 : vector<8x8xf32>
    %cst_91 = arith.constant dense<0.000000e+00> : vector<8xf32>
    %246 = vector.multi_reduction <add>, %245, %cst_91 [1] : vector<8x8xf32> to vector<8xf32>
    %247 = vector.shape_cast %246 : vector<8xf32> to vector<8x1xf32>
    %248 = vector.broadcast %247 : vector<8x1xf32> to vector<8x8xf32>
    %249 = arith.divf %245, %248 : vector<8x8xf32>
    %250 = vector.extract_strided_slice %215 {offsets = [0, 8], sizes = [8, 8], strides = [1, 1]} : vector<8x32xf32> to vector<8x8xf32>
    %cst_92 = arith.constant dense<0.000000e+00> : vector<8x8xf32>
    %251 = tpu.matmul %249, %250, %cst_92 {dimension_numbers = #tpu.dot_dimension_numbers<[1], [0], [0], [1], [0, 0, 1, 1], [], []>} : vector<8x8xf32>, vector<8x8xf32>, vector<8x8xf32> -> vector<8x8xf32>
    %252 = vector.extract_strided_slice %205 {offsets = [0, 16], sizes = [8, 8], strides = [1, 1]} : vector<8x32xf32> to vector<8x8xf32>
    %253 = vector.extract_strided_slice %210 {offsets = [0, 16], sizes = [8, 8], strides = [1, 1]} : vector<8x32xf32> to vector<8x8xf32>
    %cst_93 = arith.constant dense<0.000000e+00> : vector<8x8xf32>
    %254 = tpu.matmul %252, %253, %cst_93 {dimension_numbers = #tpu.dot_dimension_numbers<[1], [1], [0], [0], [0, 0, 1, 0], [], []>} : vector<8x8xf32>, vector<8x8xf32>, vector<8x8xf32> -> vector<8x8xf32>
    %cst_94 = arith.constant 0.353553385 : f32
    %255 = vector.broadcast %cst_94 : f32 to vector<8x8xf32>
    %256 = arith.mulf %254, %255 : vector<8x8xf32>
    %257 = vector.broadcast %15 : vector<1x8xf32> to vector<8x8xf32>
    %258 = arith.addf %256, %257 : vector<8x8xf32>
    %cst_95 = arith.constant dense<0xFF800000> : vector<8xf32>
    %259 = vector.multi_reduction <maximumf>, %258, %cst_95 [1] : vector<8x8xf32> to vector<8xf32>
    %260 = vector.shape_cast %259 : vector<8xf32> to vector<8x1xf32>
    %261 = vector.broadcast %260 : vector<8x1xf32> to vector<8x8xf32>
    %262 = arith.subf %258, %261 : vector<8x8xf32>
    %263 = math.exp %262 : vector<8x8xf32>
    %cst_96 = arith.constant dense<0.000000e+00> : vector<8xf32>
    %264 = vector.multi_reduction <add>, %263, %cst_96 [1] : vector<8x8xf32> to vector<8xf32>
    %265 = vector.shape_cast %264 : vector<8xf32> to vector<8x1xf32>
    %266 = vector.broadcast %265 : vector<8x1xf32> to vector<8x8xf32>
    %267 = arith.divf %263, %266 : vector<8x8xf32>
    %268 = vector.extract_strided_slice %215 {offsets = [0, 16], sizes = [8, 8], strides = [1, 1]} : vector<8x32xf32> to vector<8x8xf32>
    %cst_97 = arith.constant dense<0.000000e+00> : vector<8x8xf32>
    %269 = tpu.matmul %267, %268, %cst_97 {dimension_numbers = #tpu.dot_dimension_numbers<[1], [0], [0], [1], [0, 0, 1, 1], [], []>} : vector<8x8xf32>, vector<8x8xf32>, vector<8x8xf32> -> vector<8x8xf32>
    %270 = vector.extract_strided_slice %205 {offsets = [0, 24], sizes = [8, 8], strides = [1, 1]} : vector<8x32xf32> to vector<8x8xf32>
    %271 = vector.extract_strided_slice %210 {offsets = [0, 24], sizes = [8, 8], strides = [1, 1]} : vector<8x32xf32> to vector<8x8xf32>
    %cst_98 = arith.constant dense<0.000000e+00> : vector<8x8xf32>
    %272 = tpu.matmul %270, %271, %cst_98 {dimension_numbers = #tpu.dot_dimension_numbers<[1], [1], [0], [0], [0, 0, 1, 0], [], []>} : vector<8x8xf32>, vector<8x8xf32>, vector<8x8xf32> -> vector<8x8xf32>
    %cst_99 = arith.constant 0.353553385 : f32
    %273 = vector.broadcast %cst_99 : f32 to vector<8x8xf32>
    %274 = arith.mulf %272, %273 : vector<8x8xf32>
    %275 = vector.broadcast %15 : vector<1x8xf32> to vector<8x8xf32>
    %276 = arith.addf %274, %275 : vector<8x8xf32>
    %cst_100 = arith.constant dense<0xFF800000> : vector<8xf32>
    %277 = vector.multi_reduction <maximumf>, %276, %cst_100 [1] : vector<8x8xf32> to vector<8xf32>
    %278 = vector.shape_cast %277 : vector<8xf32> to vector<8x1xf32>
    %279 = vector.broadcast %278 : vector<8x1xf32> to vector<8x8xf32>
    %280 = arith.subf %276, %279 : vector<8x8xf32>
    %281 = math.exp %280 : vector<8x8xf32>
    %cst_101 = arith.constant dense<0.000000e+00> : vector<8xf32>
    %282 = vector.multi_reduction <add>, %281, %cst_101 [1] : vector<8x8xf32> to vector<8xf32>
    %283 = vector.shape_cast %282 : vector<8xf32> to vector<8x1xf32>
    %284 = vector.broadcast %283 : vector<8x1xf32> to vector<8x8xf32>
    %285 = arith.divf %281, %284 : vector<8x8xf32>
    %286 = vector.extract_strided_slice %215 {offsets = [0, 24], sizes = [8, 8], strides = [1, 1]} : vector<8x32xf32> to vector<8x8xf32>
    %cst_102 = arith.constant dense<0.000000e+00> : vector<8x8xf32>
    %287 = tpu.matmul %285, %286, %cst_102 {dimension_numbers = #tpu.dot_dimension_numbers<[1], [0], [0], [1], [0, 0, 1, 1], [], []>} : vector<8x8xf32>, vector<8x8xf32>, vector<8x8xf32> -> vector<8x8xf32>
    %288 = tpu.concatenate %233, %251, %269, %287 in 1 : vector<8x8xf32>, vector<8x8xf32>, vector<8x8xf32>, vector<8x8xf32> -> vector<8x32xf32>
    %c528 = arith.constant 528 : index
    %c0_103 = arith.constant 0 : index
    %289 = vector.load %arg4[%c528, %c0_103] : memref<1632x128xf32, #tpu.memory_space<vmem>>, vector<32x32xf32>
    %cst_104 = arith.constant dense<0.000000e+00> : vector<8x32xf32>
    %290 = tpu.matmul %288, %289, %cst_104 {dimension_numbers = #tpu.dot_dimension_numbers<[1], [0], [0], [1], [0, 0, 1, 1], [], []>} : vector<8x32xf32>, vector<32x32xf32>, vector<8x32xf32> -> vector<8x32xf32>
    %291 = arith.addf %176, %290 : vector<8x32xf32>
    %c560 = arith.constant 560 : index
    %c0_105 = arith.constant 0 : index
    %292 = vector.load %arg4[%c560, %c0_105] : memref<1632x128xf32, #tpu.memory_space<vmem>>, vector<1x32xf32>
    %293 = vector.broadcast %292 : vector<1x32xf32> to vector<8x32xf32>
    %294 = arith.addf %291, %293 : vector<8x32xf32>
    %c568 = arith.constant 568 : index
    %c0_106 = arith.constant 0 : index
    %295 = vector.load %arg4[%c568, %c0_106] : memref<1632x128xf32, #tpu.memory_space<vmem>>, vector<1x32xf32>
    %c576 = arith.constant 576 : index
    %c0_107 = arith.constant 0 : index
    %296 = vector.load %arg4[%c576, %c0_107] : memref<1632x128xf32, #tpu.memory_space<vmem>>, vector<1x32xf32>
    %cst_108 = arith.constant dense<0.000000e+00> : vector<8xf32>
    %297 = vector.multi_reduction <add>, %294, %cst_108 [1] : vector<8x32xf32> to vector<8xf32>
    %298 = vector.shape_cast %297 : vector<8xf32> to vector<8x1xf32>
    %cst_109 = arith.constant 3.200000e+01 : f32
    %299 = vector.broadcast %cst_109 : f32 to vector<8x1xf32>
    %300 = arith.divf %298, %299 : vector<8x1xf32>
    %301 = vector.broadcast %300 : vector<8x1xf32> to vector<8x32xf32>
    %302 = arith.subf %294, %301 : vector<8x32xf32>
    %303 = arith.mulf %302, %302 : vector<8x32xf32>
    %cst_110 = arith.constant dense<0.000000e+00> : vector<8xf32>
    %304 = vector.multi_reduction <add>, %303, %cst_110 [1] : vector<8x32xf32> to vector<8xf32>
    %305 = vector.shape_cast %304 : vector<8xf32> to vector<8x1xf32>
    %cst_111 = arith.constant 3.200000e+01 : f32
    %306 = vector.broadcast %cst_111 : f32 to vector<8x1xf32>
    %307 = arith.divf %305, %306 : vector<8x1xf32>
    %308 = vector.broadcast %300 : vector<8x1xf32> to vector<8x32xf32>
    %309 = arith.subf %294, %308 : vector<8x32xf32>
    %cst_112 = arith.constant 9.99999997E-7 : f32
    %310 = vector.broadcast %cst_112 : f32 to vector<8x1xf32>
    %311 = arith.addf %307, %310 : vector<8x1xf32>
    %312 = math.rsqrt %311 : vector<8x1xf32>
    %313 = vector.broadcast %312 : vector<8x1xf32> to vector<8x32xf32>
    %314 = arith.mulf %309, %313 : vector<8x32xf32>
    %315 = vector.broadcast %295 : vector<1x32xf32> to vector<8x32xf32>
    %316 = arith.mulf %314, %315 : vector<8x32xf32>
    %317 = vector.broadcast %296 : vector<1x32xf32> to vector<8x32xf32>
    %318 = arith.addf %316, %317 : vector<8x32xf32>
    %c584 = arith.constant 584 : index
    %c0_113 = arith.constant 0 : index
    %319 = vector.load %arg4[%c584, %c0_113] : memref<1632x128xf32, #tpu.memory_space<vmem>>, vector<32x128xf32>
    %cst_114 = arith.constant dense<0.000000e+00> : vector<8x128xf32>
    %320 = tpu.matmul %318, %319, %cst_114 {dimension_numbers = #tpu.dot_dimension_numbers<[1], [0], [0], [1], [0, 0, 1, 1], [], []>} : vector<8x32xf32>, vector<32x128xf32>, vector<8x128xf32> -> vector<8x128xf32>
    %c616 = arith.constant 616 : index
    %c0_115 = arith.constant 0 : index
    %321 = vector.load %arg4[%c616, %c0_115] : memref<1632x128xf32, #tpu.memory_space<vmem>>, vector<1x128xf32>
    %322 = vector.broadcast %321 : vector<1x128xf32> to vector<8x128xf32>
    %323 = arith.addf %320, %322 : vector<8x128xf32>
    %cst_116 = arith.constant 5.000000e-01 : f32
    %324 = vector.broadcast %cst_116 : f32 to vector<8x128xf32>
    %325 = arith.mulf %324, %323 : vector<8x128xf32>
    %cst_117 = arith.constant 0.707106769 : f32
    %326 = vector.broadcast %cst_117 : f32 to vector<8x128xf32>
    %327 = arith.mulf %323, %326 : vector<8x128xf32>
    %328 = math.erf %327 : vector<8x128xf32>
    %cst_118 = arith.constant 1.000000e+00 : f32
    %329 = vector.broadcast %cst_118 : f32 to vector<8x128xf32>
    %330 = arith.addf %329, %328 : vector<8x128xf32>
    %331 = arith.mulf %325, %330 : vector<8x128xf32>
    %c624 = arith.constant 624 : index
    %c0_119 = arith.constant 0 : index
    %332 = vector.load %arg4[%c624, %c0_119] : memref<1632x128xf32, #tpu.memory_space<vmem>>, vector<128x32xf32>
    %cst_120 = arith.constant dense<0.000000e+00> : vector<8x32xf32>
    %333 = tpu.matmul %331, %332, %cst_120 {dimension_numbers = #tpu.dot_dimension_numbers<[1], [0], [0], [1], [0, 0, 1, 1], [], []>} : vector<8x128xf32>, vector<128x32xf32>, vector<8x32xf32> -> vector<8x32xf32>
    %c752 = arith.constant 752 : index
    %c0_121 = arith.constant 0 : index
    %334 = vector.load %arg4[%c752, %c0_121] : memref<1632x128xf32, #tpu.memory_space<vmem>>, vector<1x32xf32>
    %335 = vector.broadcast %334 : vector<1x32xf32> to vector<8x32xf32>
    %336 = arith.addf %333, %335 : vector<8x32xf32>
    %337 = arith.addf %294, %336 : vector<8x32xf32>
    %c760 = arith.constant 760 : index
    %c0_122 = arith.constant 0 : index
    %338 = vector.load %arg4[%c760, %c0_122] : memref<1632x128xf32, #tpu.memory_space<vmem>>, vector<1x32xf32>
    %c768 = arith.constant 768 : index
    %c0_123 = arith.constant 0 : index
    %339 = vector.load %arg4[%c768, %c0_123] : memref<1632x128xf32, #tpu.memory_space<vmem>>, vector<1x32xf32>
    %cst_124 = arith.constant dense<0.000000e+00> : vector<8xf32>
    %340 = vector.multi_reduction <add>, %337, %cst_124 [1] : vector<8x32xf32> to vector<8xf32>
    %341 = vector.shape_cast %340 : vector<8xf32> to vector<8x1xf32>
    %cst_125 = arith.constant 3.200000e+01 : f32
    %342 = vector.broadcast %cst_125 : f32 to vector<8x1xf32>
    %343 = arith.divf %341, %342 : vector<8x1xf32>
    %344 = vector.broadcast %343 : vector<8x1xf32> to vector<8x32xf32>
    %345 = arith.subf %337, %344 : vector<8x32xf32>
    %346 = arith.mulf %345, %345 : vector<8x32xf32>
    %cst_126 = arith.constant dense<0.000000e+00> : vector<8xf32>
    %347 = vector.multi_reduction <add>, %346, %cst_126 [1] : vector<8x32xf32> to vector<8xf32>
    %348 = vector.shape_cast %347 : vector<8xf32> to vector<8x1xf32>
    %cst_127 = arith.constant 3.200000e+01 : f32
    %349 = vector.broadcast %cst_127 : f32 to vector<8x1xf32>
    %350 = arith.divf %348, %349 : vector<8x1xf32>
    %351 = vector.broadcast %343 : vector<8x1xf32> to vector<8x32xf32>
    %352 = arith.subf %337, %351 : vector<8x32xf32>
    %cst_128 = arith.constant 9.99999997E-7 : f32
    %353 = vector.broadcast %cst_128 : f32 to vector<8x1xf32>
    %354 = arith.addf %350, %353 : vector<8x1xf32>
    %355 = math.rsqrt %354 : vector<8x1xf32>
    %356 = vector.broadcast %355 : vector<8x1xf32> to vector<8x32xf32>
    %357 = arith.mulf %352, %356 : vector<8x32xf32>
    %358 = vector.broadcast %338 : vector<1x32xf32> to vector<8x32xf32>
    %359 = arith.mulf %357, %358 : vector<8x32xf32>
    %360 = vector.broadcast %339 : vector<1x32xf32> to vector<8x32xf32>
    %361 = arith.addf %359, %360 : vector<8x32xf32>
    %c776 = arith.constant 776 : index
    %c0_129 = arith.constant 0 : index
    %362 = vector.load %arg4[%c776, %c0_129] : memref<1632x128xf32, #tpu.memory_space<vmem>>, vector<32x32xf32>
    %cst_130 = arith.constant dense<0.000000e+00> : vector<8x32xf32>
    %363 = tpu.matmul %361, %362, %cst_130 {dimension_numbers = #tpu.dot_dimension_numbers<[1], [0], [0], [1], [0, 0, 1, 1], [], []>} : vector<8x32xf32>, vector<32x32xf32>, vector<8x32xf32> -> vector<8x32xf32>
    %c808 = arith.constant 808 : index
    %c0_131 = arith.constant 0 : index
    %364 = vector.load %arg4[%c808, %c0_131] : memref<1632x128xf32, #tpu.memory_space<vmem>>, vector<1x32xf32>
    %365 = vector.broadcast %364 : vector<1x32xf32> to vector<8x32xf32>
    %366 = arith.addf %363, %365 : vector<8x32xf32>
    %cst_132 = arith.constant dense<0.000000e+00> : vector<16x32xf32>
    %367 = tpu.matmul %2, %366, %cst_132 {dimension_numbers = #tpu.dot_dimension_numbers<[1], [0], [0], [1], [0, 0, 1, 1], [], []>} : vector<16x8xf32>, vector<8x32xf32>, vector<16x32xf32> -> vector<16x32xf32>
    %cst_133 = arith.constant dense<0.000000e+00> : vector<16xf32>
    %368 = vector.multi_reduction <add>, %2, %cst_133 [1] : vector<16x8xf32> to vector<16xf32>
    %369 = vector.shape_cast %368 : vector<16xf32> to vector<16x1xf32>
    %cst_134 = arith.constant 1.000000e+00 : f32
    %370 = vector.broadcast %cst_134 : f32 to vector<16x1xf32>
    %371 = arith.subf %370, %369 : vector<16x1xf32>
    %c816 = arith.constant 816 : index
    %c0_135 = arith.constant 0 : index
    %372 = vector.load %arg4[%c816, %c0_135] : memref<1632x128xf32, #tpu.memory_space<vmem>>, vector<1x32xf32>
    %373 = vector.broadcast %371 : vector<16x1xf32> to vector<16x32xf32>
    %374 = vector.broadcast %372 : vector<1x32xf32> to vector<16x32xf32>
    %375 = arith.mulf %373, %374 : vector<16x32xf32>
    %376 = arith.addf %367, %375 : vector<16x32xf32>
    %c824 = arith.constant 824 : index
    %c0_136 = arith.constant 0 : index
    %377 = vector.load %arg4[%c824, %c0_136] : memref<1632x128xf32, #tpu.memory_space<vmem>>, vector<16x32xf32>
    %378 = arith.addf %376, %377 : vector<16x32xf32>
    %379 = tpu.iota {dimensions = array<i32: 1>} : vector<1x16xi32>
    %c9_i32 = arith.constant 9 : i32
    %380 = vector.broadcast %c9_i32 : i32 to vector<1x16xi32>
    %381 = arith.cmpi slt, %379, %380 : vector<1x16xi32>
    %cst_137 = arith.constant 0.000000e+00 : f32
    %cst_138 = arith.constant -1.000000e+30 : f32
    %382 = vector.broadcast %cst_137 : f32 to vector<1x16xf32>
    %383 = vector.broadcast %cst_138 : f32 to vector<1x16xf32>
    %384 = arith.select %381, %382, %383 : vector<1x16xi1>, vector<1x16xf32>
    %c840 = arith.constant 840 : index
    %c0_139 = arith.constant 0 : index
    %385 = vector.load %arg4[%c840, %c0_139] : memref<1632x128xf32, #tpu.memory_space<vmem>>, vector<1x32xf32>
    %c848 = arith.constant 848 : index
    %c0_140 = arith.constant 0 : index
    %386 = vector.load %arg4[%c848, %c0_140] : memref<1632x128xf32, #tpu.memory_space<vmem>>, vector<1x32xf32>
    %cst_141 = arith.constant dense<0.000000e+00> : vector<16xf32>
    %387 = vector.multi_reduction <add>, %378, %cst_141 [1] : vector<16x32xf32> to vector<16xf32>
    %388 = vector.shape_cast %387 : vector<16xf32> to vector<16x1xf32>
    %cst_142 = arith.constant 3.200000e+01 : f32
    %389 = vector.broadcast %cst_142 : f32 to vector<16x1xf32>
    %390 = arith.divf %388, %389 : vector<16x1xf32>
    %391 = vector.broadcast %390 : vector<16x1xf32> to vector<16x32xf32>
    %392 = arith.subf %378, %391 : vector<16x32xf32>
    %393 = arith.mulf %392, %392 : vector<16x32xf32>
    %cst_143 = arith.constant dense<0.000000e+00> : vector<16xf32>
    %394 = vector.multi_reduction <add>, %393, %cst_143 [1] : vector<16x32xf32> to vector<16xf32>
    %395 = vector.shape_cast %394 : vector<16xf32> to vector<16x1xf32>
    %cst_144 = arith.constant 3.200000e+01 : f32
    %396 = vector.broadcast %cst_144 : f32 to vector<16x1xf32>
    %397 = arith.divf %395, %396 : vector<16x1xf32>
    %398 = vector.broadcast %390 : vector<16x1xf32> to vector<16x32xf32>
    %399 = arith.subf %378, %398 : vector<16x32xf32>
    %cst_145 = arith.constant 9.99999997E-7 : f32
    %400 = vector.broadcast %cst_145 : f32 to vector<16x1xf32>
    %401 = arith.addf %397, %400 : vector<16x1xf32>
    %402 = math.rsqrt %401 : vector<16x1xf32>
    %403 = vector.broadcast %402 : vector<16x1xf32> to vector<16x32xf32>
    %404 = arith.mulf %399, %403 : vector<16x32xf32>
    %405 = vector.broadcast %385 : vector<1x32xf32> to vector<16x32xf32>
    %406 = arith.mulf %404, %405 : vector<16x32xf32>
    %407 = vector.broadcast %386 : vector<1x32xf32> to vector<16x32xf32>
    %408 = arith.addf %406, %407 : vector<16x32xf32>
    %c856 = arith.constant 856 : index
    %c0_146 = arith.constant 0 : index
    %409 = vector.load %arg4[%c856, %c0_146] : memref<1632x128xf32, #tpu.memory_space<vmem>>, vector<32x32xf32>
    %cst_147 = arith.constant dense<0.000000e+00> : vector<16x32xf32>
    %410 = tpu.matmul %408, %409, %cst_147 {dimension_numbers = #tpu.dot_dimension_numbers<[1], [0], [0], [1], [0, 0, 1, 1], [], []>} : vector<16x32xf32>, vector<32x32xf32>, vector<16x32xf32> -> vector<16x32xf32>
    %c888 = arith.constant 888 : index
    %c0_148 = arith.constant 0 : index
    %411 = vector.load %arg4[%c888, %c0_148] : memref<1632x128xf32, #tpu.memory_space<vmem>>, vector<1x32xf32>
    %412 = vector.broadcast %411 : vector<1x32xf32> to vector<16x32xf32>
    %413 = arith.addf %410, %412 : vector<16x32xf32>
    %c896 = arith.constant 896 : index
    %c0_149 = arith.constant 0 : index
    %414 = vector.load %arg4[%c896, %c0_149] : memref<1632x128xf32, #tpu.memory_space<vmem>>, vector<32x32xf32>
    %cst_150 = arith.constant dense<0.000000e+00> : vector<16x32xf32>
    %415 = tpu.matmul %408, %414, %cst_150 {dimension_numbers = #tpu.dot_dimension_numbers<[1], [0], [0], [1], [0, 0, 1, 1], [], []>} : vector<16x32xf32>, vector<32x32xf32>, vector<16x32xf32> -> vector<16x32xf32>
    %c928 = arith.constant 928 : index
    %c0_151 = arith.constant 0 : index
    %416 = vector.load %arg4[%c928, %c0_151] : memref<1632x128xf32, #tpu.memory_space<vmem>>, vector<1x32xf32>
    %417 = vector.broadcast %416 : vector<1x32xf32> to vector<16x32xf32>
    %418 = arith.addf %415, %417 : vector<16x32xf32>
    %c936 = arith.constant 936 : index
    %c0_152 = arith.constant 0 : index
    %419 = vector.load %arg4[%c936, %c0_152] : memref<1632x128xf32, #tpu.memory_space<vmem>>, vector<32x32xf32>
    %cst_153 = arith.constant dense<0.000000e+00> : vector<16x32xf32>
    %420 = tpu.matmul %408, %419, %cst_153 {dimension_numbers = #tpu.dot_dimension_numbers<[1], [0], [0], [1], [0, 0, 1, 1], [], []>} : vector<16x32xf32>, vector<32x32xf32>, vector<16x32xf32> -> vector<16x32xf32>
    %c968 = arith.constant 968 : index
    %c0_154 = arith.constant 0 : index
    %421 = vector.load %arg4[%c968, %c0_154] : memref<1632x128xf32, #tpu.memory_space<vmem>>, vector<1x32xf32>
    %422 = vector.broadcast %421 : vector<1x32xf32> to vector<16x32xf32>
    %423 = arith.addf %420, %422 : vector<16x32xf32>
    %424 = vector.extract_strided_slice %413 {offsets = [0, 0], sizes = [16, 8], strides = [1, 1]} : vector<16x32xf32> to vector<16x8xf32>
    %425 = vector.extract_strided_slice %418 {offsets = [0, 0], sizes = [16, 8], strides = [1, 1]} : vector<16x32xf32> to vector<16x8xf32>
    %cst_155 = arith.constant dense<0.000000e+00> : vector<16x16xf32>
    %426 = tpu.matmul %424, %425, %cst_155 {dimension_numbers = #tpu.dot_dimension_numbers<[1], [1], [0], [0], [0, 0, 1, 0], [], []>} : vector<16x8xf32>, vector<16x8xf32>, vector<16x16xf32> -> vector<16x16xf32>
    %cst_156 = arith.constant 0.353553385 : f32
    %427 = vector.broadcast %cst_156 : f32 to vector<16x16xf32>
    %428 = arith.mulf %426, %427 : vector<16x16xf32>
    %429 = vector.broadcast %384 : vector<1x16xf32> to vector<16x16xf32>
    %430 = arith.addf %428, %429 : vector<16x16xf32>
    %cst_157 = arith.constant dense<0xFF800000> : vector<16xf32>
    %431 = vector.multi_reduction <maximumf>, %430, %cst_157 [1] : vector<16x16xf32> to vector<16xf32>
    %432 = vector.shape_cast %431 : vector<16xf32> to vector<16x1xf32>
    %433 = vector.broadcast %432 : vector<16x1xf32> to vector<16x16xf32>
    %434 = arith.subf %430, %433 : vector<16x16xf32>
    %435 = math.exp %434 : vector<16x16xf32>
    %cst_158 = arith.constant dense<0.000000e+00> : vector<16xf32>
    %436 = vector.multi_reduction <add>, %435, %cst_158 [1] : vector<16x16xf32> to vector<16xf32>
    %437 = vector.shape_cast %436 : vector<16xf32> to vector<16x1xf32>
    %438 = vector.broadcast %437 : vector<16x1xf32> to vector<16x16xf32>
    %439 = arith.divf %435, %438 : vector<16x16xf32>
    %440 = vector.extract_strided_slice %423 {offsets = [0, 0], sizes = [16, 8], strides = [1, 1]} : vector<16x32xf32> to vector<16x8xf32>
    %cst_159 = arith.constant dense<0.000000e+00> : vector<16x8xf32>
    %441 = tpu.matmul %439, %440, %cst_159 {dimension_numbers = #tpu.dot_dimension_numbers<[1], [0], [0], [1], [0, 0, 1, 1], [], []>} : vector<16x16xf32>, vector<16x8xf32>, vector<16x8xf32> -> vector<16x8xf32>
    %442 = vector.extract_strided_slice %413 {offsets = [0, 8], sizes = [16, 8], strides = [1, 1]} : vector<16x32xf32> to vector<16x8xf32>
    %443 = vector.extract_strided_slice %418 {offsets = [0, 8], sizes = [16, 8], strides = [1, 1]} : vector<16x32xf32> to vector<16x8xf32>
    %cst_160 = arith.constant dense<0.000000e+00> : vector<16x16xf32>
    %444 = tpu.matmul %442, %443, %cst_160 {dimension_numbers = #tpu.dot_dimension_numbers<[1], [1], [0], [0], [0, 0, 1, 0], [], []>} : vector<16x8xf32>, vector<16x8xf32>, vector<16x16xf32> -> vector<16x16xf32>
    %cst_161 = arith.constant 0.353553385 : f32
    %445 = vector.broadcast %cst_161 : f32 to vector<16x16xf32>
    %446 = arith.mulf %444, %445 : vector<16x16xf32>
    %447 = vector.broadcast %384 : vector<1x16xf32> to vector<16x16xf32>
    %448 = arith.addf %446, %447 : vector<16x16xf32>
    %cst_162 = arith.constant dense<0xFF800000> : vector<16xf32>
    %449 = vector.multi_reduction <maximumf>, %448, %cst_162 [1] : vector<16x16xf32> to vector<16xf32>
    %450 = vector.shape_cast %449 : vector<16xf32> to vector<16x1xf32>
    %451 = vector.broadcast %450 : vector<16x1xf32> to vector<16x16xf32>
    %452 = arith.subf %448, %451 : vector<16x16xf32>
    %453 = math.exp %452 : vector<16x16xf32>
    %cst_163 = arith.constant dense<0.000000e+00> : vector<16xf32>
    %454 = vector.multi_reduction <add>, %453, %cst_163 [1] : vector<16x16xf32> to vector<16xf32>
    %455 = vector.shape_cast %454 : vector<16xf32> to vector<16x1xf32>
    %456 = vector.broadcast %455 : vector<16x1xf32> to vector<16x16xf32>
    %457 = arith.divf %453, %456 : vector<16x16xf32>
    %458 = vector.extract_strided_slice %423 {offsets = [0, 8], sizes = [16, 8], strides = [1, 1]} : vector<16x32xf32> to vector<16x8xf32>
    %cst_164 = arith.constant dense<0.000000e+00> : vector<16x8xf32>
    %459 = tpu.matmul %457, %458, %cst_164 {dimension_numbers = #tpu.dot_dimension_numbers<[1], [0], [0], [1], [0, 0, 1, 1], [], []>} : vector<16x16xf32>, vector<16x8xf32>, vector<16x8xf32> -> vector<16x8xf32>
    %460 = vector.extract_strided_slice %413 {offsets = [0, 16], sizes = [16, 8], strides = [1, 1]} : vector<16x32xf32> to vector<16x8xf32>
    %461 = vector.extract_strided_slice %418 {offsets = [0, 16], sizes = [16, 8], strides = [1, 1]} : vector<16x32xf32> to vector<16x8xf32>
    %cst_165 = arith.constant dense<0.000000e+00> : vector<16x16xf32>
    %462 = tpu.matmul %460, %461, %cst_165 {dimension_numbers = #tpu.dot_dimension_numbers<[1], [1], [0], [0], [0, 0, 1, 0], [], []>} : vector<16x8xf32>, vector<16x8xf32>, vector<16x16xf32> -> vector<16x16xf32>
    %cst_166 = arith.constant 0.353553385 : f32
    %463 = vector.broadcast %cst_166 : f32 to vector<16x16xf32>
    %464 = arith.mulf %462, %463 : vector<16x16xf32>
    %465 = vector.broadcast %384 : vector<1x16xf32> to vector<16x16xf32>
    %466 = arith.addf %464, %465 : vector<16x16xf32>
    %cst_167 = arith.constant dense<0xFF800000> : vector<16xf32>
    %467 = vector.multi_reduction <maximumf>, %466, %cst_167 [1] : vector<16x16xf32> to vector<16xf32>
    %468 = vector.shape_cast %467 : vector<16xf32> to vector<16x1xf32>
    %469 = vector.broadcast %468 : vector<16x1xf32> to vector<16x16xf32>
    %470 = arith.subf %466, %469 : vector<16x16xf32>
    %471 = math.exp %470 : vector<16x16xf32>
    %cst_168 = arith.constant dense<0.000000e+00> : vector<16xf32>
    %472 = vector.multi_reduction <add>, %471, %cst_168 [1] : vector<16x16xf32> to vector<16xf32>
    %473 = vector.shape_cast %472 : vector<16xf32> to vector<16x1xf32>
    %474 = vector.broadcast %473 : vector<16x1xf32> to vector<16x16xf32>
    %475 = arith.divf %471, %474 : vector<16x16xf32>
    %476 = vector.extract_strided_slice %423 {offsets = [0, 16], sizes = [16, 8], strides = [1, 1]} : vector<16x32xf32> to vector<16x8xf32>
    %cst_169 = arith.constant dense<0.000000e+00> : vector<16x8xf32>
    %477 = tpu.matmul %475, %476, %cst_169 {dimension_numbers = #tpu.dot_dimension_numbers<[1], [0], [0], [1], [0, 0, 1, 1], [], []>} : vector<16x16xf32>, vector<16x8xf32>, vector<16x8xf32> -> vector<16x8xf32>
    %478 = vector.extract_strided_slice %413 {offsets = [0, 24], sizes = [16, 8], strides = [1, 1]} : vector<16x32xf32> to vector<16x8xf32>
    %479 = vector.extract_strided_slice %418 {offsets = [0, 24], sizes = [16, 8], strides = [1, 1]} : vector<16x32xf32> to vector<16x8xf32>
    %cst_170 = arith.constant dense<0.000000e+00> : vector<16x16xf32>
    %480 = tpu.matmul %478, %479, %cst_170 {dimension_numbers = #tpu.dot_dimension_numbers<[1], [1], [0], [0], [0, 0, 1, 0], [], []>} : vector<16x8xf32>, vector<16x8xf32>, vector<16x16xf32> -> vector<16x16xf32>
    %cst_171 = arith.constant 0.353553385 : f32
    %481 = vector.broadcast %cst_171 : f32 to vector<16x16xf32>
    %482 = arith.mulf %480, %481 : vector<16x16xf32>
    %483 = vector.broadcast %384 : vector<1x16xf32> to vector<16x16xf32>
    %484 = arith.addf %482, %483 : vector<16x16xf32>
    %cst_172 = arith.constant dense<0xFF800000> : vector<16xf32>
    %485 = vector.multi_reduction <maximumf>, %484, %cst_172 [1] : vector<16x16xf32> to vector<16xf32>
    %486 = vector.shape_cast %485 : vector<16xf32> to vector<16x1xf32>
    %487 = vector.broadcast %486 : vector<16x1xf32> to vector<16x16xf32>
    %488 = arith.subf %484, %487 : vector<16x16xf32>
    %489 = math.exp %488 : vector<16x16xf32>
    %cst_173 = arith.constant dense<0.000000e+00> : vector<16xf32>
    %490 = vector.multi_reduction <add>, %489, %cst_173 [1] : vector<16x16xf32> to vector<16xf32>
    %491 = vector.shape_cast %490 : vector<16xf32> to vector<16x1xf32>
    %492 = vector.broadcast %491 : vector<16x1xf32> to vector<16x16xf32>
    %493 = arith.divf %489, %492 : vector<16x16xf32>
    %494 = vector.extract_strided_slice %423 {offsets = [0, 24], sizes = [16, 8], strides = [1, 1]} : vector<16x32xf32> to vector<16x8xf32>
    %cst_174 = arith.constant dense<0.000000e+00> : vector<16x8xf32>
    %495 = tpu.matmul %493, %494, %cst_174 {dimension_numbers = #tpu.dot_dimension_numbers<[1], [0], [0], [1], [0, 0, 1, 1], [], []>} : vector<16x16xf32>, vector<16x8xf32>, vector<16x8xf32> -> vector<16x8xf32>
    %496 = tpu.concatenate %441, %459, %477, %495 in 1 : vector<16x8xf32>, vector<16x8xf32>, vector<16x8xf32>, vector<16x8xf32> -> vector<16x32xf32>
    %c976 = arith.constant 976 : index
    %c0_175 = arith.constant 0 : index
    %497 = vector.load %arg4[%c976, %c0_175] : memref<1632x128xf32, #tpu.memory_space<vmem>>, vector<32x32xf32>
    %cst_176 = arith.constant dense<0.000000e+00> : vector<16x32xf32>
    %498 = tpu.matmul %496, %497, %cst_176 {dimension_numbers = #tpu.dot_dimension_numbers<[1], [0], [0], [1], [0, 0, 1, 1], [], []>} : vector<16x32xf32>, vector<32x32xf32>, vector<16x32xf32> -> vector<16x32xf32>
    %499 = arith.addf %378, %498 : vector<16x32xf32>
    %c1008 = arith.constant 1008 : index
    %c0_177 = arith.constant 0 : index
    %500 = vector.load %arg4[%c1008, %c0_177] : memref<1632x128xf32, #tpu.memory_space<vmem>>, vector<1x32xf32>
    %501 = vector.broadcast %500 : vector<1x32xf32> to vector<16x32xf32>
    %502 = arith.addf %499, %501 : vector<16x32xf32>
    %c1016 = arith.constant 1016 : index
    %c0_178 = arith.constant 0 : index
    %503 = vector.load %arg4[%c1016, %c0_178] : memref<1632x128xf32, #tpu.memory_space<vmem>>, vector<1x32xf32>
    %c1024 = arith.constant 1024 : index
    %c0_179 = arith.constant 0 : index
    %504 = vector.load %arg4[%c1024, %c0_179] : memref<1632x128xf32, #tpu.memory_space<vmem>>, vector<1x32xf32>
    %cst_180 = arith.constant dense<0.000000e+00> : vector<16xf32>
    %505 = vector.multi_reduction <add>, %502, %cst_180 [1] : vector<16x32xf32> to vector<16xf32>
    %506 = vector.shape_cast %505 : vector<16xf32> to vector<16x1xf32>
    %cst_181 = arith.constant 3.200000e+01 : f32
    %507 = vector.broadcast %cst_181 : f32 to vector<16x1xf32>
    %508 = arith.divf %506, %507 : vector<16x1xf32>
    %509 = vector.broadcast %508 : vector<16x1xf32> to vector<16x32xf32>
    %510 = arith.subf %502, %509 : vector<16x32xf32>
    %511 = arith.mulf %510, %510 : vector<16x32xf32>
    %cst_182 = arith.constant dense<0.000000e+00> : vector<16xf32>
    %512 = vector.multi_reduction <add>, %511, %cst_182 [1] : vector<16x32xf32> to vector<16xf32>
    %513 = vector.shape_cast %512 : vector<16xf32> to vector<16x1xf32>
    %cst_183 = arith.constant 3.200000e+01 : f32
    %514 = vector.broadcast %cst_183 : f32 to vector<16x1xf32>
    %515 = arith.divf %513, %514 : vector<16x1xf32>
    %516 = vector.broadcast %508 : vector<16x1xf32> to vector<16x32xf32>
    %517 = arith.subf %502, %516 : vector<16x32xf32>
    %cst_184 = arith.constant 9.99999997E-7 : f32
    %518 = vector.broadcast %cst_184 : f32 to vector<16x1xf32>
    %519 = arith.addf %515, %518 : vector<16x1xf32>
    %520 = math.rsqrt %519 : vector<16x1xf32>
    %521 = vector.broadcast %520 : vector<16x1xf32> to vector<16x32xf32>
    %522 = arith.mulf %517, %521 : vector<16x32xf32>
    %523 = vector.broadcast %503 : vector<1x32xf32> to vector<16x32xf32>
    %524 = arith.mulf %522, %523 : vector<16x32xf32>
    %525 = vector.broadcast %504 : vector<1x32xf32> to vector<16x32xf32>
    %526 = arith.addf %524, %525 : vector<16x32xf32>
    %c1032 = arith.constant 1032 : index
    %c0_185 = arith.constant 0 : index
    %527 = vector.load %arg4[%c1032, %c0_185] : memref<1632x128xf32, #tpu.memory_space<vmem>>, vector<32x128xf32>
    %cst_186 = arith.constant dense<0.000000e+00> : vector<16x128xf32>
    %528 = tpu.matmul %526, %527, %cst_186 {dimension_numbers = #tpu.dot_dimension_numbers<[1], [0], [0], [1], [0, 0, 1, 1], [], []>} : vector<16x32xf32>, vector<32x128xf32>, vector<16x128xf32> -> vector<16x128xf32>
    %c1064 = arith.constant 1064 : index
    %c0_187 = arith.constant 0 : index
    %529 = vector.load %arg4[%c1064, %c0_187] : memref<1632x128xf32, #tpu.memory_space<vmem>>, vector<1x128xf32>
    %530 = vector.broadcast %529 : vector<1x128xf32> to vector<16x128xf32>
    %531 = arith.addf %528, %530 : vector<16x128xf32>
    %cst_188 = arith.constant 5.000000e-01 : f32
    %532 = vector.broadcast %cst_188 : f32 to vector<16x128xf32>
    %533 = arith.mulf %532, %531 : vector<16x128xf32>
    %cst_189 = arith.constant 0.707106769 : f32
    %534 = vector.broadcast %cst_189 : f32 to vector<16x128xf32>
    %535 = arith.mulf %531, %534 : vector<16x128xf32>
    %536 = math.erf %535 : vector<16x128xf32>
    %cst_190 = arith.constant 1.000000e+00 : f32
    %537 = vector.broadcast %cst_190 : f32 to vector<16x128xf32>
    %538 = arith.addf %537, %536 : vector<16x128xf32>
    %539 = arith.mulf %533, %538 : vector<16x128xf32>
    %c1072 = arith.constant 1072 : index
    %c0_191 = arith.constant 0 : index
    %540 = vector.load %arg4[%c1072, %c0_191] : memref<1632x128xf32, #tpu.memory_space<vmem>>, vector<128x32xf32>
    %cst_192 = arith.constant dense<0.000000e+00> : vector<16x32xf32>
    %541 = tpu.matmul %539, %540, %cst_192 {dimension_numbers = #tpu.dot_dimension_numbers<[1], [0], [0], [1], [0, 0, 1, 1], [], []>} : vector<16x128xf32>, vector<128x32xf32>, vector<16x32xf32> -> vector<16x32xf32>
    %c1200 = arith.constant 1200 : index
    %c0_193 = arith.constant 0 : index
    %542 = vector.load %arg4[%c1200, %c0_193] : memref<1632x128xf32, #tpu.memory_space<vmem>>, vector<1x32xf32>
    %543 = vector.broadcast %542 : vector<1x32xf32> to vector<16x32xf32>
    %544 = arith.addf %541, %543 : vector<16x32xf32>
    %545 = arith.addf %502, %544 : vector<16x32xf32>
    %c1208 = arith.constant 1208 : index
    %c0_194 = arith.constant 0 : index
    %546 = vector.load %arg4[%c1208, %c0_194] : memref<1632x128xf32, #tpu.memory_space<vmem>>, vector<1x32xf32>
    %c1216 = arith.constant 1216 : index
    %c0_195 = arith.constant 0 : index
    %547 = vector.load %arg4[%c1216, %c0_195] : memref<1632x128xf32, #tpu.memory_space<vmem>>, vector<1x32xf32>
    %cst_196 = arith.constant dense<0.000000e+00> : vector<16xf32>
    %548 = vector.multi_reduction <add>, %545, %cst_196 [1] : vector<16x32xf32> to vector<16xf32>
    %549 = vector.shape_cast %548 : vector<16xf32> to vector<16x1xf32>
    %cst_197 = arith.constant 3.200000e+01 : f32
    %550 = vector.broadcast %cst_197 : f32 to vector<16x1xf32>
    %551 = arith.divf %549, %550 : vector<16x1xf32>
    %552 = vector.broadcast %551 : vector<16x1xf32> to vector<16x32xf32>
    %553 = arith.subf %545, %552 : vector<16x32xf32>
    %554 = arith.mulf %553, %553 : vector<16x32xf32>
    %cst_198 = arith.constant dense<0.000000e+00> : vector<16xf32>
    %555 = vector.multi_reduction <add>, %554, %cst_198 [1] : vector<16x32xf32> to vector<16xf32>
    %556 = vector.shape_cast %555 : vector<16xf32> to vector<16x1xf32>
    %cst_199 = arith.constant 3.200000e+01 : f32
    %557 = vector.broadcast %cst_199 : f32 to vector<16x1xf32>
    %558 = arith.divf %556, %557 : vector<16x1xf32>
    %559 = vector.broadcast %551 : vector<16x1xf32> to vector<16x32xf32>
    %560 = arith.subf %545, %559 : vector<16x32xf32>
    %cst_200 = arith.constant 9.99999997E-7 : f32
    %561 = vector.broadcast %cst_200 : f32 to vector<16x1xf32>
    %562 = arith.addf %558, %561 : vector<16x1xf32>
    %563 = math.rsqrt %562 : vector<16x1xf32>
    %564 = vector.broadcast %563 : vector<16x1xf32> to vector<16x32xf32>
    %565 = arith.mulf %560, %564 : vector<16x32xf32>
    %566 = vector.broadcast %546 : vector<1x32xf32> to vector<16x32xf32>
    %567 = arith.mulf %565, %566 : vector<16x32xf32>
    %568 = vector.broadcast %547 : vector<1x32xf32> to vector<16x32xf32>
    %569 = arith.addf %567, %568 : vector<16x32xf32>
    %c1224 = arith.constant 1224 : index
    %c0_201 = arith.constant 0 : index
    %570 = vector.load %arg4[%c1224, %c0_201] : memref<1632x128xf32, #tpu.memory_space<vmem>>, vector<32x32xf32>
    %cst_202 = arith.constant dense<0.000000e+00> : vector<16x32xf32>
    %571 = tpu.matmul %569, %570, %cst_202 {dimension_numbers = #tpu.dot_dimension_numbers<[1], [0], [0], [1], [0, 0, 1, 1], [], []>} : vector<16x32xf32>, vector<32x32xf32>, vector<16x32xf32> -> vector<16x32xf32>
    %c1256 = arith.constant 1256 : index
    %c0_203 = arith.constant 0 : index
    %572 = vector.load %arg4[%c1256, %c0_203] : memref<1632x128xf32, #tpu.memory_space<vmem>>, vector<1x32xf32>
    %573 = vector.broadcast %572 : vector<1x32xf32> to vector<16x32xf32>
    %574 = arith.addf %571, %573 : vector<16x32xf32>
    %c1264 = arith.constant 1264 : index
    %c0_204 = arith.constant 0 : index
    %575 = vector.load %arg4[%c1264, %c0_204] : memref<1632x128xf32, #tpu.memory_space<vmem>>, vector<32x32xf32>
    %cst_205 = arith.constant dense<0.000000e+00> : vector<16x32xf32>
    %576 = tpu.matmul %569, %575, %cst_205 {dimension_numbers = #tpu.dot_dimension_numbers<[1], [0], [0], [1], [0, 0, 1, 1], [], []>} : vector<16x32xf32>, vector<32x32xf32>, vector<16x32xf32> -> vector<16x32xf32>
    %c1296 = arith.constant 1296 : index
    %c0_206 = arith.constant 0 : index
    %577 = vector.load %arg4[%c1296, %c0_206] : memref<1632x128xf32, #tpu.memory_space<vmem>>, vector<1x32xf32>
    %578 = vector.broadcast %577 : vector<1x32xf32> to vector<16x32xf32>
    %579 = arith.addf %576, %578 : vector<16x32xf32>
    %c1304 = arith.constant 1304 : index
    %c0_207 = arith.constant 0 : index
    %580 = vector.load %arg4[%c1304, %c0_207] : memref<1632x128xf32, #tpu.memory_space<vmem>>, vector<32x32xf32>
    %cst_208 = arith.constant dense<0.000000e+00> : vector<16x32xf32>
    %581 = tpu.matmul %569, %580, %cst_208 {dimension_numbers = #tpu.dot_dimension_numbers<[1], [0], [0], [1], [0, 0, 1, 1], [], []>} : vector<16x32xf32>, vector<32x32xf32>, vector<16x32xf32> -> vector<16x32xf32>
    %c1336 = arith.constant 1336 : index
    %c0_209 = arith.constant 0 : index
    %582 = vector.load %arg4[%c1336, %c0_209] : memref<1632x128xf32, #tpu.memory_space<vmem>>, vector<1x32xf32>
    %583 = vector.broadcast %582 : vector<1x32xf32> to vector<16x32xf32>
    %584 = arith.addf %581, %583 : vector<16x32xf32>
    %585 = vector.extract_strided_slice %574 {offsets = [0, 0], sizes = [16, 8], strides = [1, 1]} : vector<16x32xf32> to vector<16x8xf32>
    %586 = vector.extract_strided_slice %579 {offsets = [0, 0], sizes = [16, 8], strides = [1, 1]} : vector<16x32xf32> to vector<16x8xf32>
    %cst_210 = arith.constant dense<0.000000e+00> : vector<16x16xf32>
    %587 = tpu.matmul %585, %586, %cst_210 {dimension_numbers = #tpu.dot_dimension_numbers<[1], [1], [0], [0], [0, 0, 1, 0], [], []>} : vector<16x8xf32>, vector<16x8xf32>, vector<16x16xf32> -> vector<16x16xf32>
    %cst_211 = arith.constant 0.353553385 : f32
    %588 = vector.broadcast %cst_211 : f32 to vector<16x16xf32>
    %589 = arith.mulf %587, %588 : vector<16x16xf32>
    %590 = vector.broadcast %384 : vector<1x16xf32> to vector<16x16xf32>
    %591 = arith.addf %589, %590 : vector<16x16xf32>
    %cst_212 = arith.constant dense<0xFF800000> : vector<16xf32>
    %592 = vector.multi_reduction <maximumf>, %591, %cst_212 [1] : vector<16x16xf32> to vector<16xf32>
    %593 = vector.shape_cast %592 : vector<16xf32> to vector<16x1xf32>
    %594 = vector.broadcast %593 : vector<16x1xf32> to vector<16x16xf32>
    %595 = arith.subf %591, %594 : vector<16x16xf32>
    %596 = math.exp %595 : vector<16x16xf32>
    %cst_213 = arith.constant dense<0.000000e+00> : vector<16xf32>
    %597 = vector.multi_reduction <add>, %596, %cst_213 [1] : vector<16x16xf32> to vector<16xf32>
    %598 = vector.shape_cast %597 : vector<16xf32> to vector<16x1xf32>
    %599 = vector.broadcast %598 : vector<16x1xf32> to vector<16x16xf32>
    %600 = arith.divf %596, %599 : vector<16x16xf32>
    %601 = vector.extract_strided_slice %584 {offsets = [0, 0], sizes = [16, 8], strides = [1, 1]} : vector<16x32xf32> to vector<16x8xf32>
    %cst_214 = arith.constant dense<0.000000e+00> : vector<16x8xf32>
    %602 = tpu.matmul %600, %601, %cst_214 {dimension_numbers = #tpu.dot_dimension_numbers<[1], [0], [0], [1], [0, 0, 1, 1], [], []>} : vector<16x16xf32>, vector<16x8xf32>, vector<16x8xf32> -> vector<16x8xf32>
    %603 = vector.extract_strided_slice %574 {offsets = [0, 8], sizes = [16, 8], strides = [1, 1]} : vector<16x32xf32> to vector<16x8xf32>
    %604 = vector.extract_strided_slice %579 {offsets = [0, 8], sizes = [16, 8], strides = [1, 1]} : vector<16x32xf32> to vector<16x8xf32>
    %cst_215 = arith.constant dense<0.000000e+00> : vector<16x16xf32>
    %605 = tpu.matmul %603, %604, %cst_215 {dimension_numbers = #tpu.dot_dimension_numbers<[1], [1], [0], [0], [0, 0, 1, 0], [], []>} : vector<16x8xf32>, vector<16x8xf32>, vector<16x16xf32> -> vector<16x16xf32>
    %cst_216 = arith.constant 0.353553385 : f32
    %606 = vector.broadcast %cst_216 : f32 to vector<16x16xf32>
    %607 = arith.mulf %605, %606 : vector<16x16xf32>
    %608 = vector.broadcast %384 : vector<1x16xf32> to vector<16x16xf32>
    %609 = arith.addf %607, %608 : vector<16x16xf32>
    %cst_217 = arith.constant dense<0xFF800000> : vector<16xf32>
    %610 = vector.multi_reduction <maximumf>, %609, %cst_217 [1] : vector<16x16xf32> to vector<16xf32>
    %611 = vector.shape_cast %610 : vector<16xf32> to vector<16x1xf32>
    %612 = vector.broadcast %611 : vector<16x1xf32> to vector<16x16xf32>
    %613 = arith.subf %609, %612 : vector<16x16xf32>
    %614 = math.exp %613 : vector<16x16xf32>
    %cst_218 = arith.constant dense<0.000000e+00> : vector<16xf32>
    %615 = vector.multi_reduction <add>, %614, %cst_218 [1] : vector<16x16xf32> to vector<16xf32>
    %616 = vector.shape_cast %615 : vector<16xf32> to vector<16x1xf32>
    %617 = vector.broadcast %616 : vector<16x1xf32> to vector<16x16xf32>
    %618 = arith.divf %614, %617 : vector<16x16xf32>
    %619 = vector.extract_strided_slice %584 {offsets = [0, 8], sizes = [16, 8], strides = [1, 1]} : vector<16x32xf32> to vector<16x8xf32>
    %cst_219 = arith.constant dense<0.000000e+00> : vector<16x8xf32>
    %620 = tpu.matmul %618, %619, %cst_219 {dimension_numbers = #tpu.dot_dimension_numbers<[1], [0], [0], [1], [0, 0, 1, 1], [], []>} : vector<16x16xf32>, vector<16x8xf32>, vector<16x8xf32> -> vector<16x8xf32>
    %621 = vector.extract_strided_slice %574 {offsets = [0, 16], sizes = [16, 8], strides = [1, 1]} : vector<16x32xf32> to vector<16x8xf32>
    %622 = vector.extract_strided_slice %579 {offsets = [0, 16], sizes = [16, 8], strides = [1, 1]} : vector<16x32xf32> to vector<16x8xf32>
    %cst_220 = arith.constant dense<0.000000e+00> : vector<16x16xf32>
    %623 = tpu.matmul %621, %622, %cst_220 {dimension_numbers = #tpu.dot_dimension_numbers<[1], [1], [0], [0], [0, 0, 1, 0], [], []>} : vector<16x8xf32>, vector<16x8xf32>, vector<16x16xf32> -> vector<16x16xf32>
    %cst_221 = arith.constant 0.353553385 : f32
    %624 = vector.broadcast %cst_221 : f32 to vector<16x16xf32>
    %625 = arith.mulf %623, %624 : vector<16x16xf32>
    %626 = vector.broadcast %384 : vector<1x16xf32> to vector<16x16xf32>
    %627 = arith.addf %625, %626 : vector<16x16xf32>
    %cst_222 = arith.constant dense<0xFF800000> : vector<16xf32>
    %628 = vector.multi_reduction <maximumf>, %627, %cst_222 [1] : vector<16x16xf32> to vector<16xf32>
    %629 = vector.shape_cast %628 : vector<16xf32> to vector<16x1xf32>
    %630 = vector.broadcast %629 : vector<16x1xf32> to vector<16x16xf32>
    %631 = arith.subf %627, %630 : vector<16x16xf32>
    %632 = math.exp %631 : vector<16x16xf32>
    %cst_223 = arith.constant dense<0.000000e+00> : vector<16xf32>
    %633 = vector.multi_reduction <add>, %632, %cst_223 [1] : vector<16x16xf32> to vector<16xf32>
    %634 = vector.shape_cast %633 : vector<16xf32> to vector<16x1xf32>
    %635 = vector.broadcast %634 : vector<16x1xf32> to vector<16x16xf32>
    %636 = arith.divf %632, %635 : vector<16x16xf32>
    %637 = vector.extract_strided_slice %584 {offsets = [0, 16], sizes = [16, 8], strides = [1, 1]} : vector<16x32xf32> to vector<16x8xf32>
    %cst_224 = arith.constant dense<0.000000e+00> : vector<16x8xf32>
    %638 = tpu.matmul %636, %637, %cst_224 {dimension_numbers = #tpu.dot_dimension_numbers<[1], [0], [0], [1], [0, 0, 1, 1], [], []>} : vector<16x16xf32>, vector<16x8xf32>, vector<16x8xf32> -> vector<16x8xf32>
    %639 = vector.extract_strided_slice %574 {offsets = [0, 24], sizes = [16, 8], strides = [1, 1]} : vector<16x32xf32> to vector<16x8xf32>
    %640 = vector.extract_strided_slice %579 {offsets = [0, 24], sizes = [16, 8], strides = [1, 1]} : vector<16x32xf32> to vector<16x8xf32>
    %cst_225 = arith.constant dense<0.000000e+00> : vector<16x16xf32>
    %641 = tpu.matmul %639, %640, %cst_225 {dimension_numbers = #tpu.dot_dimension_numbers<[1], [1], [0], [0], [0, 0, 1, 0], [], []>} : vector<16x8xf32>, vector<16x8xf32>, vector<16x16xf32> -> vector<16x16xf32>
    %cst_226 = arith.constant 0.353553385 : f32
    %642 = vector.broadcast %cst_226 : f32 to vector<16x16xf32>
    %643 = arith.mulf %641, %642 : vector<16x16xf32>
    %644 = vector.broadcast %384 : vector<1x16xf32> to vector<16x16xf32>
    %645 = arith.addf %643, %644 : vector<16x16xf32>
    %cst_227 = arith.constant dense<0xFF800000> : vector<16xf32>
    %646 = vector.multi_reduction <maximumf>, %645, %cst_227 [1] : vector<16x16xf32> to vector<16xf32>
    %647 = vector.shape_cast %646 : vector<16xf32> to vector<16x1xf32>
    %648 = vector.broadcast %647 : vector<16x1xf32> to vector<16x16xf32>
    %649 = arith.subf %645, %648 : vector<16x16xf32>
    %650 = math.exp %649 : vector<16x16xf32>
    %cst_228 = arith.constant dense<0.000000e+00> : vector<16xf32>
    %651 = vector.multi_reduction <add>, %650, %cst_228 [1] : vector<16x16xf32> to vector<16xf32>
    %652 = vector.shape_cast %651 : vector<16xf32> to vector<16x1xf32>
    %653 = vector.broadcast %652 : vector<16x1xf32> to vector<16x16xf32>
    %654 = arith.divf %650, %653 : vector<16x16xf32>
    %655 = vector.extract_strided_slice %584 {offsets = [0, 24], sizes = [16, 8], strides = [1, 1]} : vector<16x32xf32> to vector<16x8xf32>
    %cst_229 = arith.constant dense<0.000000e+00> : vector<16x8xf32>
    %656 = tpu.matmul %654, %655, %cst_229 {dimension_numbers = #tpu.dot_dimension_numbers<[1], [0], [0], [1], [0, 0, 1, 1], [], []>} : vector<16x16xf32>, vector<16x8xf32>, vector<16x8xf32> -> vector<16x8xf32>
    %657 = tpu.concatenate %602, %620, %638, %656 in 1 : vector<16x8xf32>, vector<16x8xf32>, vector<16x8xf32>, vector<16x8xf32> -> vector<16x32xf32>
    %c1344 = arith.constant 1344 : index
    %c0_230 = arith.constant 0 : index
    %658 = vector.load %arg4[%c1344, %c0_230] : memref<1632x128xf32, #tpu.memory_space<vmem>>, vector<32x32xf32>
    %cst_231 = arith.constant dense<0.000000e+00> : vector<16x32xf32>
    %659 = tpu.matmul %657, %658, %cst_231 {dimension_numbers = #tpu.dot_dimension_numbers<[1], [0], [0], [1], [0, 0, 1, 1], [], []>} : vector<16x32xf32>, vector<32x32xf32>, vector<16x32xf32> -> vector<16x32xf32>
    %660 = arith.addf %545, %659 : vector<16x32xf32>
    %c1376 = arith.constant 1376 : index
    %c0_232 = arith.constant 0 : index
    %661 = vector.load %arg4[%c1376, %c0_232] : memref<1632x128xf32, #tpu.memory_space<vmem>>, vector<1x32xf32>
    %662 = vector.broadcast %661 : vector<1x32xf32> to vector<16x32xf32>
    %663 = arith.addf %660, %662 : vector<16x32xf32>
    %c1384 = arith.constant 1384 : index
    %c0_233 = arith.constant 0 : index
    %664 = vector.load %arg4[%c1384, %c0_233] : memref<1632x128xf32, #tpu.memory_space<vmem>>, vector<1x32xf32>
    %c1392 = arith.constant 1392 : index
    %c0_234 = arith.constant 0 : index
    %665 = vector.load %arg4[%c1392, %c0_234] : memref<1632x128xf32, #tpu.memory_space<vmem>>, vector<1x32xf32>
    %cst_235 = arith.constant dense<0.000000e+00> : vector<16xf32>
    %666 = vector.multi_reduction <add>, %663, %cst_235 [1] : vector<16x32xf32> to vector<16xf32>
    %667 = vector.shape_cast %666 : vector<16xf32> to vector<16x1xf32>
    %cst_236 = arith.constant 3.200000e+01 : f32
    %668 = vector.broadcast %cst_236 : f32 to vector<16x1xf32>
    %669 = arith.divf %667, %668 : vector<16x1xf32>
    %670 = vector.broadcast %669 : vector<16x1xf32> to vector<16x32xf32>
    %671 = arith.subf %663, %670 : vector<16x32xf32>
    %672 = arith.mulf %671, %671 : vector<16x32xf32>
    %cst_237 = arith.constant dense<0.000000e+00> : vector<16xf32>
    %673 = vector.multi_reduction <add>, %672, %cst_237 [1] : vector<16x32xf32> to vector<16xf32>
    %674 = vector.shape_cast %673 : vector<16xf32> to vector<16x1xf32>
    %cst_238 = arith.constant 3.200000e+01 : f32
    %675 = vector.broadcast %cst_238 : f32 to vector<16x1xf32>
    %676 = arith.divf %674, %675 : vector<16x1xf32>
    %677 = vector.broadcast %669 : vector<16x1xf32> to vector<16x32xf32>
    %678 = arith.subf %663, %677 : vector<16x32xf32>
    %cst_239 = arith.constant 9.99999997E-7 : f32
    %679 = vector.broadcast %cst_239 : f32 to vector<16x1xf32>
    %680 = arith.addf %676, %679 : vector<16x1xf32>
    %681 = math.rsqrt %680 : vector<16x1xf32>
    %682 = vector.broadcast %681 : vector<16x1xf32> to vector<16x32xf32>
    %683 = arith.mulf %678, %682 : vector<16x32xf32>
    %684 = vector.broadcast %664 : vector<1x32xf32> to vector<16x32xf32>
    %685 = arith.mulf %683, %684 : vector<16x32xf32>
    %686 = vector.broadcast %665 : vector<1x32xf32> to vector<16x32xf32>
    %687 = arith.addf %685, %686 : vector<16x32xf32>
    %c1400 = arith.constant 1400 : index
    %c0_240 = arith.constant 0 : index
    %688 = vector.load %arg4[%c1400, %c0_240] : memref<1632x128xf32, #tpu.memory_space<vmem>>, vector<32x128xf32>
    %cst_241 = arith.constant dense<0.000000e+00> : vector<16x128xf32>
    %689 = tpu.matmul %687, %688, %cst_241 {dimension_numbers = #tpu.dot_dimension_numbers<[1], [0], [0], [1], [0, 0, 1, 1], [], []>} : vector<16x32xf32>, vector<32x128xf32>, vector<16x128xf32> -> vector<16x128xf32>
    %c1432 = arith.constant 1432 : index
    %c0_242 = arith.constant 0 : index
    %690 = vector.load %arg4[%c1432, %c0_242] : memref<1632x128xf32, #tpu.memory_space<vmem>>, vector<1x128xf32>
    %691 = vector.broadcast %690 : vector<1x128xf32> to vector<16x128xf32>
    %692 = arith.addf %689, %691 : vector<16x128xf32>
    %cst_243 = arith.constant 5.000000e-01 : f32
    %693 = vector.broadcast %cst_243 : f32 to vector<16x128xf32>
    %694 = arith.mulf %693, %692 : vector<16x128xf32>
    %cst_244 = arith.constant 0.707106769 : f32
    %695 = vector.broadcast %cst_244 : f32 to vector<16x128xf32>
    %696 = arith.mulf %692, %695 : vector<16x128xf32>
    %697 = math.erf %696 : vector<16x128xf32>
    %cst_245 = arith.constant 1.000000e+00 : f32
    %698 = vector.broadcast %cst_245 : f32 to vector<16x128xf32>
    %699 = arith.addf %698, %697 : vector<16x128xf32>
    %700 = arith.mulf %694, %699 : vector<16x128xf32>
    %c1440 = arith.constant 1440 : index
    %c0_246 = arith.constant 0 : index
    %701 = vector.load %arg4[%c1440, %c0_246] : memref<1632x128xf32, #tpu.memory_space<vmem>>, vector<128x32xf32>
    %cst_247 = arith.constant dense<0.000000e+00> : vector<16x32xf32>
    %702 = tpu.matmul %700, %701, %cst_247 {dimension_numbers = #tpu.dot_dimension_numbers<[1], [0], [0], [1], [0, 0, 1, 1], [], []>} : vector<16x128xf32>, vector<128x32xf32>, vector<16x32xf32> -> vector<16x32xf32>
    %c1568 = arith.constant 1568 : index
    %c0_248 = arith.constant 0 : index
    %703 = vector.load %arg4[%c1568, %c0_248] : memref<1632x128xf32, #tpu.memory_space<vmem>>, vector<1x32xf32>
    %704 = vector.broadcast %703 : vector<1x32xf32> to vector<16x32xf32>
    %705 = arith.addf %702, %704 : vector<16x32xf32>
    %706 = arith.addf %663, %705 : vector<16x32xf32>
    %c1576 = arith.constant 1576 : index
    %c0_249 = arith.constant 0 : index
    %707 = vector.load %arg4[%c1576, %c0_249] : memref<1632x128xf32, #tpu.memory_space<vmem>>, vector<1x32xf32>
    %c1584 = arith.constant 1584 : index
    %c0_250 = arith.constant 0 : index
    %708 = vector.load %arg4[%c1584, %c0_250] : memref<1632x128xf32, #tpu.memory_space<vmem>>, vector<1x32xf32>
    %cst_251 = arith.constant dense<0.000000e+00> : vector<16xf32>
    %709 = vector.multi_reduction <add>, %706, %cst_251 [1] : vector<16x32xf32> to vector<16xf32>
    %710 = vector.shape_cast %709 : vector<16xf32> to vector<16x1xf32>
    %cst_252 = arith.constant 3.200000e+01 : f32
    %711 = vector.broadcast %cst_252 : f32 to vector<16x1xf32>
    %712 = arith.divf %710, %711 : vector<16x1xf32>
    %713 = vector.broadcast %712 : vector<16x1xf32> to vector<16x32xf32>
    %714 = arith.subf %706, %713 : vector<16x32xf32>
    %715 = arith.mulf %714, %714 : vector<16x32xf32>
    %cst_253 = arith.constant dense<0.000000e+00> : vector<16xf32>
    %716 = vector.multi_reduction <add>, %715, %cst_253 [1] : vector<16x32xf32> to vector<16xf32>
    %717 = vector.shape_cast %716 : vector<16xf32> to vector<16x1xf32>
    %cst_254 = arith.constant 3.200000e+01 : f32
    %718 = vector.broadcast %cst_254 : f32 to vector<16x1xf32>
    %719 = arith.divf %717, %718 : vector<16x1xf32>
    %720 = vector.broadcast %712 : vector<16x1xf32> to vector<16x32xf32>
    %721 = arith.subf %706, %720 : vector<16x32xf32>
    %cst_255 = arith.constant 9.99999997E-7 : f32
    %722 = vector.broadcast %cst_255 : f32 to vector<16x1xf32>
    %723 = arith.addf %719, %722 : vector<16x1xf32>
    %724 = math.rsqrt %723 : vector<16x1xf32>
    %725 = vector.broadcast %724 : vector<16x1xf32> to vector<16x32xf32>
    %726 = arith.mulf %721, %725 : vector<16x32xf32>
    %727 = vector.broadcast %707 : vector<1x32xf32> to vector<16x32xf32>
    %728 = arith.mulf %726, %727 : vector<16x32xf32>
    %729 = vector.broadcast %708 : vector<1x32xf32> to vector<16x32xf32>
    %730 = arith.addf %728, %729 : vector<16x32xf32>
    %c1592 = arith.constant 1592 : index
    %c0_256 = arith.constant 0 : index
    %731 = vector.load %arg4[%c1592, %c0_256] : memref<1632x128xf32, #tpu.memory_space<vmem>>, vector<32x8xf32>
    %cst_257 = arith.constant dense<0.000000e+00> : vector<16x8xf32>
    %732 = tpu.matmul %730, %731, %cst_257 {dimension_numbers = #tpu.dot_dimension_numbers<[1], [0], [0], [1], [0, 0, 1, 1], [], []>} : vector<16x32xf32>, vector<32x8xf32>, vector<16x8xf32> -> vector<16x8xf32>
    %c1624 = arith.constant 1624 : index
    %c0_258 = arith.constant 0 : index
    %733 = vector.load %arg4[%c1624, %c0_258] : memref<1632x128xf32, #tpu.memory_space<vmem>>, vector<1x8xf32>
    %734 = vector.broadcast %733 : vector<1x8xf32> to vector<16x8xf32>
    %735 = arith.addf %732, %734 : vector<16x8xf32>
    %736 = vector.extract_strided_slice %735 {offsets = [1, 0], sizes = [8, 8], strides = [1, 1]} : vector<16x8xf32> to vector<8x8xf32>
    %737 = arith.subf %736, %0 : vector<8x8xf32>
    %738 = arith.mulf %737, %737 : vector<8x8xf32>
    %cst_259 = arith.constant dense<0.000000e+00> : vector<8xf32>
    %739 = vector.multi_reduction <add>, %738, %cst_259 [1] : vector<8x8xf32> to vector<8xf32>
    %740 = vector.shape_cast %739 : vector<8xf32> to vector<8x1xf32>
    %cst_260 = arith.constant 8.000000e+00 : f32
    %741 = vector.broadcast %cst_260 : f32 to vector<8x1xf32>
    %742 = arith.divf %740, %741 : vector<8x1xf32>
    %743 = vector.extract_strided_slice %371 {offsets = [1, 0], sizes = [8, 1], strides = [1, 1]} : vector<16x1xf32> to vector<8x1xf32>
    %744 = arith.mulf %742, %743 : vector<8x1xf32>
    %cst_261 = arith.constant dense<0.000000e+00> : vector<1xf32>
    %745 = vector.multi_reduction <add>, %744, %cst_261 [0] : vector<8x1xf32> to vector<1xf32>
    %746 = vector.shape_cast %745 : vector<1xf32> to vector<1x1xf32>
    %cst_262 = arith.constant dense<0.000000e+00> : vector<1xf32>
    %747 = vector.multi_reduction <add>, %743, %cst_262 [0] : vector<8x1xf32> to vector<1xf32>
    %748 = vector.shape_cast %747 : vector<1xf32> to vector<1x1xf32>
    %cst_263 = arith.constant 0.000000e+00 : f32
    %749 = vector.broadcast %cst_263 : f32 to vector<1x118xf32>
    %750 = tpu.concatenate %746, %748, %749 in 1 : vector<1x1xf32>, vector<1x1xf32>, vector<1x118xf32> -> vector<1x120xf32>
    %cst_264 = arith.constant 0.000000e+00 : f32
    %751 = vector.broadcast %cst_264 : f32 to vector<7x120xf32>
    %752 = tpu.concatenate %750, %751 in 0 : vector<1x120xf32>, vector<7x120xf32> -> vector<8x120xf32>
    %753 = tpu.concatenate %736, %752 in 1 : vector<8x8xf32>, vector<8x120xf32> -> vector<8x128xf32>
    %c0_265 = arith.constant 0 : index
    %c0_266 = arith.constant 0 : index
    %754 = vector.load %arg5[%c0_265, %c0_266] : memref<8x128xf32, #tpu.memory_space<vmem>>, vector<8x128xf32>
    tpu.vector_store %arg5[%c0_265, %c0_266], %753 {strides = array<i32>} : memref<8x128xf32, #tpu.memory_space<vmem>>, vector<8x128xf32>,
    return
  }
  func.func @transform_0(%arg0: i32) -> (i32, i32) {
    %c0_i32 = arith.constant 0 : i32
    %c0_i32_0 = arith.constant 0 : i32
    return %arg0, %c0_i32 : i32, i32
  }
  func.func @transform_1(%arg0: i32) -> (i32, i32) {
    %c0_i32 = arith.constant 0 : i32
    %c0_i32_0 = arith.constant 0 : i32
    return %arg0, %c0_i32 : i32, i32
  }
  func.func @transform_2(%arg0: i32) -> (i32, i32) {
    %c0_i32 = arith.constant 0 : i32
    %c0_i32_0 = arith.constant 0 : i32
    return %arg0, %c0_i32 : i32, i32
  }
  func.func @transform_3(%arg0: i32) -> (i32, i32) {
    %c0_i32 = arith.constant 0 : i32
    %c0_i32_0 = arith.constant 0 : i32
    %c0_i32_1 = arith.constant 0 : i32
    return %c0_i32, %c0_i32_0 : i32, i32
  }
  func.func @transform_4(%arg0: i32) -> (i32, i32) {
    %c0_i32 = arith.constant 0 : i32
    %c0_i32_0 = arith.constant 0 : i32
    return %arg0, %c0_i32 : i32, i32
  }
}

</mosaic_0001>

<llo_original>
// kernel: mae_forward.1
$region0: #{mae_forward.1}
  #allocation0 [shape = 'u32[]', space=smem, size = 0x4, offset = 0x4, fixed_abs, tag = 'smem constant byte address 0x4 - core index']
  #allocation1 [shape = 'u32[144,128]{1,0:T(1,128)}', space=vmem, size = 0x12000, scoped, tag = 'internal scratch']
  %s0 = inlined_call_operand.vmem [shape: f32[16,8], index: 0, kind: input, shape index: {}]
  %s1 = inlined_call_operand.vmem [shape: f32[16,8], index: 1, kind: input, shape index: {}]
  %s2 = inlined_call_operand.vmem [shape: f32[32,8], index: 2, kind: input, shape index: {}]
  %s3 = inlined_call_operand.hbm [shape: f32[1632,128], index: 3, kind: input, shape index: {}]
  %s4 = inlined_call_operand.vmem [shape: f32[16,128], index: 4, kind: output, shape index: {}]
  %s5 = sld [smem:[#allocation0]]
  $region53: #{mae_forward.1} parent=0
    _
  %s7 = ssub.s32 1, %s5
  %s8 = scalar_select 0, %s7, %s5
  $region1: #{mae_forward.1} parent=0
    #allocation2 [shape = 'u8[835584]{0}', space=vmem, size = 0xcc000, scoped, tag = 'input window, operand 3, single buffered']
    #allocation3 [shape = 's32[2]{0}', space=sflag, size = 0x8, scoped, tag = 'scoped memory for mae_forward.1']
    %9 = vsyncpa [#allocation3], 0
    loop: start=0, step=1, limit=4
    $region2: #{mae_forward.1} parent=1 // loop_pre_header
      _
    $region3: #{mae_forward.1} parent=1 // loop_header
      %s11 = sphi 0, %s15
      %p12 = scmp.ge.s32.totalorder %s11, 4
      %s21 = sphi 0, %s23
      %s24 = sphi 0, %s21
      %s25 = sphi 0, %s24
      %s41 = sphi 0, %s25
      %s47 = sphi 0, %s49
      %s50 = sphi 0, %s47
      %s51 = sphi 0, %s50
      %s67 = sphi 0, %s51
      %s73 = sphi 0, %s75
      %s76 = sphi 0, %s73
      %s77 = sphi 0, %s76
      %s93 = sphi 0, %s77
      %s97 = sphi 0, %s97
      %s99 = sphi 0, %s97
      %s100 = sphi 0, %s99
      %s114 = sphi 0, %s100
      %s120 = sphi 0, %s122
      %s123 = sphi 0, %s120
      %s124 = sphi 0, %s123
      %s140 = sphi 0, %s124
    $region4: #{mae_forward.1} parent=1 // loop_header_branch
      %14 = sbr.rel (%p12) target = $region8
    $region5: #{mae_forward.1} parent=1 // loop_body
      %s16 = ssub.s32 %s11, 1
      %s17 = ssub.s32 %s11, 2
      %s18 = sadd.s32 %s11, 1
      %s19 = ssub.s32 %s11, %s18
      %p20 = scmp.eq.s32.totalorder %s19, 0
      %s22 = sadd.s32 %s21, 1
      %s23 = scalar_select %p20, %s21, %s22
      %p26 = pneg %p20
      %p27 = scmp.eq.s32.totalorder %s11, 1
      %p28 = por %p26, %p27
      %p29 = scmp.ne.s32.totalorder %s21, %s24
      %p30 = scmp.eq.s32.totalorder %s11, 0
      %p31 = por %p29, %p30
      %p32 = scmp.ne.s32.totalorder %s21, %s24
      %p33 = scmp.eq.s32.totalorder %s16, 1
      %p34 = por %p32, %p33
      %p35 = scmp.ne.s32.totalorder %s24, %s25
      %p36 = scmp.eq.s32.totalorder %s16, 0
      %p37 = por %p35, %p36
      %p38 = scmp.ne.s32.totalorder %s24, %s25
      %p39 = scmp.eq.s32.totalorder %s17, 1
      %p40 = por %p38, %p39
      %p42 = scmp.ne.s32.totalorder %s25, %s41
      %p43 = scmp.eq.s32.totalorder %s17, 0
      %p44 = por %p42, %p43
      %s45 = ssub.s32 %s11, %s18
      %p46 = scmp.eq.s32.totalorder %s45, 0
      %s48 = sadd.s32 %s47, 1
      %s49 = scalar_select %p46, %s47, %s48
      %p52 = pneg %p46
      %p53 = scmp.eq.s32.totalorder %s11, 1
      %p54 = por %p52, %p53
      %p55 = scmp.ne.s32.totalorder %s47, %s50
      %p56 = scmp.eq.s32.totalorder %s11, 0
      %p57 = por %p55, %p56
      %p58 = scmp.ne.s32.totalorder %s47, %s50
      %p59 = scmp.eq.s32.totalorder %s16, 1
      %p60 = por %p58, %p59
      %p61 = scmp.ne.s32.totalorder %s50, %s51
      %p62 = scmp.eq.s32.totalorder %s16, 0
      %p63 = por %p61, %p62
      %p64 = scmp.ne.s32.totalorder %s50, %s51
      %p65 = scmp.eq.s32.totalorder %s17, 1
      %p66 = por %p64, %p65
      %p68 = scmp.ne.s32.totalorder %s51, %s67
      %p69 = scmp.eq.s32.totalorder %s17, 0
      %p70 = por %p68, %p69
      %s71 = ssub.s32 %s11, %s18
      %p72 = scmp.eq.s32.totalorder %s71, 0
      %s74 = sadd.s32 %s73, 1
      %s75 = scalar_select %p72, %s73, %s74
      %p78 = pneg %p72
      %p79 = scmp.eq.s32.totalorder %s11, 1
      %p80 = por %p78, %p79
      %p81 = scmp.ne.s32.totalorder %s73, %s76
      %p82 = scmp.eq.s32.totalorder %s11, 0
      %p83 = por %p81, %p82
      %p84 = scmp.ne.s32.totalorder %s73, %s76
      %p85 = scmp.eq.s32.totalorder %s16, 1
      %p86 = por %p84, %p85
      %p87 = scmp.ne.s32.totalorder %s76, %s77
      %p88 = scmp.eq.s32.totalorder %s16, 0
      %p89 = por %p87, %p88
      %p90 = scmp.ne.s32.totalorder %s76, %s77
      %p91 = scmp.eq.s32.totalorder %s17, 1
      %p92 = por %p90, %p91
      %p94 = scmp.ne.s32.totalorder %s77, %s93
      %p95 = scmp.eq.s32.totalorder %s17, 0
      %p96 = por %p94, %p95
      %s98 = sadd.s32 %s97, 1
      %p101 = scmp.eq.s32.totalorder %s11, 1
      %p102 = scmp.ne.s32.totalorder %s97, %s99
      %p103 = scmp.eq.s32.totalorder %s11, 0
      %p104 = por %p102, %p103
      %p105 = scmp.ne.s32.totalorder %s97, %s99
      %p106 = scmp.eq.s32.totalorder %s16, 1
      %p107 = por %p105, %p106
      %p108 = scmp.ne.s32.totalorder %s99, %s100
      %p109 = scmp.eq.s32.totalorder %s16, 0
      %p110 = por %p108, %p109
      %p111 = scmp.ne.s32.totalorder %s99, %s100
      %p112 = scmp.eq.s32.totalorder %s17, 1
      %p113 = por %p111, %p112
      %p115 = scmp.ne.s32.totalorder %s100, %s114
      %p116 = scmp.eq.s32.totalorder %s17, 0
      %p117 = por %p115, %p116
      %s118 = ssub.s32 %s11, %s18
      %p119 = scmp.eq.s32.totalorder %s118, 0
      %s121 = sadd.s32 %s120, 1
      %s122 = scalar_select %p119, %s120, %s121
      %p125 = pneg %p119
      %p126 = scmp.eq.s32.totalorder %s11, 1
      %p127 = por %p125, %p126
      %p128 = scmp.ne.s32.totalorder %s120, %s123
      %p129 = scmp.eq.s32.totalorder %s11, 0
      %p130 = por %p128, %p129
      %p131 = scmp.ne.s32.totalorder %s120, %s123
      %p132 = scmp.eq.s32.totalorder %s16, 1
      %p133 = por %p131, %p132
      %p134 = scmp.ne.s32.totalorder %s123, %s124
      %p135 = scmp.eq.s32.totalorder %s16, 0
      %p136 = por %p134, %p135
      %p137 = scmp.ne.s32.totalorder %s123, %s124
      %p138 = scmp.eq.s32.totalorder %s17, 1
      %p139 = por %p137, %p138
      %p141 = scmp.ne.s32.totalorder %s124, %s140
      %p142 = scmp.eq.s32.totalorder %s17, 0
      %p143 = por %p141, %p142
      %p144 = scmp.le.s32.totalorder 1, %s11
      %p145 = scmp.lt.s32.totalorder %s11, 3
      %p146 = pnand %p144, %p145
      %p147 = pneg %p146
      // Predicated region
      $region9: #{mae_forward.1} parent=5 // pred_check
        _
      $region10: #{mae_forward.1} parent=5 // pred_check_branch
        %149 = sbr.rel (%p146) target = $region12
      $region11: #{mae_forward.1} parent=5 // pred_region
        %s150 = ssub.s32 %s11, 1
        // Predicated region
        $region13: #{mae_forward.1} parent=11 // pred_check
          %p151 = pneg %p110
        $region14: #{mae_forward.1} parent=11 // pred_check_branch
          %153 = sbr.rel (%p151) target = $region16
        $region15: #{mae_forward.1} parent=11 // pred_region
          %s155 = ssub.s32 26112, 26112
          %156 = vsyncadd [#allocation3], %s155
          %s157 = sshll.u32 [#allocation2], 4
          %s158 = int_to_ptr.vmem [resolvable:$true] %s157
          %163 = dma.hbm_to_vmem [thread:$0]  %s3, 26112, %s158, [#allocation3], 128, 128, 8
        $region16: #{mae_forward.1} parent=11 // pred_fallthru
          _
      $region12: #{mae_forward.1} parent=5 // pred_fallthru
        _
      %p164 = scmp.lt.s32.totalorder %s11, 2
      // Predicated region
      $region17: #{mae_forward.1} parent=5 // pred_check
        %p165 = pneg %p164
      $region18: #{mae_forward.1} parent=5 // pred_check_branch
        %167 = sbr.rel (%p165) target = $region20
      $region19: #{mae_forward.1} parent=5 // pred_region
        // Predicated region
        $region21: #{mae_forward.1} parent=19 // pred_check
          %p168 = pneg %p31
        $region22: #{mae_forward.1} parent=19 // pred_check_branch
          %170 = sbr.rel (%p168) target = $region24
        $region23: #{mae_forward.1} parent=19 // pred_region
          %p171 = scmp.lt.s32.totalorder %s11, 1
          %s172 = scalar_select %p171, %s11, 1
          %s173 = smul.addr %s172, 8
          %s174 = scalar_lea.vmem %s0, %s173
        $region24: #{mae_forward.1} parent=19 // pred_fallthru
          _
        // Predicated region
        $region25: #{mae_forward.1} parent=19 // pred_check
          %p175 = pneg %p57
        $region26: #{mae_forward.1} parent=19 // pred_check_branch
          %177 = sbr.rel (%p175) target = $region28
        $region27: #{mae_forward.1} parent=19 // pred_region
          %p178 = scmp.lt.s32.totalorder %s11, 1
          %s179 = scalar_select %p178, %s11, 1
          %s180 = smul.addr %s179, 8
          %s181 = scalar_lea.vmem %s1, %s180
        $region28: #{mae_forward.1} parent=19 // pred_fallthru
          _
        // Predicated region
        $region29: #{mae_forward.1} parent=19 // pred_check
          %p182 = pneg %p83
        $region30: #{mae_forward.1} parent=19 // pred_check_branch
          %184 = sbr.rel (%p182) target = $region32
        $region31: #{mae_forward.1} parent=19 // pred_region
          %s185 = smul.u32 2, %s11
          %p186 = scmp.lt.s32.totalorder %s185, 3
          %s187 = scalar_select %p186, %s185, 3
          %s188 = smul.addr %s187, 8
          %s189 = scalar_lea.vmem %s2, %s188
          %s190 = smul.u32 2, %s11
        $region32: #{mae_forward.1} parent=19 // pred_fallthru
          _
      $region20: #{mae_forward.1} parent=5 // pred_fallthru
        _
      %p191 = scmp.le.s32.totalorder 1, %s11
      %p192 = scmp.lt.s32.totalorder %s11, 3
      %p193 = pnand %p191, %p192
      %p194 = pneg %p193
      // Predicated region
      $region33: #{mae_forward.1} parent=5 // pred_check
        _
      $region34: #{mae_forward.1} parent=5 // pred_check_branch
        %196 = sbr.rel (%p193) target = $region36
      $region35: #{mae_forward.1} parent=5 // pred_region
        %s197 = ssub.s32 %s11, 1
        // Predicated region
        $region37: #{mae_forward.1} parent=35 // pred_check
          %p198 = pneg %p110
        $region38: #{mae_forward.1} parent=35 // pred_check_branch
          %200 = sbr.rel (%p198) target = $region40
        $region39: #{mae_forward.1} parent=35 // pred_region
          %201 = dma.done [#allocation3], 26112
        $region40: #{mae_forward.1} parent=35 // pred_fallthru
          _
        %p202 = scmp.lt.s32.totalorder %s16, 1
        %s203 = scalar_select %p202, %s16, 1
        %s204 = smul.addr %s203, 8
        %s205 = scalar_lea.vmem %s0, %s204
        %p206 = pneg %p37
        %p207 = pneg %p34
        %p208 = scmp.lt.s32.totalorder %s16, 1
        %s209 = scalar_select %p208, %s16, 1
        %s210 = smul.addr %s209, 8
        %s211 = scalar_lea.vmem %s1, %s210
        %p212 = pneg %p63
        %p213 = pneg %p60
        %s214 = smul.u32 2, %s16
        %p215 = scmp.lt.s32.totalorder %s214, 3
        %s216 = scalar_select %p215, %s214, 3
        %s217 = smul.addr %s216, 8
        %s218 = scalar_lea.vmem %s2, %s217
        %p219 = pneg %p89
        %p220 = pneg %p86
        %p221 = pneg %p110
        %p222 = pneg %p107
        %p223 = pneg %p136
        %p224 = pneg %p133
        %p225 = scmp.lt.s32.totalorder %s16, 1
        %s226 = scalar_select %p225, %s16, 1
        %s227 = smul.addr %s226, 8
        %s228 = scalar_lea.vmem %s4, %s227
        %p229 = scmp.lt.s32.totalorder %s16, 1
        %s230 = scalar_select %p229, %s16, 1
        %s231 = smul.addr %s230, 8
        %s232 = scalar_lea.vmem %s0, %s231
        %p233 = scmp.lt.s32.totalorder %s16, 1
        %s234 = scalar_select %p233, %s16, 1
        %s235 = smul.addr %s234, 8
        %s236 = scalar_lea.vmem %s1, %s235
        %s237 = smul.u32 2, %s16
        %p238 = scmp.lt.s32.totalorder %s237, 3
        %s239 = scalar_select %p238, %s237, 3
        %s240 = smul.addr %s239, 8
        %s241 = scalar_lea.vmem %s2, %s240
        %s242 = smul.u32 2, %s16
        %p243 = scmp.lt.s32.totalorder %s16, 1
        %s244 = scalar_select %p243, %s16, 1
        %s245 = smul.addr %s244, 8
        %s246 = scalar_lea.vmem %s4, %s245
        %v247 = vld [vmem:[%s232] sm:$0xff]
        %v248 = vld [vmem:[%s236] sm:$0xff]
        %v249 = vld [vmem:[%s241] sm:$0xff]
        %v250 = vld [vmem:[%s241 + $0x8] sm:$0xff]
        %v251 = vld [vmem:[#allocation2] sm:$0xff]
        %v252 = vld [vmem:[#allocation2 + $0x8] sm:$0xff]
        %vm253 = vcmask 64512
        %v255 = vsel %vm253, %v247, 0
        %257 = vmatprep.subr.mxu0 0.0
        %258 = vmatpush1.msra.mxu0 %v251
        %259 = vmatprep.subr.mxu0 0.0
        %260 = vmatpush1.msra.mxu0 0.0
        %261 = vmatprep.subr.mxu0 0.0
        %262 = vmatpush1.msra.mxu0 0.0
        %263 = vmatprep.subr.mxu0 0.0
        %264 = vmatpush1.msra.mxu0 0.0
        %265 = vmatprep.subr.mxu0 0.0
        %266 = vmatpush1.msra.mxu0 0.0
        %267 = vmatprep.subr.mxu0 0.0
        %268 = vmatpush1.msra.mxu0 0.0
        %269 = vmatprep.subr.mxu0 0.0
        %270 = vmatpush1.msra.mxu0 0.0
        %271 = vmatprep.subr.mxu0 0.0
        %272 = vmatpush1.msra.mxu0 0.0
        %273 = vmatprep.subr.mxu0 0.0
        %274 = vmatpush1.msra.mxu0 0.0
        %275 = vmatprep.subr.mxu0 0.0
        %276 = vmatpush1.msra.mxu0 0.0
        %277 = vmatprep.subr.mxu0 0.0
        %278 = vmatpush1.msra.mxu0 0.0
        %279 = vmatprep.subr.mxu0 0.0
        %280 = vmatpush1.msra.mxu0 0.0
        %281 = vmatprep.subr.mxu0 0.0
        %282 = vmatpush1.msra.mxu0 0.0
        %283 = vmatprep.subr.mxu0 0.0
        %284 = vmatpush1.msra.mxu0 0.0
        %285 = vmatprep.subr.mxu0 0.0
        %286 = vmatpush1.msra.mxu0 0.0
        %287 = vmatprep.subr.mxu0 0.0
        %288 = vmatpush1.msra.mxu0 0.0
        %289 = vmatprep.subr.mxu0 0.0
        %290 = vmatpush1.msra.mxu0 0.0
        %291 = vmatprep.subr.mxu0 0.0
        %292 = vmatpush1.msra.mxu0 0.0
        %293 = vmatprep.subr.mxu0 0.0
        %294 = vmatpush1.msra.mxu0 0.0
        %295 = vmatprep.subr.mxu0 0.0
        %296 = vmatpush1.msra.mxu0 0.0
        %297 = vmatprep.subr.mxu0 0.0
        %298 = vmatpush1.msra.mxu0 0.0
        %299 = vmatprep.subr.mxu0 0.0
        %300 = vmatpush1.msra.mxu0 0.0
        %301 = vmatprep.subr.mxu0 0.0
        %302 = vmatpush1.msra.mxu0 0.0
        %303 = vmatprep.subr.mxu0 0.0
        %304 = vmatpush1.msra.mxu0 0.0
        %305 = vmatprep.subr.mxu0 0.0
        %306 = vmatpush1.msra.mxu0 0.0
        %307 = vmatprep.subr.mxu0 0.0
        %308 = vmatpush1.msra.mxu0 0.0
        %309 = vmatprep.subr.mxu0 0.0
        %310 = vmatpush1.msra.mxu0 0.0
        %311 = vmatprep.subr.mxu0 0.0
        %312 = vmatpush1.msra.mxu0 0.0
        %313 = vmatprep.subr.mxu0 0.0
        %314 = vmatpush1.msra.mxu0 0.0
        %315 = vmatprep.subr.mxu0 0.0
        %316 = vmatpush1.msra.mxu0 0.0
        %317 = vmatprep.subr.mxu0 0.0
        %318 = vmatpush1.msra.mxu0 0.0
        %319 = vmatprep.subr.mxu0 0.0
        %320 = vmatpush1.msra.mxu0 0.0
        %321 = vmatprep.mubr.f32.mxu0 0.0
        %322 = vmatmul.mubr.f32.gmra.mrb[0].mxu0 %v255
        %v323 = vpop.f32.mrb[0].mxu0
        %v324 = vadd.f32 %v252, %v323
        %v325 = vpop.f32.mrb[0].mxu0
        %326 = vdwg.mxu0
        %v327 = vld [vmem:[#allocation2 + $0x10] sm:$0xff]
        %v329 = vsel %vm253, %v248, 0
        %331 = vmatprep.subr.mxu0 0.0
        %332 = vmatpush1.msra.mxu0 %v324
        %333 = vmatprep.subr.mxu0 0.0
        %334 = vmatpush1.msra.mxu0 0.0
        %335 = vmatprep.subr.mxu0 0.0
        %336 = vmatpush1.msra.mxu0 0.0
        %337 = vmatprep.subr.mxu0 0.0
        %338 = vmatpush1.msra.mxu0 0.0
        %339 = vmatprep.subr.mxu0 0.0
        %340 = vmatpush1.msra.mxu0 0.0
        %341 = vmatprep.subr.mxu0 0.0
        %342 = vmatpush1.msra.mxu0 0.0
        %343 = vmatprep.subr.mxu0 0.0
        %344 = vmatpush1.msra.mxu0 0.0
        %345 = vmatprep.subr.mxu0 0.0
        %346 = vmatpush1.msra.mxu0 0.0
        %347 = vmatprep.subr.mxu0 0.0
        %348 = vmatpush1.msra.mxu0 0.0
        %349 = vmatprep.subr.mxu0 0.0
        %350 = vmatpush1.msra.mxu0 0.0
        %351 = vmatprep.subr.mxu0 0.0
        %352 = vmatpush1.msra.mxu0 0.0
        %353 = vmatprep.subr.mxu0 0.0
        %354 = vmatpush1.msra.mxu0 0.0
        %355 = vmatprep.subr.mxu0 0.0
        %356 = vmatpush1.msra.mxu0 0.0
        %357 = vmatprep.subr.mxu0 0.0
        %358 = vmatpush1.msra.mxu0 0.0
        %359 = vmatprep.subr.mxu0 0.0
        %360 = vmatpush1.msra.mxu0 0.0
        %361 = vmatprep.subr.mxu0 0.0
        %362 = vmatpush1.msra.mxu0 0.0
        %363 = vmatprep.subr.mxu0 0.0
        %364 = vmatpush1.msra.mxu0 0.0
        %365 = vmatprep.subr.mxu0 0.0
        %366 = vmatpush1.msra.mxu0 0.0
        %367 = vmatprep.subr.mxu0 0.0
        %368 = vmatpush1.msra.mxu0 0.0
        %369 = vmatprep.subr.mxu0 0.0
        %370 = vmatpush1.msra.mxu0 0.0
        %371 = vmatprep.subr.mxu0 0.0
        %372 = vmatpush1.msra.mxu0 0.0
        %373 = vmatprep.subr.mxu0 0.0
        %374 = vmatpush1.msra.mxu0 0.0
        %375 = vmatprep.subr.mxu0 0.0
        %376 = vmatpush1.msra.mxu0 0.0
        %377 = vmatprep.subr.mxu0 0.0
        %378 = vmatpush1.msra.mxu0 0.0
        %379 = vmatprep.subr.mxu0 0.0
        %380 = vmatpush1.msra.mxu0 0.0
        %381 = vmatprep.subr.mxu0 0.0
        %382 = vmatpush1.msra.mxu0 0.0
        %383 = vmatprep.subr.mxu0 0.0
        %384 = vmatpush1.msra.mxu0 0.0
        %385 = vmatprep.subr.mxu0 0.0
        %386 = vmatpush1.msra.mxu0 0.0
        %387 = vmatprep.subr.mxu0 0.0
        %388 = vmatpush1.msra.mxu0 0.0
        %389 = vmatprep.subr.mxu0 0.0
        %390 = vmatpush1.msra.mxu0 0.0
        %391 = vmatprep.subr.mxu0 0.0
        %392 = vmatpush1.msra.mxu0 0.0
        %393 = vmatprep.subr.mxu0 0.0
        %394 = vmatpush1.msra.mxu0 0.0
        %395 = vmatprep.mubr.f32.mxu0 0.0
        %396 = vmatmul.mubr.f32.gmra.mrb[0].mxu0 %v329
        %v397 = vpop.f32.mrb[0].mxu0
        %v398 = vadd.f32 %v327, %v397
        %v399 = vpop.f32.mrb[0].mxu0
        %400 = vdwg.mxu0
        %v401 = vlaneseq
        %v402 = vand.u32 %v401, 127
        %vm403 = vcmp.lt.s32.totalorder %v402, 3
        %v404 = vsel %vm403, 0.0, -1e+30
        %v405 = vld [vmem:[#allocation2 + $0x18] sm:$0x1]
        %v406 = vld [vmem:[#allocation2 + $0x20] sm:$0x1]
        %vm407 = vcmask 261120
        %v408 = vsel %vm407, %v398, 0.0
        %409 = vadd.xlane.f32.xlu0 %v408
        %v410 = vpop.xlane.xlu0 %409
        %v411 = vrcp.pop 32.0
        %v412 = vmul.f32 %v410, %v411
        %v413 = vsub.f32 %v398, %v412
        %v414 = vmul.f32 %v413, %v413
        %v415 = vsel %vm407, %v414, 0.0
        %416 = vadd.xlane.f32.xlu0 %v415
        %v417 = vpop.xlane.xlu0 %416
        %v418 = vmul.f32 %v417, %v411
        %v419 = vadd.f32 %v418, 1e-06
        %v420 = vrsqrt.pop %v419
        %v421 = vmul.f32 %v413, %v420
        %v422 = vlaneseq
        %v423 = vshrl.u32 %v422, 7
        %v424 = vsub.s32 0, %v423
        %v425 = vrot.slane %v405, %v424
        %v426 = vmul.f32 %v421, %v425
        %v427 = vlaneseq
        %v428 = vshrl.u32 %v427, 7
        %v429 = vsub.s32 0, %v428
        %v430 = vrot.slane %v406, %v429
        %v431 = vadd.f32 %v426, %v430
        %v432 = vld [vmem:[#allocation2 + $0x28] sm:$0xff]
        %v433 = vld [vmem:[#allocation2 + $0x30] sm:$0xff]
        %v434 = vld [vmem:[#allocation2 + $0x38] sm:$0xff]
        %v435 = vld [vmem:[#allocation2 + $0x40] sm:$0xff]
        %v436 = vld [vmem:[#allocation2 + $0x48] sm:$0x1]
        %v437 = vlaneseq
        %v438 = vshrl.u32 %v437, 7
        %v439 = vsub.s32 0, %v438
        %v440 = vrot.slane %v436, %v439
        %v442 = vsel %vm407, %v431, 0
        %444 = vmatprep.subr.mxu0 0.0
        %445 = vmatpush1.msra.mxu0 %v432
        %446 = vmatprep.subr.mxu0 0.0
        %447 = vmatpush1.msra.mxu0 %v433
        %448 = vmatprep.subr.mxu0 0.0
        %449 = vmatpush1.msra.mxu0 %v434
        %450 = vmatprep.subr.mxu0 0.0
        %451 = vmatpush1.msra.mxu0 %v435
        %452 = vmatprep.subr.mxu0 0.0
        %453 = vmatpush1.msra.mxu0 0.0
        %454 = vmatprep.subr.mxu0 0.0
        %455 = vmatpush1.msra.mxu0 0.0
        %456 = vmatprep.subr.mxu0 0.0
        %457 = vmatpush1.msra.mxu0 0.0
        %458 = vmatprep.subr.mxu0 0.0
        %459 = vmatpush1.msra.mxu0 0.0
        %460 = vmatprep.subr.mxu0 0.0
        %461 = vmatpush1.msra.mxu0 0.0
        %462 = vmatprep.subr.mxu0 0.0
        %463 = vmatpush1.msra.mxu0 0.0
        %464 = vmatprep.subr.mxu0 0.0
        %465 = vmatpush1.msra.mxu0 0.0
        %466 = vmatprep.subr.mxu0 0.0
        %467 = vmatpush1.msra.mxu0 0.0
        %468 = vmatprep.subr.mxu0 0.0
        %469 = vmatpush1.msra.mxu0 0.0
        %470 = vmatprep.subr.mxu0 0.0
        %471 = vmatpush1.msra.mxu0 0.0
        %472 = vmatprep.subr.mxu0 0.0
        %473 = vmatpush1.msra.mxu0 0.0
        %474 = vmatprep.subr.mxu0 0.0
        %475 = vmatpush1.msra.mxu0 0.0
        %476 = vmatprep.subr.mxu0 0.0
        %477 = vmatpush1.msra.mxu0 0.0
        %478 = vmatprep.subr.mxu0 0.0
        %479 = vmatpush1.msra.mxu0 0.0
        %480 = vmatprep.subr.mxu0 0.0
        %481 = vmatpush1.msra.mxu0 0.0
        %482 = vmatprep.subr.mxu0 0.0
        %483 = vmatpush1.msra.mxu0 0.0
        %484 = vmatprep.subr.mxu0 0.0
        %485 = vmatpush1.msra.mxu0 0.0
        %486 = vmatprep.subr.mxu0 0.0
        %487 = vmatpush1.msra.mxu0 0.0
        %488 = vmatprep.subr.mxu0 0.0
        %489 = vmatpush1.msra.mxu0 0.0
        %490 = vmatprep.subr.mxu0 0.0
        %491 = vmatpush1.msra.mxu0 0.0
        %492 = vmatprep.subr.mxu0 0.0
        %493 = vmatpush1.msra.mxu0 0.0
        %494 = vmatprep.subr.mxu0 0.0
        %495 = vmatpush1.msra.mxu0 0.0
        %496 = vmatprep.subr.mxu0 0.0
        %497 = vmatpush1.msra.mxu0 0.0
        %498 = vmatprep.subr.mxu0 0.0
        %499 = vmatpush1.msra.mxu0 0.0
        %500 = vmatprep.subr.mxu0 0.0
        %501 = vmatpush1.msra.mxu0 0.0
        %502 = vmatprep.subr.mxu0 0.0
        %503 = vmatpush1.msra.mxu0 0.0
        %504 = vmatprep.subr.mxu0 0.0
        %505 = vmatpush1.msra.mxu0 0.0
        %506 = vmatprep.subr.mxu0 0.0
        %507 = vmatpush1.msra.mxu0 0.0
        %508 = vmatprep.mubr.f32.mxu0 0.0
        %509 = vmatmul.mubr.f32.gmra.mrb[0].mxu0 %v442
        %v510 = vpop.f32.mrb[0].mxu0
        %v511 = vadd.f32 %v440, %v510
        %v512 = vpop.f32.mrb[0].mxu0
        %513 = vdwg.mxu0
        %v514 = vld [vmem:[#allocation2 + $0x50] sm:$0xff]
        %v515 = vld [vmem:[#allocation2 + $0x58] sm:$0xff]
        %v516 = vld [vmem:[#allocation2 + $0x60] sm:$0xff]
        %v517 = vld [vmem:[#allocation2 + $0x68] sm:$0xff]
        %v518 = vld [vmem:[#allocation2 + $0x70] sm:$0x1]
        %v519 = vlaneseq
        %v520 = vshrl.u32 %v519, 7
        %v521 = vsub.s32 0, %v520
        %v522 = vrot.slane %v518, %v521
        %523 = vmatprep.subr.mxu0 0.0
        %524 = vmatpush1.msra.mxu0 %v514
        %525 = vmatprep.subr.mxu0 0.0
        %526 = vmatpush1.msra.mxu0 %v515
        %527 = vmatprep.subr.mxu0 0.0
        %528 = vmatpush1.msra.mxu0 %v516
        %529 = vmatprep.subr.mxu0 0.0
        %530 = vmatpush1.msra.mxu0 %v517
        %531 = vmatprep.subr.mxu0 0.0
        %532 = vmatpush1.msra.mxu0 0.0
        %533 = vmatprep.subr.mxu0 0.0
        %534 = vmatpush1.msra.mxu0 0.0
        %535 = vmatprep.subr.mxu0 0.0
        %536 = vmatpush1.msra.mxu0 0.0
        %537 = vmatprep.subr.mxu0 0.0
        %538 = vmatpush1.msra.mxu0 0.0
        %539 = vmatprep.subr.mxu0 0.0
        %540 = vmatpush1.msra.mxu0 0.0
        %541 = vmatprep.subr.mxu0 0.0
        %542 = vmatpush1.msra.mxu0 0.0
        %543 = vmatprep.subr.mxu0 0.0
        %544 = vmatpush1.msra.mxu0 0.0
        %545 = vmatprep.subr.mxu0 0.0
        %546 = vmatpush1.msra.mxu0 0.0
        %547 = vmatprep.subr.mxu0 0.0
        %548 = vmatpush1.msra.mxu0 0.0
        %549 = vmatprep.subr.mxu0 0.0
        %550 = vmatpush1.msra.mxu0 0.0
        %551 = vmatprep.subr.mxu0 0.0
        %552 = vmatpush1.msra.mxu0 0.0
        %553 = vmatprep.subr.mxu0 0.0
        %554 = vmatpush1.msra.mxu0 0.0
        %555 = vmatprep.subr.mxu0 0.0
        %556 = vmatpush1.msra.mxu0 0.0
        %557 = vmatprep.subr.mxu0 0.0
        %558 = vmatpush1.msra.mxu0 0.0
        %559 = vmatprep.subr.mxu0 0.0
        %560 = vmatpush1.msra.mxu0 0.0
        %561 = vmatprep.subr.mxu0 0.0
        %562 = vmatpush1.msra.mxu0 0.0
        %563 = vmatprep.subr.mxu0 0.0
        %564 = vmatpush1.msra.mxu0 0.0
        %565 = vmatprep.subr.mxu0 0.0
        %566 = vmatpush1.msra.mxu0 0.0
        %567 = vmatprep.subr.mxu0 0.0
        %568 = vmatpush1.msra.mxu0 0.0
        %569 = vmatprep.subr.mxu0 0.0
        %570 = vmatpush1.msra.mxu0 0.0
        %571 = vmatprep.subr.mxu0 0.0
        %572 = vmatpush1.msra.mxu0 0.0
        %573 = vmatprep.subr.mxu0 0.0
        %574 = vmatpush1.msra.mxu0 0.0
        %575 = vmatprep.subr.mxu0 0.0
        %576 = vmatpush1.msra.mxu0 0.0
        %577 = vmatprep.subr.mxu0 0.0
        %578 = vmatpush1.msra.mxu0 0.0
        %579 = vmatprep.subr.mxu0 0.0
        %580 = vmatpush1.msra.mxu0 0.0
        %581 = vmatprep.subr.mxu0 0.0
        %582 = vmatpush1.msra.mxu0 0.0
        %583 = vmatprep.subr.mxu0 0.0
        %584 = vmatpush1.msra.mxu0 0.0
        %585 = vmatprep.subr.mxu0 0.0
        %586 = vmatpush1.msra.mxu0 0.0
        %587 = vmatprep.mubr.f32.mxu0 0.0
        %588 = vmatmul.mubr.f32.gmra.mrb[0].mxu0 %v442
        %v589 = vpop.f32.mrb[0].mxu0
        %v590 = vadd.f32 %v522, %v589
        %v591 = vpop.f32.mrb[0].mxu0
        %592 = vdwg.mxu0
        %v593 = vld [vmem:[#allocation2 + $0x78] sm:$0xff]
        %v594 = vld [vmem:[#allocation2 + $0x80] sm:$0xff]
        %v595 = vld [vmem:[#allocation2 + $0x88] sm:$0xff]
        %v596 = vld [vmem:[#allocation2 + $0x90] sm:$0xff]
        %v597 = vld [vmem:[#allocation2 + $0x98] sm:$0x1]
        %v598 = vlaneseq
        %v599 = vshrl.u32 %v598, 7
        %v600 = vsub.s32 0, %v599
        %v601 = vrot.slane %v597, %v600
        %602 = vmatprep.subr.mxu0 0.0
        %603 = vmatpush1.msra.mxu0 %v593
        %604 = vmatprep.subr.mxu0 0.0
        %605 = vmatpush1.msra.mxu0 %v594
        %606 = vmatprep.subr.mxu0 0.0
        %607 = vmatpush1.msra.mxu0 %v595
        %608 = vmatprep.subr.mxu0 0.0
        %609 = vmatpush1.msra.mxu0 %v596
        %610 = vmatprep.subr.mxu0 0.0
        %611 = vmatpush1.msra.mxu0 0.0
        %612 = vmatprep.subr.mxu0 0.0
        %613 = vmatpush1.msra.mxu0 0.0
        %614 = vmatprep.subr.mxu0 0.0
        %615 = vmatpush1.msra.mxu0 0.0
        %616 = vmatprep.subr.mxu0 0.0
        %617 = vmatpush1.msra.mxu0 0.0
        %618 = vmatprep.subr.mxu0 0.0
        %619 = vmatpush1.msra.mxu0 0.0
        %620 = vmatprep.subr.mxu0 0.0
        %621 = vmatpush1.msra.mxu0 0.0
        %622 = vmatprep.subr.mxu0 0.0
        %623 = vmatpush1.msra.mxu0 0.0
        %624 = vmatprep.subr.mxu0 0.0
        %625 = vmatpush1.msra.mxu0 0.0
        %626 = vmatprep.subr.mxu0 0.0
        %627 = vmatpush1.msra.mxu0 0.0
        %628 = vmatprep.subr.mxu0 0.0
        %629 = vmatpush1.msra.mxu0 0.0
        %630 = vmatprep.subr.mxu0 0.0
        %631 = vmatpush1.msra.mxu0 0.0
        %632 = vmatprep.subr.mxu0 0.0
        %633 = vmatpush1.msra.mxu0 0.0
        %634 = vmatprep.subr.mxu0 0.0
        %635 = vmatpush1.msra.mxu0 0.0
        %636 = vmatprep.subr.mxu0 0.0
        %637 = vmatpush1.msra.mxu0 0.0
        %638 = vmatprep.subr.mxu0 0.0
        %639 = vmatpush1.msra.mxu0 0.0
        %640 = vmatprep.subr.mxu0 0.0
        %641 = vmatpush1.msra.mxu0 0.0
        %642 = vmatprep.subr.mxu0 0.0
        %643 = vmatpush1.msra.mxu0 0.0
        %644 = vmatprep.subr.mxu0 0.0
        %645 = vmatpush1.msra.mxu0 0.0
        %646 = vmatprep.subr.mxu0 0.0
        %647 = vmatpush1.msra.mxu0 0.0
        %648 = vmatprep.subr.mxu0 0.0
        %649 = vmatpush1.msra.mxu0 0.0
        %650 = vmatprep.subr.mxu0 0.0
        %651 = vmatpush1.msra.mxu0 0.0
        %652 = vmatprep.subr.mxu0 0.0
        %653 = vmatpush1.msra.mxu0 0.0
        %654 = vmatprep.subr.mxu0 0.0
        %655 = vmatpush1.msra.mxu0 0.0
        %656 = vmatprep.subr.mxu0 0.0
        %657 = vmatpush1.msra.mxu0 0.0
        %658 = vmatprep.subr.mxu0 0.0
        %659 = vmatpush1.msra.mxu0 0.0
        %660 = vmatprep.subr.mxu0 0.0
        %661 = vmatpush1.msra.mxu0 0.0
        %662 = vmatprep.subr.mxu0 0.0
        %663 = vmatpush1.msra.mxu0 0.0
        %664 = vmatprep.subr.mxu0 0.0
        %665 = vmatpush1.msra.mxu0 0.0
        %666 = vmatprep.mubr.f32.mxu0 0.0
        %667 = vmatmul.mubr.f32.gmra.mrb[0].mxu0 %v442
        %v668 = vpop.f32.mrb[0].mxu0
        %v669 = vadd.f32 %v601, %v668
        %v670 = vpop.f32.mrb[0].mxu0
        %671 = vdwg.mxu0
        %v673 = vsel %vm253, %v511, 0
        %v676 = vsel %vm253, %v590, 0
        %678 = vmatprep.subr.mxu0 0.0
        %679 = vmatpush1.xpose.msra.mxu0 %v676
        %680 = vmatprep.subr.mxu0 0.0
        %681 = vmatpush1.xpose.msra.mxu0 0.0
        %682 = vmatprep.subr.mxu0 0.0
        %683 = vmatpush1.xpose.msra.mxu0 0.0
        %684 = vmatprep.subr.mxu0 0.0
        %685 = vmatpush1.xpose.msra.mxu0 0.0
        %686 = vmatprep.subr.mxu0 0.0
        %687 = vmatpush1.xpose.msra.mxu0 0.0
        %688 = vmatprep.subr.mxu0 0.0
        %689 = vmatpush1.xpose.msra.mxu0 0.0
        %690 = vmatprep.subr.mxu0 0.0
        %691 = vmatpush1.xpose.msra.mxu0 0.0
        %692 = vmatprep.subr.mxu0 0.0
        %693 = vmatpush1.xpose.msra.mxu0 0.0
        %694 = vmatprep.subr.mxu0 0.0
        %695 = vmatpush1.xpose.msra.mxu0 0.0
        %696 = vmatprep.subr.mxu0 0.0
        %697 = vmatpush1.xpose.msra.mxu0 0.0
        %698 = vmatprep.subr.mxu0 0.0
        %699 = vmatpush1.xpose.msra.mxu0 0.0
        %700 = vmatprep.subr.mxu0 0.0
        %701 = vmatpush1.xpose.msra.mxu0 0.0
        %702 = vmatprep.subr.mxu0 0.0
        %703 = vmatpush1.xpose.msra.mxu0 0.0
        %704 = vmatprep.subr.mxu0 0.0
        %705 = vmatpush1.xpose.msra.mxu0 0.0
        %706 = vmatprep.subr.mxu0 0.0
        %707 = vmatpush1.xpose.msra.mxu0 0.0
        %708 = vmatprep.subr.mxu0 0.0
        %709 = vmatpush1.xpose.msra.mxu0 0.0
        %710 = vmatprep.subr.mxu0 0.0
        %711 = vmatpush1.xpose.msra.mxu0 0.0
        %712 = vmatprep.subr.mxu0 0.0
        %713 = vmatpush1.xpose.msra.mxu0 0.0
        %714 = vmatprep.subr.mxu0 0.0
        %715 = vmatpush1.xpose.msra.mxu0 0.0
        %716 = vmatprep.subr.mxu0 0.0
        %717 = vmatpush1.xpose.msra.mxu0 0.0
        %718 = vmatprep.subr.mxu0 0.0
        %719 = vmatpush1.xpose.msra.mxu0 0.0
        %720 = vmatprep.subr.mxu0 0.0
        %721 = vmatpush1.xpose.msra.mxu0 0.0
        %722 = vmatprep.subr.mxu0 0.0
        %723 = vmatpush1.xpose.msra.mxu0 0.0
        %724 = vmatprep.subr.mxu0 0.0
        %725 = vmatpush1.xpose.msra.mxu0 0.0
        %726 = vmatprep.subr.mxu0 0.0
        %727 = vmatpush1.xpose.msra.mxu0 0.0
        %728 = vmatprep.subr.mxu0 0.0
        %729 = vmatpush1.xpose.msra.mxu0 0.0
        %730 = vmatprep.subr.mxu0 0.0
        %731 = vmatpush1.xpose.msra.mxu0 0.0
        %732 = vmatprep.subr.mxu0 0.0
        %733 = vmatpush1.xpose.msra.mxu0 0.0
        %734 = vmatprep.subr.mxu0 0.0
        %735 = vmatpush1.xpose.msra.mxu0 0.0
        %736 = vmatprep.subr.mxu0 0.0
        %737 = vmatpush1.xpose.msra.mxu0 0.0
        %738 = vmatprep.subr.mxu0 0.0
        %739 = vmatpush1.xpose.msra.mxu0 0.0
        %740 = vmatprep.subr.mxu0 0.0
        %741 = vmatpush1.xpose.msra.mxu0 0.0
        %742 = vmatprep.mubr.f32.mxu0 0.0
        %743 = vmatmul.mubr.f32.gmra.mrb[0].mxu0 %v673
        %v744 = vpop.f32.mrb[0].mxu0
        %v745 = vadd.f32 0.0, %v744
        %v746 = vpop.f32.mrb[0].mxu0
        %747 = vdwg.mxu0
        %v748 = vmul.f32 %v745, 0.35355338
        %v749 = vadd.f32 %v748, %v404
        %v750 = vsel %vm253, %v749, -inf
        %751 = vmax.xlane.f32.xlu0 %v750
        %v752 = vpop.xlane.xlu0 %751
        %v753 = vsub.f32 %v749, %v752
        %v754 = vmul.f32 %v753, 1.442695
        %v755 = vpow.pop %v754
        %v756 = vsel %vm253, %v755, 0.0
        %757 = vadd.xlane.f32.xlu0 %v756
        %v758 = vpop.xlane.xlu0 %757
        %v759 = vrcp.pop %v758
        %v760 = vmul.f32 %v755, %v759
        %v762 = vsel %vm253, %v760, 0
        %764 = vmatprep.subr.mxu0 0.0
        %765 = vmatpush1.msra.mxu0 %v669
        %766 = vmatprep.subr.mxu0 0.0
        %767 = vmatpush1.msra.mxu0 0.0
        %768 = vmatprep.subr.mxu0 0.0
        %769 = vmatpush1.msra.mxu0 0.0
        %770 = vmatprep.subr.mxu0 0.0
        %771 = vmatpush1.msra.mxu0 0.0
        %772 = vmatprep.subr.mxu0 0.0
        %773 = vmatpush1.msra.mxu0 0.0
        %774 = vmatprep.subr.mxu0 0.0
        %775 = vmatpush1.msra.mxu0 0.0
        %776 = vmatprep.subr.mxu0 0.0
        %777 = vmatpush1.msra.mxu0 0.0
        %778 = vmatprep.subr.mxu0 0.0
        %779 = vmatpush1.msra.mxu0 0.0
        %780 = vmatprep.subr.mxu0 0.0
        %781 = vmatpush1.msra.mxu0 0.0
        %782 = vmatprep.subr.mxu0 0.0
        %783 = vmatpush1.msra.mxu0 0.0
        %784 = vmatprep.subr.mxu0 0.0
        %785 = vmatpush1.msra.mxu0 0.0
        %786 = vmatprep.subr.mxu0 0.0
        %787 = vmatpush1.msra.mxu0 0.0
        %788 = vmatprep.subr.mxu0 0.0
        %789 = vmatpush1.msra.mxu0 0.0
        %790 = vmatprep.subr.mxu0 0.0
        %791 = vmatpush1.msra.mxu0 0.0
        %792 = vmatprep.subr.mxu0 0.0
        %793 = vmatpush1.msra.mxu0 0.0
        %794 = vmatprep.subr.mxu0 0.0
        %795 = vmatpush1.msra.mxu0 0.0
        %796 = vmatprep.subr.mxu0 0.0
        %797 = vmatpush1.msra.mxu0 0.0
        %798 = vmatprep.subr.mxu0 0.0
        %799 = vmatpush1.msra.mxu0 0.0
        %800 = vmatprep.subr.mxu0 0.0
        %801 = vmatpush1.msra.mxu0 0.0
        %802 = vmatprep.subr.mxu0 0.0
        %803 = vmatpush1.msra.mxu0 0.0
        %804 = vmatprep.subr.mxu0 0.0
        %805 = vmatpush1.msra.mxu0 0.0
        %806 = vmatprep.subr.mxu0 0.0
        %807 = vmatpush1.msra.mxu0 0.0
        %808 = vmatprep.subr.mxu0 0.0
        %809 = vmatpush1.msra.mxu0 0.0
        %810 = vmatprep.subr.mxu0 0.0
        %811 = vmatpush1.msra.mxu0 0.0
        %812 = vmatprep.subr.mxu0 0.0
        %813 = vmatpush1.msra.mxu0 0.0
        %814 = vmatprep.subr.mxu0 0.0
        %815 = vmatpush1.msra.mxu0 0.0
        %816 = vmatprep.subr.mxu0 0.0
        %817 = vmatpush1.msra.mxu0 0.0
        %818 = vmatprep.subr.mxu0 0.0
        %819 = vmatpush1.msra.mxu0 0.0
        %820 = vmatprep.subr.mxu0 0.0
        %821 = vmatpush1.msra.mxu0 0.0
        %822 = vmatprep.subr.mxu0 0.0
        %823 = vmatpush1.msra.mxu0 0.0
        %824 = vmatprep.subr.mxu0 0.0
        %825 = vmatpush1.msra.mxu0 0.0
        %826 = vmatprep.subr.mxu0 0.0
        %827 = vmatpush1.msra.mxu0 0.0
        %828 = vmatprep.mubr.f32.mxu0 0.0
        %829 = vmatmul.mubr.f32.gmra.mrb[0].mxu0 %v762
        %v830 = vpop.f32.mrb[0].mxu0
        %v831 = vadd.f32 0.0, %v830
        %v832 = vpop.f32.mrb[0].mxu0
        %833 = vdwg.mxu0
        %834 = vrot.lane.b32.xlu0 %v511, 120
        %v835 = vpop.permute.xlu0 %834
        %836 = vrot.lane.b32.xlu0 %v590, 120
        %v837 = vpop.permute.xlu0 %836
        %v838 = vsel %vm253, %v835, 0
        %v840 = vsel %vm253, %v837, 0
        %842 = vmatprep.subr.mxu0 0.0
        %843 = vmatpush1.xpose.msra.mxu0 %v840
        %844 = vmatprep.subr.mxu0 0.0
        %845 = vmatpush1.xpose.msra.mxu0 0.0
        %846 = vmatprep.subr.mxu0 0.0
        %847 = vmatpush1.xpose.msra.mxu0 0.0
        %848 = vmatprep.subr.mxu0 0.0
        %849 = vmatpush1.xpose.msra.mxu0 0.0
        %850 = vmatprep.subr.mxu0 0.0
        %851 = vmatpush1.xpose.msra.mxu0 0.0
        %852 = vmatprep.subr.mxu0 0.0
        %853 = vmatpush1.xpose.msra.mxu0 0.0
        %854 = vmatprep.subr.mxu0 0.0
        %855 = vmatpush1.xpose.msra.mxu0 0.0
        %856 = vmatprep.subr.mxu0 0.0
        %857 = vmatpush1.xpose.msra.mxu0 0.0
        %858 = vmatprep.subr.mxu0 0.0
        %859 = vmatpush1.xpose.msra.mxu0 0.0
        %860 = vmatprep.subr.mxu0 0.0
        %861 = vmatpush1.xpose.msra.mxu0 0.0
        %862 = vmatprep.subr.mxu0 0.0
        %863 = vmatpush1.xpose.msra.mxu0 0.0
        %864 = vmatprep.subr.mxu0 0.0
        %865 = vmatpush1.xpose.msra.mxu0 0.0
        %866 = vmatprep.subr.mxu0 0.0
        %867 = vmatpush1.xpose.msra.mxu0 0.0
        %868 = vmatprep.subr.mxu0 0.0
        %869 = vmatpush1.xpose.msra.mxu0 0.0
        %870 = vmatprep.subr.mxu0 0.0
        %871 = vmatpush1.xpose.msra.mxu0 0.0
        %872 = vmatprep.subr.mxu0 0.0
        %873 = vmatpush1.xpose.msra.mxu0 0.0
        %874 = vmatprep.subr.mxu0 0.0
        %875 = vmatpush1.xpose.msra.mxu0 0.0
        %876 = vmatprep.subr.mxu0 0.0
        %877 = vmatpush1.xpose.msra.mxu0 0.0
        %878 = vmatprep.subr.mxu0 0.0
        %879 = vmatpush1.xpose.msra.mxu0 0.0
        %880 = vmatprep.subr.mxu0 0.0
        %881 = vmatpush1.xpose.msra.mxu0 0.0
        %882 = vmatprep.subr.mxu0 0.0
        %883 = vmatpush1.xpose.msra.mxu0 0.0
        %884 = vmatprep.subr.mxu0 0.0
        %885 = vmatpush1.xpose.msra.mxu0 0.0
        %886 = vmatprep.subr.mxu0 0.0
        %887 = vmatpush1.xpose.msra.mxu0 0.0
        %888 = vmatprep.subr.mxu0 0.0
        %889 = vmatpush1.xpose.msra.mxu0 0.0
        %890 = vmatprep.subr.mxu0 0.0
        %891 = vmatpush1.xpose.msra.mxu0 0.0
        %892 = vmatprep.subr.mxu0 0.0
        %893 = vmatpush1.xpose.msra.mxu0 0.0
        %894 = vmatprep.subr.mxu0 0.0
        %895 = vmatpush1.xpose.msra.mxu0 0.0
        %896 = vmatprep.subr.mxu0 0.0
        %897 = vmatpush1.xpose.msra.mxu0 0.0
        %898 = vmatprep.subr.mxu0 0.0
        %899 = vmatpush1.xpose.msra.mxu0 0.0
        %900 = vmatprep.subr.mxu0 0.0
        %901 = vmatpush1.xpose.msra.mxu0 0.0
        %902 = vmatprep.subr.mxu0 0.0
        %903 = vmatpush1.xpose.msra.mxu0 0.0
        %904 = vmatprep.subr.mxu0 0.0
        %905 = vmatpush1.xpose.msra.mxu0 0.0
        %906 = vmatprep.mubr.f32.mxu0 0.0
        %907 = vmatmul.mubr.f32.gmra.mrb[0].mxu0 %v838
        %v908 = vpop.f32.mrb[0].mxu0
        %v909 = vadd.f32 0.0, %v908
        %v910 = vpop.f32.mrb[0].mxu0
        %911 = vdwg.mxu0
        %v912 = vmul.f32 %v909, 0.35355338
        %v913 = vadd.f32 %v912, %v404
        %v914 = vsel %vm253, %v913, -inf
        %915 = vmax.xlane.f32.xlu0 %v914
        %v916 = vpop.xlane.xlu0 %915
        %v917 = vsub.f32 %v913, %v916
        %v918 = vmul.f32 %v917, 1.442695
        %v919 = vpow.pop %v918
        %v920 = vsel %vm253, %v919, 0.0
        %921 = vadd.xlane.f32.xlu0 %v920
        %v922 = vpop.xlane.xlu0 %921
        %v923 = vrcp.pop %v922
        %v924 = vmul.f32 %v919, %v923
        %926 = vrot.lane.b32.xlu0 %v669, 120
        %v927 = vpop.permute.xlu0 %926
        %v930 = vsel %vm253, %v924, 0
        %932 = vmatprep.subr.mxu0 0.0
        %933 = vmatpush1.msra.mxu0 %v927
        %934 = vmatprep.subr.mxu0 0.0
        %935 = vmatpush1.msra.mxu0 0.0
        %936 = vmatprep.subr.mxu0 0.0
        %937 = vmatpush1.msra.mxu0 0.0
        %938 = vmatprep.subr.mxu0 0.0
        %939 = vmatpush1.msra.mxu0 0.0
        %940 = vmatprep.subr.mxu0 0.0
        %941 = vmatpush1.msra.mxu0 0.0
        %942 = vmatprep.subr.mxu0 0.0
        %943 = vmatpush1.msra.mxu0 0.0
        %944 = vmatprep.subr.mxu0 0.0
        %945 = vmatpush1.msra.mxu0 0.0
        %946 = vmatprep.subr.mxu0 0.0
        %947 = vmatpush1.msra.mxu0 0.0
        %948 = vmatprep.subr.mxu0 0.0
        %949 = vmatpush1.msra.mxu0 0.0
        %950 = vmatprep.subr.mxu0 0.0
        %951 = vmatpush1.msra.mxu0 0.0
        %952 = vmatprep.subr.mxu0 0.0
        %953 = vmatpush1.msra.mxu0 0.0
        %954 = vmatprep.subr.mxu0 0.0
        %955 = vmatpush1.msra.mxu0 0.0
        %956 = vmatprep.subr.mxu0 0.0
        %957 = vmatpush1.msra.mxu0 0.0
        %958 = vmatprep.subr.mxu0 0.0
        %959 = vmatpush1.msra.mxu0 0.0
        %960 = vmatprep.subr.mxu0 0.0
        %961 = vmatpush1.msra.mxu0 0.0
        %962 = vmatprep.subr.mxu0 0.0
        %963 = vmatpush1.msra.mxu0 0.0
        %964 = vmatprep.subr.mxu0 0.0
        %965 = vmatpush1.msra.mxu0 0.0
        %966 = vmatprep.subr.mxu0 0.0
        %967 = vmatpush1.msra.mxu0 0.0
        %968 = vmatprep.subr.mxu0 0.0
        %969 = vmatpush1.msra.mxu0 0.0
        %970 = vmatprep.subr.mxu0 0.0
        %971 = vmatpush1.msra.mxu0 0.0
        %972 = vmatprep.subr.mxu0 0.0
        %973 = vmatpush1.msra.mxu0 0.0
        %974 = vmatprep.subr.mxu0 0.0
        %975 = vmatpush1.msra.mxu0 0.0
        %976 = vmatprep.subr.mxu0 0.0
        %977 = vmatpush1.msra.mxu0 0.0
        %978 = vmatprep.subr.mxu0 0.0
        %979 = vmatpush1.msra.mxu0 0.0
        %980 = vmatprep.subr.mxu0 0.0
        %981 = vmatpush1.msra.mxu0 0.0
        %982 = vmatprep.subr.mxu0 0.0
        %983 = vmatpush1.msra.mxu0 0.0
        %984 = vmatprep.subr.mxu0 0.0
        %985 = vmatpush1.msra.mxu0 0.0
        %986 = vmatprep.subr.mxu0 0.0
        %987 = vmatpush1.msra.mxu0 0.0
        %988 = vmatprep.subr.mxu0 0.0
        %989 = vmatpush1.msra.mxu0 0.0
        %990 = vmatprep.subr.mxu0 0.0
        %991 = vmatpush1.msra.mxu0 0.0
        %992 = vmatprep.subr.mxu0 0.0
        %993 = vmatpush1.msra.mxu0 0.0
        %994 = vmatprep.subr.mxu0 0.0
        %995 = vmatpush1.msra.mxu0 0.0
        %996 = vmatprep.mubr.f32.mxu0 0.0
        %997 = vmatmul.mubr.f32.gmra.mrb[0].mxu0 %v930
        %v998 = vpop.f32.mrb[0].mxu0
        %v999 = vadd.f32 0.0, %v998
        %v1000 = vpop.f32.mrb[0].mxu0
        %1001 = vdwg.mxu0
        %1002 = vrot.lane.b32.xlu0 %v511, 112
        %v1003 = vpop.permute.xlu0 %1002
        %1004 = vrot.lane.b32.xlu0 %v590, 112
        %v1005 = vpop.permute.xlu0 %1004
        %v1006 = vsel %vm253, %v1003, 0
        %v1008 = vsel %vm253, %v1005, 0
        %1010 = vmatprep.subr.mxu0 0.0
        %1011 = vmatpush1.xpose.msra.mxu0 %v1008
        %1012 = vmatprep.subr.mxu0 0.0
        %1013 = vmatpush1.xpose.msra.mxu0 0.0
        %1014 = vmatprep.subr.mxu0 0.0
        %1015 = vmatpush1.xpose.msra.mxu0 0.0
        %1016 = vmatprep.subr.mxu0 0.0
        %1017 = vmatpush1.xpose.msra.mxu0 0.0
        %1018 = vmatprep.subr.mxu0 0.0
        %1019 = vmatpush1.xpose.msra.mxu0 0.0
        %1020 = vmatprep.subr.mxu0 0.0
        %1021 = vmatpush1.xpose.msra.mxu0 0.0
        %1022 = vmatprep.subr.mxu0 0.0
        %1023 = vmatpush1.xpose.msra.mxu0 0.0
        %1024 = vmatprep.subr.mxu0 0.0
        %1025 = vmatpush1.xpose.msra.mxu0 0.0
        %1026 = vmatprep.subr.mxu0 0.0
        %1027 = vmatpush1.xpose.msra.mxu0 0.0
        %1028 = vmatprep.subr.mxu0 0.0
        %1029 = vmatpush1.xpose.msra.mxu0 0.0
        %1030 = vmatprep.subr.mxu0 0.0
        %1031 = vmatpush1.xpose.msra.mxu0 0.0
        %1032 = vmatprep.subr.mxu0 0.0
        %1033 = vmatpush1.xpose.msra.mxu0 0.0
        %1034 = vmatprep.subr.mxu0 0.0
        %1035 = vmatpush1.xpose.msra.mxu0 0.0
        %1036 = vmatprep.subr.mxu0 0.0
        %1037 = vmatpush1.xpose.msra.mxu0 0.0
        %1038 = vmatprep.subr.mxu0 0.0
        %1039 = vmatpush1.xpose.msra.mxu0 0.0
        %1040 = vmatprep.subr.mxu0 0.0
        %1041 = vmatpush1.xpose.msra.mxu0 0.0
        %1042 = vmatprep.subr.mxu0 0.0
        %1043 = vmatpush1.xpose.msra.mxu0 0.0
        %1044 = vmatprep.subr.mxu0 0.0
        %1045 = vmatpush1.xpose.msra.mxu0 0.0
        %1046 = vmatprep.subr.mxu0 0.0
        %1047 = vmatpush1.xpose.msra.mxu0 0.0
        %1048 = vmatprep.subr.mxu0 0.0
        %1049 = vmatpush1.xpose.msra.mxu0 0.0
        %1050 = vmatprep.subr.mxu0 0.0
        %1051 = vmatpush1.xpose.msra.mxu0 0.0
        %1052 = vmatprep.subr.mxu0 0.0
        %1053 = vmatpush1.xpose.msra.mxu0 0.0
        %1054 = vmatprep.subr.mxu0 0.0
        %1055 = vmatpush1.xpose.msra.mxu0 0.0
        %1056 = vmatprep.subr.mxu0 0.0
        %1057 = vmatpush1.xpose.msra.mxu0 0.0
        %1058 = vmatprep.subr.mxu0 0.0
        %1059 = vmatpush1.xpose.msra.mxu0 0.0
        %1060 = vmatprep.subr.mxu0 0.0
        %1061 = vmatpush1.xpose.msra.mxu0 0.0
        %1062 = vmatprep.subr.mxu0 0.0
        %1063 = vmatpush1.xpose.msra.mxu0 0.0
        %1064 = vmatprep.subr.mxu0 0.0
        %1065 = vmatpush1.xpose.msra.mxu0 0.0
        %1066 = vmatprep.subr.mxu0 0.0
        %1067 = vmatpush1.xpose.msra.mxu0 0.0
        %1068 = vmatprep.subr.mxu0 0.0
        %1069 = vmatpush1.xpose.msra.mxu0 0.0
        %1070 = vmatprep.subr.mxu0 0.0
        %1071 = vmatpush1.xpose.msra.mxu0 0.0
        %1072 = vmatprep.subr.mxu0 0.0
        %1073 = vmatpush1.xpose.msra.mxu0 0.0
        %1074 = vmatprep.mubr.f32.mxu0 0.0
        %1075 = vmatmul.mubr.f32.gmra.mrb[0].mxu0 %v1006
        %v1076 = vpop.f32.mrb[0].mxu0
        %v1077 = vadd.f32 0.0, %v1076
        %v1078 = vpop.f32.mrb[0].mxu0
        %1079 = vdwg.mxu0
        %v1080 = vmul.f32 %v1077, 0.35355338
        %v1081 = vadd.f32 %v1080, %v404
        %v1082 = vsel %vm253, %v1081, -inf
        %1083 = vmax.xlane.f32.xlu0 %v1082
        %v1084 = vpop.xlane.xlu0 %1083
        %v1085 = vsub.f32 %v1081, %v1084
        %v1086 = vmul.f32 %v1085, 1.442695
        %v1087 = vpow.pop %v1086
        %v1088 = vsel %vm253, %v1087, 0.0
        %1089 = vadd.xlane.f32.xlu0 %v1088
        %v1090 = vpop.xlane.xlu0 %1089
        %v1091 = vrcp.pop %v1090
        %v1092 = vmul.f32 %v1087, %v1091
        %1093 = vrot.lane.b32.xlu0 %v669, 112
        %v1094 = vpop.permute.xlu0 %1093
        %v1097 = vsel %vm253, %v1092, 0
        %1099 = vmatprep.subr.mxu0 0.0
        %1100 = vmatpush1.msra.mxu0 %v1094
        %1101 = vmatprep.subr.mxu0 0.0
        %1102 = vmatpush1.msra.mxu0 0.0
        %1103 = vmatprep.subr.mxu0 0.0
        %1104 = vmatpush1.msra.mxu0 0.0
        %1105 = vmatprep.subr.mxu0 0.0
        %1106 = vmatpush1.msra.mxu0 0.0
        %1107 = vmatprep.subr.mxu0 0.0
        %1108 = vmatpush1.msra.mxu0 0.0
        %1109 = vmatprep.subr.mxu0 0.0
        %1110 = vmatpush1.msra.mxu0 0.0
        %1111 = vmatprep.subr.mxu0 0.0
        %1112 = vmatpush1.msra.mxu0 0.0
        %1113 = vmatprep.subr.mxu0 0.0
        %1114 = vmatpush1.msra.mxu0 0.0
        %1115 = vmatprep.subr.mxu0 0.0
        %1116 = vmatpush1.msra.mxu0 0.0
        %1117 = vmatprep.subr.mxu0 0.0
        %1118 = vmatpush1.msra.mxu0 0.0
        %1119 = vmatprep.subr.mxu0 0.0
        %1120 = vmatpush1.msra.mxu0 0.0
        %1121 = vmatprep.subr.mxu0 0.0
        %1122 = vmatpush1.msra.mxu0 0.0
        %1123 = vmatprep.subr.mxu0 0.0
        %1124 = vmatpush1.msra.mxu0 0.0
        %1125 = vmatprep.subr.mxu0 0.0
        %1126 = vmatpush1.msra.mxu0 0.0
        %1127 = vmatprep.subr.mxu0 0.0
        %1128 = vmatpush1.msra.mxu0 0.0
        %1129 = vmatprep.subr.mxu0 0.0
        %1130 = vmatpush1.msra.mxu0 0.0
        %1131 = vmatprep.subr.mxu0 0.0
        %1132 = vmatpush1.msra.mxu0 0.0
        %1133 = vmatprep.subr.mxu0 0.0
        %1134 = vmatpush1.msra.mxu0 0.0
        %1135 = vmatprep.subr.mxu0 0.0
        %1136 = vmatpush1.msra.mxu0 0.0
        %1137 = vmatprep.subr.mxu0 0.0
        %1138 = vmatpush1.msra.mxu0 0.0
        %1139 = vmatprep.subr.mxu0 0.0
        %1140 = vmatpush1.msra.mxu0 0.0
        %1141 = vmatprep.subr.mxu0 0.0
        %1142 = vmatpush1.msra.mxu0 0.0
        %1143 = vmatprep.subr.mxu0 0.0
        %1144 = vmatpush1.msra.mxu0 0.0
        %1145 = vmatprep.subr.mxu0 0.0
        %1146 = vmatpush1.msra.mxu0 0.0
        %1147 = vmatprep.subr.mxu0 0.0
        %1148 = vmatpush1.msra.mxu0 0.0
        %1149 = vmatprep.subr.mxu0 0.0
        %1150 = vmatpush1.msra.mxu0 0.0
        %1151 = vmatprep.subr.mxu0 0.0
        %1152 = vmatpush1.msra.mxu0 0.0
        %1153 = vmatprep.subr.mxu0 0.0
        %1154 = vmatpush1.msra.mxu0 0.0
        %1155 = vmatprep.subr.mxu0 0.0
        %1156 = vmatpush1.msra.mxu0 0.0
        %1157 = vmatprep.subr.mxu0 0.0
        %1158 = vmatpush1.msra.mxu0 0.0
        %1159 = vmatprep.subr.mxu0 0.0
        %1160 = vmatpush1.msra.mxu0 0.0
        %1161 = vmatprep.subr.mxu0 0.0
        %1162 = vmatpush1.msra.mxu0 0.0
        %1163 = vmatprep.mubr.f32.mxu0 0.0
        %1164 = vmatmul.mubr.f32.gmra.mrb[0].mxu0 %v1097
        %v1165 = vpop.f32.mrb[0].mxu0
        %v1166 = vadd.f32 0.0, %v1165
        %v1167 = vpop.f32.mrb[0].mxu0
        %1168 = vdwg.mxu0
        %1169 = vrot.lane.b32.xlu0 %v511, 104
        %v1170 = vpop.permute.xlu0 %1169
        %1171 = vrot.lane.b32.xlu0 %v590, 104
        %v1172 = vpop.permute.xlu0 %1171
        %v1173 = vsel %vm253, %v1170, 0
        %v1175 = vsel %vm253, %v1172, 0
        %1177 = vmatprep.subr.mxu0 0.0
        %1178 = vmatpush1.xpose.msra.mxu0 %v1175
        %1179 = vmatprep.subr.mxu0 0.0
        %1180 = vmatpush1.xpose.msra.mxu0 0.0
        %1181 = vmatprep.subr.mxu0 0.0
        %1182 = vmatpush1.xpose.msra.mxu0 0.0
        %1183 = vmatprep.subr.mxu0 0.0
        %1184 = vmatpush1.xpose.msra.mxu0 0.0
        %1185 = vmatprep.subr.mxu0 0.0
        %1186 = vmatpush1.xpose.msra.mxu0 0.0
        %1187 = vmatprep.subr.mxu0 0.0
        %1188 = vmatpush1.xpose.msra.mxu0 0.0
        %1189 = vmatprep.subr.mxu0 0.0
        %1190 = vmatpush1.xpose.msra.mxu0 0.0
        %1191 = vmatprep.subr.mxu0 0.0
        %1192 = vmatpush1.xpose.msra.mxu0 0.0
        %1193 = vmatprep.subr.mxu0 0.0
        %1194 = vmatpush1.xpose.msra.mxu0 0.0
        %1195 = vmatprep.subr.mxu0 0.0
        %1196 = vmatpush1.xpose.msra.mxu0 0.0
        %1197 = vmatprep.subr.mxu0 0.0
        %1198 = vmatpush1.xpose.msra.mxu0 0.0
        %1199 = vmatprep.subr.mxu0 0.0
        %1200 = vmatpush1.xpose.msra.mxu0 0.0
        %1201 = vmatprep.subr.mxu0 0.0
        %1202 = vmatpush1.xpose.msra.mxu0 0.0
        %1203 = vmatprep.subr.mxu0 0.0
        %1204 = vmatpush1.xpose.msra.mxu0 0.0
        %1205 = vmatprep.subr.mxu0 0.0
        %1206 = vmatpush1.xpose.msra.mxu0 0.0
        %1207 = vmatprep.subr.mxu0 0.0
        %1208 = vmatpush1.xpose.msra.mxu0 0.0
        %1209 = vmatprep.subr.mxu0 0.0
        %1210 = vmatpush1.xpose.msra.mxu0 0.0
        %1211 = vmatprep.subr.mxu0 0.0
        %1212 = vmatpush1.xpose.msra.mxu0 0.0
        %1213 = vmatprep.subr.mxu0 0.0
        %1214 = vmatpush1.xpose.msra.mxu0 0.0
        %1215 = vmatprep.subr.mxu0 0.0
        %1216 = vmatpush1.xpose.msra.mxu0 0.0
        %1217 = vmatprep.subr.mxu0 0.0
        %1218 = vmatpush1.xpose.msra.mxu0 0.0
        %1219 = vmatprep.subr.mxu0 0.0
        %1220 = vmatpush1.xpose.msra.mxu0 0.0
        %1221 = vmatprep.subr.mxu0 0.0
        %1222 = vmatpush1.xpose.msra.mxu0 0.0
        %1223 = vmatprep.subr.mxu0 0.0
        %1224 = vmatpush1.xpose.msra.mxu0 0.0
        %1225 = vmatprep.subr.mxu0 0.0
        %1226 = vmatpush1.xpose.msra.mxu0 0.0
        %1227 = vmatprep.subr.mxu0 0.0
        %1228 = vmatpush1.xpose.msra.mxu0 0.0
        %1229 = vmatprep.subr.mxu0 0.0
        %1230 = vmatpush1.xpose.msra.mxu0 0.0
        %1231 = vmatprep.subr.mxu0 0.0
        %1232 = vmatpush1.xpose.msra.mxu0 0.0
        %1233 = vmatprep.subr.mxu0 0.0
        %1234 = vmatpush1.xpose.msra.mxu0 0.0
        %1235 = vmatprep.subr.mxu0 0.0
        %1236 = vmatpush1.xpose.msra.mxu0 0.0
        %1237 = vmatprep.subr.mxu0 0.0
        %1238 = vmatpush1.xpose.msra.mxu0 0.0
        %1239 = vmatprep.subr.mxu0 0.0
        %1240 = vmatpush1.xpose.msra.mxu0 0.0
        %1241 = vmatprep.mubr.f32.mxu0 0.0
        %1242 = vmatmul.mubr.f32.gmra.mrb[0].mxu0 %v1173
        %v1243 = vpop.f32.mrb[0].mxu0
        %v1244 = vadd.f32 0.0, %v1243
        %v1245 = vpop.f32.mrb[0].mxu0
        %1246 = vdwg.mxu0
        %v1247 = vmul.f32 %v1244, 0.35355338
        %v1248 = vadd.f32 %v1247, %v404
        %v1249 = vsel %vm253, %v1248, -inf
        %1250 = vmax.xlane.f32.xlu0 %v1249
        %v1251 = vpop.xlane.xlu0 %1250
        %v1252 = vsub.f32 %v1248, %v1251
        %v1253 = vmul.f32 %v1252, 1.442695
        %v1254 = vpow.pop %v1253
        %v1255 = vsel %vm253, %v1254, 0.0
        %1256 = vadd.xlane.f32.xlu0 %v1255
        %v1257 = vpop.xlane.xlu0 %1256
        %v1258 = vrcp.pop %v1257
        %v1259 = vmul.f32 %v1254, %v1258
        %1260 = vrot.lane.b32.xlu0 %v669, 104
        %v1261 = vpop.permute.xlu0 %1260
        %v1264 = vsel %vm253, %v1259, 0
        %1266 = vmatprep.subr.mxu0 0.0
        %1267 = vmatpush1.msra.mxu0 %v1261
        %1268 = vmatprep.subr.mxu0 0.0
        %1269 = vmatpush1.msra.mxu0 0.0
        %1270 = vmatprep.subr.mxu0 0.0
        %1271 = vmatpush1.msra.mxu0 0.0
        %1272 = vmatprep.subr.mxu0 0.0
        %1273 = vmatpush1.msra.mxu0 0.0
        %1274 = vmatprep.subr.mxu0 0.0
        %1275 = vmatpush1.msra.mxu0 0.0
        %1276 = vmatprep.subr.mxu0 0.0
        %1277 = vmatpush1.msra.mxu0 0.0
        %1278 = vmatprep.subr.mxu0 0.0
        %1279 = vmatpush1.msra.mxu0 0.0
        %1280 = vmatprep.subr.mxu0 0.0
        %1281 = vmatpush1.msra.mxu0 0.0
        %1282 = vmatprep.subr.mxu0 0.0
        %1283 = vmatpush1.msra.mxu0 0.0
        %1284 = vmatprep.subr.mxu0 0.0
        %1285 = vmatpush1.msra.mxu0 0.0
        %1286 = vmatprep.subr.mxu0 0.0
        %1287 = vmatpush1.msra.mxu0 0.0
        %1288 = vmatprep.subr.mxu0 0.0
        %1289 = vmatpush1.msra.mxu0 0.0
        %1290 = vmatprep.subr.mxu0 0.0
        %1291 = vmatpush1.msra.mxu0 0.0
        %1292 = vmatprep.subr.mxu0 0.0
        %1293 = vmatpush1.msra.mxu0 0.0
        %1294 = vmatprep.subr.mxu0 0.0
        %1295 = vmatpush1.msra.mxu0 0.0
        %1296 = vmatprep.subr.mxu0 0.0
        %1297 = vmatpush1.msra.mxu0 0.0
        %1298 = vmatprep.subr.mxu0 0.0
        %1299 = vmatpush1.msra.mxu0 0.0
        %1300 = vmatprep.subr.mxu0 0.0
        %1301 = vmatpush1.msra.mxu0 0.0
        %1302 = vmatprep.subr.mxu0 0.0
        %1303 = vmatpush1.msra.mxu0 0.0
        %1304 = vmatprep.subr.mxu0 0.0
        %1305 = vmatpush1.msra.mxu0 0.0
        %1306 = vmatprep.subr.mxu0 0.0
        %1307 = vmatpush1.msra.mxu0 0.0
        %1308 = vmatprep.subr.mxu0 0.0
        %1309 = vmatpush1.msra.mxu0 0.0
        %1310 = vmatprep.subr.mxu0 0.0
        %1311 = vmatpush1.msra.mxu0 0.0
        %1312 = vmatprep.subr.mxu0 0.0
        %1313 = vmatpush1.msra.mxu0 0.0
        %1314 = vmatprep.subr.mxu0 0.0
        %1315 = vmatpush1.msra.mxu0 0.0
        %1316 = vmatprep.subr.mxu0 0.0
        %1317 = vmatpush1.msra.mxu0 0.0
        %1318 = vmatprep.subr.mxu0 0.0
        %1319 = vmatpush1.msra.mxu0 0.0
        %1320 = vmatprep.subr.mxu0 0.0
        %1321 = vmatpush1.msra.mxu0 0.0
        %1322 = vmatprep.subr.mxu0 0.0
        %1323 = vmatpush1.msra.mxu0 0.0
        %1324 = vmatprep.subr.mxu0 0.0
        %1325 = vmatpush1.msra.mxu0 0.0
        %1326 = vmatprep.subr.mxu0 0.0
        %1327 = vmatpush1.msra.mxu0 0.0
        %1328 = vmatprep.subr.mxu0 0.0
        %1329 = vmatpush1.msra.mxu0 0.0
        %1330 = vmatprep.mubr.f32.mxu0 0.0
        %1331 = vmatmul.mubr.f32.gmra.mrb[0].mxu0 %v1264
        %v1332 = vpop.f32.mrb[0].mxu0
        %v1333 = vadd.f32 0.0, %v1332
        %v1334 = vpop.f32.mrb[0].mxu0
        %1335 = vdwg.mxu0
        %1337 = vrot.lane.b32.xlu0 %v999, 8
        %v1338 = vpop.permute.xlu0 %1337
        %1341 = vrot.lane.b32.xlu0 %v1166, 16
        %v1342 = vpop.permute.xlu0 %1341
        %1345 = vrot.lane.b32.xlu0 %v1333, 24
        %v1346 = vpop.permute.xlu0 %1345
        %v1348 = vsel %vm253, %v831, %v1338
        %vm1349 = vcmask 130048
        %v1350 = vsel %vm1349, %v1348, %v1342
        %vm1351 = vcmask 195584
        %v1352 = vsel %vm1351, %v1350, %v1346
        %v1353 = vld [vmem:[#allocation2 + $0xa0] sm:$0xff]
        %v1354 = vld [vmem:[#allocation2 + $0xa8] sm:$0xff]
        %v1355 = vld [vmem:[#allocation2 + $0xb0] sm:$0xff]
        %v1356 = vld [vmem:[#allocation2 + $0xb8] sm:$0xff]
        %v1358 = vsel %vm407, %v1352, 0
        %1360 = vmatprep.subr.mxu0 0.0
        %1361 = vmatpush1.msra.mxu0 %v1353
        %1362 = vmatprep.subr.mxu0 0.0
        %1363 = vmatpush1.msra.mxu0 %v1354
        %1364 = vmatprep.subr.mxu0 0.0
        %1365 = vmatpush1.msra.mxu0 %v1355
        %1366 = vmatprep.subr.mxu0 0.0
        %1367 = vmatpush1.msra.mxu0 %v1356
        %1368 = vmatprep.subr.mxu0 0.0
        %1369 = vmatpush1.msra.mxu0 0.0
        %1370 = vmatprep.subr.mxu0 0.0
        %1371 = vmatpush1.msra.mxu0 0.0
        %1372 = vmatprep.subr.mxu0 0.0
        %1373 = vmatpush1.msra.mxu0 0.0
        %1374 = vmatprep.subr.mxu0 0.0
        %1375 = vmatpush1.msra.mxu0 0.0
        %1376 = vmatprep.subr.mxu0 0.0
        %1377 = vmatpush1.msra.mxu0 0.0
        %1378 = vmatprep.subr.mxu0 0.0
        %1379 = vmatpush1.msra.mxu0 0.0
        %1380 = vmatprep.subr.mxu0 0.0
        %1381 = vmatpush1.msra.mxu0 0.0
        %1382 = vmatprep.subr.mxu0 0.0
        %1383 = vmatpush1.msra.mxu0 0.0
        %1384 = vmatprep.subr.mxu0 0.0
        %1385 = vmatpush1.msra.mxu0 0.0
        %1386 = vmatprep.subr.mxu0 0.0
        %1387 = vmatpush1.msra.mxu0 0.0
        %1388 = vmatprep.subr.mxu0 0.0
        %1389 = vmatpush1.msra.mxu0 0.0
        %1390 = vmatprep.subr.mxu0 0.0
        %1391 = vmatpush1.msra.mxu0 0.0
        %1392 = vmatprep.subr.mxu0 0.0
        %1393 = vmatpush1.msra.mxu0 0.0
        %1394 = vmatprep.subr.mxu0 0.0
        %1395 = vmatpush1.msra.mxu0 0.0
        %1396 = vmatprep.subr.mxu0 0.0
        %1397 = vmatpush1.msra.mxu0 0.0
        %1398 = vmatprep.subr.mxu0 0.0
        %1399 = vmatpush1.msra.mxu0 0.0
        %1400 = vmatprep.subr.mxu0 0.0
        %1401 = vmatpush1.msra.mxu0 0.0
        %1402 = vmatprep.subr.mxu0 0.0
        %1403 = vmatpush1.msra.mxu0 0.0
        %1404 = vmatprep.subr.mxu0 0.0
        %1405 = vmatpush1.msra.mxu0 0.0
        %1406 = vmatprep.subr.mxu0 0.0
        %1407 = vmatpush1.msra.mxu0 0.0
        %1408 = vmatprep.subr.mxu0 0.0
        %1409 = vmatpush1.msra.mxu0 0.0
        %1410 = vmatprep.subr.mxu0 0.0
        %1411 = vmatpush1.msra.mxu0 0.0
        %1412 = vmatprep.subr.mxu0 0.0
        %1413 = vmatpush1.msra.mxu0 0.0
        %1414 = vmatprep.subr.mxu0 0.0
        %1415 = vmatpush1.msra.mxu0 0.0
        %1416 = vmatprep.subr.mxu0 0.0
        %1417 = vmatpush1.msra.mxu0 0.0
        %1418 = vmatprep.subr.mxu0 0.0
        %1419 = vmatpush1.msra.mxu0 0.0
        %1420 = vmatprep.subr.mxu0 0.0
        %1421 = vmatpush1.msra.mxu0 0.0
        %1422 = vmatprep.subr.mxu0 0.0
        %1423 = vmatpush1.msra.mxu0 0.0
        %1424 = vmatprep.mubr.f32.mxu0 0.0
        %1425 = vmatmul.mubr.f32.gmra.mrb[0].mxu0 %v1358
        %v1426 = vpop.f32.mrb[0].mxu0
        %v1427 = vadd.f32 0.0, %v1426
        %v1428 = vpop.f32.mrb[0].mxu0
        %1429 = vdwg.mxu0
        %v1430 = vadd.f32 %v398, %v1427
        %v1431 = vld [vmem:[#allocation2 + $0xc0] sm:$0x1]
        %v1432 = vlaneseq
        %v1433 = vshrl.u32 %v1432, 7
        %v1434 = vsub.s32 0, %v1433
        %v1435 = vrot.slane %v1431, %v1434
        %v1436 = vadd.f32 %v1430, %v1435
        %v1437 = vld [vmem:[#allocation2 + $0xc8] sm:$0x1]
        %v1438 = vld [vmem:[#allocation2 + $0xd0] sm:$0x1]
        %v1439 = vsel %vm407, %v1436, 0.0
        %1440 = vadd.xlane.f32.xlu0 %v1439
        %v1441 = vpop.xlane.xlu0 %1440
        %v1442 = vmul.f32 %v1441, %v411
        %v1443 = vsub.f32 %v1436, %v1442
        %v1444 = vmul.f32 %v1443, %v1443
        %v1445 = vsel %vm407, %v1444, 0.0
        %1446 = vadd.xlane.f32.xlu0 %v1445
        %v1447 = vpop.xlane.xlu0 %1446
        %v1448 = vmul.f32 %v1447, %v411
        %v1449 = vadd.f32 %v1448, 1e-06
        %v1450 = vrsqrt.pop %v1449
        %v1451 = vmul.f32 %v1443, %v1450
        %v1452 = vlaneseq
        %v1453 = vshrl.u32 %v1452, 7
        %v1454 = vsub.s32 0, %v1453
        %v1455 = vrot.slane %v1437, %v1454
        %v1456 = vmul.f32 %v1451, %v1455
        %v1457 = vlaneseq
        %v1458 = vshrl.u32 %v1457, 7
        %v1459 = vsub.s32 0, %v1458
        %v1460 = vrot.slane %v1438, %v1459
        %v1461 = vadd.f32 %v1456, %v1460
        %v1462 = vld [vmem:[#allocation2 + $0xd8] sm:$0xff]
        %v1463 = vld [vmem:[#allocation2 + $0xe0] sm:$0xff]
        %v1464 = vld [vmem:[#allocation2 + $0xe8] sm:$0xff]
        %v1465 = vld [vmem:[#allocation2 + $0xf0] sm:$0xff]
        %v1466 = vld [vmem:[#allocation2 + $0xf8] sm:$0x1]
        %v1467 = vlaneseq
        %v1468 = vshrl.u32 %v1467, 7
        %v1469 = vsub.s32 0, %v1468
        %v1470 = vrot.slane %v1466, %v1469
        %v1472 = vsel %vm407, %v1461, 0
        %1474 = vmatprep.subr.mxu0 0.0
        %1475 = vmatpush1.msra.mxu0 %v1462
        %1476 = vmatprep.subr.mxu0 0.0
        %1477 = vmatpush1.msra.mxu0 %v1463
        %1478 = vmatprep.subr.mxu0 0.0
        %1479 = vmatpush1.msra.mxu0 %v1464
        %1480 = vmatprep.subr.mxu0 0.0
        %1481 = vmatpush1.msra.mxu0 %v1465
        %1482 = vmatprep.subr.mxu0 0.0
        %1483 = vmatpush1.msra.mxu0 0.0
        %1484 = vmatprep.subr.mxu0 0.0
        %1485 = vmatpush1.msra.mxu0 0.0
        %1486 = vmatprep.subr.mxu0 0.0
        %1487 = vmatpush1.msra.mxu0 0.0
        %1488 = vmatprep.subr.mxu0 0.0
        %1489 = vmatpush1.msra.mxu0 0.0
        %1490 = vmatprep.subr.mxu0 0.0
        %1491 = vmatpush1.msra.mxu0 0.0
        %1492 = vmatprep.subr.mxu0 0.0
        %1493 = vmatpush1.msra.mxu0 0.0
        %1494 = vmatprep.subr.mxu0 0.0
        %1495 = vmatpush1.msra.mxu0 0.0
        %1496 = vmatprep.subr.mxu0 0.0
        %1497 = vmatpush1.msra.mxu0 0.0
        %1498 = vmatprep.subr.mxu0 0.0
        %1499 = vmatpush1.msra.mxu0 0.0
        %1500 = vmatprep.subr.mxu0 0.0
        %1501 = vmatpush1.msra.mxu0 0.0
        %1502 = vmatprep.subr.mxu0 0.0
        %1503 = vmatpush1.msra.mxu0 0.0
        %1504 = vmatprep.subr.mxu0 0.0
        %1505 = vmatpush1.msra.mxu0 0.0
        %1506 = vmatprep.subr.mxu0 0.0
        %1507 = vmatpush1.msra.mxu0 0.0
        %1508 = vmatprep.subr.mxu0 0.0
        %1509 = vmatpush1.msra.mxu0 0.0
        %1510 = vmatprep.subr.mxu0 0.0
        %1511 = vmatpush1.msra.mxu0 0.0
        %1512 = vmatprep.subr.mxu0 0.0
        %1513 = vmatpush1.msra.mxu0 0.0
        %1514 = vmatprep.subr.mxu0 0.0
        %1515 = vmatpush1.msra.mxu0 0.0
        %1516 = vmatprep.subr.mxu0 0.0
        %1517 = vmatpush1.msra.mxu0 0.0
        %1518 = vmatprep.subr.mxu0 0.0
        %1519 = vmatpush1.msra.mxu0 0.0
        %1520 = vmatprep.subr.mxu0 0.0
        %1521 = vmatpush1.msra.mxu0 0.0
        %1522 = vmatprep.subr.mxu0 0.0
        %1523 = vmatpush1.msra.mxu0 0.0
        %1524 = vmatprep.subr.mxu0 0.0
        %1525 = vmatpush1.msra.mxu0 0.0
        %1526 = vmatprep.subr.mxu0 0.0
        %1527 = vmatpush1.msra.mxu0 0.0
        %1528 = vmatprep.subr.mxu0 0.0
        %1529 = vmatpush1.msra.mxu0 0.0
        %1530 = vmatprep.subr.mxu0 0.0
        %1531 = vmatpush1.msra.mxu0 0.0
        %1532 = vmatprep.subr.mxu0 0.0
        %1533 = vmatpush1.msra.mxu0 0.0
        %1534 = vmatprep.subr.mxu0 0.0
        %1535 = vmatpush1.msra.mxu0 0.0
        %1536 = vmatprep.subr.mxu0 0.0
        %1537 = vmatpush1.msra.mxu0 0.0
        %1538 = vmatprep.mubr.f32.mxu0 0.0
        %1539 = vmatmul.mubr.f32.gmra.mrb[0].mxu0 %v1472
        %v1540 = vpop.f32.mrb[0].mxu0
        %v1541 = vadd.f32 %v1470, %v1540
        %v1542 = vpop.f32.mrb[0].mxu0
        %1543 = vdwg.mxu0
        %v1544 = vmul.f32 %v1541, 0.5
        %v1545 = vmul.f32 %v1541, 0.70710677
        %v1546 = verf.f32.pop %v1545
        %v1547 = vadd.f32 %v1546, 1.0
        %v1548 = vmul.f32 %v1544, %v1547
        %v1549 = vld [vmem:[#allocation2 + $0x100] sm:$0xff]
        %v1550 = vld [vmem:[#allocation2 + $0x108] sm:$0xff]
        %v1551 = vld [vmem:[#allocation2 + $0x110] sm:$0xff]
        %v1552 = vld [vmem:[#allocation2 + $0x118] sm:$0xff]
        %v1553 = vld [vmem:[#allocation2 + $0x120] sm:$0xff]
        %v1554 = vld [vmem:[#allocation2 + $0x128] sm:$0xff]
        %v1555 = vld [vmem:[#allocation2 + $0x130] sm:$0xff]
        %v1556 = vld [vmem:[#allocation2 + $0x138] sm:$0xff]
        %v1557 = vld [vmem:[#allocation2 + $0x140] sm:$0xff]
        %v1558 = vld [vmem:[#allocation2 + $0x148] sm:$0xff]
        %v1559 = vld [vmem:[#allocation2 + $0x150] sm:$0xff]
        %v1560 = vld [vmem:[#allocation2 + $0x158] sm:$0xff]
        %v1561 = vld [vmem:[#allocation2 + $0x160] sm:$0xff]
        %v1562 = vld [vmem:[#allocation2 + $0x168] sm:$0xff]
        %v1563 = vld [vmem:[#allocation2 + $0x170] sm:$0xff]
        %v1564 = vld [vmem:[#allocation2 + $0x178] sm:$0xff]
        %v1565 = vld [vmem:[#allocation2 + $0x180] sm:$0x1]
        %v1566 = vlaneseq
        %v1567 = vshrl.u32 %v1566, 7
        %v1568 = vsub.s32 0, %v1567
        %v1569 = vrot.slane %v1565, %v1568
        %1570 = vmatprep.subr.mxu0 0.0
        %1571 = vmatpush1.msra.mxu0 %v1549
        %1572 = vmatprep.subr.mxu0 0.0
        %1573 = vmatpush1.msra.mxu0 %v1550
        %1574 = vmatprep.subr.mxu0 0.0
        %1575 = vmatpush1.msra.mxu0 %v1551
        %1576 = vmatprep.subr.mxu0 0.0
        %1577 = vmatpush1.msra.mxu0 %v1552
        %1578 = vmatprep.subr.mxu0 0.0
        %1579 = vmatpush1.msra.mxu0 %v1553
        %1580 = vmatprep.subr.mxu0 0.0
        %1581 = vmatpush1.msra.mxu0 %v1554
        %1582 = vmatprep.subr.mxu0 0.0
        %1583 = vmatpush1.msra.mxu0 %v1555
        %1584 = vmatprep.subr.mxu0 0.0
        %1585 = vmatpush1.msra.mxu0 %v1556
        %1586 = vmatprep.subr.mxu0 0.0
        %1587 = vmatpush1.msra.mxu0 %v1557
        %1588 = vmatprep.subr.mxu0 0.0
        %1589 = vmatpush1.msra.mxu0 %v1558
        %1590 = vmatprep.subr.mxu0 0.0
        %1591 = vmatpush1.msra.mxu0 %v1559
        %1592 = vmatprep.subr.mxu0 0.0
        %1593 = vmatpush1.msra.mxu0 %v1560
        %1594 = vmatprep.subr.mxu0 0.0
        %1595 = vmatpush1.msra.mxu0 %v1561
        %1596 = vmatprep.subr.mxu0 0.0
        %1597 = vmatpush1.msra.mxu0 %v1562
        %1598 = vmatprep.subr.mxu0 0.0
        %1599 = vmatpush1.msra.mxu0 %v1563
        %1600 = vmatprep.subr.mxu0 0.0
        %1601 = vmatpush1.msra.mxu0 %v1564
        %1602 = vmatprep.subr.mxu0 0.0
        %1603 = vmatpush1.msra.mxu0 0.0
        %1604 = vmatprep.subr.mxu0 0.0
        %1605 = vmatpush1.msra.mxu0 0.0
        %1606 = vmatprep.subr.mxu0 0.0
        %1607 = vmatpush1.msra.mxu0 0.0
        %1608 = vmatprep.subr.mxu0 0.0
        %1609 = vmatpush1.msra.mxu0 0.0
        %1610 = vmatprep.subr.mxu0 0.0
        %1611 = vmatpush1.msra.mxu0 0.0
        %1612 = vmatprep.subr.mxu0 0.0
        %1613 = vmatpush1.msra.mxu0 0.0
        %1614 = vmatprep.subr.mxu0 0.0
        %1615 = vmatpush1.msra.mxu0 0.0
        %1616 = vmatprep.subr.mxu0 0.0
        %1617 = vmatpush1.msra.mxu0 0.0
        %1618 = vmatprep.subr.mxu0 0.0
        %1619 = vmatpush1.msra.mxu0 0.0
        %1620 = vmatprep.subr.mxu0 0.0
        %1621 = vmatpush1.msra.mxu0 0.0
        %1622 = vmatprep.subr.mxu0 0.0
        %1623 = vmatpush1.msra.mxu0 0.0
        %1624 = vmatprep.subr.mxu0 0.0
        %1625 = vmatpush1.msra.mxu0 0.0
        %1626 = vmatprep.subr.mxu0 0.0
        %1627 = vmatpush1.msra.mxu0 0.0
        %1628 = vmatprep.subr.mxu0 0.0
        %1629 = vmatpush1.msra.mxu0 0.0
        %1630 = vmatprep.subr.mxu0 0.0
        %1631 = vmatpush1.msra.mxu0 0.0
        %1632 = vmatprep.subr.mxu0 0.0
        %1633 = vmatpush1.msra.mxu0 0.0
        %1634 = vmatprep.mubr.f32.mxu0 0.0
        %1635 = vmatmul.mubr.f32.gmra.mrb[0].mxu0 %v1548
        %v1636 = vpop.f32.mrb[0].mxu0
        %v1637 = vadd.f32 %v1569, %v1636
        %v1638 = vpop.f32.mrb[0].mxu0
        %1639 = vdwg.mxu0
        %v1640 = vadd.f32 %v1436, %v1637
        %v1641 = vld [vmem:[#allocation2 + $0x188] sm:$0x1]
        %v1642 = vld [vmem:[#allocation2 + $0x190] sm:$0x1]
        %v1643 = vsel %vm407, %v1640, 0.0
        %1644 = vadd.xlane.f32.xlu0 %v1643
        %v1645 = vpop.xlane.xlu0 %1644
        %v1646 = vmul.f32 %v1645, %v411
        %v1647 = vsub.f32 %v1640, %v1646
        %v1648 = vmul.f32 %v1647, %v1647
        %v1649 = vsel %vm407, %v1648, 0.0
        %1650 = vadd.xlane.f32.xlu0 %v1649
        %v1651 = vpop.xlane.xlu0 %1650
        %v1652 = vmul.f32 %v1651, %v411
        %v1653 = vadd.f32 %v1652, 1e-06
        %v1654 = vrsqrt.pop %v1653
        %v1655 = vmul.f32 %v1647, %v1654
        %v1656 = vlaneseq
        %v1657 = vshrl.u32 %v1656, 7
        %v1658 = vsub.s32 0, %v1657
        %v1659 = vrot.slane %v1641, %v1658
        %v1660 = vmul.f32 %v1655, %v1659
        %v1661 = vlaneseq
        %v1662 = vshrl.u32 %v1661, 7
        %v1663 = vsub.s32 0, %v1662
        %v1664 = vrot.slane %v1642, %v1663
        %v1665 = vadd.f32 %v1660, %v1664
        %v1666 = vld [vmem:[#allocation2 + $0x198] sm:$0xff]
        %v1667 = vld [vmem:[#allocation2 + $0x1a0] sm:$0xff]
        %v1668 = vld [vmem:[#allocation2 + $0x1a8] sm:$0xff]
        %v1669 = vld [vmem:[#allocation2 + $0x1b0] sm:$0xff]
        %v1670 = vld [vmem:[#allocation2 + $0x1b8] sm:$0x1]
        %v1671 = vlaneseq
        %v1672 = vshrl.u32 %v1671, 7
        %v1673 = vsub.s32 0, %v1672
        %v1674 = vrot.slane %v1670, %v1673
        %v1676 = vsel %vm407, %v1665, 0
        %1678 = vmatprep.subr.mxu0 0.0
        %1679 = vmatpush1.msra.mxu0 %v1666
        %1680 = vmatprep.subr.mxu0 0.0
        %1681 = vmatpush1.msra.mxu0 %v1667
        %1682 = vmatprep.subr.mxu0 0.0
        %1683 = vmatpush1.msra.mxu0 %v1668
        %1684 = vmatprep.subr.mxu0 0.0
        %1685 = vmatpush1.msra.mxu0 %v1669
        %1686 = vmatprep.subr.mxu0 0.0
        %1687 = vmatpush1.msra.mxu0 0.0
        %1688 = vmatprep.subr.mxu0 0.0
        %1689 = vmatpush1.msra.mxu0 0.0
        %1690 = vmatprep.subr.mxu0 0.0
        %1691 = vmatpush1.msra.mxu0 0.0
        %1692 = vmatprep.subr.mxu0 0.0
        %1693 = vmatpush1.msra.mxu0 0.0
        %1694 = vmatprep.subr.mxu0 0.0
        %1695 = vmatpush1.msra.mxu0 0.0
        %1696 = vmatprep.subr.mxu0 0.0
        %1697 = vmatpush1.msra.mxu0 0.0
        %1698 = vmatprep.subr.mxu0 0.0
        %1699 = vmatpush1.msra.mxu0 0.0
        %1700 = vmatprep.subr.mxu0 0.0
        %1701 = vmatpush1.msra.mxu0 0.0
        %1702 = vmatprep.subr.mxu0 0.0
        %1703 = vmatpush1.msra.mxu0 0.0
        %1704 = vmatprep.subr.mxu0 0.0
        %1705 = vmatpush1.msra.mxu0 0.0
        %1706 = vmatprep.subr.mxu0 0.0
        %1707 = vmatpush1.msra.mxu0 0.0
        %1708 = vmatprep.subr.mxu0 0.0
        %1709 = vmatpush1.msra.mxu0 0.0
        %1710 = vmatprep.subr.mxu0 0.0
        %1711 = vmatpush1.msra.mxu0 0.0
        %1712 = vmatprep.subr.mxu0 0.0
        %1713 = vmatpush1.msra.mxu0 0.0
        %1714 = vmatprep.subr.mxu0 0.0
        %1715 = vmatpush1.msra.mxu0 0.0
        %1716 = vmatprep.subr.mxu0 0.0
        %1717 = vmatpush1.msra.mxu0 0.0
        %1718 = vmatprep.subr.mxu0 0.0
        %1719 = vmatpush1.msra.mxu0 0.0
        %1720 = vmatprep.subr.mxu0 0.0
        %1721 = vmatpush1.msra.mxu0 0.0
        %1722 = vmatprep.subr.mxu0 0.0
        %1723 = vmatpush1.msra.mxu0 0.0
        %1724 = vmatprep.subr.mxu0 0.0
        %1725 = vmatpush1.msra.mxu0 0.0
        %1726 = vmatprep.subr.mxu0 0.0
        %1727 = vmatpush1.msra.mxu0 0.0
        %1728 = vmatprep.subr.mxu0 0.0
        %1729 = vmatpush1.msra.mxu0 0.0
        %1730 = vmatprep.subr.mxu0 0.0
        %1731 = vmatpush1.msra.mxu0 0.0
        %1732 = vmatprep.subr.mxu0 0.0
        %1733 = vmatpush1.msra.mxu0 0.0
        %1734 = vmatprep.subr.mxu0 0.0
        %1735 = vmatpush1.msra.mxu0 0.0
        %1736 = vmatprep.subr.mxu0 0.0
        %1737 = vmatpush1.msra.mxu0 0.0
        %1738 = vmatprep.subr.mxu0 0.0
        %1739 = vmatpush1.msra.mxu0 0.0
        %1740 = vmatprep.subr.mxu0 0.0
        %1741 = vmatpush1.msra.mxu0 0.0
        %1742 = vmatprep.mubr.f32.mxu0 0.0
        %1743 = vmatmul.mubr.f32.gmra.mrb[0].mxu0 %v1676
        %v1744 = vpop.f32.mrb[0].mxu0
        %v1745 = vadd.f32 %v1674, %v1744
        %v1746 = vpop.f32.mrb[0].mxu0
        %1747 = vdwg.mxu0
        %v1748 = vld [vmem:[#allocation2 + $0x1c0] sm:$0xff]
        %v1749 = vld [vmem:[#allocation2 + $0x1c8] sm:$0xff]
        %v1750 = vld [vmem:[#allocation2 + $0x1d0] sm:$0xff]
        %v1751 = vld [vmem:[#allocation2 + $0x1d8] sm:$0xff]
        %v1752 = vld [vmem:[#allocation2 + $0x1e0] sm:$0x1]
        %v1753 = vlaneseq
        %v1754 = vshrl.u32 %v1753, 7
        %v1755 = vsub.s32 0, %v1754
        %v1756 = vrot.slane %v1752, %v1755
        %1757 = vmatprep.subr.mxu0 0.0
        %1758 = vmatpush1.msra.mxu0 %v1748
        %1759 = vmatprep.subr.mxu0 0.0
        %1760 = vmatpush1.msra.mxu0 %v1749
        %1761 = vmatprep.subr.mxu0 0.0
        %1762 = vmatpush1.msra.mxu0 %v1750
        %1763 = vmatprep.subr.mxu0 0.0
        %1764 = vmatpush1.msra.mxu0 %v1751
        %1765 = vmatprep.subr.mxu0 0.0
        %1766 = vmatpush1.msra.mxu0 0.0
        %1767 = vmatprep.subr.mxu0 0.0
        %1768 = vmatpush1.msra.mxu0 0.0
        %1769 = vmatprep.subr.mxu0 0.0
        %1770 = vmatpush1.msra.mxu0 0.0
        %1771 = vmatprep.subr.mxu0 0.0
        %1772 = vmatpush1.msra.mxu0 0.0
        %1773 = vmatprep.subr.mxu0 0.0
        %1774 = vmatpush1.msra.mxu0 0.0
        %1775 = vmatprep.subr.mxu0 0.0
        %1776 = vmatpush1.msra.mxu0 0.0
        %1777 = vmatprep.subr.mxu0 0.0
        %1778 = vmatpush1.msra.mxu0 0.0
        %1779 = vmatprep.subr.mxu0 0.0
        %1780 = vmatpush1.msra.mxu0 0.0
        %1781 = vmatprep.subr.mxu0 0.0
        %1782 = vmatpush1.msra.mxu0 0.0
        %1783 = vmatprep.subr.mxu0 0.0
        %1784 = vmatpush1.msra.mxu0 0.0
        %1785 = vmatprep.subr.mxu0 0.0
        %1786 = vmatpush1.msra.mxu0 0.0
        %1787 = vmatprep.subr.mxu0 0.0
        %1788 = vmatpush1.msra.mxu0 0.0
        %1789 = vmatprep.subr.mxu0 0.0
        %1790 = vmatpush1.msra.mxu0 0.0
        %1791 = vmatprep.subr.mxu0 0.0
        %1792 = vmatpush1.msra.mxu0 0.0
        %1793 = vmatprep.subr.mxu0 0.0
        %1794 = vmatpush1.msra.mxu0 0.0
        %1795 = vmatprep.subr.mxu0 0.0
        %1796 = vmatpush1.msra.mxu0 0.0
        %1797 = vmatprep.subr.mxu0 0.0
        %1798 = vmatpush1.msra.mxu0 0.0
        %1799 = vmatprep.subr.mxu0 0.0
        %1800 = vmatpush1.msra.mxu0 0.0
        %1801 = vmatprep.subr.mxu0 0.0
        %1802 = vmatpush1.msra.mxu0 0.0
        %1803 = vmatprep.subr.mxu0 0.0
        %1804 = vmatpush1.msra.mxu0 0.0
        %1805 = vmatprep.subr.mxu0 0.0
        %1806 = vmatpush1.msra.mxu0 0.0
        %1807 = vmatprep.subr.mxu0 0.0
        %1808 = vmatpush1.msra.mxu0 0.0
        %1809 = vmatprep.subr.mxu0 0.0
        %1810 = vmatpush1.msra.mxu0 0.0
        %1811 = vmatprep.subr.mxu0 0.0
        %1812 = vmatpush1.msra.mxu0 0.0
        %1813 = vmatprep.subr.mxu0 0.0
        %1814 = vmatpush1.msra.mxu0 0.0
        %1815 = vmatprep.subr.mxu0 0.0
        %1816 = vmatpush1.msra.mxu0 0.0
        %1817 = vmatprep.subr.mxu0 0.0
        %1818 = vmatpush1.msra.mxu0 0.0
        %1819 = vmatprep.subr.mxu0 0.0
        %1820 = vmatpush1.msra.mxu0 0.0
        %1821 = vmatprep.mubr.f32.mxu0 0.0
        %1822 = vmatmul.mubr.f32.gmra.mrb[0].mxu0 %v1676
        %v1823 = vpop.f32.mrb[0].mxu0
        %v1824 = vadd.f32 %v1756, %v1823
        %v1825 = vpop.f32.mrb[0].mxu0
        %1826 = vdwg.mxu0
        %v1827 = vld [vmem:[#allocation2 + $0x1e8] sm:$0xff]
        %v1828 = vld [vmem:[#allocation2 + $0x1f0] sm:$0xff]
        %v1829 = vld [vmem:[#allocation2 + $0x1f8] sm:$0xff]
        %v1830 = vld [vmem:[#allocation2 + $0x200] sm:$0xff]
        %v1831 = vld [vmem:[#allocation2 + $0x208] sm:$0x1]
        %v1832 = vlaneseq
        %v1833 = vshrl.u32 %v1832, 7
        %v1834 = vsub.s32 0, %v1833
        %v1835 = vrot.slane %v1831, %v1834
        %1836 = vmatprep.subr.mxu0 0.0
        %1837 = vmatpush1.msra.mxu0 %v1827
        %1838 = vmatprep.subr.mxu0 0.0
        %1839 = vmatpush1.msra.mxu0 %v1828
        %1840 = vmatprep.subr.mxu0 0.0
        %1841 = vmatpush1.msra.mxu0 %v1829
        %1842 = vmatprep.subr.mxu0 0.0
        %1843 = vmatpush1.msra.mxu0 %v1830
        %1844 = vmatprep.subr.mxu0 0.0
        %1845 = vmatpush1.msra.mxu0 0.0
        %1846 = vmatprep.subr.mxu0 0.0
        %1847 = vmatpush1.msra.mxu0 0.0
        %1848 = vmatprep.subr.mxu0 0.0
        %1849 = vmatpush1.msra.mxu0 0.0
        %1850 = vmatprep.subr.mxu0 0.0
        %1851 = vmatpush1.msra.mxu0 0.0
        %1852 = vmatprep.subr.mxu0 0.0
        %1853 = vmatpush1.msra.mxu0 0.0
        %1854 = vmatprep.subr.mxu0 0.0
        %1855 = vmatpush1.msra.mxu0 0.0
        %1856 = vmatprep.subr.mxu0 0.0
        %1857 = vmatpush1.msra.mxu0 0.0
        %1858 = vmatprep.subr.mxu0 0.0
        %1859 = vmatpush1.msra.mxu0 0.0
        %1860 = vmatprep.subr.mxu0 0.0
        %1861 = vmatpush1.msra.mxu0 0.0
        %1862 = vmatprep.subr.mxu0 0.0
        %1863 = vmatpush1.msra.mxu0 0.0
        %1864 = vmatprep.subr.mxu0 0.0
        %1865 = vmatpush1.msra.mxu0 0.0
        %1866 = vmatprep.subr.mxu0 0.0
        %1867 = vmatpush1.msra.mxu0 0.0
        %1868 = vmatprep.subr.mxu0 0.0
        %1869 = vmatpush1.msra.mxu0 0.0
        %1870 = vmatprep.subr.mxu0 0.0
        %1871 = vmatpush1.msra.mxu0 0.0
        %1872 = vmatprep.subr.mxu0 0.0
        %1873 = vmatpush1.msra.mxu0 0.0
        %1874 = vmatprep.subr.mxu0 0.0
        %1875 = vmatpush1.msra.mxu0 0.0
        %1876 = vmatprep.subr.mxu0 0.0
        %1877 = vmatpush1.msra.mxu0 0.0
        %1878 = vmatprep.subr.mxu0 0.0
        %1879 = vmatpush1.msra.mxu0 0.0
        %1880 = vmatprep.subr.mxu0 0.0
        %1881 = vmatpush1.msra.mxu0 0.0
        %1882 = vmatprep.subr.mxu0 0.0
        %1883 = vmatpush1.msra.mxu0 0.0
        %1884 = vmatprep.subr.mxu0 0.0
        %1885 = vmatpush1.msra.mxu0 0.0
        %1886 = vmatprep.subr.mxu0 0.0
        %1887 = vmatpush1.msra.mxu0 0.0
        %1888 = vmatprep.subr.mxu0 0.0
        %1889 = vmatpush1.msra.mxu0 0.0
        %1890 = vmatprep.subr.mxu0 0.0
        %1891 = vmatpush1.msra.mxu0 0.0
        %1892 = vmatprep.subr.mxu0 0.0
        %1893 = vmatpush1.msra.mxu0 0.0
        %1894 = vmatprep.subr.mxu0 0.0
        %1895 = vmatpush1.msra.mxu0 0.0
        %1896 = vmatprep.subr.mxu0 0.0
        %1897 = vmatpush1.msra.mxu0 0.0
        %1898 = vmatprep.subr.mxu0 0.0
        %1899 = vmatpush1.msra.mxu0 0.0
        %1900 = vmatprep.mubr.f32.mxu0 0.0
        %1901 = vmatmul.mubr.f32.gmra.mrb[0].mxu0 %v1676
        %v1902 = vpop.f32.mrb[0].mxu0
        %v1903 = vadd.f32 %v1835, %v1902
        %v1904 = vpop.f32.mrb[0].mxu0
        %1905 = vdwg.mxu0
        %v1907 = vsel %vm253, %v1745, 0
        %v1910 = vsel %vm253, %v1824, 0
        %1912 = vmatprep.subr.mxu0 0.0
        %1913 = vmatpush1.xpose.msra.mxu0 %v1910
        %1914 = vmatprep.subr.mxu0 0.0
        %1915 = vmatpush1.xpose.msra.mxu0 0.0
        %1916 = vmatprep.subr.mxu0 0.0
        %1917 = vmatpush1.xpose.msra.mxu0 0.0
        %1918 = vmatprep.subr.mxu0 0.0
        %1919 = vmatpush1.xpose.msra.mxu0 0.0
        %1920 = vmatprep.subr.mxu0 0.0
        %1921 = vmatpush1.xpose.msra.mxu0 0.0
        %1922 = vmatprep.subr.mxu0 0.0
        %1923 = vmatpush1.xpose.msra.mxu0 0.0
        %1924 = vmatprep.subr.mxu0 0.0
        %1925 = vmatpush1.xpose.msra.mxu0 0.0
        %1926 = vmatprep.subr.mxu0 0.0
        %1927 = vmatpush1.xpose.msra.mxu0 0.0
        %1928 = vmatprep.subr.mxu0 0.0
        %1929 = vmatpush1.xpose.msra.mxu0 0.0
        %1930 = vmatprep.subr.mxu0 0.0
        %1931 = vmatpush1.xpose.msra.mxu0 0.0
        %1932 = vmatprep.subr.mxu0 0.0
        %1933 = vmatpush1.xpose.msra.mxu0 0.0
        %1934 = vmatprep.subr.mxu0 0.0
        %1935 = vmatpush1.xpose.msra.mxu0 0.0
        %1936 = vmatprep.subr.mxu0 0.0
        %1937 = vmatpush1.xpose.msra.mxu0 0.0
        %1938 = vmatprep.subr.mxu0 0.0
        %1939 = vmatpush1.xpose.msra.mxu0 0.0
        %1940 = vmatprep.subr.mxu0 0.0
        %1941 = vmatpush1.xpose.msra.mxu0 0.0
        %1942 = vmatprep.subr.mxu0 0.0
        %1943 = vmatpush1.xpose.msra.mxu0 0.0
        %1944 = vmatprep.subr.mxu0 0.0
        %1945 = vmatpush1.xpose.msra.mxu0 0.0
        %1946 = vmatprep.subr.mxu0 0.0
        %1947 = vmatpush1.xpose.msra.mxu0 0.0
        %1948 = vmatprep.subr.mxu0 0.0
        %1949 = vmatpush1.xpose.msra.mxu0 0.0
        %1950 = vmatprep.subr.mxu0 0.0
        %1951 = vmatpush1.xpose.msra.mxu0 0.0
        %1952 = vmatprep.subr.mxu0 0.0
        %1953 = vmatpush1.xpose.msra.mxu0 0.0
        %1954 = vmatprep.subr.mxu0 0.0
        %1955 = vmatpush1.xpose.msra.mxu0 0.0
        %1956 = vmatprep.subr.mxu0 0.0
        %1957 = vmatpush1.xpose.msra.mxu0 0.0
        %1958 = vmatprep.subr.mxu0 0.0
        %1959 = vmatpush1.xpose.msra.mxu0 0.0
        %1960 = vmatprep.subr.mxu0 0.0
        %1961 = vmatpush1.xpose.msra.mxu0 0.0
        %1962 = vmatprep.subr.mxu0 0.0
        %1963 = vmatpush1.xpose.msra.mxu0 0.0
        %1964 = vmatprep.subr.mxu0 0.0
        %1965 = vmatpush1.xpose.msra.mxu0 0.0
        %1966 = vmatprep.subr.mxu0 0.0
        %1967 = vmatpush1.xpose.msra.mxu0 0.0
        %1968 = vmatprep.subr.mxu0 0.0
        %1969 = vmatpush1.xpose.msra.mxu0 0.0
        %1970 = vmatprep.subr.mxu0 0.0
        %1971 = vmatpush1.xpose.msra.mxu0 0.0
        %1972 = vmatprep.subr.mxu0 0.0
        %1973 = vmatpush1.xpose.msra.mxu0 0.0
        %1974 = vmatprep.subr.mxu0 0.0
        %1975 = vmatpush1.xpose.msra.mxu0 0.0
        %1976 = vmatprep.mubr.f32.mxu0 0.0
        %1977 = vmatmul.mubr.f32.gmra.mrb[0].mxu0 %v1907
        %v1978 = vpop.f32.mrb[0].mxu0
        %v1979 = vadd.f32 0.0, %v1978
        %v1980 = vpop.f32.mrb[0].mxu0
        %1981 = vdwg.mxu0
        %v1982 = vmul.f32 %v1979, 0.35355338
        %v1983 = vadd.f32 %v1982, %v404
        %v1984 = vsel %vm253, %v1983, -inf
        %1985 = vmax.xlane.f32.xlu0 %v1984
        %v1986 = vpop.xlane.xlu0 %1985
        %v1987 = vsub.f32 %v1983, %v1986
        %v1988 = vmul.f32 %v1987, 1.442695
        %v1989 = vpow.pop %v1988
        %v1990 = vsel %vm253, %v1989, 0.0
        %1991 = vadd.xlane.f32.xlu0 %v1990
        %v1992 = vpop.xlane.xlu0 %1991
        %v1993 = vrcp.pop %v1992
        %v1994 = vmul.f32 %v1989, %v1993
        %v1996 = vsel %vm253, %v1994, 0
        %1998 = vmatprep.subr.mxu0 0.0
        %1999 = vmatpush1.msra.mxu0 %v1903
        %2000 = vmatprep.subr.mxu0 0.0
        %2001 = vmatpush1.msra.mxu0 0.0
        %2002 = vmatprep.subr.mxu0 0.0
        %2003 = vmatpush1.msra.mxu0 0.0
        %2004 = vmatprep.subr.mxu0 0.0
        %2005 = vmatpush1.msra.mxu0 0.0
        %2006 = vmatprep.subr.mxu0 0.0
        %2007 = vmatpush1.msra.mxu0 0.0
        %2008 = vmatprep.subr.mxu0 0.0
        %2009 = vmatpush1.msra.mxu0 0.0
        %2010 = vmatprep.subr.mxu0 0.0
        %2011 = vmatpush1.msra.mxu0 0.0
        %2012 = vmatprep.subr.mxu0 0.0
        %2013 = vmatpush1.msra.mxu0 0.0
        %2014 = vmatprep.subr.mxu0 0.0
        %2015 = vmatpush1.msra.mxu0 0.0
        %2016 = vmatprep.subr.mxu0 0.0
        %2017 = vmatpush1.msra.mxu0 0.0
        %2018 = vmatprep.subr.mxu0 0.0
        %2019 = vmatpush1.msra.mxu0 0.0
        %2020 = vmatprep.subr.mxu0 0.0
        %2021 = vmatpush1.msra.mxu0 0.0
        %2022 = vmatprep.subr.mxu0 0.0
        %2023 = vmatpush1.msra.mxu0 0.0
        %2024 = vmatprep.subr.mxu0 0.0
        %2025 = vmatpush1.msra.mxu0 0.0
        %2026 = vmatprep.subr.mxu0 0.0
        %2027 = vmatpush1.msra.mxu0 0.0
        %2028 = vmatprep.subr.mxu0 0.0
        %2029 = vmatpush1.msra.mxu0 0.0
        %2030 = vmatprep.subr.mxu0 0.0
        %2031 = vmatpush1.msra.mxu0 0.0
        %2032 = vmatprep.subr.mxu0 0.0
        %2033 = vmatpush1.msra.mxu0 0.0
        %2034 = vmatprep.subr.mxu0 0.0
        %2035 = vmatpush1.msra.mxu0 0.0
        %2036 = vmatprep.subr.mxu0 0.0
        %2037 = vmatpush1.msra.mxu0 0.0
        %2038 = vmatprep.subr.mxu0 0.0
        %2039 = vmatpush1.msra.mxu0 0.0
        %2040 = vmatprep.subr.mxu0 0.0
        %2041 = vmatpush1.msra.mxu0 0.0
        %2042 = vmatprep.subr.mxu0 0.0
        %2043 = vmatpush1.msra.mxu0 0.0
        %2044 = vmatprep.subr.mxu0 0.0
        %2045 = vmatpush1.msra.mxu0 0.0
        %2046 = vmatprep.subr.mxu0 0.0
        %2047 = vmatpush1.msra.mxu0 0.0
        %2048 = vmatprep.subr.mxu0 0.0
        %2049 = vmatpush1.msra.mxu0 0.0
        %2050 = vmatprep.subr.mxu0 0.0
        %2051 = vmatpush1.msra.mxu0 0.0
        %2052 = vmatprep.subr.mxu0 0.0
        %2053 = vmatpush1.msra.mxu0 0.0
        %2054 = vmatprep.subr.mxu0 0.0
        %2055 = vmatpush1.msra.mxu0 0.0
        %2056 = vmatprep.subr.mxu0 0.0
        %2057 = vmatpush1.msra.mxu0 0.0
        %2058 = vmatprep.subr.mxu0 0.0
        %2059 = vmatpush1.msra.mxu0 0.0
        %2060 = vmatprep.subr.mxu0 0.0
        %2061 = vmatpush1.msra.mxu0 0.0
        %2062 = vmatprep.mubr.f32.mxu0 0.0
        %2063 = vmatmul.mubr.f32.gmra.mrb[0].mxu0 %v1996
        %v2064 = vpop.f32.mrb[0].mxu0
        %v2065 = vadd.f32 0.0, %v2064
        %v2066 = vpop.f32.mrb[0].mxu0
        %2067 = vdwg.mxu0
        %2068 = vrot.lane.b32.xlu0 %v1745, 120
        %v2069 = vpop.permute.xlu0 %2068
        %2070 = vrot.lane.b32.xlu0 %v1824, 120
        %v2071 = vpop.permute.xlu0 %2070
        %v2072 = vsel %vm253, %v2069, 0
        %v2074 = vsel %vm253, %v2071, 0
        %2076 = vmatprep.subr.mxu0 0.0
        %2077 = vmatpush1.xpose.msra.mxu0 %v2074
        %2078 = vmatprep.subr.mxu0 0.0
        %2079 = vmatpush1.xpose.msra.mxu0 0.0
        %2080 = vmatprep.subr.mxu0 0.0
        %2081 = vmatpush1.xpose.msra.mxu0 0.0
        %2082 = vmatprep.subr.mxu0 0.0
        %2083 = vmatpush1.xpose.msra.mxu0 0.0
        %2084 = vmatprep.subr.mxu0 0.0
        %2085 = vmatpush1.xpose.msra.mxu0 0.0
        %2086 = vmatprep.subr.mxu0 0.0
        %2087 = vmatpush1.xpose.msra.mxu0 0.0
        %2088 = vmatprep.subr.mxu0 0.0
        %2089 = vmatpush1.xpose.msra.mxu0 0.0
        %2090 = vmatprep.subr.mxu0 0.0
        %2091 = vmatpush1.xpose.msra.mxu0 0.0
        %2092 = vmatprep.subr.mxu0 0.0
        %2093 = vmatpush1.xpose.msra.mxu0 0.0
        %2094 = vmatprep.subr.mxu0 0.0
        %2095 = vmatpush1.xpose.msra.mxu0 0.0
        %2096 = vmatprep.subr.mxu0 0.0
        %2097 = vmatpush1.xpose.msra.mxu0 0.0
        %2098 = vmatprep.subr.mxu0 0.0
        %2099 = vmatpush1.xpose.msra.mxu0 0.0
        %2100 = vmatprep.subr.mxu0 0.0
        %2101 = vmatpush1.xpose.msra.mxu0 0.0
        %2102 = vmatprep.subr.mxu0 0.0
        %2103 = vmatpush1.xpose.msra.mxu0 0.0
        %2104 = vmatprep.subr.mxu0 0.0
        %2105 = vmatpush1.xpose.msra.mxu0 0.0
        %2106 = vmatprep.subr.mxu0 0.0
        %2107 = vmatpush1.xpose.msra.mxu0 0.0
        %2108 = vmatprep.subr.mxu0 0.0
        %2109 = vmatpush1.xpose.msra.mxu0 0.0
        %2110 = vmatprep.subr.mxu0 0.0
        %2111 = vmatpush1.xpose.msra.mxu0 0.0
        %2112 = vmatprep.subr.mxu0 0.0
        %2113 = vmatpush1.xpose.msra.mxu0 0.0
        %2114 = vmatprep.subr.mxu0 0.0
        %2115 = vmatpush1.xpose.msra.mxu0 0.0
        %2116 = vmatprep.subr.mxu0 0.0
        %2117 = vmatpush1.xpose.msra.mxu0 0.0
        %2118 = vmatprep.subr.mxu0 0.0
        %2119 = vmatpush1.xpose.msra.mxu0 0.0
        %2120 = vmatprep.subr.mxu0 0.0
        %2121 = vmatpush1.xpose.msra.mxu0 0.0
        %2122 = vmatprep.subr.mxu0 0.0
        %2123 = vmatpush1.xpose.msra.mxu0 0.0
        %2124 = vmatprep.subr.mxu0 0.0
        %2125 = vmatpush1.xpose.msra.mxu0 0.0
        %2126 = vmatprep.subr.mxu0 0.0
        %2127 = vmatpush1.xpose.msra.mxu0 0.0
        %2128 = vmatprep.subr.mxu0 0.0
        %2129 = vmatpush1.xpose.msra.mxu0 0.0
        %2130 = vmatprep.subr.mxu0 0.0
        %2131 = vmatpush1.xpose.msra.mxu0 0.0
        %2132 = vmatprep.subr.mxu0 0.0
        %2133 = vmatpush1.xpose.msra.mxu0 0.0
        %2134 = vmatprep.subr.mxu0 0.0
        %2135 = vmatpush1.xpose.msra.mxu0 0.0
        %2136 = vmatprep.subr.mxu0 0.0
        %2137 = vmatpush1.xpose.msra.mxu0 0.0
        %2138 = vmatprep.subr.mxu0 0.0
        %2139 = vmatpush1.xpose.msra.mxu0 0.0
        %2140 = vmatprep.mubr.f32.mxu0 0.0
        %2141 = vmatmul.mubr.f32.gmra.mrb[0].mxu0 %v2072
        %v2142 = vpop.f32.mrb[0].mxu0
        %v2143 = vadd.f32 0.0, %v2142
        %v2144 = vpop.f32.mrb[0].mxu0
        %2145 = vdwg.mxu0
        %v2146 = vmul.f32 %v2143, 0.35355338
        %v2147 = vadd.f32 %v2146, %v404
        %v2148 = vsel %vm253, %v2147, -inf
        %2149 = vmax.xlane.f32.xlu0 %v2148
        %v2150 = vpop.xlane.xlu0 %2149
        %v2151 = vsub.f32 %v2147, %v2150
        %v2152 = vmul.f32 %v2151, 1.442695
        %v2153 = vpow.pop %v2152
        %v2154 = vsel %vm253, %v2153, 0.0
        %2155 = vadd.xlane.f32.xlu0 %v2154
        %v2156 = vpop.xlane.xlu0 %2155
        %v2157 = vrcp.pop %v2156
        %v2158 = vmul.f32 %v2153, %v2157
        %2160 = vrot.lane.b32.xlu0 %v1903, 120
        %v2161 = vpop.permute.xlu0 %2160
        %v2164 = vsel %vm253, %v2158, 0
        %2166 = vmatprep.subr.mxu0 0.0
        %2167 = vmatpush1.msra.mxu0 %v2161
        %2168 = vmatprep.subr.mxu0 0.0
        %2169 = vmatpush1.msra.mxu0 0.0
        %2170 = vmatprep.subr.mxu0 0.0
        %2171 = vmatpush1.msra.mxu0 0.0
        %2172 = vmatprep.subr.mxu0 0.0
        %2173 = vmatpush1.msra.mxu0 0.0
        %2174 = vmatprep.subr.mxu0 0.0
        %2175 = vmatpush1.msra.mxu0 0.0
        %2176 = vmatprep.subr.mxu0 0.0
        %2177 = vmatpush1.msra.mxu0 0.0
        %2178 = vmatprep.subr.mxu0 0.0
        %2179 = vmatpush1.msra.mxu0 0.0
        %2180 = vmatprep.subr.mxu0 0.0
        %2181 = vmatpush1.msra.mxu0 0.0
        %2182 = vmatprep.subr.mxu0 0.0
        %2183 = vmatpush1.msra.mxu0 0.0
        %2184 = vmatprep.subr.mxu0 0.0
        %2185 = vmatpush1.msra.mxu0 0.0
        %2186 = vmatprep.subr.mxu0 0.0
        %2187 = vmatpush1.msra.mxu0 0.0
        %2188 = vmatprep.subr.mxu0 0.0
        %2189 = vmatpush1.msra.mxu0 0.0
        %2190 = vmatprep.subr.mxu0 0.0
        %2191 = vmatpush1.msra.mxu0 0.0
        %2192 = vmatprep.subr.mxu0 0.0
        %2193 = vmatpush1.msra.mxu0 0.0
        %2194 = vmatprep.subr.mxu0 0.0
        %2195 = vmatpush1.msra.mxu0 0.0
        %2196 = vmatprep.subr.mxu0 0.0
        %2197 = vmatpush1.msra.mxu0 0.0
        %2198 = vmatprep.subr.mxu0 0.0
        %2199 = vmatpush1.msra.mxu0 0.0
        %2200 = vmatprep.subr.mxu0 0.0
        %2201 = vmatpush1.msra.mxu0 0.0
        %2202 = vmatprep.subr.mxu0 0.0
        %2203 = vmatpush1.msra.mxu0 0.0
        %2204 = vmatprep.subr.mxu0 0.0
        %2205 = vmatpush1.msra.mxu0 0.0
        %2206 = vmatprep.subr.mxu0 0.0
        %2207 = vmatpush1.msra.mxu0 0.0
        %2208 = vmatprep.subr.mxu0 0.0
        %2209 = vmatpush1.msra.mxu0 0.0
        %2210 = vmatprep.subr.mxu0 0.0
        %2211 = vmatpush1.msra.mxu0 0.0
        %2212 = vmatprep.subr.mxu0 0.0
        %2213 = vmatpush1.msra.mxu0 0.0
        %2214 = vmatprep.subr.mxu0 0.0
        %2215 = vmatpush1.msra.mxu0 0.0
        %2216 = vmatprep.subr.mxu0 0.0
        %2217 = vmatpush1.msra.mxu0 0.0
        %2218 = vmatprep.subr.mxu0 0.0
        %2219 = vmatpush1.msra.mxu0 0.0
        %2220 = vmatprep.subr.mxu0 0.0
        %2221 = vmatpush1.msra.mxu0 0.0
        %2222 = vmatprep.subr.mxu0 0.0
        %2223 = vmatpush1.msra.mxu0 0.0
        %2224 = vmatprep.subr.mxu0 0.0
        %2225 = vmatpush1.msra.mxu0 0.0
        %2226 = vmatprep.subr.mxu0 0.0
        %2227 = vmatpush1.msra.mxu0 0.0
        %2228 = vmatprep.subr.mxu0 0.0
        %2229 = vmatpush1.msra.mxu0 0.0
        %2230 = vmatprep.mubr.f32.mxu0 0.0
        %2231 = vmatmul.mubr.f32.gmra.mrb[0].mxu0 %v2164
        %v2232 = vpop.f32.mrb[0].mxu0
        %v2233 = vadd.f32 0.0, %v2232
        %v2234 = vpop.f32.mrb[0].mxu0
        %2235 = vdwg.mxu0
        %2236 = vrot.lane.b32.xlu0 %v1745, 112
        %v2237 = vpop.permute.xlu0 %2236
        %2238 = vrot.lane.b32.xlu0 %v1824, 112
        %v2239 = vpop.permute.xlu0 %2238
        %v2240 = vsel %vm253, %v2237, 0
        %v2242 = vsel %vm253, %v2239, 0
        %2244 = vmatprep.subr.mxu0 0.0
        %2245 = vmatpush1.xpose.msra.mxu0 %v2242
        %2246 = vmatprep.subr.mxu0 0.0
        %2247 = vmatpush1.xpose.msra.mxu0 0.0
        %2248 = vmatprep.subr.mxu0 0.0
        %2249 = vmatpush1.xpose.msra.mxu0 0.0
        %2250 = vmatprep.subr.mxu0 0.0
        %2251 = vmatpush1.xpose.msra.mxu0 0.0
        %2252 = vmatprep.subr.mxu0 0.0
        %2253 = vmatpush1.xpose.msra.mxu0 0.0
        %2254 = vmatprep.subr.mxu0 0.0
        %2255 = vmatpush1.xpose.msra.mxu0 0.0
        %2256 = vmatprep.subr.mxu0 0.0
        %2257 = vmatpush1.xpose.msra.mxu0 0.0
        %2258 = vmatprep.subr.mxu0 0.0
        %2259 = vmatpush1.xpose.msra.mxu0 0.0
        %2260 = vmatprep.subr.mxu0 0.0
        %2261 = vmatpush1.xpose.msra.mxu0 0.0
        %2262 = vmatprep.subr.mxu0 0.0
        %2263 = vmatpush1.xpose.msra.mxu0 0.0
        %2264 = vmatprep.subr.mxu0 0.0
        %2265 = vmatpush1.xpose.msra.mxu0 0.0
        %2266 = vmatprep.subr.mxu0 0.0
        %2267 = vmatpush1.xpose.msra.mxu0 0.0
        %2268 = vmatprep.subr.mxu0 0.0
        %2269 = vmatpush1.xpose.msra.mxu0 0.0
        %2270 = vmatprep.subr.mxu0 0.0
        %2271 = vmatpush1.xpose.msra.mxu0 0.0
        %2272 = vmatprep.subr.mxu0 0.0
        %2273 = vmatpush1.xpose.msra.mxu0 0.0
        %2274 = vmatprep.subr.mxu0 0.0
        %2275 = vmatpush1.xpose.msra.mxu0 0.0
        %2276 = vmatprep.subr.mxu0 0.0
        %2277 = vmatpush1.xpose.msra.mxu0 0.0
        %2278 = vmatprep.subr.mxu0 0.0
        %2279 = vmatpush1.xpose.msra.mxu0 0.0
        %2280 = vmatprep.subr.mxu0 0.0
        %2281 = vmatpush1.xpose.msra.mxu0 0.0
        %2282 = vmatprep.subr.mxu0 0.0
        %2283 = vmatpush1.xpose.msra.mxu0 0.0
        %2284 = vmatprep.subr.mxu0 0.0
        %2285 = vmatpush1.xpose.msra.mxu0 0.0
        %2286 = vmatprep.subr.mxu0 0.0
        %2287 = vmatpush1.xpose.msra.mxu0 0.0
        %2288 = vmatprep.subr.mxu0 0.0
        %2289 = vmatpush1.xpose.msra.mxu0 0.0
        %2290 = vmatprep.subr.mxu0 0.0
        %2291 = vmatpush1.xpose.msra.mxu0 0.0
        %2292 = vmatprep.subr.mxu0 0.0
        %2293 = vmatpush1.xpose.msra.mxu0 0.0
        %2294 = vmatprep.subr.mxu0 0.0
        %2295 = vmatpush1.xpose.msra.mxu0 0.0
        %2296 = vmatprep.subr.mxu0 0.0
        %2297 = vmatpush1.xpose.msra.mxu0 0.0
        %2298 = vmatprep.subr.mxu0 0.0
        %2299 = vmatpush1.xpose.msra.mxu0 0.0
        %2300 = vmatprep.subr.mxu0 0.0
        %2301 = vmatpush1.xpose.msra.mxu0 0.0
        %2302 = vmatprep.subr.mxu0 0.0
        %2303 = vmatpush1.xpose.msra.mxu0 0.0
        %2304 = vmatprep.subr.mxu0 0.0
        %2305 = vmatpush1.xpose.msra.mxu0 0.0
        %2306 = vmatprep.subr.mxu0 0.0
        %2307 = vmatpush1.xpose.msra.mxu0 0.0
        %2308 = vmatprep.mubr.f32.mxu0 0.0
        %2309 = vmatmul.mubr.f32.gmra.mrb[0].mxu0 %v2240
        %v2310 = vpop.f32.mrb[0].mxu0
        %v2311 = vadd.f32 0.0, %v2310
        %v2312 = vpop.f32.mrb[0].mxu0
        %2313 = vdwg.mxu0
        %v2314 = vmul.f32 %v2311, 0.35355338
        %v2315 = vadd.f32 %v2314, %v404
        %v2316 = vsel %vm253, %v2315, -inf
        %2317 = vmax.xlane.f32.xlu0 %v2316
        %v2318 = vpop.xlane.xlu0 %2317
        %v2319 = vsub.f32 %v2315, %v2318
        %v2320 = vmul.f32 %v2319, 1.442695
        %v2321 = vpow.pop %v2320
        %v2322 = vsel %vm253, %v2321, 0.0
        %2323 = vadd.xlane.f32.xlu0 %v2322
        %v2324 = vpop.xlane.xlu0 %2323
        %v2325 = vrcp.pop %v2324
        %v2326 = vmul.f32 %v2321, %v2325
        %2327 = vrot.lane.b32.xlu0 %v1903, 112
        %v2328 = vpop.permute.xlu0 %2327
        %v2331 = vsel %vm253, %v2326, 0
        %2333 = vmatprep.subr.mxu0 0.0
        %2334 = vmatpush1.msra.mxu0 %v2328
        %2335 = vmatprep.subr.mxu0 0.0
        %2336 = vmatpush1.msra.mxu0 0.0
        %2337 = vmatprep.subr.mxu0 0.0
        %2338 = vmatpush1.msra.mxu0 0.0
        %2339 = vmatprep.subr.mxu0 0.0
        %2340 = vmatpush1.msra.mxu0 0.0
        %2341 = vmatprep.subr.mxu0 0.0
        %2342 = vmatpush1.msra.mxu0 0.0
        %2343 = vmatprep.subr.mxu0 0.0
        %2344 = vmatpush1.msra.mxu0 0.0
        %2345 = vmatprep.subr.mxu0 0.0
        %2346 = vmatpush1.msra.mxu0 0.0
        %2347 = vmatprep.subr.mxu0 0.0
        %2348 = vmatpush1.msra.mxu0 0.0
        %2349 = vmatprep.subr.mxu0 0.0
        %2350 = vmatpush1.msra.mxu0 0.0
        %2351 = vmatprep.subr.mxu0 0.0
        %2352 = vmatpush1.msra.mxu0 0.0
        %2353 = vmatprep.subr.mxu0 0.0
        %2354 = vmatpush1.msra.mxu0 0.0
        %2355 = vmatprep.subr.mxu0 0.0
        %2356 = vmatpush1.msra.mxu0 0.0
        %2357 = vmatprep.subr.mxu0 0.0
        %2358 = vmatpush1.msra.mxu0 0.0
        %2359 = vmatprep.subr.mxu0 0.0
        %2360 = vmatpush1.msra.mxu0 0.0
        %2361 = vmatprep.subr.mxu0 0.0
        %2362 = vmatpush1.msra.mxu0 0.0
        %2363 = vmatprep.subr.mxu0 0.0
        %2364 = vmatpush1.msra.mxu0 0.0
        %2365 = vmatprep.subr.mxu0 0.0
        %2366 = vmatpush1.msra.mxu0 0.0
        %2367 = vmatprep.subr.mxu0 0.0
        %2368 = vmatpush1.msra.mxu0 0.0
        %2369 = vmatprep.subr.mxu0 0.0
        %2370 = vmatpush1.msra.mxu0 0.0
        %2371 = vmatprep.subr.mxu0 0.0
        %2372 = vmatpush1.msra.mxu0 0.0
        %2373 = vmatprep.subr.mxu0 0.0
        %2374 = vmatpush1.msra.mxu0 0.0
        %2375 = vmatprep.subr.mxu0 0.0
        %2376 = vmatpush1.msra.mxu0 0.0
        %2377 = vmatprep.subr.mxu0 0.0
        %2378 = vmatpush1.msra.mxu0 0.0
        %2379 = vmatprep.subr.mxu0 0.0
        %2380 = vmatpush1.msra.mxu0 0.0
        %2381 = vmatprep.subr.mxu0 0.0
        %2382 = vmatpush1.msra.mxu0 0.0
        %2383 = vmatprep.subr.mxu0 0.0
        %2384 = vmatpush1.msra.mxu0 0.0
        %2385 = vmatprep.subr.mxu0 0.0
        %2386 = vmatpush1.msra.mxu0 0.0
        %2387 = vmatprep.subr.mxu0 0.0
        %2388 = vmatpush1.msra.mxu0 0.0
        %2389 = vmatprep.subr.mxu0 0.0
        %2390 = vmatpush1.msra.mxu0 0.0
        %2391 = vmatprep.subr.mxu0 0.0
        %2392 = vmatpush1.msra.mxu0 0.0
        %2393 = vmatprep.subr.mxu0 0.0
        %2394 = vmatpush1.msra.mxu0 0.0
        %2395 = vmatprep.subr.mxu0 0.0
        %2396 = vmatpush1.msra.mxu0 0.0
        %2397 = vmatprep.mubr.f32.mxu0 0.0
        %2398 = vmatmul.mubr.f32.gmra.mrb[0].mxu0 %v2331
        %v2399 = vpop.f32.mrb[0].mxu0
        %v2400 = vadd.f32 0.0, %v2399
        %v2401 = vpop.f32.mrb[0].mxu0
        %2402 = vdwg.mxu0
        %2403 = vrot.lane.b32.xlu0 %v1745, 104
        %v2404 = vpop.permute.xlu0 %2403
        %2405 = vrot.lane.b32.xlu0 %v1824, 104
        %v2406 = vpop.permute.xlu0 %2405
        %v2407 = vsel %vm253, %v2404, 0
        %v2409 = vsel %vm253, %v2406, 0
        %2411 = vmatprep.subr.mxu0 0.0
        %2412 = vmatpush1.xpose.msra.mxu0 %v2409
        %2413 = vmatprep.subr.mxu0 0.0
        %2414 = vmatpush1.xpose.msra.mxu0 0.0
        %2415 = vmatprep.subr.mxu0 0.0
        %2416 = vmatpush1.xpose.msra.mxu0 0.0
        %2417 = vmatprep.subr.mxu0 0.0
        %2418 = vmatpush1.xpose.msra.mxu0 0.0
        %2419 = vmatprep.subr.mxu0 0.0
        %2420 = vmatpush1.xpose.msra.mxu0 0.0
        %2421 = vmatprep.subr.mxu0 0.0
        %2422 = vmatpush1.xpose.msra.mxu0 0.0
        %2423 = vmatprep.subr.mxu0 0.0
        %2424 = vmatpush1.xpose.msra.mxu0 0.0
        %2425 = vmatprep.subr.mxu0 0.0
        %2426 = vmatpush1.xpose.msra.mxu0 0.0
        %2427 = vmatprep.subr.mxu0 0.0
        %2428 = vmatpush1.xpose.msra.mxu0 0.0
        %2429 = vmatprep.subr.mxu0 0.0
        %2430 = vmatpush1.xpose.msra.mxu0 0.0
        %2431 = vmatprep.subr.mxu0 0.0
        %2432 = vmatpush1.xpose.msra.mxu0 0.0
        %2433 = vmatprep.subr.mxu0 0.0
        %2434 = vmatpush1.xpose.msra.mxu0 0.0
        %2435 = vmatprep.subr.mxu0 0.0
        %2436 = vmatpush1.xpose.msra.mxu0 0.0
        %2437 = vmatprep.subr.mxu0 0.0
        %2438 = vmatpush1.xpose.msra.mxu0 0.0
        %2439 = vmatprep.subr.mxu0 0.0
        %2440 = vmatpush1.xpose.msra.mxu0 0.0
        %2441 = vmatprep.subr.mxu0 0.0
        %2442 = vmatpush1.xpose.msra.mxu0 0.0
        %2443 = vmatprep.subr.mxu0 0.0
        %2444 = vmatpush1.xpose.msra.mxu0 0.0
        %2445 = vmatprep.subr.mxu0 0.0
        %2446 = vmatpush1.xpose.msra.mxu0 0.0
        %2447 = vmatprep.subr.mxu0 0.0
        %2448 = vmatpush1.xpose.msra.mxu0 0.0
        %2449 = vmatprep.subr.mxu0 0.0
        %2450 = vmatpush1.xpose.msra.mxu0 0.0
        %2451 = vmatprep.subr.mxu0 0.0
        %2452 = vmatpush1.xpose.msra.mxu0 0.0
        %2453 = vmatprep.subr.mxu0 0.0
        %2454 = vmatpush1.xpose.msra.mxu0 0.0
        %2455 = vmatprep.subr.mxu0 0.0
        %2456 = vmatpush1.xpose.msra.mxu0 0.0
        %2457 = vmatprep.subr.mxu0 0.0
        %2458 = vmatpush1.xpose.msra.mxu0 0.0
        %2459 = vmatprep.subr.mxu0 0.0
        %2460 = vmatpush1.xpose.msra.mxu0 0.0
        %2461 = vmatprep.subr.mxu0 0.0
        %2462 = vmatpush1.xpose.msra.mxu0 0.0
        %2463 = vmatprep.subr.mxu0 0.0
        %2464 = vmatpush1.xpose.msra.mxu0 0.0
        %2465 = vmatprep.subr.mxu0 0.0
        %2466 = vmatpush1.xpose.msra.mxu0 0.0
        %2467 = vmatprep.subr.mxu0 0.0
        %2468 = vmatpush1.xpose.msra.mxu0 0.0
        %2469 = vmatprep.subr.mxu0 0.0
        %2470 = vmatpush1.xpose.msra.mxu0 0.0
        %2471 = vmatprep.subr.mxu0 0.0
        %2472 = vmatpush1.xpose.msra.mxu0 0.0
        %2473 = vmatprep.subr.mxu0 0.0
        %2474 = vmatpush1.xpose.msra.mxu0 0.0
        %2475 = vmatprep.mubr.f32.mxu0 0.0
        %2476 = vmatmul.mubr.f32.gmra.mrb[0].mxu0 %v2407
        %v2477 = vpop.f32.mrb[0].mxu0
        %v2478 = vadd.f32 0.0, %v2477
        %v2479 = vpop.f32.mrb[0].mxu0
        %2480 = vdwg.mxu0
        %v2481 = vmul.f32 %v2478, 0.35355338
        %v2482 = vadd.f32 %v2481, %v404
        %v2483 = vsel %vm253, %v2482, -inf
        %2484 = vmax.xlane.f32.xlu0 %v2483
        %v2485 = vpop.xlane.xlu0 %2484
        %v2486 = vsub.f32 %v2482, %v2485
        %v2487 = vmul.f32 %v2486, 1.442695
        %v2488 = vpow.pop %v2487
        %v2489 = vsel %vm253, %v2488, 0.0
        %2490 = vadd.xlane.f32.xlu0 %v2489
        %v2491 = vpop.xlane.xlu0 %2490
        %v2492 = vrcp.pop %v2491
        %v2493 = vmul.f32 %v2488, %v2492
        %2494 = vrot.lane.b32.xlu0 %v1903, 104
        %v2495 = vpop.permute.xlu0 %2494
        %v2498 = vsel %vm253, %v2493, 0
        %2500 = vmatprep.subr.mxu0 0.0
        %2501 = vmatpush1.msra.mxu0 %v2495
        %2502 = vmatprep.subr.mxu0 0.0
        %2503 = vmatpush1.msra.mxu0 0.0
        %2504 = vmatprep.subr.mxu0 0.0
        %2505 = vmatpush1.msra.mxu0 0.0
        %2506 = vmatprep.subr.mxu0 0.0
        %2507 = vmatpush1.msra.mxu0 0.0
        %2508 = vmatprep.subr.mxu0 0.0
        %2509 = vmatpush1.msra.mxu0 0.0
        %2510 = vmatprep.subr.mxu0 0.0
        %2511 = vmatpush1.msra.mxu0 0.0
        %2512 = vmatprep.subr.mxu0 0.0
        %2513 = vmatpush1.msra.mxu0 0.0
        %2514 = vmatprep.subr.mxu0 0.0
        %2515 = vmatpush1.msra.mxu0 0.0
        %2516 = vmatprep.subr.mxu0 0.0
        %2517 = vmatpush1.msra.mxu0 0.0
        %2518 = vmatprep.subr.mxu0 0.0
        %2519 = vmatpush1.msra.mxu0 0.0
        %2520 = vmatprep.subr.mxu0 0.0
        %2521 = vmatpush1.msra.mxu0 0.0
        %2522 = vmatprep.subr.mxu0 0.0
        %2523 = vmatpush1.msra.mxu0 0.0
        %2524 = vmatprep.subr.mxu0 0.0
        %2525 = vmatpush1.msra.mxu0 0.0
        %2526 = vmatprep.subr.mxu0 0.0
        %2527 = vmatpush1.msra.mxu0 0.0
        %2528 = vmatprep.subr.mxu0 0.0
        %2529 = vmatpush1.msra.mxu0 0.0
        %2530 = vmatprep.subr.mxu0 0.0
        %2531 = vmatpush1.msra.mxu0 0.0
        %2532 = vmatprep.subr.mxu0 0.0
        %2533 = vmatpush1.msra.mxu0 0.0
        %2534 = vmatprep.subr.mxu0 0.0
        %2535 = vmatpush1.msra.mxu0 0.0
        %2536 = vmatprep.subr.mxu0 0.0
        %2537 = vmatpush1.msra.mxu0 0.0
        %2538 = vmatprep.subr.mxu0 0.0
        %2539 = vmatpush1.msra.mxu0 0.0
        %2540 = vmatprep.subr.mxu0 0.0
        %2541 = vmatpush1.msra.mxu0 0.0
        %2542 = vmatprep.subr.mxu0 0.0
        %2543 = vmatpush1.msra.mxu0 0.0
        %2544 = vmatprep.subr.mxu0 0.0
        %2545 = vmatpush1.msra.mxu0 0.0
        %2546 = vmatprep.subr.mxu0 0.0
        %2547 = vmatpush1.msra.mxu0 0.0
        %2548 = vmatprep.subr.mxu0 0.0
        %2549 = vmatpush1.msra.mxu0 0.0
        %2550 = vmatprep.subr.mxu0 0.0
        %2551 = vmatpush1.msra.mxu0 0.0
        %2552 = vmatprep.subr.mxu0 0.0
        %2553 = vmatpush1.msra.mxu0 0.0
        %2554 = vmatprep.subr.mxu0 0.0
        %2555 = vmatpush1.msra.mxu0 0.0
        %2556 = vmatprep.subr.mxu0 0.0
        %2557 = vmatpush1.msra.mxu0 0.0
        %2558 = vmatprep.subr.mxu0 0.0
        %2559 = vmatpush1.msra.mxu0 0.0
        %2560 = vmatprep.subr.mxu0 0.0
        %2561 = vmatpush1.msra.mxu0 0.0
        %2562 = vmatprep.subr.mxu0 0.0
        %2563 = vmatpush1.msra.mxu0 0.0
        %2564 = vmatprep.mubr.f32.mxu0 0.0
        %2565 = vmatmul.mubr.f32.gmra.mrb[0].mxu0 %v2498
        %v2566 = vpop.f32.mrb[0].mxu0
        %v2567 = vadd.f32 0.0, %v2566
        %v2568 = vpop.f32.mrb[0].mxu0
        %2569 = vdwg.mxu0
        %2571 = vrot.lane.b32.xlu0 %v2233, 8
        %v2572 = vpop.permute.xlu0 %2571
        %2575 = vrot.lane.b32.xlu0 %v2400, 16
        %v2576 = vpop.permute.xlu0 %2575
        %2579 = vrot.lane.b32.xlu0 %v2567, 24
        %v2580 = vpop.permute.xlu0 %2579
        %v2582 = vsel %vm253, %v2065, %v2572
        %v2583 = vsel %vm1349, %v2582, %v2576
        %v2584 = vsel %vm1351, %v2583, %v2580
        %v2585 = vld [vmem:[#allocation2 + $0x210] sm:$0xff]
        %v2586 = vld [vmem:[#allocation2 + $0x218] sm:$0xff]
        %v2587 = vld [vmem:[#allocation2 + $0x220] sm:$0xff]
        %v2588 = vld [vmem:[#allocation2 + $0x228] sm:$0xff]
        %v2590 = vsel %vm407, %v2584, 0
        %2592 = vmatprep.subr.mxu0 0.0
        %2593 = vmatpush1.msra.mxu0 %v2585
        %2594 = vmatprep.subr.mxu0 0.0
        %2595 = vmatpush1.msra.mxu0 %v2586
        %2596 = vmatprep.subr.mxu0 0.0
        %2597 = vmatpush1.msra.mxu0 %v2587
        %2598 = vmatprep.subr.mxu0 0.0
        %2599 = vmatpush1.msra.mxu0 %v2588
        %2600 = vmatprep.subr.mxu0 0.0
        %2601 = vmatpush1.msra.mxu0 0.0
        %2602 = vmatprep.subr.mxu0 0.0
        %2603 = vmatpush1.msra.mxu0 0.0
        %2604 = vmatprep.subr.mxu0 0.0
        %2605 = vmatpush1.msra.mxu0 0.0
        %2606 = vmatprep.subr.mxu0 0.0
        %2607 = vmatpush1.msra.mxu0 0.0
        %2608 = vmatprep.subr.mxu0 0.0
        %2609 = vmatpush1.msra.mxu0 0.0
        %2610 = vmatprep.subr.mxu0 0.0
        %2611 = vmatpush1.msra.mxu0 0.0
        %2612 = vmatprep.subr.mxu0 0.0
        %2613 = vmatpush1.msra.mxu0 0.0
        %2614 = vmatprep.subr.mxu0 0.0
        %2615 = vmatpush1.msra.mxu0 0.0
        %2616 = vmatprep.subr.mxu0 0.0
        %2617 = vmatpush1.msra.mxu0 0.0
        %2618 = vmatprep.subr.mxu0 0.0
        %2619 = vmatpush1.msra.mxu0 0.0
        %2620 = vmatprep.subr.mxu0 0.0
        %2621 = vmatpush1.msra.mxu0 0.0
        %2622 = vmatprep.subr.mxu0 0.0
        %2623 = vmatpush1.msra.mxu0 0.0
        %2624 = vmatprep.subr.mxu0 0.0
        %2625 = vmatpush1.msra.mxu0 0.0
        %2626 = vmatprep.subr.mxu0 0.0
        %2627 = vmatpush1.msra.mxu0 0.0
        %2628 = vmatprep.subr.mxu0 0.0
        %2629 = vmatpush1.msra.mxu0 0.0
        %2630 = vmatprep.subr.mxu0 0.0
        %2631 = vmatpush1.msra.mxu0 0.0
        %2632 = vmatprep.subr.mxu0 0.0
        %2633 = vmatpush1.msra.mxu0 0.0
        %2634 = vmatprep.subr.mxu0 0.0
        %2635 = vmatpush1.msra.mxu0 0.0
        %2636 = vmatprep.subr.mxu0 0.0
        %2637 = vmatpush1.msra.mxu0 0.0
        %2638 = vmatprep.subr.mxu0 0.0
        %2639 = vmatpush1.msra.mxu0 0.0
        %2640 = vmatprep.subr.mxu0 0.0
        %2641 = vmatpush1.msra.mxu0 0.0
        %2642 = vmatprep.subr.mxu0 0.0
        %2643 = vmatpush1.msra.mxu0 0.0
        %2644 = vmatprep.subr.mxu0 0.0
        %2645 = vmatpush1.msra.mxu0 0.0
        %2646 = vmatprep.subr.mxu0 0.0
        %2647 = vmatpush1.msra.mxu0 0.0
        %2648 = vmatprep.subr.mxu0 0.0
        %2649 = vmatpush1.msra.mxu0 0.0
        %2650 = vmatprep.subr.mxu0 0.0
        %2651 = vmatpush1.msra.mxu0 0.0
        %2652 = vmatprep.subr.mxu0 0.0
        %2653 = vmatpush1.msra.mxu0 0.0
        %2654 = vmatprep.subr.mxu0 0.0
        %2655 = vmatpush1.msra.mxu0 0.0
        %2656 = vmatprep.mubr.f32.mxu0 0.0
        %2657 = vmatmul.mubr.f32.gmra.mrb[0].mxu0 %v2590
        %v2658 = vpop.f32.mrb[0].mxu0
        %v2659 = vadd.f32 0.0, %v2658
        %v2660 = vpop.f32.mrb[0].mxu0
        %2661 = vdwg.mxu0
        %v2662 = vadd.f32 %v1640, %v2659
        %v2663 = vld [vmem:[#allocation2 + $0x230] sm:$0x1]
        %v2664 = vlaneseq
        %v2665 = vshrl.u32 %v2664, 7
        %v2666 = vsub.s32 0, %v2665
        %v2667 = vrot.slane %v2663, %v2666
        %v2668 = vadd.f32 %v2662, %v2667
        %v2669 = vld [vmem:[#allocation2 + $0x238] sm:$0x1]
        %v2670 = vld [vmem:[#allocation2 + $0x240] sm:$0x1]
        %v2671 = vsel %vm407, %v2668, 0.0
        %2672 = vadd.xlane.f32.xlu0 %v2671
        %v2673 = vpop.xlane.xlu0 %2672
        %v2674 = vmul.f32 %v2673, %v411
        %v2675 = vsub.f32 %v2668, %v2674
        %v2676 = vmul.f32 %v2675, %v2675
        %v2677 = vsel %vm407, %v2676, 0.0
        %2678 = vadd.xlane.f32.xlu0 %v2677
        %v2679 = vpop.xlane.xlu0 %2678
        %v2680 = vmul.f32 %v2679, %v411
        %v2681 = vadd.f32 %v2680, 1e-06
        %v2682 = vrsqrt.pop %v2681
        %v2683 = vmul.f32 %v2675, %v2682
        %v2684 = vlaneseq
        %v2685 = vshrl.u32 %v2684, 7
        %v2686 = vsub.s32 0, %v2685
        %v2687 = vrot.slane %v2669, %v2686
        %v2688 = vmul.f32 %v2683, %v2687
        %v2689 = vlaneseq
        %v2690 = vshrl.u32 %v2689, 7
        %v2691 = vsub.s32 0, %v2690
        %v2692 = vrot.slane %v2670, %v2691
        %v2693 = vadd.f32 %v2688, %v2692
        %v2694 = vld [vmem:[#allocation2 + $0x248] sm:$0xff]
        %v2695 = vld [vmem:[#allocation2 + $0x250] sm:$0xff]
        %v2696 = vld [vmem:[#allocation2 + $0x258] sm:$0xff]
        %v2697 = vld [vmem:[#allocation2 + $0x260] sm:$0xff]
        %v2698 = vld [vmem:[#allocation2 + $0x268] sm:$0x1]
        %v2699 = vlaneseq
        %v2700 = vshrl.u32 %v2699, 7
        %v2701 = vsub.s32 0, %v2700
        %v2702 = vrot.slane %v2698, %v2701
        %v2704 = vsel %vm407, %v2693, 0
        %2706 = vmatprep.subr.mxu0 0.0
        %2707 = vmatpush1.msra.mxu0 %v2694
        %2708 = vmatprep.subr.mxu0 0.0
        %2709 = vmatpush1.msra.mxu0 %v2695
        %2710 = vmatprep.subr.mxu0 0.0
        %2711 = vmatpush1.msra.mxu0 %v2696
        %2712 = vmatprep.subr.mxu0 0.0
        %2713 = vmatpush1.msra.mxu0 %v2697
        %2714 = vmatprep.subr.mxu0 0.0
        %2715 = vmatpush1.msra.mxu0 0.0
        %2716 = vmatprep.subr.mxu0 0.0
        %2717 = vmatpush1.msra.mxu0 0.0
        %2718 = vmatprep.subr.mxu0 0.0
        %2719 = vmatpush1.msra.mxu0 0.0
        %2720 = vmatprep.subr.mxu0 0.0
        %2721 = vmatpush1.msra.mxu0 0.0
        %2722 = vmatprep.subr.mxu0 0.0
        %2723 = vmatpush1.msra.mxu0 0.0
        %2724 = vmatprep.subr.mxu0 0.0
        %2725 = vmatpush1.msra.mxu0 0.0
        %2726 = vmatprep.subr.mxu0 0.0
        %2727 = vmatpush1.msra.mxu0 0.0
        %2728 = vmatprep.subr.mxu0 0.0
        %2729 = vmatpush1.msra.mxu0 0.0
        %2730 = vmatprep.subr.mxu0 0.0
        %2731 = vmatpush1.msra.mxu0 0.0
        %2732 = vmatprep.subr.mxu0 0.0
        %2733 = vmatpush1.msra.mxu0 0.0
        %2734 = vmatprep.subr.mxu0 0.0
        %2735 = vmatpush1.msra.mxu0 0.0
        %2736 = vmatprep.subr.mxu0 0.0
        %2737 = vmatpush1.msra.mxu0 0.0
        %2738 = vmatprep.subr.mxu0 0.0
        %2739 = vmatpush1.msra.mxu0 0.0
        %2740 = vmatprep.subr.mxu0 0.0
        %2741 = vmatpush1.msra.mxu0 0.0
        %2742 = vmatprep.subr.mxu0 0.0
        %2743 = vmatpush1.msra.mxu0 0.0
        %2744 = vmatprep.subr.mxu0 0.0
        %2745 = vmatpush1.msra.mxu0 0.0
        %2746 = vmatprep.subr.mxu0 0.0
        %2747 = vmatpush1.msra.mxu0 0.0
        %2748 = vmatprep.subr.mxu0 0.0
        %2749 = vmatpush1.msra.mxu0 0.0
        %2750 = vmatprep.subr.mxu0 0.0
        %2751 = vmatpush1.msra.mxu0 0.0
        %2752 = vmatprep.subr.mxu0 0.0
        %2753 = vmatpush1.msra.mxu0 0.0
        %2754 = vmatprep.subr.mxu0 0.0
        %2755 = vmatpush1.msra.mxu0 0.0
        %2756 = vmatprep.subr.mxu0 0.0
        %2757 = vmatpush1.msra.mxu0 0.0
        %2758 = vmatprep.subr.mxu0 0.0
        %2759 = vmatpush1.msra.mxu0 0.0
        %2760 = vmatprep.subr.mxu0 0.0
        %2761 = vmatpush1.msra.mxu0 0.0
        %2762 = vmatprep.subr.mxu0 0.0
        %2763 = vmatpush1.msra.mxu0 0.0
        %2764 = vmatprep.subr.mxu0 0.0
        %2765 = vmatpush1.msra.mxu0 0.0
        %2766 = vmatprep.subr.mxu0 0.0
        %2767 = vmatpush1.msra.mxu0 0.0
        %2768 = vmatprep.subr.mxu0 0.0
        %2769 = vmatpush1.msra.mxu0 0.0
        %2770 = vmatprep.mubr.f32.mxu0 0.0
        %2771 = vmatmul.mubr.f32.gmra.mrb[0].mxu0 %v2704
        %v2772 = vpop.f32.mrb[0].mxu0
        %v2773 = vadd.f32 %v2702, %v2772
        %v2774 = vpop.f32.mrb[0].mxu0
        %2775 = vdwg.mxu0
        %v2776 = vmul.f32 %v2773, 0.5
        %v2777 = vmul.f32 %v2773, 0.70710677
        %v2778 = verf.f32.pop %v2777
        %v2779 = vadd.f32 %v2778, 1.0
        %v2780 = vmul.f32 %v2776, %v2779
        %v2781 = vld [vmem:[#allocation2 + $0x270] sm:$0xff]
        %v2782 = vld [vmem:[#allocation2 + $0x278] sm:$0xff]
        %v2783 = vld [vmem:[#allocation2 + $0x280] sm:$0xff]
        %v2784 = vld [vmem:[#allocation2 + $0x288] sm:$0xff]
        %v2785 = vld [vmem:[#allocation2 + $0x290] sm:$0xff]
        %v2786 = vld [vmem:[#allocation2 + $0x298] sm:$0xff]
        %v2787 = vld [vmem:[#allocation2 + $0x2a0] sm:$0xff]
        %v2788 = vld [vmem:[#allocation2 + $0x2a8] sm:$0xff]
        %v2789 = vld [vmem:[#allocation2 + $0x2b0] sm:$0xff]
        %v2790 = vld [vmem:[#allocation2 + $0x2b8] sm:$0xff]
        %v2791 = vld [vmem:[#allocation2 + $0x2c0] sm:$0xff]
        %v2792 = vld [vmem:[#allocation2 + $0x2c8] sm:$0xff]
        %v2793 = vld [vmem:[#allocation2 + $0x2d0] sm:$0xff]
        %v2794 = vld [vmem:[#allocation2 + $0x2d8] sm:$0xff]
        %v2795 = vld [vmem:[#allocation2 + $0x2e0] sm:$0xff]
        %v2796 = vld [vmem:[#allocation2 + $0x2e8] sm:$0xff]
        %v2797 = vld [vmem:[#allocation2 + $0x2f0] sm:$0x1]
        %v2798 = vlaneseq
        %v2799 = vshrl.u32 %v2798, 7
        %v2800 = vsub.s32 0, %v2799
        %v2801 = vrot.slane %v2797, %v2800
        %2802 = vmatprep.subr.mxu0 0.0
        %2803 = vmatpush1.msra.mxu0 %v2781
        %2804 = vmatprep.subr.mxu0 0.0
        %2805 = vmatpush1.msra.mxu0 %v2782
        %2806 = vmatprep.subr.mxu0 0.0
        %2807 = vmatpush1.msra.mxu0 %v2783
        %2808 = vmatprep.subr.mxu0 0.0
        %2809 = vmatpush1.msra.mxu0 %v2784
        %2810 = vmatprep.subr.mxu0 0.0
        %2811 = vmatpush1.msra.mxu0 %v2785
        %2812 = vmatprep.subr.mxu0 0.0
        %2813 = vmatpush1.msra.mxu0 %v2786
        %2814 = vmatprep.subr.mxu0 0.0
        %2815 = vmatpush1.msra.mxu0 %v2787
        %2816 = vmatprep.subr.mxu0 0.0
        %2817 = vmatpush1.msra.mxu0 %v2788
        %2818 = vmatprep.subr.mxu0 0.0
        %2819 = vmatpush1.msra.mxu0 %v2789
        %2820 = vmatprep.subr.mxu0 0.0
        %2821 = vmatpush1.msra.mxu0 %v2790
        %2822 = vmatprep.subr.mxu0 0.0
        %2823 = vmatpush1.msra.mxu0 %v2791
        %2824 = vmatprep.subr.mxu0 0.0
        %2825 = vmatpush1.msra.mxu0 %v2792
        %2826 = vmatprep.subr.mxu0 0.0
        %2827 = vmatpush1.msra.mxu0 %v2793
        %2828 = vmatprep.subr.mxu0 0.0
        %2829 = vmatpush1.msra.mxu0 %v2794
        %2830 = vmatprep.subr.mxu0 0.0
        %2831 = vmatpush1.msra.mxu0 %v2795
        %2832 = vmatprep.subr.mxu0 0.0
        %2833 = vmatpush1.msra.mxu0 %v2796
        %2834 = vmatprep.subr.mxu0 0.0
        %2835 = vmatpush1.msra.mxu0 0.0
        %2836 = vmatprep.subr.mxu0 0.0
        %2837 = vmatpush1.msra.mxu0 0.0
        %2838 = vmatprep.subr.mxu0 0.0
        %2839 = vmatpush1.msra.mxu0 0.0
        %2840 = vmatprep.subr.mxu0 0.0
        %2841 = vmatpush1.msra.mxu0 0.0
        %2842 = vmatprep.subr.mxu0 0.0
        %2843 = vmatpush1.msra.mxu0 0.0
        %2844 = vmatprep.subr.mxu0 0.0
        %2845 = vmatpush1.msra.mxu0 0.0
        %2846 = vmatprep.subr.mxu0 0.0
        %2847 = vmatpush1.msra.mxu0 0.0
        %2848 = vmatprep.subr.mxu0 0.0
        %2849 = vmatpush1.msra.mxu0 0.0
        %2850 = vmatprep.subr.mxu0 0.0
        %2851 = vmatpush1.msra.mxu0 0.0
        %2852 = vmatprep.subr.mxu0 0.0
        %2853 = vmatpush1.msra.mxu0 0.0
        %2854 = vmatprep.subr.mxu0 0.0
        %2855 = vmatpush1.msra.mxu0 0.0
        %2856 = vmatprep.subr.mxu0 0.0
        %2857 = vmatpush1.msra.mxu0 0.0
        %2858 = vmatprep.subr.mxu0 0.0
        %2859 = vmatpush1.msra.mxu0 0.0
        %2860 = vmatprep.subr.mxu0 0.0
        %2861 = vmatpush1.msra.mxu0 0.0
        %2862 = vmatprep.subr.mxu0 0.0
        %2863 = vmatpush1.msra.mxu0 0.0
        %2864 = vmatprep.subr.mxu0 0.0
        %2865 = vmatpush1.msra.mxu0 0.0
        %2866 = vmatprep.mubr.f32.mxu0 0.0
        %2867 = vmatmul.mubr.f32.gmra.mrb[0].mxu0 %v2780
        %v2868 = vpop.f32.mrb[0].mxu0
        %v2869 = vadd.f32 %v2801, %v2868
        %v2870 = vpop.f32.mrb[0].mxu0
        %2871 = vdwg.mxu0
        %v2872 = vadd.f32 %v2668, %v2869
        %v2873 = vld [vmem:[#allocation2 + $0x2f8] sm:$0x1]
        %v2874 = vld [vmem:[#allocation2 + $0x300] sm:$0x1]
        %v2875 = vsel %vm407, %v2872, 0.0
        %2876 = vadd.xlane.f32.xlu0 %v2875
        %v2877 = vpop.xlane.xlu0 %2876
        %v2878 = vmul.f32 %v2877, %v411
        %v2879 = vsub.f32 %v2872, %v2878
        %v2880 = vmul.f32 %v2879, %v2879
        %v2881 = vsel %vm407, %v2880, 0.0
        %2882 = vadd.xlane.f32.xlu0 %v2881
        %v2883 = vpop.xlane.xlu0 %2882
        %v2884 = vmul.f32 %v2883, %v411
        %v2885 = vadd.f32 %v2884, 1e-06
        %v2886 = vrsqrt.pop %v2885
        %v2887 = vmul.f32 %v2879, %v2886
        %v2888 = vlaneseq
        %v2889 = vshrl.u32 %v2888, 7
        %v2890 = vsub.s32 0, %v2889
        %v2891 = vrot.slane %v2873, %v2890
        %v2892 = vmul.f32 %v2887, %v2891
        %v2893 = vlaneseq
        %v2894 = vshrl.u32 %v2893, 7
        %v2895 = vsub.s32 0, %v2894
        %v2896 = vrot.slane %v2874, %v2895
        %v2897 = vadd.f32 %v2892, %v2896
        %v2898 = vld [vmem:[#allocation2 + $0x308] sm:$0xff]
        %v2899 = vld [vmem:[#allocation2 + $0x310] sm:$0xff]
        %v2900 = vld [vmem:[#allocation2 + $0x318] sm:$0xff]
        %v2901 = vld [vmem:[#allocation2 + $0x320] sm:$0xff]
        %v2902 = vld [vmem:[#allocation2 + $0x328] sm:$0x1]
        %v2903 = vlaneseq
        %v2904 = vshrl.u32 %v2903, 7
        %v2905 = vsub.s32 0, %v2904
        %v2906 = vrot.slane %v2902, %v2905
        %v2908 = vsel %vm407, %v2897, 0
        %2910 = vmatprep.subr.mxu0 0.0
        %2911 = vmatpush1.msra.mxu0 %v2898
        %2912 = vmatprep.subr.mxu0 0.0
        %2913 = vmatpush1.msra.mxu0 %v2899
        %2914 = vmatprep.subr.mxu0 0.0
        %2915 = vmatpush1.msra.mxu0 %v2900
        %2916 = vmatprep.subr.mxu0 0.0
        %2917 = vmatpush1.msra.mxu0 %v2901
        %2918 = vmatprep.subr.mxu0 0.0
        %2919 = vmatpush1.msra.mxu0 0.0
        %2920 = vmatprep.subr.mxu0 0.0
        %2921 = vmatpush1.msra.mxu0 0.0
        %2922 = vmatprep.subr.mxu0 0.0
        %2923 = vmatpush1.msra.mxu0 0.0
        %2924 = vmatprep.subr.mxu0 0.0
        %2925 = vmatpush1.msra.mxu0 0.0
        %2926 = vmatprep.subr.mxu0 0.0
        %2927 = vmatpush1.msra.mxu0 0.0
        %2928 = vmatprep.subr.mxu0 0.0
        %2929 = vmatpush1.msra.mxu0 0.0
        %2930 = vmatprep.subr.mxu0 0.0
        %2931 = vmatpush1.msra.mxu0 0.0
        %2932 = vmatprep.subr.mxu0 0.0
        %2933 = vmatpush1.msra.mxu0 0.0
        %2934 = vmatprep.subr.mxu0 0.0
        %2935 = vmatpush1.msra.mxu0 0.0
        %2936 = vmatprep.subr.mxu0 0.0
        %2937 = vmatpush1.msra.mxu0 0.0
        %2938 = vmatprep.subr.mxu0 0.0
        %2939 = vmatpush1.msra.mxu0 0.0
        %2940 = vmatprep.subr.mxu0 0.0
        %2941 = vmatpush1.msra.mxu0 0.0
        %2942 = vmatprep.subr.mxu0 0.0
        %2943 = vmatpush1.msra.mxu0 0.0
        %2944 = vmatprep.subr.mxu0 0.0
        %2945 = vmatpush1.msra.mxu0 0.0
        %2946 = vmatprep.subr.mxu0 0.0
        %2947 = vmatpush1.msra.mxu0 0.0
        %2948 = vmatprep.subr.mxu0 0.0
        %2949 = vmatpush1.msra.mxu0 0.0
        %2950 = vmatprep.subr.mxu0 0.0
        %2951 = vmatpush1.msra.mxu0 0.0
        %2952 = vmatprep.subr.mxu0 0.0
        %2953 = vmatpush1.msra.mxu0 0.0
        %2954 = vmatprep.subr.mxu0 0.0
        %2955 = vmatpush1.msra.mxu0 0.0
        %2956 = vmatprep.subr.mxu0 0.0
        %2957 = vmatpush1.msra.mxu0 0.0
        %2958 = vmatprep.subr.mxu0 0.0
        %2959 = vmatpush1.msra.mxu0 0.0
        %2960 = vmatprep.subr.mxu0 0.0
        %2961 = vmatpush1.msra.mxu0 0.0
        %2962 = vmatprep.subr.mxu0 0.0
        %2963 = vmatpush1.msra.mxu0 0.0
        %2964 = vmatprep.subr.mxu0 0.0
        %2965 = vmatpush1.msra.mxu0 0.0
        %2966 = vmatprep.subr.mxu0 0.0
        %2967 = vmatpush1.msra.mxu0 0.0
        %2968 = vmatprep.subr.mxu0 0.0
        %2969 = vmatpush1.msra.mxu0 0.0
        %2970 = vmatprep.subr.mxu0 0.0
        %2971 = vmatpush1.msra.mxu0 0.0
        %2972 = vmatprep.subr.mxu0 0.0
        %2973 = vmatpush1.msra.mxu0 0.0
        %2974 = vmatprep.mubr.f32.mxu0 0.0
        %2975 = vmatmul.mubr.f32.gmra.mrb[0].mxu0 %v2908
        %v2976 = vpop.f32.mrb[0].mxu0
        %v2977 = vadd.f32 %v2906, %v2976
        %v2978 = vpop.f32.mrb[0].mxu0
        %2979 = vdwg.mxu0
        %v2980 = vsel %vm253, %v249, 0.0
        %2981 = vadd.xlane.f32.xlu0 %v2980
        %v2982 = vpop.xlane.xlu0 %2981
        %v2983 = vsel %vm253, %v250, 0.0
        %2984 = vadd.xlane.f32.xlu0 %v2983
        %v2985 = vpop.xlane.xlu0 %2984
        %v2986 = vsub.f32 1.0, %v2982
        %v2987 = vsub.f32 1.0, %v2985
        %v2988 = vld [vmem:[#allocation2 + $0x330] sm:$0x1]
        %v2989 = vlaneseq
        %v2990 = vshrl.u32 %v2989, 7
        %v2991 = vsub.s32 0, %v2990
        %v2992 = vrot.slane %v2988, %v2991
        %v2993 = vmul.f32 %v2986, %v2992
        %v2994 = vmul.f32 %v2987, %v2992
        %v2996 = vsel %vm253, %v249, 0
        %v2999 = vsel %vm253, %v250, 0
        %3001 = vmatprep.subr.mxu0 0.0
        %3002 = vmatpush1.msra.mxu0 %v2977
        %3003 = vmatprep.subr.mxu0 0.0
        %3004 = vmatpush1.msra.mxu0 0.0
        %3005 = vmatprep.subr.mxu0 0.0
        %3006 = vmatpush1.msra.mxu0 0.0
        %3007 = vmatprep.subr.mxu0 0.0
        %3008 = vmatpush1.msra.mxu0 0.0
        %3009 = vmatprep.subr.mxu0 0.0
        %3010 = vmatpush1.msra.mxu0 0.0
        %3011 = vmatprep.subr.mxu0 0.0
        %3012 = vmatpush1.msra.mxu0 0.0
        %3013 = vmatprep.subr.mxu0 0.0
        %3014 = vmatpush1.msra.mxu0 0.0
        %3015 = vmatprep.subr.mxu0 0.0
        %3016 = vmatpush1.msra.mxu0 0.0
        %3017 = vmatprep.subr.mxu0 0.0
        %3018 = vmatpush1.msra.mxu0 0.0
        %3019 = vmatprep.subr.mxu0 0.0
        %3020 = vmatpush1.msra.mxu0 0.0
        %3021 = vmatprep.subr.mxu0 0.0
        %3022 = vmatpush1.msra.mxu0 0.0
        %3023 = vmatprep.subr.mxu0 0.0
        %3024 = vmatpush1.msra.mxu0 0.0
        %3025 = vmatprep.subr.mxu0 0.0
        %3026 = vmatpush1.msra.mxu0 0.0
        %3027 = vmatprep.subr.mxu0 0.0
        %3028 = vmatpush1.msra.mxu0 0.0
        %3029 = vmatprep.subr.mxu0 0.0
        %3030 = vmatpush1.msra.mxu0 0.0
        %3031 = vmatprep.subr.mxu0 0.0
        %3032 = vmatpush1.msra.mxu0 0.0
        %3033 = vmatprep.subr.mxu0 0.0
        %3034 = vmatpush1.msra.mxu0 0.0
        %3035 = vmatprep.subr.mxu0 0.0
        %3036 = vmatpush1.msra.mxu0 0.0
        %3037 = vmatprep.subr.mxu0 0.0
        %3038 = vmatpush1.msra.mxu0 0.0
        %3039 = vmatprep.subr.mxu0 0.0
        %3040 = vmatpush1.msra.mxu0 0.0
        %3041 = vmatprep.subr.mxu0 0.0
        %3042 = vmatpush1.msra.mxu0 0.0
        %3043 = vmatprep.subr.mxu0 0.0
        %3044 = vmatpush1.msra.mxu0 0.0
        %3045 = vmatprep.subr.mxu0 0.0
        %3046 = vmatpush1.msra.mxu0 0.0
        %3047 = vmatprep.subr.mxu0 0.0
        %3048 = vmatpush1.msra.mxu0 0.0
        %3049 = vmatprep.subr.mxu0 0.0
        %3050 = vmatpush1.msra.mxu0 0.0
        %3051 = vmatprep.subr.mxu0 0.0
        %3052 = vmatpush1.msra.mxu0 0.0
        %3053 = vmatprep.subr.mxu0 0.0
        %3054 = vmatpush1.msra.mxu0 0.0
        %3055 = vmatprep.subr.mxu0 0.0
        %3056 = vmatpush1.msra.mxu0 0.0
        %3057 = vmatprep.subr.mxu0 0.0
        %3058 = vmatpush1.msra.mxu0 0.0
        %3059 = vmatprep.subr.mxu0 0.0
        %3060 = vmatpush1.msra.mxu0 0.0
        %3061 = vmatprep.subr.mxu0 0.0
        %3062 = vmatpush1.msra.mxu0 0.0
        %3063 = vmatprep.subr.mxu0 0.0
        %3064 = vmatpush1.msra.mxu0 0.0
        %3065 = vmatprep.mubr.f32.mxu0 0.0
        %3066 = vmatmul.mubr.f32.gmra.mrb[0].mxu0 %v2996
        %v3067 = vpop.f32.mrb[0].mxu0
        %v3068 = vadd.f32 %v2993, %v3067
        %v3069 = vpop.f32.mrb[0].mxu0
        %3070 = vmatprep.mubr.f32.mxu0 0.0
        %3071 = vmatmul.mubr.f32.gmra.mrb[0].mxu0 %v2999
        %v3072 = vpop.f32.mrb[0].mxu0
        %v3073 = vadd.f32 %v2994, %v3072
        %v3074 = vpop.f32.mrb[0].mxu0
        %3075 = vdwg.mxu0
        %v3076 = vld [vmem:[#allocation2 + $0x338] sm:$0xff]
        %v3077 = vld [vmem:[#allocation2 + $0x340] sm:$0xff]
        %v3078 = vadd.f32 %v3068, %v3076
        %v3079 = vadd.f32 %v3073, %v3077
        %vm3080 = vcmp.lt.s32.totalorder %v402, 9
        %v3081 = vsel %vm3080, 0.0, -1e+30
        %v3082 = vld [vmem:[#allocation2 + $0x348] sm:$0x1]
        %v3083 = vld [vmem:[#allocation2 + $0x350] sm:$0x1]
        %v3084 = vsel %vm407, %v3078, 0.0
        %3085 = vadd.xlane.f32.xlu0 %v3084
        %v3086 = vpop.xlane.xlu0 %3085
        %v3087 = vsel %vm407, %v3079, 0.0
        %3088 = vadd.xlane.f32.xlu0 %v3087
        %v3089 = vpop.xlane.xlu0 %3088
        %v3090 = vmul.f32 %v3086, %v411
        %v3091 = vmul.f32 %v3089, %v411
        %v3092 = vsub.f32 %v3078, %v3090
        %v3093 = vsub.f32 %v3079, %v3091
        %v3094 = vmul.f32 %v3092, %v3092
        %v3095 = vmul.f32 %v3093, %v3093
        %v3096 = vsel %vm407, %v3094, 0.0
        %3097 = vadd.xlane.f32.xlu0 %v3096
        %v3098 = vpop.xlane.xlu0 %3097
        %v3099 = vsel %vm407, %v3095, 0.0
        %3100 = vadd.xlane.f32.xlu0 %v3099
        %v3101 = vpop.xlane.xlu0 %3100
        %v3102 = vmul.f32 %v3098, %v411
        %v3103 = vmul.f32 %v3101, %v411
        %v3104 = vadd.f32 %v3102, 1e-06
        %v3105 = vadd.f32 %v3103, 1e-06
        %v3106 = vrsqrt.pop %v3104
        %v3107 = vrsqrt.pop %v3105
        %v3108 = vmul.f32 %v3092, %v3106
        %v3109 = vmul.f32 %v3093, %v3107
        %v3110 = vlaneseq
        %v3111 = vshrl.u32 %v3110, 7
        %v3112 = vsub.s32 0, %v3111
        %v3113 = vrot.slane %v3082, %v3112
        %v3114 = vmul.f32 %v3108, %v3113
        %v3115 = vmul.f32 %v3109, %v3113
        %v3116 = vlaneseq
        %v3117 = vshrl.u32 %v3116, 7
        %v3118 = vsub.s32 0, %v3117
        %v3119 = vrot.slane %v3083, %v3118
        %v3120 = vadd.f32 %v3114, %v3119
        %v3121 = vadd.f32 %v3115, %v3119
        %v3122 = vld [vmem:[#allocation2 + $0x358] sm:$0xff]
        %v3123 = vld [vmem:[#allocation2 + $0x360] sm:$0xff]
        %v3124 = vld [vmem:[#allocation2 + $0x368] sm:$0xff]
        %v3125 = vld [vmem:[#allocation2 + $0x370] sm:$0xff]
        %v3126 = vld [vmem:[#allocation2 + $0x378] sm:$0x1]
        %v3127 = vlaneseq
        %v3128 = vshrl.u32 %v3127, 7
        %v3129 = vsub.s32 0, %v3128
        %v3130 = vrot.slane %v3126, %v3129
        %v3132 = vsel %vm407, %v3120, 0
        %v3135 = vsel %vm407, %v3121, 0
        %3137 = vmatprep.subr.mxu0 0.0
        %3138 = vmatpush1.msra.mxu0 %v3122
        %3139 = vmatprep.subr.mxu0 0.0
        %3140 = vmatpush1.msra.mxu0 %v3123
        %3141 = vmatprep.subr.mxu0 0.0
        %3142 = vmatpush1.msra.mxu0 %v3124
        %3143 = vmatprep.subr.mxu0 0.0
        %3144 = vmatpush1.msra.mxu0 %v3125
        %3145 = vmatprep.subr.mxu0 0.0
        %3146 = vmatpush1.msra.mxu0 0.0
        %3147 = vmatprep.subr.mxu0 0.0
        %3148 = vmatpush1.msra.mxu0 0.0
        %3149 = vmatprep.subr.mxu0 0.0
        %3150 = vmatpush1.msra.mxu0 0.0
        %3151 = vmatprep.subr.mxu0 0.0
        %3152 = vmatpush1.msra.mxu0 0.0
        %3153 = vmatprep.subr.mxu0 0.0
        %3154 = vmatpush1.msra.mxu0 0.0
        %3155 = vmatprep.subr.mxu0 0.0
        %3156 = vmatpush1.msra.mxu0 0.0
        %3157 = vmatprep.subr.mxu0 0.0
        %3158 = vmatpush1.msra.mxu0 0.0
        %3159 = vmatprep.subr.mxu0 0.0
        %3160 = vmatpush1.msra.mxu0 0.0
        %3161 = vmatprep.subr.mxu0 0.0
        %3162 = vmatpush1.msra.mxu0 0.0
        %3163 = vmatprep.subr.mxu0 0.0
        %3164 = vmatpush1.msra.mxu0 0.0
        %3165 = vmatprep.subr.mxu0 0.0
        %3166 = vmatpush1.msra.mxu0 0.0
        %3167 = vmatprep.subr.mxu0 0.0
        %3168 = vmatpush1.msra.mxu0 0.0
        %3169 = vmatprep.subr.mxu0 0.0
        %3170 = vmatpush1.msra.mxu0 0.0
        %3171 = vmatprep.subr.mxu0 0.0
        %3172 = vmatpush1.msra.mxu0 0.0
        %3173 = vmatprep.subr.mxu0 0.0
        %3174 = vmatpush1.msra.mxu0 0.0
        %3175 = vmatprep.subr.mxu0 0.0
        %3176 = vmatpush1.msra.mxu0 0.0
        %3177 = vmatprep.subr.mxu0 0.0
        %3178 = vmatpush1.msra.mxu0 0.0
        %3179 = vmatprep.subr.mxu0 0.0
        %3180 = vmatpush1.msra.mxu0 0.0
        %3181 = vmatprep.subr.mxu0 0.0
        %3182 = vmatpush1.msra.mxu0 0.0
        %3183 = vmatprep.subr.mxu0 0.0
        %3184 = vmatpush1.msra.mxu0 0.0
        %3185 = vmatprep.subr.mxu0 0.0
        %3186 = vmatpush1.msra.mxu0 0.0
        %3187 = vmatprep.subr.mxu0 0.0
        %3188 = vmatpush1.msra.mxu0 0.0
        %3189 = vmatprep.subr.mxu0 0.0
        %3190 = vmatpush1.msra.mxu0 0.0
        %3191 = vmatprep.subr.mxu0 0.0
        %3192 = vmatpush1.msra.mxu0 0.0
        %3193 = vmatprep.subr.mxu0 0.0
        %3194 = vmatpush1.msra.mxu0 0.0
        %3195 = vmatprep.subr.mxu0 0.0
        %3196 = vmatpush1.msra.mxu0 0.0
        %3197 = vmatprep.subr.mxu0 0.0
        %3198 = vmatpush1.msra.mxu0 0.0
        %3199 = vmatprep.subr.mxu0 0.0
        %3200 = vmatpush1.msra.mxu0 0.0
        %3201 = vmatprep.mubr.f32.mxu0 0.0
        %3202 = vmatmul.mubr.f32.gmra.mrb[0].mxu0 %v3132
        %v3203 = vpop.f32.mrb[0].mxu0
        %v3204 = vadd.f32 %v3130, %v3203
        %v3205 = vpop.f32.mrb[0].mxu0
        %3206 = vmatprep.mubr.f32.mxu0 0.0
        %3207 = vmatmul.mubr.f32.gmra.mrb[0].mxu0 %v3135
        %v3208 = vpop.f32.mrb[0].mxu0
        %v3209 = vadd.f32 %v3130, %v3208
        %v3210 = vpop.f32.mrb[0].mxu0
        %3211 = vdwg.mxu0
        %v3212 = vld [vmem:[#allocation2 + $0x380] sm:$0xff]
        %v3213 = vld [vmem:[#allocation2 + $0x388] sm:$0xff]
        %v3214 = vld [vmem:[#allocation2 + $0x390] sm:$0xff]
        %v3215 = vld [vmem:[#allocation2 + $0x398] sm:$0xff]
        %v3216 = vld [vmem:[#allocation2 + $0x3a0] sm:$0x1]
        %v3217 = vlaneseq
        %v3218 = vshrl.u32 %v3217, 7
        %v3219 = vsub.s32 0, %v3218
        %v3220 = vrot.slane %v3216, %v3219
        %3221 = vmatprep.subr.mxu0 0.0
        %3222 = vmatpush1.msra.mxu0 %v3212
        %3223 = vmatprep.subr.mxu0 0.0
        %3224 = vmatpush1.msra.mxu0 %v3213
        %3225 = vmatprep.subr.mxu0 0.0
        %3226 = vmatpush1.msra.mxu0 %v3214
        %3227 = vmatprep.subr.mxu0 0.0
        %3228 = vmatpush1.msra.mxu0 %v3215
        %3229 = vmatprep.subr.mxu0 0.0
        %3230 = vmatpush1.msra.mxu0 0.0
        %3231 = vmatprep.subr.mxu0 0.0
        %3232 = vmatpush1.msra.mxu0 0.0
        %3233 = vmatprep.subr.mxu0 0.0
        %3234 = vmatpush1.msra.mxu0 0.0
        %3235 = vmatprep.subr.mxu0 0.0
        %3236 = vmatpush1.msra.mxu0 0.0
        %3237 = vmatprep.subr.mxu0 0.0
        %3238 = vmatpush1.msra.mxu0 0.0
        %3239 = vmatprep.subr.mxu0 0.0
        %3240 = vmatpush1.msra.mxu0 0.0
        %3241 = vmatprep.subr.mxu0 0.0
        %3242 = vmatpush1.msra.mxu0 0.0
        %3243 = vmatprep.subr.mxu0 0.0
        %3244 = vmatpush1.msra.mxu0 0.0
        %3245 = vmatprep.subr.mxu0 0.0
        %3246 = vmatpush1.msra.mxu0 0.0
        %3247 = vmatprep.subr.mxu0 0.0
        %3248 = vmatpush1.msra.mxu0 0.0
        %3249 = vmatprep.subr.mxu0 0.0
        %3250 = vmatpush1.msra.mxu0 0.0
        %3251 = vmatprep.subr.mxu0 0.0
        %3252 = vmatpush1.msra.mxu0 0.0
        %3253 = vmatprep.subr.mxu0 0.0
        %3254 = vmatpush1.msra.mxu0 0.0
        %3255 = vmatprep.subr.mxu0 0.0
        %3256 = vmatpush1.msra.mxu0 0.0
        %3257 = vmatprep.subr.mxu0 0.0
        %3258 = vmatpush1.msra.mxu0 0.0
        %3259 = vmatprep.subr.mxu0 0.0
        %3260 = vmatpush1.msra.mxu0 0.0
        %3261 = vmatprep.subr.mxu0 0.0
        %3262 = vmatpush1.msra.mxu0 0.0
        %3263 = vmatprep.subr.mxu0 0.0
        %3264 = vmatpush1.msra.mxu0 0.0
        %3265 = vmatprep.subr.mxu0 0.0
        %3266 = vmatpush1.msra.mxu0 0.0
        %3267 = vmatprep.subr.mxu0 0.0
        %3268 = vmatpush1.msra.mxu0 0.0
        %3269 = vmatprep.subr.mxu0 0.0
        %3270 = vmatpush1.msra.mxu0 0.0
        %3271 = vmatprep.subr.mxu0 0.0
        %3272 = vmatpush1.msra.mxu0 0.0
        %3273 = vmatprep.subr.mxu0 0.0
        %3274 = vmatpush1.msra.mxu0 0.0
        %3275 = vmatprep.subr.mxu0 0.0
        %3276 = vmatpush1.msra.mxu0 0.0
        %3277 = vmatprep.subr.mxu0 0.0
        %3278 = vmatpush1.msra.mxu0 0.0
        %3279 = vmatprep.subr.mxu0 0.0
        %3280 = vmatpush1.msra.mxu0 0.0
        %3281 = vmatprep.subr.mxu0 0.0
        %3282 = vmatpush1.msra.mxu0 0.0
        %3283 = vmatprep.subr.mxu0 0.0
        %3284 = vmatpush1.msra.mxu0 0.0
        %3285 = vmatprep.mubr.f32.mxu0 0.0
        %3286 = vmatmul.mubr.f32.gmra.mrb[0].mxu0 %v3132
        %v3287 = vpop.f32.mrb[0].mxu0
        %v3288 = vadd.f32 %v3220, %v3287
        %v3289 = vpop.f32.mrb[0].mxu0
        %3290 = vmatprep.mubr.f32.mxu0 0.0
        %3291 = vmatmul.mubr.f32.gmra.mrb[0].mxu0 %v3135
        %v3292 = vpop.f32.mrb[0].mxu0
        %v3293 = vadd.f32 %v3220, %v3292
        %v3294 = vpop.f32.mrb[0].mxu0
        %3295 = vdwg.mxu0
        %v3296 = vld [vmem:[#allocation2 + $0x3a8] sm:$0xff]
        %v3297 = vld [vmem:[#allocation2 + $0x3b0] sm:$0xff]
        %v3298 = vld [vmem:[#allocation2 + $0x3b8] sm:$0xff]
        %v3299 = vld [vmem:[#allocation2 + $0x3c0] sm:$0xff]
        %v3300 = vld [vmem:[#allocation2 + $0x3c8] sm:$0x1]
        %v3301 = vlaneseq
        %v3302 = vshrl.u32 %v3301, 7
        %v3303 = vsub.s32 0, %v3302
        %v3304 = vrot.slane %v3300, %v3303
        %3305 = vmatprep.subr.mxu0 0.0
        %3306 = vmatpush1.msra.mxu0 %v3296
        %3307 = vmatprep.subr.mxu0 0.0
        %3308 = vmatpush1.msra.mxu0 %v3297
        %3309 = vmatprep.subr.mxu0 0.0
        %3310 = vmatpush1.msra.mxu0 %v3298
        %3311 = vmatprep.subr.mxu0 0.0
        %3312 = vmatpush1.msra.mxu0 %v3299
        %3313 = vmatprep.subr.mxu0 0.0
        %3314 = vmatpush1.msra.mxu0 0.0
        %3315 = vmatprep.subr.mxu0 0.0
        %3316 = vmatpush1.msra.mxu0 0.0
        %3317 = vmatprep.subr.mxu0 0.0
        %3318 = vmatpush1.msra.mxu0 0.0
        %3319 = vmatprep.subr.mxu0 0.0
        %3320 = vmatpush1.msra.mxu0 0.0
        %3321 = vmatprep.subr.mxu0 0.0
        %3322 = vmatpush1.msra.mxu0 0.0
        %3323 = vmatprep.subr.mxu0 0.0
        %3324 = vmatpush1.msra.mxu0 0.0
        %3325 = vmatprep.subr.mxu0 0.0
        %3326 = vmatpush1.msra.mxu0 0.0
        %3327 = vmatprep.subr.mxu0 0.0
        %3328 = vmatpush1.msra.mxu0 0.0
        %3329 = vmatprep.subr.mxu0 0.0
        %3330 = vmatpush1.msra.mxu0 0.0
        %3331 = vmatprep.subr.mxu0 0.0
        %3332 = vmatpush1.msra.mxu0 0.0
        %3333 = vmatprep.subr.mxu0 0.0
        %3334 = vmatpush1.msra.mxu0 0.0
        %3335 = vmatprep.subr.mxu0 0.0
        %3336 = vmatpush1.msra.mxu0 0.0
        %3337 = vmatprep.subr.mxu0 0.0
        %3338 = vmatpush1.msra.mxu0 0.0
        %3339 = vmatprep.subr.mxu0 0.0
        %3340 = vmatpush1.msra.mxu0 0.0
        %3341 = vmatprep.subr.mxu0 0.0
        %3342 = vmatpush1.msra.mxu0 0.0
        %3343 = vmatprep.subr.mxu0 0.0
        %3344 = vmatpush1.msra.mxu0 0.0
        %3345 = vmatprep.subr.mxu0 0.0
        %3346 = vmatpush1.msra.mxu0 0.0
        %3347 = vmatprep.subr.mxu0 0.0
        %3348 = vmatpush1.msra.mxu0 0.0
        %3349 = vmatprep.subr.mxu0 0.0
        %3350 = vmatpush1.msra.mxu0 0.0
        %3351 = vmatprep.subr.mxu0 0.0
        %3352 = vmatpush1.msra.mxu0 0.0
        %3353 = vmatprep.subr.mxu0 0.0
        %3354 = vmatpush1.msra.mxu0 0.0
        %3355 = vmatprep.subr.mxu0 0.0
        %3356 = vmatpush1.msra.mxu0 0.0
        %3357 = vmatprep.subr.mxu0 0.0
        %3358 = vmatpush1.msra.mxu0 0.0
        %3359 = vmatprep.subr.mxu0 0.0
        %3360 = vmatpush1.msra.mxu0 0.0
        %3361 = vmatprep.subr.mxu0 0.0
        %3362 = vmatpush1.msra.mxu0 0.0
        %3363 = vmatprep.subr.mxu0 0.0
        %3364 = vmatpush1.msra.mxu0 0.0
        %3365 = vmatprep.subr.mxu0 0.0
        %3366 = vmatpush1.msra.mxu0 0.0
        %3367 = vmatprep.subr.mxu0 0.0
        %3368 = vmatpush1.msra.mxu0 0.0
        %3369 = vmatprep.mubr.f32.mxu0 0.0
        %3370 = vmatmul.mubr.f32.gmra.mrb[0].mxu0 %v3132
        %v3371 = vpop.f32.mrb[0].mxu0
        %v3372 = vadd.f32 %v3304, %v3371
        %v3373 = vpop.f32.mrb[0].mxu0
        %3374 = vmatprep.mubr.f32.mxu0 0.0
        %3375 = vmatmul.mubr.f32.gmra.mrb[0].mxu0 %v3135
        %v3376 = vpop.f32.mrb[0].mxu0
        %v3377 = vadd.f32 %v3304, %v3376
        %v3378 = vpop.f32.mrb[0].mxu0
        %3379 = vdwg.mxu0
        %v3381 = vsel %vm253, %v3204, 0
        %v3384 = vsel %vm253, %v3209, 0
        %v3387 = vsel %vm253, %v3288, 0
        %v3390 = vsel %vm253, %v3293, 0
        %3392 = vmatprep.subr.mxu0 0.0
        %3393 = vmatpush1.xpose.msra.mxu0 %v3387
        %3394 = vmatprep.subr.mxu0 0.0
        %3395 = vmatpush1.xpose.msra.mxu0 %v3390
        %3396 = vmatprep.subr.mxu0 0.0
        %3397 = vmatpush1.xpose.msra.mxu0 0.0
        %3398 = vmatprep.subr.mxu0 0.0
        %3399 = vmatpush1.xpose.msra.mxu0 0.0
        %3400 = vmatprep.subr.mxu0 0.0
        %3401 = vmatpush1.xpose.msra.mxu0 0.0
        %3402 = vmatprep.subr.mxu0 0.0
        %3403 = vmatpush1.xpose.msra.mxu0 0.0
        %3404 = vmatprep.subr.mxu0 0.0
        %3405 = vmatpush1.xpose.msra.mxu0 0.0
        %3406 = vmatprep.subr.mxu0 0.0
        %3407 = vmatpush1.xpose.msra.mxu0 0.0
        %3408 = vmatprep.subr.mxu0 0.0
        %3409 = vmatpush1.xpose.msra.mxu0 0.0
        %3410 = vmatprep.subr.mxu0 0.0
        %3411 = vmatpush1.xpose.msra.mxu0 0.0
        %3412 = vmatprep.subr.mxu0 0.0
        %3413 = vmatpush1.xpose.msra.mxu0 0.0
        %3414 = vmatprep.subr.mxu0 0.0
        %3415 = vmatpush1.xpose.msra.mxu0 0.0
        %3416 = vmatprep.subr.mxu0 0.0
        %3417 = vmatpush1.xpose.msra.mxu0 0.0
        %3418 = vmatprep.subr.mxu0 0.0
        %3419 = vmatpush1.xpose.msra.mxu0 0.0
        %3420 = vmatprep.subr.mxu0 0.0
        %3421 = vmatpush1.xpose.msra.mxu0 0.0
        %3422 = vmatprep.subr.mxu0 0.0
        %3423 = vmatpush1.xpose.msra.mxu0 0.0
        %3424 = vmatprep.subr.mxu0 0.0
        %3425 = vmatpush1.xpose.msra.mxu0 0.0
        %3426 = vmatprep.subr.mxu0 0.0
        %3427 = vmatpush1.xpose.msra.mxu0 0.0
        %3428 = vmatprep.subr.mxu0 0.0
        %3429 = vmatpush1.xpose.msra.mxu0 0.0
        %3430 = vmatprep.subr.mxu0 0.0
        %3431 = vmatpush1.xpose.msra.mxu0 0.0
        %3432 = vmatprep.subr.mxu0 0.0
        %3433 = vmatpush1.xpose.msra.mxu0 0.0
        %3434 = vmatprep.subr.mxu0 0.0
        %3435 = vmatpush1.xpose.msra.mxu0 0.0
        %3436 = vmatprep.subr.mxu0 0.0
        %3437 = vmatpush1.xpose.msra.mxu0 0.0
        %3438 = vmatprep.subr.mxu0 0.0
        %3439 = vmatpush1.xpose.msra.mxu0 0.0
        %3440 = vmatprep.subr.mxu0 0.0
        %3441 = vmatpush1.xpose.msra.mxu0 0.0
        %3442 = vmatprep.subr.mxu0 0.0
        %3443 = vmatpush1.xpose.msra.mxu0 0.0
        %3444 = vmatprep.subr.mxu0 0.0
        %3445 = vmatpush1.xpose.msra.mxu0 0.0
        %3446 = vmatprep.subr.mxu0 0.0
        %3447 = vmatpush1.xpose.msra.mxu0 0.0
        %3448 = vmatprep.subr.mxu0 0.0
        %3449 = vmatpush1.xpose.msra.mxu0 0.0
        %3450 = vmatprep.subr.mxu0 0.0
        %3451 = vmatpush1.xpose.msra.mxu0 0.0
        %3452 = vmatprep.subr.mxu0 0.0
        %3453 = vmatpush1.xpose.msra.mxu0 0.0
        %3454 = vmatprep.subr.mxu0 0.0
        %3455 = vmatpush1.xpose.msra.mxu0 0.0
        %3456 = vmatprep.mubr.f32.mxu0 0.0
        %3457 = vmatmul.mubr.f32.gmra.mrb[0].mxu0 %v3381
        %v3458 = vpop.f32.mrb[0].mxu0
        %v3459 = vadd.f32 0.0, %v3458
        %v3460 = vpop.f32.mrb[0].mxu0
        %3461 = vmatprep.mubr.f32.mxu0 0.0
        %3462 = vmatmul.mubr.f32.gmra.mrb[0].mxu0 %v3384
        %v3463 = vpop.f32.mrb[0].mxu0
        %v3464 = vadd.f32 0.0, %v3463
        %v3465 = vpop.f32.mrb[0].mxu0
        %3466 = vdwg.mxu0
        %v3467 = vmul.f32 %v3459, 0.35355338
        %v3468 = vmul.f32 %v3464, 0.35355338
        %v3469 = vadd.f32 %v3467, %v3081
        %v3470 = vadd.f32 %v3468, %v3081
        %v3471 = vsel %vm1349, %v3469, -inf
        %3472 = vmax.xlane.f32.xlu0 %v3471
        %v3473 = vpop.xlane.xlu0 %3472
        %v3474 = vsel %vm1349, %v3470, -inf
        %3475 = vmax.xlane.f32.xlu0 %v3474
        %v3476 = vpop.xlane.xlu0 %3475
        %v3477 = vsub.f32 %v3469, %v3473
        %v3478 = vsub.f32 %v3470, %v3476
        %v3479 = vmul.f32 %v3477, 1.442695
        %v3480 = vpow.pop %v3479
        %v3481 = vmul.f32 %v3478, 1.442695
        %v3482 = vpow.pop %v3481
        %v3483 = vsel %vm1349, %v3480, 0.0
        %3484 = vadd.xlane.f32.xlu0 %v3483
        %v3485 = vpop.xlane.xlu0 %3484
        %v3486 = vsel %vm1349, %v3482, 0.0
        %3487 = vadd.xlane.f32.xlu0 %v3486
        %v3488 = vpop.xlane.xlu0 %3487
        %v3489 = vrcp.pop %v3485
        %v3490 = vmul.f32 %v3480, %v3489
        %v3491 = vrcp.pop %v3488
        %v3492 = vmul.f32 %v3482, %v3491
        %v3494 = vsel %vm1349, %v3490, 0
        %v3497 = vsel %vm1349, %v3492, 0
        %3499 = vmatprep.subr.mxu0 0.0
        %3500 = vmatpush1.msra.mxu0 %v3372
        %3501 = vmatprep.subr.mxu0 0.0
        %3502 = vmatpush1.msra.mxu0 %v3377
        %3503 = vmatprep.subr.mxu0 0.0
        %3504 = vmatpush1.msra.mxu0 0.0
        %3505 = vmatprep.subr.mxu0 0.0
        %3506 = vmatpush1.msra.mxu0 0.0
        %3507 = vmatprep.subr.mxu0 0.0
        %3508 = vmatpush1.msra.mxu0 0.0
        %3509 = vmatprep.subr.mxu0 0.0
        %3510 = vmatpush1.msra.mxu0 0.0
        %3511 = vmatprep.subr.mxu0 0.0
        %3512 = vmatpush1.msra.mxu0 0.0
        %3513 = vmatprep.subr.mxu0 0.0
        %3514 = vmatpush1.msra.mxu0 0.0
        %3515 = vmatprep.subr.mxu0 0.0
        %3516 = vmatpush1.msra.mxu0 0.0
        %3517 = vmatprep.subr.mxu0 0.0
        %3518 = vmatpush1.msra.mxu0 0.0
        %3519 = vmatprep.subr.mxu0 0.0
        %3520 = vmatpush1.msra.mxu0 0.0
        %3521 = vmatprep.subr.mxu0 0.0
        %3522 = vmatpush1.msra.mxu0 0.0
        %3523 = vmatprep.subr.mxu0 0.0
        %3524 = vmatpush1.msra.mxu0 0.0
        %3525 = vmatprep.subr.mxu0 0.0
        %3526 = vmatpush1.msra.mxu0 0.0
        %3527 = vmatprep.subr.mxu0 0.0
        %3528 = vmatpush1.msra.mxu0 0.0
        %3529 = vmatprep.subr.mxu0 0.0
        %3530 = vmatpush1.msra.mxu0 0.0
        %3531 = vmatprep.subr.mxu0 0.0
        %3532 = vmatpush1.msra.mxu0 0.0
        %3533 = vmatprep.subr.mxu0 0.0
        %3534 = vmatpush1.msra.mxu0 0.0
        %3535 = vmatprep.subr.mxu0 0.0
        %3536 = vmatpush1.msra.mxu0 0.0
        %3537 = vmatprep.subr.mxu0 0.0
        %3538 = vmatpush1.msra.mxu0 0.0
        %3539 = vmatprep.subr.mxu0 0.0
        %3540 = vmatpush1.msra.mxu0 0.0
        %3541 = vmatprep.subr.mxu0 0.0
        %3542 = vmatpush1.msra.mxu0 0.0
        %3543 = vmatprep.subr.mxu0 0.0
        %3544 = vmatpush1.msra.mxu0 0.0
        %3545 = vmatprep.subr.mxu0 0.0
        %3546 = vmatpush1.msra.mxu0 0.0
        %3547 = vmatprep.subr.mxu0 0.0
        %3548 = vmatpush1.msra.mxu0 0.0
        %3549 = vmatprep.subr.mxu0 0.0
        %3550 = vmatpush1.msra.mxu0 0.0
        %3551 = vmatprep.subr.mxu0 0.0
        %3552 = vmatpush1.msra.mxu0 0.0
        %3553 = vmatprep.subr.mxu0 0.0
        %3554 = vmatpush1.msra.mxu0 0.0
        %3555 = vmatprep.subr.mxu0 0.0
        %3556 = vmatpush1.msra.mxu0 0.0
        %3557 = vmatprep.subr.mxu0 0.0
        %3558 = vmatpush1.msra.mxu0 0.0
        %3559 = vmatprep.subr.mxu0 0.0
        %3560 = vmatpush1.msra.mxu0 0.0
        %3561 = vmatprep.subr.mxu0 0.0
        %3562 = vmatpush1.msra.mxu0 0.0
        %3563 = vmatprep.mubr.f32.mxu0 0.0
        %3564 = vmatmul.mubr.f32.gmra.mrb[0].mxu0 %v3494
        %v3565 = vpop.f32.mrb[0].mxu0
        %v3566 = vadd.f32 0.0, %v3565
        %v3567 = vpop.f32.mrb[0].mxu0
        %3568 = vmatprep.mubr.f32.mxu0 0.0
        %3569 = vmatmul.mubr.f32.gmra.mrb[0].mxu0 %v3497
        %v3570 = vpop.f32.mrb[0].mxu0
        %v3571 = vadd.f32 0.0, %v3570
        %v3572 = vpop.f32.mrb[0].mxu0
        %3573 = vdwg.mxu0
        %3574 = vrot.lane.b32.xlu0 %v3204, 120
        %v3575 = vpop.permute.xlu0 %3574
        %3576 = vrot.lane.b32.xlu0 %v3209, 120
        %v3577 = vpop.permute.xlu0 %3576
        %3578 = vrot.lane.b32.xlu0 %v3288, 120
        %v3579 = vpop.permute.xlu0 %3578
        %3580 = vrot.lane.b32.xlu0 %v3293, 120
        %v3581 = vpop.permute.xlu0 %3580
        %v3582 = vsel %vm253, %v3575, 0
        %v3584 = vsel %vm253, %v3577, 0
        %v3586 = vsel %vm253, %v3579, 0
        %v3588 = vsel %vm253, %v3581, 0
        %3590 = vmatprep.subr.mxu0 0.0
        %3591 = vmatpush1.xpose.msra.mxu0 %v3586
        %3592 = vmatprep.subr.mxu0 0.0
        %3593 = vmatpush1.xpose.msra.mxu0 %v3588
        %3594 = vmatprep.subr.mxu0 0.0
        %3595 = vmatpush1.xpose.msra.mxu0 0.0
        %3596 = vmatprep.subr.mxu0 0.0
        %3597 = vmatpush1.xpose.msra.mxu0 0.0
        %3598 = vmatprep.subr.mxu0 0.0
        %3599 = vmatpush1.xpose.msra.mxu0 0.0
        %3600 = vmatprep.subr.mxu0 0.0
        %3601 = vmatpush1.xpose.msra.mxu0 0.0
        %3602 = vmatprep.subr.mxu0 0.0
        %3603 = vmatpush1.xpose.msra.mxu0 0.0
        %3604 = vmatprep.subr.mxu0 0.0
        %3605 = vmatpush1.xpose.msra.mxu0 0.0
        %3606 = vmatprep.subr.mxu0 0.0
        %3607 = vmatpush1.xpose.msra.mxu0 0.0
        %3608 = vmatprep.subr.mxu0 0.0
        %3609 = vmatpush1.xpose.msra.mxu0 0.0
        %3610 = vmatprep.subr.mxu0 0.0
        %3611 = vmatpush1.xpose.msra.mxu0 0.0
        %3612 = vmatprep.subr.mxu0 0.0
        %3613 = vmatpush1.xpose.msra.mxu0 0.0
        %3614 = vmatprep.subr.mxu0 0.0
        %3615 = vmatpush1.xpose.msra.mxu0 0.0
        %3616 = vmatprep.subr.mxu0 0.0
        %3617 = vmatpush1.xpose.msra.mxu0 0.0
        %3618 = vmatprep.subr.mxu0 0.0
        %3619 = vmatpush1.xpose.msra.mxu0 0.0
        %3620 = vmatprep.subr.mxu0 0.0
        %3621 = vmatpush1.xpose.msra.mxu0 0.0
        %3622 = vmatprep.subr.mxu0 0.0
        %3623 = vmatpush1.xpose.msra.mxu0 0.0
        %3624 = vmatprep.subr.mxu0 0.0
        %3625 = vmatpush1.xpose.msra.mxu0 0.0
        %3626 = vmatprep.subr.mxu0 0.0
        %3627 = vmatpush1.xpose.msra.mxu0 0.0
        %3628 = vmatprep.subr.mxu0 0.0
        %3629 = vmatpush1.xpose.msra.mxu0 0.0
        %3630 = vmatprep.subr.mxu0 0.0
        %3631 = vmatpush1.xpose.msra.mxu0 0.0
        %3632 = vmatprep.subr.mxu0 0.0
        %3633 = vmatpush1.xpose.msra.mxu0 0.0
        %3634 = vmatprep.subr.mxu0 0.0
        %3635 = vmatpush1.xpose.msra.mxu0 0.0
        %3636 = vmatprep.subr.mxu0 0.0
        %3637 = vmatpush1.xpose.msra.mxu0 0.0
        %3638 = vmatprep.subr.mxu0 0.0
        %3639 = vmatpush1.xpose.msra.mxu0 0.0
        %3640 = vmatprep.subr.mxu0 0.0
        %3641 = vmatpush1.xpose.msra.mxu0 0.0
        %3642 = vmatprep.subr.mxu0 0.0
        %3643 = vmatpush1.xpose.msra.mxu0 0.0
        %3644 = vmatprep.subr.mxu0 0.0
        %3645 = vmatpush1.xpose.msra.mxu0 0.0
        %3646 = vmatprep.subr.mxu0 0.0
        %3647 = vmatpush1.xpose.msra.mxu0 0.0
        %3648 = vmatprep.subr.mxu0 0.0
        %3649 = vmatpush1.xpose.msra.mxu0 0.0
        %3650 = vmatprep.subr.mxu0 0.0
        %3651 = vmatpush1.xpose.msra.mxu0 0.0
        %3652 = vmatprep.subr.mxu0 0.0
        %3653 = vmatpush1.xpose.msra.mxu0 0.0
        %3654 = vmatprep.mubr.f32.mxu0 0.0
        %3655 = vmatmul.mubr.f32.gmra.mrb[0].mxu0 %v3582
        %v3656 = vpop.f32.mrb[0].mxu0
        %v3657 = vadd.f32 0.0, %v3656
        %v3658 = vpop.f32.mrb[0].mxu0
        %3659 = vmatprep.mubr.f32.mxu0 0.0
        %3660 = vmatmul.mubr.f32.gmra.mrb[0].mxu0 %v3584
        %v3661 = vpop.f32.mrb[0].mxu0
        %v3662 = vadd.f32 0.0, %v3661
        %v3663 = vpop.f32.mrb[0].mxu0
        %3664 = vdwg.mxu0
        %v3665 = vmul.f32 %v3657, 0.35355338
        %v3666 = vmul.f32 %v3662, 0.35355338
        %v3667 = vadd.f32 %v3665, %v3081
        %v3668 = vadd.f32 %v3666, %v3081
        %v3669 = vsel %vm1349, %v3667, -inf
        %3670 = vmax.xlane.f32.xlu0 %v3669
        %v3671 = vpop.xlane.xlu0 %3670
        %v3672 = vsel %vm1349, %v3668, -inf
        %3673 = vmax.xlane.f32.xlu0 %v3672
        %v3674 = vpop.xlane.xlu0 %3673
        %v3675 = vsub.f32 %v3667, %v3671
        %v3676 = vsub.f32 %v3668, %v3674
        %v3677 = vmul.f32 %v3675, 1.442695
        %v3678 = vpow.pop %v3677
        %v3679 = vmul.f32 %v3676, 1.442695
        %v3680 = vpow.pop %v3679
        %v3681 = vsel %vm1349, %v3678, 0.0
        %3682 = vadd.xlane.f32.xlu0 %v3681
        %v3683 = vpop.xlane.xlu0 %3682
        %v3684 = vsel %vm1349, %v3680, 0.0
        %3685 = vadd.xlane.f32.xlu0 %v3684
        %v3686 = vpop.xlane.xlu0 %3685
        %v3687 = vrcp.pop %v3683
        %v3688 = vmul.f32 %v3678, %v3687
        %v3689 = vrcp.pop %v3686
        %v3690 = vmul.f32 %v3680, %v3689
        %3693 = vrot.lane.b32.xlu0 %v3372, 120
        %v3694 = vpop.permute.xlu0 %3693
        %3695 = vrot.lane.b32.xlu0 %v3377, 120
        %v3696 = vpop.permute.xlu0 %3695
        %v3700 = vsel %vm1349, %v3688, 0
        %v3703 = vsel %vm1349, %v3690, 0
        %3705 = vmatprep.subr.mxu0 0.0
        %3706 = vmatpush1.msra.mxu0 %v3694
        %3707 = vmatprep.subr.mxu0 0.0
        %3708 = vmatpush1.msra.mxu0 %v3696
        %3709 = vmatprep.subr.mxu0 0.0
        %3710 = vmatpush1.msra.mxu0 0.0
        %3711 = vmatprep.subr.mxu0 0.0
        %3712 = vmatpush1.msra.mxu0 0.0
        %3713 = vmatprep.subr.mxu0 0.0
        %3714 = vmatpush1.msra.mxu0 0.0
        %3715 = vmatprep.subr.mxu0 0.0
        %3716 = vmatpush1.msra.mxu0 0.0
        %3717 = vmatprep.subr.mxu0 0.0
        %3718 = vmatpush1.msra.mxu0 0.0
        %3719 = vmatprep.subr.mxu0 0.0
        %3720 = vmatpush1.msra.mxu0 0.0
        %3721 = vmatprep.subr.mxu0 0.0
        %3722 = vmatpush1.msra.mxu0 0.0
        %3723 = vmatprep.subr.mxu0 0.0
        %3724 = vmatpush1.msra.mxu0 0.0
        %3725 = vmatprep.subr.mxu0 0.0
        %3726 = vmatpush1.msra.mxu0 0.0
        %3727 = vmatprep.subr.mxu0 0.0
        %3728 = vmatpush1.msra.mxu0 0.0
        %3729 = vmatprep.subr.mxu0 0.0
        %3730 = vmatpush1.msra.mxu0 0.0
        %3731 = vmatprep.subr.mxu0 0.0
        %3732 = vmatpush1.msra.mxu0 0.0
        %3733 = vmatprep.subr.mxu0 0.0
        %3734 = vmatpush1.msra.mxu0 0.0
        %3735 = vmatprep.subr.mxu0 0.0
        %3736 = vmatpush1.msra.mxu0 0.0
        %3737 = vmatprep.subr.mxu0 0.0
        %3738 = vmatpush1.msra.mxu0 0.0
        %3739 = vmatprep.subr.mxu0 0.0
        %3740 = vmatpush1.msra.mxu0 0.0
        %3741 = vmatprep.subr.mxu0 0.0
        %3742 = vmatpush1.msra.mxu0 0.0
        %3743 = vmatprep.subr.mxu0 0.0
        %3744 = vmatpush1.msra.mxu0 0.0
        %3745 = vmatprep.subr.mxu0 0.0
        %3746 = vmatpush1.msra.mxu0 0.0
        %3747 = vmatprep.subr.mxu0 0.0
        %3748 = vmatpush1.msra.mxu0 0.0
        %3749 = vmatprep.subr.mxu0 0.0
        %3750 = vmatpush1.msra.mxu0 0.0
        %3751 = vmatprep.subr.mxu0 0.0
        %3752 = vmatpush1.msra.mxu0 0.0
        %3753 = vmatprep.subr.mxu0 0.0
        %3754 = vmatpush1.msra.mxu0 0.0
        %3755 = vmatprep.subr.mxu0 0.0
        %3756 = vmatpush1.msra.mxu0 0.0
        %3757 = vmatprep.subr.mxu0 0.0
        %3758 = vmatpush1.msra.mxu0 0.0
        %3759 = vmatprep.subr.mxu0 0.0
        %3760 = vmatpush1.msra.mxu0 0.0
        %3761 = vmatprep.subr.mxu0 0.0
        %3762 = vmatpush1.msra.mxu0 0.0
        %3763 = vmatprep.subr.mxu0 0.0
        %3764 = vmatpush1.msra.mxu0 0.0
        %3765 = vmatprep.subr.mxu0 0.0
        %3766 = vmatpush1.msra.mxu0 0.0
        %3767 = vmatprep.subr.mxu0 0.0
        %3768 = vmatpush1.msra.mxu0 0.0
        %3769 = vmatprep.mubr.f32.mxu0 0.0
        %3770 = vmatmul.mubr.f32.gmra.mrb[0].mxu0 %v3700
        %v3771 = vpop.f32.mrb[0].mxu0
        %v3772 = vadd.f32 0.0, %v3771
        %v3773 = vpop.f32.mrb[0].mxu0
        %3774 = vmatprep.mubr.f32.mxu0 0.0
        %3775 = vmatmul.mubr.f32.gmra.mrb[0].mxu0 %v3703
        %v3776 = vpop.f32.mrb[0].mxu0
        %v3777 = vadd.f32 0.0, %v3776
        %v3778 = vpop.f32.mrb[0].mxu0
        %3779 = vdwg.mxu0
        %3780 = vrot.lane.b32.xlu0 %v3204, 112
        %v3781 = vpop.permute.xlu0 %3780
        %3782 = vrot.lane.b32.xlu0 %v3209, 112
        %v3783 = vpop.permute.xlu0 %3782
        %3784 = vrot.lane.b32.xlu0 %v3288, 112
        %v3785 = vpop.permute.xlu0 %3784
        %3786 = vrot.lane.b32.xlu0 %v3293, 112
        %v3787 = vpop.permute.xlu0 %3786
        %v3788 = vsel %vm253, %v3781, 0
        %v3790 = vsel %vm253, %v3783, 0
        %v3792 = vsel %vm253, %v3785, 0
        %v3794 = vsel %vm253, %v3787, 0
        %3796 = vmatprep.subr.mxu0 0.0
        %3797 = vmatpush1.xpose.msra.mxu0 %v3792
        %3798 = vmatprep.subr.mxu0 0.0
        %3799 = vmatpush1.xpose.msra.mxu0 %v3794
        %3800 = vmatprep.subr.mxu0 0.0
        %3801 = vmatpush1.xpose.msra.mxu0 0.0
        %3802 = vmatprep.subr.mxu0 0.0
        %3803 = vmatpush1.xpose.msra.mxu0 0.0
        %3804 = vmatprep.subr.mxu0 0.0
        %3805 = vmatpush1.xpose.msra.mxu0 0.0
        %3806 = vmatprep.subr.mxu0 0.0
        %3807 = vmatpush1.xpose.msra.mxu0 0.0
        %3808 = vmatprep.subr.mxu0 0.0
        %3809 = vmatpush1.xpose.msra.mxu0 0.0
        %3810 = vmatprep.subr.mxu0 0.0
        %3811 = vmatpush1.xpose.msra.mxu0 0.0
        %3812 = vmatprep.subr.mxu0 0.0
        %3813 = vmatpush1.xpose.msra.mxu0 0.0
        %3814 = vmatprep.subr.mxu0 0.0
        %3815 = vmatpush1.xpose.msra.mxu0 0.0
        %3816 = vmatprep.subr.mxu0 0.0
        %3817 = vmatpush1.xpose.msra.mxu0 0.0
        %3818 = vmatprep.subr.mxu0 0.0
        %3819 = vmatpush1.xpose.msra.mxu0 0.0
        %3820 = vmatprep.subr.mxu0 0.0
        %3821 = vmatpush1.xpose.msra.mxu0 0.0
        %3822 = vmatprep.subr.mxu0 0.0
        %3823 = vmatpush1.xpose.msra.mxu0 0.0
        %3824 = vmatprep.subr.mxu0 0.0
        %3825 = vmatpush1.xpose.msra.mxu0 0.0
        %3826 = vmatprep.subr.mxu0 0.0
        %3827 = vmatpush1.xpose.msra.mxu0 0.0
        %3828 = vmatprep.subr.mxu0 0.0
        %3829 = vmatpush1.xpose.msra.mxu0 0.0
        %3830 = vmatprep.subr.mxu0 0.0
        %3831 = vmatpush1.xpose.msra.mxu0 0.0
        %3832 = vmatprep.subr.mxu0 0.0
        %3833 = vmatpush1.xpose.msra.mxu0 0.0
        %3834 = vmatprep.subr.mxu0 0.0
        %3835 = vmatpush1.xpose.msra.mxu0 0.0
        %3836 = vmatprep.subr.mxu0 0.0
        %3837 = vmatpush1.xpose.msra.mxu0 0.0
        %3838 = vmatprep.subr.mxu0 0.0
        %3839 = vmatpush1.xpose.msra.mxu0 0.0
        %3840 = vmatprep.subr.mxu0 0.0
        %3841 = vmatpush1.xpose.msra.mxu0 0.0
        %3842 = vmatprep.subr.mxu0 0.0
        %3843 = vmatpush1.xpose.msra.mxu0 0.0
        %3844 = vmatprep.subr.mxu0 0.0
        %3845 = vmatpush1.xpose.msra.mxu0 0.0
        %3846 = vmatprep.subr.mxu0 0.0
        %3847 = vmatpush1.xpose.msra.mxu0 0.0
        %3848 = vmatprep.subr.mxu0 0.0
        %3849 = vmatpush1.xpose.msra.mxu0 0.0
        %3850 = vmatprep.subr.mxu0 0.0
        %3851 = vmatpush1.xpose.msra.mxu0 0.0
        %3852 = vmatprep.subr.mxu0 0.0
        %3853 = vmatpush1.xpose.msra.mxu0 0.0
        %3854 = vmatprep.subr.mxu0 0.0
        %3855 = vmatpush1.xpose.msra.mxu0 0.0
        %3856 = vmatprep.subr.mxu0 0.0
        %3857 = vmatpush1.xpose.msra.mxu0 0.0
        %3858 = vmatprep.subr.mxu0 0.0
        %3859 = vmatpush1.xpose.msra.mxu0 0.0
        %3860 = vmatprep.mubr.f32.mxu0 0.0
        %3861 = vmatmul.mubr.f32.gmra.mrb[0].mxu0 %v3788
        %v3862 = vpop.f32.mrb[0].mxu0
        %v3863 = vadd.f32 0.0, %v3862
        %v3864 = vpop.f32.mrb[0].mxu0
        %3865 = vmatprep.mubr.f32.mxu0 0.0
        %3866 = vmatmul.mubr.f32.gmra.mrb[0].mxu0 %v3790
        %v3867 = vpop.f32.mrb[0].mxu0
        %v3868 = vadd.f32 0.0, %v3867
        %v3869 = vpop.f32.mrb[0].mxu0
        %3870 = vdwg.mxu0
        %v3871 = vmul.f32 %v3863, 0.35355338
        %v3872 = vmul.f32 %v3868, 0.35355338
        %v3873 = vadd.f32 %v3871, %v3081
        %v3874 = vadd.f32 %v3872, %v3081
        %v3875 = vsel %vm1349, %v3873, -inf
        %3876 = vmax.xlane.f32.xlu0 %v3875
        %v3877 = vpop.xlane.xlu0 %3876
        %v3878 = vsel %vm1349, %v3874, -inf
        %3879 = vmax.xlane.f32.xlu0 %v3878
        %v3880 = vpop.xlane.xlu0 %3879
        %v3881 = vsub.f32 %v3873, %v3877
        %v3882 = vsub.f32 %v3874, %v3880
        %v3883 = vmul.f32 %v3881, 1.442695
        %v3884 = vpow.pop %v3883
        %v3885 = vmul.f32 %v3882, 1.442695
        %v3886 = vpow.pop %v3885
        %v3887 = vsel %vm1349, %v3884, 0.0
        %3888 = vadd.xlane.f32.xlu0 %v3887
        %v3889 = vpop.xlane.xlu0 %3888
        %v3890 = vsel %vm1349, %v3886, 0.0
        %3891 = vadd.xlane.f32.xlu0 %v3890
        %v3892 = vpop.xlane.xlu0 %3891
        %v3893 = vrcp.pop %v3889
        %v3894 = vmul.f32 %v3884, %v3893
        %v3895 = vrcp.pop %v3892
        %v3896 = vmul.f32 %v3886, %v3895
        %3897 = vrot.lane.b32.xlu0 %v3372, 112
        %v3898 = vpop.permute.xlu0 %3897
        %3899 = vrot.lane.b32.xlu0 %v3377, 112
        %v3900 = vpop.permute.xlu0 %3899
        %v3904 = vsel %vm1349, %v3894, 0
        %v3907 = vsel %vm1349, %v3896, 0
        %3909 = vmatprep.subr.mxu0 0.0
        %3910 = vmatpush1.msra.mxu0 %v3898
        %3911 = vmatprep.subr.mxu0 0.0
        %3912 = vmatpush1.msra.mxu0 %v3900
        %3913 = vmatprep.subr.mxu0 0.0
        %3914 = vmatpush1.msra.mxu0 0.0
        %3915 = vmatprep.subr.mxu0 0.0
        %3916 = vmatpush1.msra.mxu0 0.0
        %3917 = vmatprep.subr.mxu0 0.0
        %3918 = vmatpush1.msra.mxu0 0.0
        %3919 = vmatprep.subr.mxu0 0.0
        %3920 = vmatpush1.msra.mxu0 0.0
        %3921 = vmatprep.subr.mxu0 0.0
        %3922 = vmatpush1.msra.mxu0 0.0
        %3923 = vmatprep.subr.mxu0 0.0
        %3924 = vmatpush1.msra.mxu0 0.0
        %3925 = vmatprep.subr.mxu0 0.0
        %3926 = vmatpush1.msra.mxu0 0.0
        %3927 = vmatprep.subr.mxu0 0.0
        %3928 = vmatpush1.msra.mxu0 0.0
        %3929 = vmatprep.subr.mxu0 0.0
        %3930 = vmatpush1.msra.mxu0 0.0
        %3931 = vmatprep.subr.mxu0 0.0
        %3932 = vmatpush1.msra.mxu0 0.0
        %3933 = vmatprep.subr.mxu0 0.0
        %3934 = vmatpush1.msra.mxu0 0.0
        %3935 = vmatprep.subr.mxu0 0.0
        %3936 = vmatpush1.msra.mxu0 0.0
        %3937 = vmatprep.subr.mxu0 0.0
        %3938 = vmatpush1.msra.mxu0 0.0
        %3939 = vmatprep.subr.mxu0 0.0
        %3940 = vmatpush1.msra.mxu0 0.0
        %3941 = vmatprep.subr.mxu0 0.0
        %3942 = vmatpush1.msra.mxu0 0.0
        %3943 = vmatprep.subr.mxu0 0.0
        %3944 = vmatpush1.msra.mxu0 0.0
        %3945 = vmatprep.subr.mxu0 0.0
        %3946 = vmatpush1.msra.mxu0 0.0
        %3947 = vmatprep.subr.mxu0 0.0
        %3948 = vmatpush1.msra.mxu0 0.0
        %3949 = vmatprep.subr.mxu0 0.0
        %3950 = vmatpush1.msra.mxu0 0.0
        %3951 = vmatprep.subr.mxu0 0.0
        %3952 = vmatpush1.msra.mxu0 0.0
        %3953 = vmatprep.subr.mxu0 0.0
        %3954 = vmatpush1.msra.mxu0 0.0
        %3955 = vmatprep.subr.mxu0 0.0
        %3956 = vmatpush1.msra.mxu0 0.0
        %3957 = vmatprep.subr.mxu0 0.0
        %3958 = vmatpush1.msra.mxu0 0.0
        %3959 = vmatprep.subr.mxu0 0.0
        %3960 = vmatpush1.msra.mxu0 0.0
        %3961 = vmatprep.subr.mxu0 0.0
        %3962 = vmatpush1.msra.mxu0 0.0
        %3963 = vmatprep.subr.mxu0 0.0
        %3964 = vmatpush1.msra.mxu0 0.0
        %3965 = vmatprep.subr.mxu0 0.0
        %3966 = vmatpush1.msra.mxu0 0.0
        %3967 = vmatprep.subr.mxu0 0.0
        %3968 = vmatpush1.msra.mxu0 0.0
        %3969 = vmatprep.subr.mxu0 0.0
        %3970 = vmatpush1.msra.mxu0 0.0
        %3971 = vmatprep.subr.mxu0 0.0
        %3972 = vmatpush1.msra.mxu0 0.0
        %3973 = vmatprep.mubr.f32.mxu0 0.0
        %3974 = vmatmul.mubr.f32.gmra.mrb[0].mxu0 %v3904
        %v3975 = vpop.f32.mrb[0].mxu0
        %v3976 = vadd.f32 0.0, %v3975
        %v3977 = vpop.f32.mrb[0].mxu0
        %3978 = vmatprep.mubr.f32.mxu0 0.0
        %3979 = vmatmul.mubr.f32.gmra.mrb[0].mxu0 %v3907
        %v3980 = vpop.f32.mrb[0].mxu0
        %v3981 = vadd.f32 0.0, %v3980
        %v3982 = vpop.f32.mrb[0].mxu0
        %3983 = vdwg.mxu0
        %3984 = vrot.lane.b32.xlu0 %v3204, 104
        %v3985 = vpop.permute.xlu0 %3984
        %3986 = vrot.lane.b32.xlu0 %v3209, 104
        %v3987 = vpop.permute.xlu0 %3986
        %3988 = vrot.lane.b32.xlu0 %v3288, 104
        %v3989 = vpop.permute.xlu0 %3988
        %3990 = vrot.lane.b32.xlu0 %v3293, 104
        %v3991 = vpop.permute.xlu0 %3990
        %v3992 = vsel %vm253, %v3985, 0
        %v3994 = vsel %vm253, %v3987, 0
        %v3996 = vsel %vm253, %v3989, 0
        %v3998 = vsel %vm253, %v3991, 0
        %4000 = vmatprep.subr.mxu0 0.0
        %4001 = vmatpush1.xpose.msra.mxu0 %v3996
        %4002 = vmatprep.subr.mxu0 0.0
        %4003 = vmatpush1.xpose.msra.mxu0 %v3998
        %4004 = vmatprep.subr.mxu0 0.0
        %4005 = vmatpush1.xpose.msra.mxu0 0.0
        %4006 = vmatprep.subr.mxu0 0.0
        %4007 = vmatpush1.xpose.msra.mxu0 0.0
        %4008 = vmatprep.subr.mxu0 0.0
        %4009 = vmatpush1.xpose.msra.mxu0 0.0
        %4010 = vmatprep.subr.mxu0 0.0
        %4011 = vmatpush1.xpose.msra.mxu0 0.0
        %4012 = vmatprep.subr.mxu0 0.0
        %4013 = vmatpush1.xpose.msra.mxu0 0.0
        %4014 = vmatprep.subr.mxu0 0.0
        %4015 = vmatpush1.xpose.msra.mxu0 0.0
        %4016 = vmatprep.subr.mxu0 0.0
        %4017 = vmatpush1.xpose.msra.mxu0 0.0
        %4018 = vmatprep.subr.mxu0 0.0
        %4019 = vmatpush1.xpose.msra.mxu0 0.0
        %4020 = vmatprep.subr.mxu0 0.0
        %4021 = vmatpush1.xpose.msra.mxu0 0.0
        %4022 = vmatprep.subr.mxu0 0.0
        %4023 = vmatpush1.xpose.msra.mxu0 0.0
        %4024 = vmatprep.subr.mxu0 0.0
        %4025 = vmatpush1.xpose.msra.mxu0 0.0
        %4026 = vmatprep.subr.mxu0 0.0
        %4027 = vmatpush1.xpose.msra.mxu0 0.0
        %4028 = vmatprep.subr.mxu0 0.0
        %4029 = vmatpush1.xpose.msra.mxu0 0.0
        %4030 = vmatprep.subr.mxu0 0.0
        %4031 = vmatpush1.xpose.msra.mxu0 0.0
        %4032 = vmatprep.subr.mxu0 0.0
        %4033 = vmatpush1.xpose.msra.mxu0 0.0
        %4034 = vmatprep.subr.mxu0 0.0
        %4035 = vmatpush1.xpose.msra.mxu0 0.0
        %4036 = vmatprep.subr.mxu0 0.0
        %4037 = vmatpush1.xpose.msra.mxu0 0.0
        %4038 = vmatprep.subr.mxu0 0.0
        %4039 = vmatpush1.xpose.msra.mxu0 0.0
        %4040 = vmatprep.subr.mxu0 0.0
        %4041 = vmatpush1.xpose.msra.mxu0 0.0
        %4042 = vmatprep.subr.mxu0 0.0
        %4043 = vmatpush1.xpose.msra.mxu0 0.0
        %4044 = vmatprep.subr.mxu0 0.0
        %4045 = vmatpush1.xpose.msra.mxu0 0.0
        %4046 = vmatprep.subr.mxu0 0.0
        %4047 = vmatpush1.xpose.msra.mxu0 0.0
        %4048 = vmatprep.subr.mxu0 0.0
        %4049 = vmatpush1.xpose.msra.mxu0 0.0
        %4050 = vmatprep.subr.mxu0 0.0
        %4051 = vmatpush1.xpose.msra.mxu0 0.0
        %4052 = vmatprep.subr.mxu0 0.0
        %4053 = vmatpush1.xpose.msra.mxu0 0.0
        %4054 = vmatprep.subr.mxu0 0.0
        %4055 = vmatpush1.xpose.msra.mxu0 0.0
        %4056 = vmatprep.subr.mxu0 0.0
        %4057 = vmatpush1.xpose.msra.mxu0 0.0
        %4058 = vmatprep.subr.mxu0 0.0
        %4059 = vmatpush1.xpose.msra.mxu0 0.0
        %4060 = vmatprep.subr.mxu0 0.0
        %4061 = vmatpush1.xpose.msra.mxu0 0.0
        %4062 = vmatprep.subr.mxu0 0.0
        %4063 = vmatpush1.xpose.msra.mxu0 0.0
        %4064 = vmatprep.mubr.f32.mxu0 0.0
        %4065 = vmatmul.mubr.f32.gmra.mrb[0].mxu0 %v3992
        %v4066 = vpop.f32.mrb[0].mxu0
        %v4067 = vadd.f32 0.0, %v4066
        %v4068 = vpop.f32.mrb[0].mxu0
        %4069 = vmatprep.mubr.f32.mxu0 0.0
        %4070 = vmatmul.mubr.f32.gmra.mrb[0].mxu0 %v3994
        %v4071 = vpop.f32.mrb[0].mxu0
        %v4072 = vadd.f32 0.0, %v4071
        %v4073 = vpop.f32.mrb[0].mxu0
        %4074 = vdwg.mxu0
        %v4075 = vmul.f32 %v4067, 0.35355338
        %v4076 = vmul.f32 %v4072, 0.35355338
        %v4077 = vadd.f32 %v4075, %v3081
        %v4078 = vadd.f32 %v4076, %v3081
        %v4079 = vsel %vm1349, %v4077, -inf
        %4080 = vmax.xlane.f32.xlu0 %v4079
        %v4081 = vpop.xlane.xlu0 %4080
        %v4082 = vsel %vm1349, %v4078, -inf
        %4083 = vmax.xlane.f32.xlu0 %v4082
        %v4084 = vpop.xlane.xlu0 %4083
        %v4085 = vsub.f32 %v4077, %v4081
        %v4086 = vsub.f32 %v4078, %v4084
        %v4087 = vmul.f32 %v4085, 1.442695
        %v4088 = vpow.pop %v4087
        %v4089 = vmul.f32 %v4086, 1.442695
        %v4090 = vpow.pop %v4089
        %v4091 = vsel %vm1349, %v4088, 0.0
        %4092 = vadd.xlane.f32.xlu0 %v4091
        %v4093 = vpop.xlane.xlu0 %4092
        %v4094 = vsel %vm1349, %v4090, 0.0
        %4095 = vadd.xlane.f32.xlu0 %v4094
        %v4096 = vpop.xlane.xlu0 %4095
        %v4097 = vrcp.pop %v4093
        %v4098 = vmul.f32 %v4088, %v4097
        %v4099 = vrcp.pop %v4096
        %v4100 = vmul.f32 %v4090, %v4099
        %4101 = vrot.lane.b32.xlu0 %v3372, 104
        %v4102 = vpop.permute.xlu0 %4101
        %4103 = vrot.lane.b32.xlu0 %v3377, 104
        %v4104 = vpop.permute.xlu0 %4103
        %v4108 = vsel %vm1349, %v4098, 0
        %v4111 = vsel %vm1349, %v4100, 0
        %4113 = vmatprep.subr.mxu0 0.0
        %4114 = vmatpush1.msra.mxu0 %v4102
        %4115 = vmatprep.subr.mxu0 0.0
        %4116 = vmatpush1.msra.mxu0 %v4104
        %4117 = vmatprep.subr.mxu0 0.0
        %4118 = vmatpush1.msra.mxu0 0.0
        %4119 = vmatprep.subr.mxu0 0.0
        %4120 = vmatpush1.msra.mxu0 0.0
        %4121 = vmatprep.subr.mxu0 0.0
        %4122 = vmatpush1.msra.mxu0 0.0
        %4123 = vmatprep.subr.mxu0 0.0
        %4124 = vmatpush1.msra.mxu0 0.0
        %4125 = vmatprep.subr.mxu0 0.0
        %4126 = vmatpush1.msra.mxu0 0.0
        %4127 = vmatprep.subr.mxu0 0.0
        %4128 = vmatpush1.msra.mxu0 0.0
        %4129 = vmatprep.subr.mxu0 0.0
        %4130 = vmatpush1.msra.mxu0 0.0
        %4131 = vmatprep.subr.mxu0 0.0
        %4132 = vmatpush1.msra.mxu0 0.0
        %4133 = vmatprep.subr.mxu0 0.0
        %4134 = vmatpush1.msra.mxu0 0.0
        %4135 = vmatprep.subr.mxu0 0.0
        %4136 = vmatpush1.msra.mxu0 0.0
        %4137 = vmatprep.subr.mxu0 0.0
        %4138 = vmatpush1.msra.mxu0 0.0
        %4139 = vmatprep.subr.mxu0 0.0
        %4140 = vmatpush1.msra.mxu0 0.0
        %4141 = vmatprep.subr.mxu0 0.0
        %4142 = vmatpush1.msra.mxu0 0.0
        %4143 = vmatprep.subr.mxu0 0.0
        %4144 = vmatpush1.msra.mxu0 0.0
        %4145 = vmatprep.subr.mxu0 0.0
        %4146 = vmatpush1.msra.mxu0 0.0
        %4147 = vmatprep.subr.mxu0 0.0
        %4148 = vmatpush1.msra.mxu0 0.0
        %4149 = vmatprep.subr.mxu0 0.0
        %4150 = vmatpush1.msra.mxu0 0.0
        %4151 = vmatprep.subr.mxu0 0.0
        %4152 = vmatpush1.msra.mxu0 0.0
        %4153 = vmatprep.subr.mxu0 0.0
        %4154 = vmatpush1.msra.mxu0 0.0
        %4155 = vmatprep.subr.mxu0 0.0
        %4156 = vmatpush1.msra.mxu0 0.0
        %4157 = vmatprep.subr.mxu0 0.0
        %4158 = vmatpush1.msra.mxu0 0.0
        %4159 = vmatprep.subr.mxu0 0.0
        %4160 = vmatpush1.msra.mxu0 0.0
        %4161 = vmatprep.subr.mxu0 0.0
        %4162 = vmatpush1.msra.mxu0 0.0
        %4163 = vmatprep.subr.mxu0 0.0
        %4164 = vmatpush1.msra.mxu0 0.0
        %4165 = vmatprep.subr.mxu0 0.0
        %4166 = vmatpush1.msra.mxu0 0.0
        %4167 = vmatprep.subr.mxu0 0.0
        %4168 = vmatpush1.msra.mxu0 0.0
        %4169 = vmatprep.subr.mxu0 0.0
        %4170 = vmatpush1.msra.mxu0 0.0
        %4171 = vmatprep.subr.mxu0 0.0
        %4172 = vmatpush1.msra.mxu0 0.0
        %4173 = vmatprep.subr.mxu0 0.0
        %4174 = vmatpush1.msra.mxu0 0.0
        %4175 = vmatprep.subr.mxu0 0.0
        %4176 = vmatpush1.msra.mxu0 0.0
        %4177 = vmatprep.mubr.f32.mxu0 0.0
        %4178 = vmatmul.mubr.f32.gmra.mrb[0].mxu0 %v4108
        %v4179 = vpop.f32.mrb[0].mxu0
        %v4180 = vadd.f32 0.0, %v4179
        %v4181 = vpop.f32.mrb[0].mxu0
        %4182 = vmatprep.mubr.f32.mxu0 0.0
        %4183 = vmatmul.mubr.f32.gmra.mrb[0].mxu0 %v4111
        %v4184 = vpop.f32.mrb[0].mxu0
        %v4185 = vadd.f32 0.0, %v4184
        %v4186 = vpop.f32.mrb[0].mxu0
        %4187 = vdwg.mxu0
        %4190 = vrot.lane.b32.xlu0 %v3772, 8
        %v4191 = vpop.permute.xlu0 %4190
        %4192 = vrot.lane.b32.xlu0 %v3777, 8
        %v4193 = vpop.permute.xlu0 %4192
        %4198 = vrot.lane.b32.xlu0 %v3976, 16
        %v4199 = vpop.permute.xlu0 %4198
        %4200 = vrot.lane.b32.xlu0 %v3981, 16
        %v4201 = vpop.permute.xlu0 %4200
        %4206 = vrot.lane.b32.xlu0 %v4180, 24
        %v4207 = vpop.permute.xlu0 %4206
        %4208 = vrot.lane.b32.xlu0 %v4185, 24
        %v4209 = vpop.permute.xlu0 %4208
        %v4212 = vsel %vm253, %v3566, %v4191
        %v4213 = vsel %vm253, %v3571, %v4193
        %v4214 = vsel %vm1349, %v4212, %v4199
        %v4215 = vsel %vm1349, %v4213, %v4201
        %v4216 = vsel %vm1351, %v4214, %v4207
        %v4217 = vsel %vm1351, %v4215, %v4209
        %v4218 = vld [vmem:[#allocation2 + $0x3d0] sm:$0xff]
        %v4219 = vld [vmem:[#allocation2 + $0x3d8] sm:$0xff]
        %v4220 = vld [vmem:[#allocation2 + $0x3e0] sm:$0xff]
        %v4221 = vld [vmem:[#allocation2 + $0x3e8] sm:$0xff]
        %v4223 = vsel %vm407, %v4216, 0
        %v4226 = vsel %vm407, %v4217, 0
        %4228 = vmatprep.subr.mxu0 0.0
        %4229 = vmatpush1.msra.mxu0 %v4218
        %4230 = vmatprep.subr.mxu0 0.0
        %4231 = vmatpush1.msra.mxu0 %v4219
        %4232 = vmatprep.subr.mxu0 0.0
        %4233 = vmatpush1.msra.mxu0 %v4220
        %4234 = vmatprep.subr.mxu0 0.0
        %4235 = vmatpush1.msra.mxu0 %v4221
        %4236 = vmatprep.subr.mxu0 0.0
        %4237 = vmatpush1.msra.mxu0 0.0
        %4238 = vmatprep.subr.mxu0 0.0
        %4239 = vmatpush1.msra.mxu0 0.0
        %4240 = vmatprep.subr.mxu0 0.0
        %4241 = vmatpush1.msra.mxu0 0.0
        %4242 = vmatprep.subr.mxu0 0.0
        %4243 = vmatpush1.msra.mxu0 0.0
        %4244 = vmatprep.subr.mxu0 0.0
        %4245 = vmatpush1.msra.mxu0 0.0
        %4246 = vmatprep.subr.mxu0 0.0
        %4247 = vmatpush1.msra.mxu0 0.0
        %4248 = vmatprep.subr.mxu0 0.0
        %4249 = vmatpush1.msra.mxu0 0.0
        %4250 = vmatprep.subr.mxu0 0.0
        %4251 = vmatpush1.msra.mxu0 0.0
        %4252 = vmatprep.subr.mxu0 0.0
        %4253 = vmatpush1.msra.mxu0 0.0
        %4254 = vmatprep.subr.mxu0 0.0
        %4255 = vmatpush1.msra.mxu0 0.0
        %4256 = vmatprep.subr.mxu0 0.0
        %4257 = vmatpush1.msra.mxu0 0.0
        %4258 = vmatprep.subr.mxu0 0.0
        %4259 = vmatpush1.msra.mxu0 0.0
        %4260 = vmatprep.subr.mxu0 0.0
        %4261 = vmatpush1.msra.mxu0 0.0
        %4262 = vmatprep.subr.mxu0 0.0
        %4263 = vmatpush1.msra.mxu0 0.0
        %4264 = vmatprep.subr.mxu0 0.0
        %4265 = vmatpush1.msra.mxu0 0.0
        %4266 = vmatprep.subr.mxu0 0.0
        %4267 = vmatpush1.msra.mxu0 0.0
        %4268 = vmatprep.subr.mxu0 0.0
        %4269 = vmatpush1.msra.mxu0 0.0
        %4270 = vmatprep.subr.mxu0 0.0
        %4271 = vmatpush1.msra.mxu0 0.0
        %4272 = vmatprep.subr.mxu0 0.0
        %4273 = vmatpush1.msra.mxu0 0.0
        %4274 = vmatprep.subr.mxu0 0.0
        %4275 = vmatpush1.msra.mxu0 0.0
        %4276 = vmatprep.subr.mxu0 0.0
        %4277 = vmatpush1.msra.mxu0 0.0
        %4278 = vmatprep.subr.mxu0 0.0
        %4279 = vmatpush1.msra.mxu0 0.0
        %4280 = vmatprep.subr.mxu0 0.0
        %4281 = vmatpush1.msra.mxu0 0.0
        %4282 = vmatprep.subr.mxu0 0.0
        %4283 = vmatpush1.msra.mxu0 0.0
        %4284 = vmatprep.subr.mxu0 0.0
        %4285 = vmatpush1.msra.mxu0 0.0
        %4286 = vmatprep.subr.mxu0 0.0
        %4287 = vmatpush1.msra.mxu0 0.0
        %4288 = vmatprep.subr.mxu0 0.0
        %4289 = vmatpush1.msra.mxu0 0.0
        %4290 = vmatprep.subr.mxu0 0.0
        %4291 = vmatpush1.msra.mxu0 0.0
        %4292 = vmatprep.mubr.f32.mxu0 0.0
        %4293 = vmatmul.mubr.f32.gmra.mrb[0].mxu0 %v4223
        %v4294 = vpop.f32.mrb[0].mxu0
        %v4295 = vadd.f32 0.0, %v4294
        %v4296 = vpop.f32.mrb[0].mxu0
        %4297 = vmatprep.mubr.f32.mxu0 0.0
        %4298 = vmatmul.mubr.f32.gmra.mrb[0].mxu0 %v4226
        %v4299 = vpop.f32.mrb[0].mxu0
        %v4300 = vadd.f32 0.0, %v4299
        %v4301 = vpop.f32.mrb[0].mxu0
        %4302 = vdwg.mxu0
        %v4303 = vadd.f32 %v3078, %v4295
        %v4304 = vadd.f32 %v3079, %v4300
        %v4305 = vld [vmem:[#allocation2 + $0x3f0] sm:$0x1]
        %v4306 = vlaneseq
        %v4307 = vshrl.u32 %v4306, 7
        %v4308 = vsub.s32 0, %v4307
        %v4309 = vrot.slane %v4305, %v4308
        %v4310 = vadd.f32 %v4303, %v4309
        %v4311 = vadd.f32 %v4304, %v4309
        %v4312 = vld [vmem:[#allocation2 + $0x3f8] sm:$0x1]
        %v4313 = vld [vmem:[#allocation2 + $0x400] sm:$0x1]
        %v4314 = vsel %vm407, %v4310, 0.0
        %4315 = vadd.xlane.f32.xlu0 %v4314
        %v4316 = vpop.xlane.xlu0 %4315
        %v4317 = vsel %vm407, %v4311, 0.0
        %4318 = vadd.xlane.f32.xlu0 %v4317
        %v4319 = vpop.xlane.xlu0 %4318
        %v4320 = vmul.f32 %v4316, %v411
        %v4321 = vmul.f32 %v4319, %v411
        %v4322 = vsub.f32 %v4310, %v4320
        %v4323 = vsub.f32 %v4311, %v4321
        %v4324 = vmul.f32 %v4322, %v4322
        %v4325 = vmul.f32 %v4323, %v4323
        %v4326 = vsel %vm407, %v4324, 0.0
        %4327 = vadd.xlane.f32.xlu0 %v4326
        %v4328 = vpop.xlane.xlu0 %4327
        %v4329 = vsel %vm407, %v4325, 0.0
        %4330 = vadd.xlane.f32.xlu0 %v4329
        %v4331 = vpop.xlane.xlu0 %4330
        %v4332 = vmul.f32 %v4328, %v411
        %v4333 = vmul.f32 %v4331, %v411
        %v4334 = vadd.f32 %v4332, 1e-06
        %v4335 = vadd.f32 %v4333, 1e-06
        %v4336 = vrsqrt.pop %v4334
        %v4337 = vrsqrt.pop %v4335
        %v4338 = vmul.f32 %v4322, %v4336
        %v4339 = vmul.f32 %v4323, %v4337
        %v4340 = vlaneseq
        %v4341 = vshrl.u32 %v4340, 7
        %v4342 = vsub.s32 0, %v4341
        %v4343 = vrot.slane %v4312, %v4342
        %v4344 = vmul.f32 %v4338, %v4343
        %v4345 = vmul.f32 %v4339, %v4343
        %v4346 = vlaneseq
        %v4347 = vshrl.u32 %v4346, 7
        %v4348 = vsub.s32 0, %v4347
        %v4349 = vrot.slane %v4313, %v4348
        %v4350 = vadd.f32 %v4344, %v4349
        %v4351 = vadd.f32 %v4345, %v4349
        %v4352 = vld [vmem:[#allocation2 + $0x408] sm:$0xff]
        %v4353 = vld [vmem:[#allocation2 + $0x410] sm:$0xff]
        %v4354 = vld [vmem:[#allocation2 + $0x418] sm:$0xff]
        %v4355 = vld [vmem:[#allocation2 + $0x420] sm:$0xff]
        %v4356 = vld [vmem:[#allocation2 + $0x428] sm:$0x1]
        %v4357 = vlaneseq
        %v4358 = vshrl.u32 %v4357, 7
        %v4359 = vsub.s32 0, %v4358
        %v4360 = vrot.slane %v4356, %v4359
        %v4362 = vsel %vm407, %v4350, 0
        %v4365 = vsel %vm407, %v4351, 0
        %4367 = vmatprep.subr.mxu0 0.0
        %4368 = vmatpush1.msra.mxu0 %v4352
        %4369 = vmatprep.subr.mxu0 0.0
        %4370 = vmatpush1.msra.mxu0 %v4353
        %4371 = vmatprep.subr.mxu0 0.0
        %4372 = vmatpush1.msra.mxu0 %v4354
        %4373 = vmatprep.subr.mxu0 0.0
        %4374 = vmatpush1.msra.mxu0 %v4355
        %4375 = vmatprep.subr.mxu0 0.0
        %4376 = vmatpush1.msra.mxu0 0.0
        %4377 = vmatprep.subr.mxu0 0.0
        %4378 = vmatpush1.msra.mxu0 0.0
        %4379 = vmatprep.subr.mxu0 0.0
        %4380 = vmatpush1.msra.mxu0 0.0
        %4381 = vmatprep.subr.mxu0 0.0
        %4382 = vmatpush1.msra.mxu0 0.0
        %4383 = vmatprep.subr.mxu0 0.0
        %4384 = vmatpush1.msra.mxu0 0.0
        %4385 = vmatprep.subr.mxu0 0.0
        %4386 = vmatpush1.msra.mxu0 0.0
        %4387 = vmatprep.subr.mxu0 0.0
        %4388 = vmatpush1.msra.mxu0 0.0
        %4389 = vmatprep.subr.mxu0 0.0
        %4390 = vmatpush1.msra.mxu0 0.0
        %4391 = vmatprep.subr.mxu0 0.0
        %4392 = vmatpush1.msra.mxu0 0.0
        %4393 = vmatprep.subr.mxu0 0.0
        %4394 = vmatpush1.msra.mxu0 0.0
        %4395 = vmatprep.subr.mxu0 0.0
        %4396 = vmatpush1.msra.mxu0 0.0
        %4397 = vmatprep.subr.mxu0 0.0
        %4398 = vmatpush1.msra.mxu0 0.0
        %4399 = vmatprep.subr.mxu0 0.0
        %4400 = vmatpush1.msra.mxu0 0.0
        %4401 = vmatprep.subr.mxu0 0.0
        %4402 = vmatpush1.msra.mxu0 0.0
        %4403 = vmatprep.subr.mxu0 0.0
        %4404 = vmatpush1.msra.mxu0 0.0
        %4405 = vmatprep.subr.mxu0 0.0
        %4406 = vmatpush1.msra.mxu0 0.0
        %4407 = vmatprep.subr.mxu0 0.0
        %4408 = vmatpush1.msra.mxu0 0.0
        %4409 = vmatprep.subr.mxu0 0.0
        %4410 = vmatpush1.msra.mxu0 0.0
        %4411 = vmatprep.subr.mxu0 0.0
        %4412 = vmatpush1.msra.mxu0 0.0
        %4413 = vmatprep.subr.mxu0 0.0
        %4414 = vmatpush1.msra.mxu0 0.0
        %4415 = vmatprep.subr.mxu0 0.0
        %4416 = vmatpush1.msra.mxu0 0.0
        %4417 = vmatprep.subr.mxu0 0.0
        %4418 = vmatpush1.msra.mxu0 0.0
        %4419 = vmatprep.subr.mxu0 0.0
        %4420 = vmatpush1.msra.mxu0 0.0
        %4421 = vmatprep.subr.mxu0 0.0
        %4422 = vmatpush1.msra.mxu0 0.0
        %4423 = vmatprep.subr.mxu0 0.0
        %4424 = vmatpush1.msra.mxu0 0.0
        %4425 = vmatprep.subr.mxu0 0.0
        %4426 = vmatpush1.msra.mxu0 0.0
        %4427 = vmatprep.subr.mxu0 0.0
        %4428 = vmatpush1.msra.mxu0 0.0
        %4429 = vmatprep.subr.mxu0 0.0
        %4430 = vmatpush1.msra.mxu0 0.0
        %4431 = vmatprep.mubr.f32.mxu0 0.0
        %4432 = vmatmul.mubr.f32.gmra.mrb[0].mxu0 %v4362
        %v4433 = vpop.f32.mrb[0].mxu0
        %v4434 = vadd.f32 %v4360, %v4433
        %v4435 = vpop.f32.mrb[0].mxu0
        %4436 = vmatprep.mubr.f32.mxu0 0.0
        %4437 = vmatmul.mubr.f32.gmra.mrb[0].mxu0 %v4365
        %v4438 = vpop.f32.mrb[0].mxu0
        %v4439 = vadd.f32 %v4360, %v4438
        %v4440 = vpop.f32.mrb[0].mxu0
        %4441 = vdwg.mxu0
        %v4442 = vmul.f32 %v4434, 0.5
        %v4443 = vmul.f32 %v4439, 0.5
        %v4444 = vmul.f32 %v4434, 0.70710677
        %v4445 = vmul.f32 %v4439, 0.70710677
        %v4446 = verf.f32.pop %v4444
        %v4447 = verf.f32.pop %v4445
        %v4448 = vadd.f32 %v4446, 1.0
        %v4449 = vadd.f32 %v4447, 1.0
        %v4450 = vmul.f32 %v4442, %v4448
        %v4451 = vmul.f32 %v4443, %v4449
        %v4452 = vld [vmem:[#allocation2 + $0x430] sm:$0xff]
        %v4453 = vld [vmem:[#allocation2 + $0x438] sm:$0xff]
        %v4454 = vld [vmem:[#allocation2 + $0x440] sm:$0xff]
        %v4455 = vld [vmem:[#allocation2 + $0x448] sm:$0xff]
        %v4456 = vld [vmem:[#allocation2 + $0x450] sm:$0xff]
        %v4457 = vld [vmem:[#allocation2 + $0x458] sm:$0xff]
        %v4458 = vld [vmem:[#allocation2 + $0x460] sm:$0xff]
        %v4459 = vld [vmem:[#allocation2 + $0x468] sm:$0xff]
        %v4460 = vld [vmem:[#allocation2 + $0x470] sm:$0xff]
        %v4461 = vld [vmem:[#allocation2 + $0x478] sm:$0xff]
        %v4462 = vld [vmem:[#allocation2 + $0x480] sm:$0xff]
        %v4463 = vld [vmem:[#allocation2 + $0x488] sm:$0xff]
        %v4464 = vld [vmem:[#allocation2 + $0x490] sm:$0xff]
        %v4465 = vld [vmem:[#allocation2 + $0x498] sm:$0xff]
        %v4466 = vld [vmem:[#allocation2 + $0x4a0] sm:$0xff]
        %v4467 = vld [vmem:[#allocation2 + $0x4a8] sm:$0xff]
        %v4468 = vld [vmem:[#allocation2 + $0x4b0] sm:$0x1]
        %v4469 = vlaneseq
        %v4470 = vshrl.u32 %v4469, 7
        %v4471 = vsub.s32 0, %v4470
        %v4472 = vrot.slane %v4468, %v4471
        %4473 = vmatprep.subr.mxu0 0.0
        %4474 = vmatpush1.msra.mxu0 %v4452
        %4475 = vmatprep.subr.mxu0 0.0
        %4476 = vmatpush1.msra.mxu0 %v4453
        %4477 = vmatprep.subr.mxu0 0.0
        %4478 = vmatpush1.msra.mxu0 %v4454
        %4479 = vmatprep.subr.mxu0 0.0
        %4480 = vmatpush1.msra.mxu0 %v4455
        %4481 = vmatprep.subr.mxu0 0.0
        %4482 = vmatpush1.msra.mxu0 %v4456
        %4483 = vmatprep.subr.mxu0 0.0
        %4484 = vmatpush1.msra.mxu0 %v4457
        %4485 = vmatprep.subr.mxu0 0.0
        %4486 = vmatpush1.msra.mxu0 %v4458
        %4487 = vmatprep.subr.mxu0 0.0
        %4488 = vmatpush1.msra.mxu0 %v4459
        %4489 = vmatprep.subr.mxu0 0.0
        %4490 = vmatpush1.msra.mxu0 %v4460
        %4491 = vmatprep.subr.mxu0 0.0
        %4492 = vmatpush1.msra.mxu0 %v4461
        %4493 = vmatprep.subr.mxu0 0.0
        %4494 = vmatpush1.msra.mxu0 %v4462
        %4495 = vmatprep.subr.mxu0 0.0
        %4496 = vmatpush1.msra.mxu0 %v4463
        %4497 = vmatprep.subr.mxu0 0.0
        %4498 = vmatpush1.msra.mxu0 %v4464
        %4499 = vmatprep.subr.mxu0 0.0
        %4500 = vmatpush1.msra.mxu0 %v4465
        %4501 = vmatprep.subr.mxu0 0.0
        %4502 = vmatpush1.msra.mxu0 %v4466
        %4503 = vmatprep.subr.mxu0 0.0
        %4504 = vmatpush1.msra.mxu0 %v4467
        %4505 = vmatprep.subr.mxu0 0.0
        %4506 = vmatpush1.msra.mxu0 0.0
        %4507 = vmatprep.subr.mxu0 0.0
        %4508 = vmatpush1.msra.mxu0 0.0
        %4509 = vmatprep.subr.mxu0 0.0
        %4510 = vmatpush1.msra.mxu0 0.0
        %4511 = vmatprep.subr.mxu0 0.0
        %4512 = vmatpush1.msra.mxu0 0.0
        %4513 = vmatprep.subr.mxu0 0.0
        %4514 = vmatpush1.msra.mxu0 0.0
        %4515 = vmatprep.subr.mxu0 0.0
        %4516 = vmatpush1.msra.mxu0 0.0
        %4517 = vmatprep.subr.mxu0 0.0
        %4518 = vmatpush1.msra.mxu0 0.0
        %4519 = vmatprep.subr.mxu0 0.0
        %4520 = vmatpush1.msra.mxu0 0.0
        %4521 = vmatprep.subr.mxu0 0.0
        %4522 = vmatpush1.msra.mxu0 0.0
        %4523 = vmatprep.subr.mxu0 0.0
        %4524 = vmatpush1.msra.mxu0 0.0
        %4525 = vmatprep.subr.mxu0 0.0
        %4526 = vmatpush1.msra.mxu0 0.0
        %4527 = vmatprep.subr.mxu0 0.0
        %4528 = vmatpush1.msra.mxu0 0.0
        %4529 = vmatprep.subr.mxu0 0.0
        %4530 = vmatpush1.msra.mxu0 0.0
        %4531 = vmatprep.subr.mxu0 0.0
        %4532 = vmatpush1.msra.mxu0 0.0
        %4533 = vmatprep.subr.mxu0 0.0
        %4534 = vmatpush1.msra.mxu0 0.0
        %4535 = vmatprep.subr.mxu0 0.0
        %4536 = vmatpush1.msra.mxu0 0.0
        %4537 = vmatprep.mubr.f32.mxu0 0.0
        %4538 = vmatmul.mubr.f32.gmra.mrb[0].mxu0 %v4450
        %v4539 = vpop.f32.mrb[0].mxu0
        %v4540 = vadd.f32 %v4472, %v4539
        %v4541 = vpop.f32.mrb[0].mxu0
        %4542 = vmatprep.mubr.f32.mxu0 0.0
        %4543 = vmatmul.mubr.f32.gmra.mrb[0].mxu0 %v4451
        %v4544 = vpop.f32.mrb[0].mxu0
        %v4545 = vadd.f32 %v4472, %v4544
        %v4546 = vpop.f32.mrb[0].mxu0
        %4547 = vdwg.mxu0
        %v4548 = vadd.f32 %v4310, %v4540
        %v4549 = vadd.f32 %v4311, %v4545
        %v4550 = vld [vmem:[#allocation2 + $0x4b8] sm:$0x1]
        %v4551 = vld [vmem:[#allocation2 + $0x4c0] sm:$0x1]
        %v4552 = vsel %vm407, %v4548, 0.0
        %4553 = vadd.xlane.f32.xlu0 %v4552
        %v4554 = vpop.xlane.xlu0 %4553
        %v4555 = vsel %vm407, %v4549, 0.0
        %4556 = vadd.xlane.f32.xlu0 %v4555
        %v4557 = vpop.xlane.xlu0 %4556
        %v4558 = vmul.f32 %v4554, %v411
        %v4559 = vmul.f32 %v4557, %v411
        %v4560 = vsub.f32 %v4548, %v4558
        %v4561 = vsub.f32 %v4549, %v4559
        %v4562 = vmul.f32 %v4560, %v4560
        %v4563 = vmul.f32 %v4561, %v4561
        %v4564 = vsel %vm407, %v4562, 0.0
        %4565 = vadd.xlane.f32.xlu0 %v4564
        %v4566 = vpop.xlane.xlu0 %4565
        %v4567 = vsel %vm407, %v4563, 0.0
        %4568 = vadd.xlane.f32.xlu0 %v4567
        %v4569 = vpop.xlane.xlu0 %4568
        %v4570 = vmul.f32 %v4566, %v411
        %v4571 = vmul.f32 %v4569, %v411
        %v4572 = vadd.f32 %v4570, 1e-06
        %v4573 = vadd.f32 %v4571, 1e-06
        %v4574 = vrsqrt.pop %v4572
        %v4575 = vrsqrt.pop %v4573
        %v4576 = vmul.f32 %v4560, %v4574
        %v4577 = vmul.f32 %v4561, %v4575
        %v4578 = vlaneseq
        %v4579 = vshrl.u32 %v4578, 7
        %v4580 = vsub.s32 0, %v4579
        %v4581 = vrot.slane %v4550, %v4580
        %v4582 = vmul.f32 %v4576, %v4581
        %v4583 = vmul.f32 %v4577, %v4581
        %v4584 = vlaneseq
        %v4585 = vshrl.u32 %v4584, 7
        %v4586 = vsub.s32 0, %v4585
        %v4587 = vrot.slane %v4551, %v4586
        %v4588 = vadd.f32 %v4582, %v4587
        %v4589 = vadd.f32 %v4583, %v4587
        %v4590 = vld [vmem:[#allocation2 + $0x4c8] sm:$0xff]
        %v4591 = vld [vmem:[#allocation2 + $0x4d0] sm:$0xff]
        %v4592 = vld [vmem:[#allocation2 + $0x4d8] sm:$0xff]
        %v4593 = vld [vmem:[#allocation2 + $0x4e0] sm:$0xff]
        %v4594 = vld [vmem:[#allocation2 + $0x4e8] sm:$0x1]
        %v4595 = vlaneseq
        %v4596 = vshrl.u32 %v4595, 7
        %v4597 = vsub.s32 0, %v4596
        %v4598 = vrot.slane %v4594, %v4597
        %v4600 = vsel %vm407, %v4588, 0
        %v4603 = vsel %vm407, %v4589, 0
        %4605 = vmatprep.subr.mxu0 0.0
        %4606 = vmatpush1.msra.mxu0 %v4590
        %4607 = vmatprep.subr.mxu0 0.0
        %4608 = vmatpush1.msra.mxu0 %v4591
        %4609 = vmatprep.subr.mxu0 0.0
        %4610 = vmatpush1.msra.mxu0 %v4592
        %4611 = vmatprep.subr.mxu0 0.0
        %4612 = vmatpush1.msra.mxu0 %v4593
        %4613 = vmatprep.subr.mxu0 0.0
        %4614 = vmatpush1.msra.mxu0 0.0
        %4615 = vmatprep.subr.mxu0 0.0
        %4616 = vmatpush1.msra.mxu0 0.0
        %4617 = vmatprep.subr.mxu0 0.0
        %4618 = vmatpush1.msra.mxu0 0.0
        %4619 = vmatprep.subr.mxu0 0.0
        %4620 = vmatpush1.msra.mxu0 0.0
        %4621 = vmatprep.subr.mxu0 0.0
        %4622 = vmatpush1.msra.mxu0 0.0
        %4623 = vmatprep.subr.mxu0 0.0
        %4624 = vmatpush1.msra.mxu0 0.0
        %4625 = vmatprep.subr.mxu0 0.0
        %4626 = vmatpush1.msra.mxu0 0.0
        %4627 = vmatprep.subr.mxu0 0.0
        %4628 = vmatpush1.msra.mxu0 0.0
        %4629 = vmatprep.subr.mxu0 0.0
        %4630 = vmatpush1.msra.mxu0 0.0
        %4631 = vmatprep.subr.mxu0 0.0
        %4632 = vmatpush1.msra.mxu0 0.0
        %4633 = vmatprep.subr.mxu0 0.0
        %4634 = vmatpush1.msra.mxu0 0.0
        %4635 = vmatprep.subr.mxu0 0.0
        %4636 = vmatpush1.msra.mxu0 0.0
        %4637 = vmatprep.subr.mxu0 0.0
        %4638 = vmatpush1.msra.mxu0 0.0
        %4639 = vmatprep.subr.mxu0 0.0
        %4640 = vmatpush1.msra.mxu0 0.0
        %4641 = vmatprep.subr.mxu0 0.0
        %4642 = vmatpush1.msra.mxu0 0.0
        %4643 = vmatprep.subr.mxu0 0.0
        %4644 = vmatpush1.msra.mxu0 0.0
        %4645 = vmatprep.subr.mxu0 0.0
        %4646 = vmatpush1.msra.mxu0 0.0
        %4647 = vmatprep.subr.mxu0 0.0
        %4648 = vmatpush1.msra.mxu0 0.0
        %4649 = vmatprep.subr.mxu0 0.0
        %4650 = vmatpush1.msra.mxu0 0.0
        %4651 = vmatprep.subr.mxu0 0.0
        %4652 = vmatpush1.msra.mxu0 0.0
        %4653 = vmatprep.subr.mxu0 0.0
        %4654 = vmatpush1.msra.mxu0 0.0
        %4655 = vmatprep.subr.mxu0 0.0
        %4656 = vmatpush1.msra.mxu0 0.0
        %4657 = vmatprep.subr.mxu0 0.0
        %4658 = vmatpush1.msra.mxu0 0.0
        %4659 = vmatprep.subr.mxu0 0.0
        %4660 = vmatpush1.msra.mxu0 0.0
        %4661 = vmatprep.subr.mxu0 0.0
        %4662 = vmatpush1.msra.mxu0 0.0
        %4663 = vmatprep.subr.mxu0 0.0
        %4664 = vmatpush1.msra.mxu0 0.0
        %4665 = vmatprep.subr.mxu0 0.0
        %4666 = vmatpush1.msra.mxu0 0.0
        %4667 = vmatprep.subr.mxu0 0.0
        %4668 = vmatpush1.msra.mxu0 0.0
        %4669 = vmatprep.mubr.f32.mxu0 0.0
        %4670 = vmatmul.mubr.f32.gmra.mrb[0].mxu0 %v4600
        %v4671 = vpop.f32.mrb[0].mxu0
        %v4672 = vadd.f32 %v4598, %v4671
        %v4673 = vpop.f32.mrb[0].mxu0
        %4674 = vmatprep.mubr.f32.mxu0 0.0
        %4675 = vmatmul.mubr.f32.gmra.mrb[0].mxu0 %v4603
        %v4676 = vpop.f32.mrb[0].mxu0
        %v4677 = vadd.f32 %v4598, %v4676
        %v4678 = vpop.f32.mrb[0].mxu0
        %4679 = vdwg.mxu0
        %v4680 = vld [vmem:[#allocation2 + $0x4f0] sm:$0xff]
        %v4681 = vld [vmem:[#allocation2 + $0x4f8] sm:$0xff]
        %v4682 = vld [vmem:[#allocation2 + $0x500] sm:$0xff]
        %v4683 = vld [vmem:[#allocation2 + $0x508] sm:$0xff]
        %v4684 = vld [vmem:[#allocation2 + $0x510] sm:$0x1]
        %v4685 = vlaneseq
        %v4686 = vshrl.u32 %v4685, 7
        %v4687 = vsub.s32 0, %v4686
        %v4688 = vrot.slane %v4684, %v4687
        %4689 = vmatprep.subr.mxu0 0.0
        %4690 = vmatpush1.msra.mxu0 %v4680
        %4691 = vmatprep.subr.mxu0 0.0
        %4692 = vmatpush1.msra.mxu0 %v4681
        %4693 = vmatprep.subr.mxu0 0.0
        %4694 = vmatpush1.msra.mxu0 %v4682
        %4695 = vmatprep.subr.mxu0 0.0
        %4696 = vmatpush1.msra.mxu0 %v4683
        %4697 = vmatprep.subr.mxu0 0.0
        %4698 = vmatpush1.msra.mxu0 0.0
        %4699 = vmatprep.subr.mxu0 0.0
        %4700 = vmatpush1.msra.mxu0 0.0
        %4701 = vmatprep.subr.mxu0 0.0
        %4702 = vmatpush1.msra.mxu0 0.0
        %4703 = vmatprep.subr.mxu0 0.0
        %4704 = vmatpush1.msra.mxu0 0.0
        %4705 = vmatprep.subr.mxu0 0.0
        %4706 = vmatpush1.msra.mxu0 0.0
        %4707 = vmatprep.subr.mxu0 0.0
        %4708 = vmatpush1.msra.mxu0 0.0
        %4709 = vmatprep.subr.mxu0 0.0
        %4710 = vmatpush1.msra.mxu0 0.0
        %4711 = vmatprep.subr.mxu0 0.0
        %4712 = vmatpush1.msra.mxu0 0.0
        %4713 = vmatprep.subr.mxu0 0.0
        %4714 = vmatpush1.msra.mxu0 0.0
        %4715 = vmatprep.subr.mxu0 0.0
        %4716 = vmatpush1.msra.mxu0 0.0
        %4717 = vmatprep.subr.mxu0 0.0
        %4718 = vmatpush1.msra.mxu0 0.0
        %4719 = vmatprep.subr.mxu0 0.0
        %4720 = vmatpush1.msra.mxu0 0.0
        %4721 = vmatprep.subr.mxu0 0.0
        %4722 = vmatpush1.msra.mxu0 0.0
        %4723 = vmatprep.subr.mxu0 0.0
        %4724 = vmatpush1.msra.mxu0 0.0
        %4725 = vmatprep.subr.mxu0 0.0
        %4726 = vmatpush1.msra.mxu0 0.0
        %4727 = vmatprep.subr.mxu0 0.0
        %4728 = vmatpush1.msra.mxu0 0.0
        %4729 = vmatprep.subr.mxu0 0.0
        %4730 = vmatpush1.msra.mxu0 0.0
        %4731 = vmatprep.subr.mxu0 0.0
        %4732 = vmatpush1.msra.mxu0 0.0
        %4733 = vmatprep.subr.mxu0 0.0
        %4734 = vmatpush1.msra.mxu0 0.0
        %4735 = vmatprep.subr.mxu0 0.0
        %4736 = vmatpush1.msra.mxu0 0.0
        %4737 = vmatprep.subr.mxu0 0.0
        %4738 = vmatpush1.msra.mxu0 0.0
        %4739 = vmatprep.subr.mxu0 0.0
        %4740 = vmatpush1.msra.mxu0 0.0
        %4741 = vmatprep.subr.mxu0 0.0
        %4742 = vmatpush1.msra.mxu0 0.0
        %4743 = vmatprep.subr.mxu0 0.0
        %4744 = vmatpush1.msra.mxu0 0.0
        %4745 = vmatprep.subr.mxu0 0.0
        %4746 = vmatpush1.msra.mxu0 0.0
        %4747 = vmatprep.subr.mxu0 0.0
        %4748 = vmatpush1.msra.mxu0 0.0
        %4749 = vmatprep.subr.mxu0 0.0
        %4750 = vmatpush1.msra.mxu0 0.0
        %4751 = vmatprep.subr.mxu0 0.0
        %4752 = vmatpush1.msra.mxu0 0.0
        %4753 = vmatprep.mubr.f32.mxu0 0.0
        %4754 = vmatmul.mubr.f32.gmra.mrb[0].mxu0 %v4600
        %v4755 = vpop.f32.mrb[0].mxu0
        %v4756 = vadd.f32 %v4688, %v4755
        %v4757 = vpop.f32.mrb[0].mxu0
        %4758 = vmatprep.mubr.f32.mxu0 0.0
        %4759 = vmatmul.mubr.f32.gmra.mrb[0].mxu0 %v4603
        %v4760 = vpop.f32.mrb[0].mxu0
        %v4761 = vadd.f32 %v4688, %v4760
        %v4762 = vpop.f32.mrb[0].mxu0
        %4763 = vdwg.mxu0
        %v4764 = vld [vmem:[#allocation2 + $0x518] sm:$0xff]
        %v4765 = vld [vmem:[#allocation2 + $0x520] sm:$0xff]
        %v4766 = vld [vmem:[#allocation2 + $0x528] sm:$0xff]
        %v4767 = vld [vmem:[#allocation2 + $0x530] sm:$0xff]
        %v4768 = vld [vmem:[#allocation2 + $0x538] sm:$0x1]
        %v4769 = vlaneseq
        %v4770 = vshrl.u32 %v4769, 7
        %v4771 = vsub.s32 0, %v4770
        %v4772 = vrot.slane %v4768, %v4771
        %4773 = vmatprep.subr.mxu0 0.0
        %4774 = vmatpush1.msra.mxu0 %v4764
        %4775 = vmatprep.subr.mxu0 0.0
        %4776 = vmatpush1.msra.mxu0 %v4765
        %4777 = vmatprep.subr.mxu0 0.0
        %4778 = vmatpush1.msra.mxu0 %v4766
        %4779 = vmatprep.subr.mxu0 0.0
        %4780 = vmatpush1.msra.mxu0 %v4767
        %4781 = vmatprep.subr.mxu0 0.0
        %4782 = vmatpush1.msra.mxu0 0.0
        %4783 = vmatprep.subr.mxu0 0.0
        %4784 = vmatpush1.msra.mxu0 0.0
        %4785 = vmatprep.subr.mxu0 0.0
        %4786 = vmatpush1.msra.mxu0 0.0
        %4787 = vmatprep.subr.mxu0 0.0
        %4788 = vmatpush1.msra.mxu0 0.0
        %4789 = vmatprep.subr.mxu0 0.0
        %4790 = vmatpush1.msra.mxu0 0.0
        %4791 = vmatprep.subr.mxu0 0.0
        %4792 = vmatpush1.msra.mxu0 0.0
        %4793 = vmatprep.subr.mxu0 0.0
        %4794 = vmatpush1.msra.mxu0 0.0
        %4795 = vmatprep.subr.mxu0 0.0
        %4796 = vmatpush1.msra.mxu0 0.0
        %4797 = vmatprep.subr.mxu0 0.0
        %4798 = vmatpush1.msra.mxu0 0.0
        %4799 = vmatprep.subr.mxu0 0.0
        %4800 = vmatpush1.msra.mxu0 0.0
        %4801 = vmatprep.subr.mxu0 0.0
        %4802 = vmatpush1.msra.mxu0 0.0
        %4803 = vmatprep.subr.mxu0 0.0
        %4804 = vmatpush1.msra.mxu0 0.0
        %4805 = vmatprep.subr.mxu0 0.0
        %4806 = vmatpush1.msra.mxu0 0.0
        %4807 = vmatprep.subr.mxu0 0.0
        %4808 = vmatpush1.msra.mxu0 0.0
        %4809 = vmatprep.subr.mxu0 0.0
        %4810 = vmatpush1.msra.mxu0 0.0
        %4811 = vmatprep.subr.mxu0 0.0
        %4812 = vmatpush1.msra.mxu0 0.0
        %4813 = vmatprep.subr.mxu0 0.0
        %4814 = vmatpush1.msra.mxu0 0.0
        %4815 = vmatprep.subr.mxu0 0.0
        %4816 = vmatpush1.msra.mxu0 0.0
        %4817 = vmatprep.subr.mxu0 0.0
        %4818 = vmatpush1.msra.mxu0 0.0
        %4819 = vmatprep.subr.mxu0 0.0
        %4820 = vmatpush1.msra.mxu0 0.0
        %4821 = vmatprep.subr.mxu0 0.0
        %4822 = vmatpush1.msra.mxu0 0.0
        %4823 = vmatprep.subr.mxu0 0.0
        %4824 = vmatpush1.msra.mxu0 0.0
        %4825 = vmatprep.subr.mxu0 0.0
        %4826 = vmatpush1.msra.mxu0 0.0
        %4827 = vmatprep.subr.mxu0 0.0
        %4828 = vmatpush1.msra.mxu0 0.0
        %4829 = vmatprep.subr.mxu0 0.0
        %4830 = vmatpush1.msra.mxu0 0.0
        %4831 = vmatprep.subr.mxu0 0.0
        %4832 = vmatpush1.msra.mxu0 0.0
        %4833 = vmatprep.subr.mxu0 0.0
        %4834 = vmatpush1.msra.mxu0 0.0
        %4835 = vmatprep.subr.mxu0 0.0
        %4836 = vmatpush1.msra.mxu0 0.0
        %4837 = vmatprep.mubr.f32.mxu0 0.0
        %4838 = vmatmul.mubr.f32.gmra.mrb[0].mxu0 %v4600
        %v4839 = vpop.f32.mrb[0].mxu0
        %v4840 = vadd.f32 %v4772, %v4839
        %v4841 = vpop.f32.mrb[0].mxu0
        %4842 = vmatprep.mubr.f32.mxu0 0.0
        %4843 = vmatmul.mubr.f32.gmra.mrb[0].mxu0 %v4603
        %v4844 = vpop.f32.mrb[0].mxu0
        %v4845 = vadd.f32 %v4772, %v4844
        %v4846 = vpop.f32.mrb[0].mxu0
        %4847 = vdwg.mxu0
        %v4849 = vsel %vm253, %v4672, 0
        %v4852 = vsel %vm253, %v4677, 0
        %v4855 = vsel %vm253, %v4756, 0
        %v4858 = vsel %vm253, %v4761, 0
        %4860 = vmatprep.subr.mxu0 0.0
        %4861 = vmatpush1.xpose.msra.mxu0 %v4855
        %4862 = vmatprep.subr.mxu0 0.0
        %4863 = vmatpush1.xpose.msra.mxu0 %v4858
        %4864 = vmatprep.subr.mxu0 0.0
        %4865 = vmatpush1.xpose.msra.mxu0 0.0
        %4866 = vmatprep.subr.mxu0 0.0
        %4867 = vmatpush1.xpose.msra.mxu0 0.0
        %4868 = vmatprep.subr.mxu0 0.0
        %4869 = vmatpush1.xpose.msra.mxu0 0.0
        %4870 = vmatprep.subr.mxu0 0.0
        %4871 = vmatpush1.xpose.msra.mxu0 0.0
        %4872 = vmatprep.subr.mxu0 0.0
        %4873 = vmatpush1.xpose.msra.mxu0 0.0
        %4874 = vmatprep.subr.mxu0 0.0
        %4875 = vmatpush1.xpose.msra.mxu0 0.0
        %4876 = vmatprep.subr.mxu0 0.0
        %4877 = vmatpush1.xpose.msra.mxu0 0.0
        %4878 = vmatprep.subr.mxu0 0.0
        %4879 = vmatpush1.xpose.msra.mxu0 0.0
        %4880 = vmatprep.subr.mxu0 0.0
        %4881 = vmatpush1.xpose.msra.mxu0 0.0
        %4882 = vmatprep.subr.mxu0 0.0
        %4883 = vmatpush1.xpose.msra.mxu0 0.0
        %4884 = vmatprep.subr.mxu0 0.0
        %4885 = vmatpush1.xpose.msra.mxu0 0.0
        %4886 = vmatprep.subr.mxu0 0.0
        %4887 = vmatpush1.xpose.msra.mxu0 0.0
        %4888 = vmatprep.subr.mxu0 0.0
        %4889 = vmatpush1.xpose.msra.mxu0 0.0
        %4890 = vmatprep.subr.mxu0 0.0
        %4891 = vmatpush1.xpose.msra.mxu0 0.0
        %4892 = vmatprep.subr.mxu0 0.0
        %4893 = vmatpush1.xpose.msra.mxu0 0.0
        %4894 = vmatprep.subr.mxu0 0.0
        %4895 = vmatpush1.xpose.msra.mxu0 0.0
        %4896 = vmatprep.subr.mxu0 0.0
        %4897 = vmatpush1.xpose.msra.mxu0 0.0
        %4898 = vmatprep.subr.mxu0 0.0
        %4899 = vmatpush1.xpose.msra.mxu0 0.0
        %4900 = vmatprep.subr.mxu0 0.0
        %4901 = vmatpush1.xpose.msra.mxu0 0.0
        %4902 = vmatprep.subr.mxu0 0.0
        %4903 = vmatpush1.xpose.msra.mxu0 0.0
        %4904 = vmatprep.subr.mxu0 0.0
        %4905 = vmatpush1.xpose.msra.mxu0 0.0
        %4906 = vmatprep.subr.mxu0 0.0
        %4907 = vmatpush1.xpose.msra.mxu0 0.0
        %4908 = vmatprep.subr.mxu0 0.0
        %4909 = vmatpush1.xpose.msra.mxu0 0.0
        %4910 = vmatprep.subr.mxu0 0.0
        %4911 = vmatpush1.xpose.msra.mxu0 0.0
        %4912 = vmatprep.subr.mxu0 0.0
        %4913 = vmatpush1.xpose.msra.mxu0 0.0
        %4914 = vmatprep.subr.mxu0 0.0
        %4915 = vmatpush1.xpose.msra.mxu0 0.0
        %4916 = vmatprep.subr.mxu0 0.0
        %4917 = vmatpush1.xpose.msra.mxu0 0.0
        %4918 = vmatprep.subr.mxu0 0.0
        %4919 = vmatpush1.xpose.msra.mxu0 0.0
        %4920 = vmatprep.subr.mxu0 0.0
        %4921 = vmatpush1.xpose.msra.mxu0 0.0
        %4922 = vmatprep.subr.mxu0 0.0
        %4923 = vmatpush1.xpose.msra.mxu0 0.0
        %4924 = vmatprep.mubr.f32.mxu0 0.0
        %4925 = vmatmul.mubr.f32.gmra.mrb[0].mxu0 %v4849
        %v4926 = vpop.f32.mrb[0].mxu0
        %v4927 = vadd.f32 0.0, %v4926
        %v4928 = vpop.f32.mrb[0].mxu0
        %4929 = vmatprep.mubr.f32.mxu0 0.0
        %4930 = vmatmul.mubr.f32.gmra.mrb[0].mxu0 %v4852
        %v4931 = vpop.f32.mrb[0].mxu0
        %v4932 = vadd.f32 0.0, %v4931
        %v4933 = vpop.f32.mrb[0].mxu0
        %4934 = vdwg.mxu0
        %v4935 = vmul.f32 %v4927, 0.35355338
        %v4936 = vmul.f32 %v4932, 0.35355338
        %v4937 = vadd.f32 %v4935, %v3081
        %v4938 = vadd.f32 %v4936, %v3081
        %v4939 = vsel %vm1349, %v4937, -inf
        %4940 = vmax.xlane.f32.xlu0 %v4939
        %v4941 = vpop.xlane.xlu0 %4940
        %v4942 = vsel %vm1349, %v4938, -inf
        %4943 = vmax.xlane.f32.xlu0 %v4942
        %v4944 = vpop.xlane.xlu0 %4943
        %v4945 = vsub.f32 %v4937, %v4941
        %v4946 = vsub.f32 %v4938, %v4944
        %v4947 = vmul.f32 %v4945, 1.442695
        %v4948 = vpow.pop %v4947
        %v4949 = vmul.f32 %v4946, 1.442695
        %v4950 = vpow.pop %v4949
        %v4951 = vsel %vm1349, %v4948, 0.0
        %4952 = vadd.xlane.f32.xlu0 %v4951
        %v4953 = vpop.xlane.xlu0 %4952
        %v4954 = vsel %vm1349, %v4950, 0.0
        %4955 = vadd.xlane.f32.xlu0 %v4954
        %v4956 = vpop.xlane.xlu0 %4955
        %v4957 = vrcp.pop %v4953
        %v4958 = vmul.f32 %v4948, %v4957
        %v4959 = vrcp.pop %v4956
        %v4960 = vmul.f32 %v4950, %v4959
        %v4962 = vsel %vm1349, %v4958, 0
        %v4965 = vsel %vm1349, %v4960, 0
        %4967 = vmatprep.subr.mxu0 0.0
        %4968 = vmatpush1.msra.mxu0 %v4840
        %4969 = vmatprep.subr.mxu0 0.0
        %4970 = vmatpush1.msra.mxu0 %v4845
        %4971 = vmatprep.subr.mxu0 0.0
        %4972 = vmatpush1.msra.mxu0 0.0
        %4973 = vmatprep.subr.mxu0 0.0
        %4974 = vmatpush1.msra.mxu0 0.0
        %4975 = vmatprep.subr.mxu0 0.0
        %4976 = vmatpush1.msra.mxu0 0.0
        %4977 = vmatprep.subr.mxu0 0.0
        %4978 = vmatpush1.msra.mxu0 0.0
        %4979 = vmatprep.subr.mxu0 0.0
        %4980 = vmatpush1.msra.mxu0 0.0
        %4981 = vmatprep.subr.mxu0 0.0
        %4982 = vmatpush1.msra.mxu0 0.0
        %4983 = vmatprep.subr.mxu0 0.0
        %4984 = vmatpush1.msra.mxu0 0.0
        %4985 = vmatprep.subr.mxu0 0.0
        %4986 = vmatpush1.msra.mxu0 0.0
        %4987 = vmatprep.subr.mxu0 0.0
        %4988 = vmatpush1.msra.mxu0 0.0
        %4989 = vmatprep.subr.mxu0 0.0
        %4990 = vmatpush1.msra.mxu0 0.0
        %4991 = vmatprep.subr.mxu0 0.0
        %4992 = vmatpush1.msra.mxu0 0.0
        %4993 = vmatprep.subr.mxu0 0.0
        %4994 = vmatpush1.msra.mxu0 0.0
        %4995 = vmatprep.subr.mxu0 0.0
        %4996 = vmatpush1.msra.mxu0 0.0
        %4997 = vmatprep.subr.mxu0 0.0
        %4998 = vmatpush1.msra.mxu0 0.0
        %4999 = vmatprep.subr.mxu0 0.0
        %5000 = vmatpush1.msra.mxu0 0.0
        %5001 = vmatprep.subr.mxu0 0.0
        %5002 = vmatpush1.msra.mxu0 0.0
        %5003 = vmatprep.subr.mxu0 0.0
        %5004 = vmatpush1.msra.mxu0 0.0
        %5005 = vmatprep.subr.mxu0 0.0
        %5006 = vmatpush1.msra.mxu0 0.0
        %5007 = vmatprep.subr.mxu0 0.0
        %5008 = vmatpush1.msra.mxu0 0.0
        %5009 = vmatprep.subr.mxu0 0.0
        %5010 = vmatpush1.msra.mxu0 0.0
        %5011 = vmatprep.subr.mxu0 0.0
        %5012 = vmatpush1.msra.mxu0 0.0
        %5013 = vmatprep.subr.mxu0 0.0
        %5014 = vmatpush1.msra.mxu0 0.0
        %5015 = vmatprep.subr.mxu0 0.0
        %5016 = vmatpush1.msra.mxu0 0.0
        %5017 = vmatprep.subr.mxu0 0.0
        %5018 = vmatpush1.msra.mxu0 0.0
        %5019 = vmatprep.subr.mxu0 0.0
        %5020 = vmatpush1.msra.mxu0 0.0
        %5021 = vmatprep.subr.mxu0 0.0
        %5022 = vmatpush1.msra.mxu0 0.0
        %5023 = vmatprep.subr.mxu0 0.0
        %5024 = vmatpush1.msra.mxu0 0.0
        %5025 = vmatprep.subr.mxu0 0.0
        %5026 = vmatpush1.msra.mxu0 0.0
        %5027 = vmatprep.subr.mxu0 0.0
        %5028 = vmatpush1.msra.mxu0 0.0
        %5029 = vmatprep.subr.mxu0 0.0
        %5030 = vmatpush1.msra.mxu0 0.0
        %5031 = vmatprep.mubr.f32.mxu0 0.0
        %5032 = vmatmul.mubr.f32.gmra.mrb[0].mxu0 %v4962
        %v5033 = vpop.f32.mrb[0].mxu0
        %v5034 = vadd.f32 0.0, %v5033
        %v5035 = vpop.f32.mrb[0].mxu0
        %5036 = vmatprep.mubr.f32.mxu0 0.0
        %5037 = vmatmul.mubr.f32.gmra.mrb[0].mxu0 %v4965
        %v5038 = vpop.f32.mrb[0].mxu0
        %v5039 = vadd.f32 0.0, %v5038
        %v5040 = vpop.f32.mrb[0].mxu0
        %5041 = vdwg.mxu0
        %5042 = vrot.lane.b32.xlu0 %v4672, 120
        %v5043 = vpop.permute.xlu0 %5042
        %5044 = vrot.lane.b32.xlu0 %v4677, 120
        %v5045 = vpop.permute.xlu0 %5044
        %5046 = vrot.lane.b32.xlu0 %v4756, 120
        %v5047 = vpop.permute.xlu0 %5046
        %5048 = vrot.lane.b32.xlu0 %v4761, 120
        %v5049 = vpop.permute.xlu0 %5048
        %v5050 = vsel %vm253, %v5043, 0
        %v5052 = vsel %vm253, %v5045, 0
        %v5054 = vsel %vm253, %v5047, 0
        %v5056 = vsel %vm253, %v5049, 0
        %5058 = vmatprep.subr.mxu0 0.0
        %5059 = vmatpush1.xpose.msra.mxu0 %v5054
        %5060 = vmatprep.subr.mxu0 0.0
        %5061 = vmatpush1.xpose.msra.mxu0 %v5056
        %5062 = vmatprep.subr.mxu0 0.0
        %5063 = vmatpush1.xpose.msra.mxu0 0.0
        %5064 = vmatprep.subr.mxu0 0.0
        %5065 = vmatpush1.xpose.msra.mxu0 0.0
        %5066 = vmatprep.subr.mxu0 0.0
        %5067 = vmatpush1.xpose.msra.mxu0 0.0
        %5068 = vmatprep.subr.mxu0 0.0
        %5069 = vmatpush1.xpose.msra.mxu0 0.0
        %5070 = vmatprep.subr.mxu0 0.0
        %5071 = vmatpush1.xpose.msra.mxu0 0.0
        %5072 = vmatprep.subr.mxu0 0.0
        %5073 = vmatpush1.xpose.msra.mxu0 0.0
        %5074 = vmatprep.subr.mxu0 0.0
        %5075 = vmatpush1.xpose.msra.mxu0 0.0
        %5076 = vmatprep.subr.mxu0 0.0
        %5077 = vmatpush1.xpose.msra.mxu0 0.0
        %5078 = vmatprep.subr.mxu0 0.0
        %5079 = vmatpush1.xpose.msra.mxu0 0.0
        %5080 = vmatprep.subr.mxu0 0.0
        %5081 = vmatpush1.xpose.msra.mxu0 0.0
        %5082 = vmatprep.subr.mxu0 0.0
        %5083 = vmatpush1.xpose.msra.mxu0 0.0
        %5084 = vmatprep.subr.mxu0 0.0
        %5085 = vmatpush1.xpose.msra.mxu0 0.0
        %5086 = vmatprep.subr.mxu0 0.0
        %5087 = vmatpush1.xpose.msra.mxu0 0.0
        %5088 = vmatprep.subr.mxu0 0.0
        %5089 = vmatpush1.xpose.msra.mxu0 0.0
        %5090 = vmatprep.subr.mxu0 0.0
        %5091 = vmatpush1.xpose.msra.mxu0 0.0
        %5092 = vmatprep.subr.mxu0 0.0
        %5093 = vmatpush1.xpose.msra.mxu0 0.0
        %5094 = vmatprep.subr.mxu0 0.0
        %5095 = vmatpush1.xpose.msra.mxu0 0.0
        %5096 = vmatprep.subr.mxu0 0.0
        %5097 = vmatpush1.xpose.msra.mxu0 0.0
        %5098 = vmatprep.subr.mxu0 0.0
        %5099 = vmatpush1.xpose.msra.mxu0 0.0
        %5100 = vmatprep.subr.mxu0 0.0
        %5101 = vmatpush1.xpose.msra.mxu0 0.0
        %5102 = vmatprep.subr.mxu0 0.0
        %5103 = vmatpush1.xpose.msra.mxu0 0.0
        %5104 = vmatprep.subr.mxu0 0.0
        %5105 = vmatpush1.xpose.msra.mxu0 0.0
        %5106 = vmatprep.subr.mxu0 0.0
        %5107 = vmatpush1.xpose.msra.mxu0 0.0
        %5108 = vmatprep.subr.mxu0 0.0
        %5109 = vmatpush1.xpose.msra.mxu0 0.0
        %5110 = vmatprep.subr.mxu0 0.0
        %5111 = vmatpush1.xpose.msra.mxu0 0.0
        %5112 = vmatprep.subr.mxu0 0.0
        %5113 = vmatpush1.xpose.msra.mxu0 0.0
        %5114 = vmatprep.subr.mxu0 0.0
        %5115 = vmatpush1.xpose.msra.mxu0 0.0
        %5116 = vmatprep.subr.mxu0 0.0
        %5117 = vmatpush1.xpose.msra.mxu0 0.0
        %5118 = vmatprep.subr.mxu0 0.0
        %5119 = vmatpush1.xpose.msra.mxu0 0.0
        %5120 = vmatprep.subr.mxu0 0.0
        %5121 = vmatpush1.xpose.msra.mxu0 0.0
        %5122 = vmatprep.mubr.f32.mxu0 0.0
        %5123 = vmatmul.mubr.f32.gmra.mrb[0].mxu0 %v5050
        %v5124 = vpop.f32.mrb[0].mxu0
        %v5125 = vadd.f32 0.0, %v5124
        %v5126 = vpop.f32.mrb[0].mxu0
        %5127 = vmatprep.mubr.f32.mxu0 0.0
        %5128 = vmatmul.mubr.f32.gmra.mrb[0].mxu0 %v5052
        %v5129 = vpop.f32.mrb[0].mxu0
        %v5130 = vadd.f32 0.0, %v5129
        %v5131 = vpop.f32.mrb[0].mxu0
        %5132 = vdwg.mxu0
        %v5133 = vmul.f32 %v5125, 0.35355338
        %v5134 = vmul.f32 %v5130, 0.35355338
        %v5135 = vadd.f32 %v5133, %v3081
        %v5136 = vadd.f32 %v5134, %v3081
        %v5137 = vsel %vm1349, %v5135, -inf
        %5138 = vmax.xlane.f32.xlu0 %v5137
        %v5139 = vpop.xlane.xlu0 %5138
        %v5140 = vsel %vm1349, %v5136, -inf
        %5141 = vmax.xlane.f32.xlu0 %v5140
        %v5142 = vpop.xlane.xlu0 %5141
        %v5143 = vsub.f32 %v5135, %v5139
        %v5144 = vsub.f32 %v5136, %v5142
        %v5145 = vmul.f32 %v5143, 1.442695
        %v5146 = vpow.pop %v5145
        %v5147 = vmul.f32 %v5144, 1.442695
        %v5148 = vpow.pop %v5147
        %v5149 = vsel %vm1349, %v5146, 0.0
        %5150 = vadd.xlane.f32.xlu0 %v5149
        %v5151 = vpop.xlane.xlu0 %5150
        %v5152 = vsel %vm1349, %v5148, 0.0
        %5153 = vadd.xlane.f32.xlu0 %v5152
        %v5154 = vpop.xlane.xlu0 %5153
        %v5155 = vrcp.pop %v5151
        %v5156 = vmul.f32 %v5146, %v5155
        %v5157 = vrcp.pop %v5154
        %v5158 = vmul.f32 %v5148, %v5157
        %5161 = vrot.lane.b32.xlu0 %v4840, 120
        %v5162 = vpop.permute.xlu0 %5161
        %5163 = vrot.lane.b32.xlu0 %v4845, 120
        %v5164 = vpop.permute.xlu0 %5163
        %v5168 = vsel %vm1349, %v5156, 0
        %v5171 = vsel %vm1349, %v5158, 0
        %5173 = vmatprep.subr.mxu0 0.0
        %5174 = vmatpush1.msra.mxu0 %v5162
        %5175 = vmatprep.subr.mxu0 0.0
        %5176 = vmatpush1.msra.mxu0 %v5164
        %5177 = vmatprep.subr.mxu0 0.0
        %5178 = vmatpush1.msra.mxu0 0.0
        %5179 = vmatprep.subr.mxu0 0.0
        %5180 = vmatpush1.msra.mxu0 0.0
        %5181 = vmatprep.subr.mxu0 0.0
        %5182 = vmatpush1.msra.mxu0 0.0
        %5183 = vmatprep.subr.mxu0 0.0
        %5184 = vmatpush1.msra.mxu0 0.0
        %5185 = vmatprep.subr.mxu0 0.0
        %5186 = vmatpush1.msra.mxu0 0.0
        %5187 = vmatprep.subr.mxu0 0.0
        %5188 = vmatpush1.msra.mxu0 0.0
        %5189 = vmatprep.subr.mxu0 0.0
        %5190 = vmatpush1.msra.mxu0 0.0
        %5191 = vmatprep.subr.mxu0 0.0
        %5192 = vmatpush1.msra.mxu0 0.0
        %5193 = vmatprep.subr.mxu0 0.0
        %5194 = vmatpush1.msra.mxu0 0.0
        %5195 = vmatprep.subr.mxu0 0.0
        %5196 = vmatpush1.msra.mxu0 0.0
        %5197 = vmatprep.subr.mxu0 0.0
        %5198 = vmatpush1.msra.mxu0 0.0
        %5199 = vmatprep.subr.mxu0 0.0
        %5200 = vmatpush1.msra.mxu0 0.0
        %5201 = vmatprep.subr.mxu0 0.0
        %5202 = vmatpush1.msra.mxu0 0.0
        %5203 = vmatprep.subr.mxu0 0.0
        %5204 = vmatpush1.msra.mxu0 0.0
        %5205 = vmatprep.subr.mxu0 0.0
        %5206 = vmatpush1.msra.mxu0 0.0
        %5207 = vmatprep.subr.mxu0 0.0
        %5208 = vmatpush1.msra.mxu0 0.0
        %5209 = vmatprep.subr.mxu0 0.0
        %5210 = vmatpush1.msra.mxu0 0.0
        %5211 = vmatprep.subr.mxu0 0.0
        %5212 = vmatpush1.msra.mxu0 0.0
        %5213 = vmatprep.subr.mxu0 0.0
        %5214 = vmatpush1.msra.mxu0 0.0
        %5215 = vmatprep.subr.mxu0 0.0
        %5216 = vmatpush1.msra.mxu0 0.0
        %5217 = vmatprep.subr.mxu0 0.0
        %5218 = vmatpush1.msra.mxu0 0.0
        %5219 = vmatprep.subr.mxu0 0.0
        %5220 = vmatpush1.msra.mxu0 0.0
        %5221 = vmatprep.subr.mxu0 0.0
        %5222 = vmatpush1.msra.mxu0 0.0
        %5223 = vmatprep.subr.mxu0 0.0
        %5224 = vmatpush1.msra.mxu0 0.0
        %5225 = vmatprep.subr.mxu0 0.0
        %5226 = vmatpush1.msra.mxu0 0.0
        %5227 = vmatprep.subr.mxu0 0.0
        %5228 = vmatpush1.msra.mxu0 0.0
        %5229 = vmatprep.subr.mxu0 0.0
        %5230 = vmatpush1.msra.mxu0 0.0
        %5231 = vmatprep.subr.mxu0 0.0
        %5232 = vmatpush1.msra.mxu0 0.0
        %5233 = vmatprep.subr.mxu0 0.0
        %5234 = vmatpush1.msra.mxu0 0.0
        %5235 = vmatprep.subr.mxu0 0.0
        %5236 = vmatpush1.msra.mxu0 0.0
        %5237 = vmatprep.mubr.f32.mxu0 0.0
        %5238 = vmatmul.mubr.f32.gmra.mrb[0].mxu0 %v5168
        %v5239 = vpop.f32.mrb[0].mxu0
        %v5240 = vadd.f32 0.0, %v5239
        %v5241 = vpop.f32.mrb[0].mxu0
        %5242 = vmatprep.mubr.f32.mxu0 0.0
        %5243 = vmatmul.mubr.f32.gmra.mrb[0].mxu0 %v5171
        %v5244 = vpop.f32.mrb[0].mxu0
        %v5245 = vadd.f32 0.0, %v5244
        %v5246 = vpop.f32.mrb[0].mxu0
        %5247 = vdwg.mxu0
        %5248 = vrot.lane.b32.xlu0 %v4672, 112
        %v5249 = vpop.permute.xlu0 %5248
        %5250 = vrot.lane.b32.xlu0 %v4677, 112
        %v5251 = vpop.permute.xlu0 %5250
        %5252 = vrot.lane.b32.xlu0 %v4756, 112
        %v5253 = vpop.permute.xlu0 %5252
        %5254 = vrot.lane.b32.xlu0 %v4761, 112
        %v5255 = vpop.permute.xlu0 %5254
        %v5256 = vsel %vm253, %v5249, 0
        %v5258 = vsel %vm253, %v5251, 0
        %v5260 = vsel %vm253, %v5253, 0
        %v5262 = vsel %vm253, %v5255, 0
        %5264 = vmatprep.subr.mxu0 0.0
        %5265 = vmatpush1.xpose.msra.mxu0 %v5260
        %5266 = vmatprep.subr.mxu0 0.0
        %5267 = vmatpush1.xpose.msra.mxu0 %v5262
        %5268 = vmatprep.subr.mxu0 0.0
        %5269 = vmatpush1.xpose.msra.mxu0 0.0
        %5270 = vmatprep.subr.mxu0 0.0
        %5271 = vmatpush1.xpose.msra.mxu0 0.0
        %5272 = vmatprep.subr.mxu0 0.0
        %5273 = vmatpush1.xpose.msra.mxu0 0.0
        %5274 = vmatprep.subr.mxu0 0.0
        %5275 = vmatpush1.xpose.msra.mxu0 0.0
        %5276 = vmatprep.subr.mxu0 0.0
        %5277 = vmatpush1.xpose.msra.mxu0 0.0
        %5278 = vmatprep.subr.mxu0 0.0
        %5279 = vmatpush1.xpose.msra.mxu0 0.0
        %5280 = vmatprep.subr.mxu0 0.0
        %5281 = vmatpush1.xpose.msra.mxu0 0.0
        %5282 = vmatprep.subr.mxu0 0.0
        %5283 = vmatpush1.xpose.msra.mxu0 0.0
        %5284 = vmatprep.subr.mxu0 0.0
        %5285 = vmatpush1.xpose.msra.mxu0 0.0
        %5286 = vmatprep.subr.mxu0 0.0
        %5287 = vmatpush1.xpose.msra.mxu0 0.0
        %5288 = vmatprep.subr.mxu0 0.0
        %5289 = vmatpush1.xpose.msra.mxu0 0.0
        %5290 = vmatprep.subr.mxu0 0.0
        %5291 = vmatpush1.xpose.msra.mxu0 0.0
        %5292 = vmatprep.subr.mxu0 0.0
        %5293 = vmatpush1.xpose.msra.mxu0 0.0
        %5294 = vmatprep.subr.mxu0 0.0
        %5295 = vmatpush1.xpose.msra.mxu0 0.0
        %5296 = vmatprep.subr.mxu0 0.0
        %5297 = vmatpush1.xpose.msra.mxu0 0.0
        %5298 = vmatprep.subr.mxu0 0.0
        %5299 = vmatpush1.xpose.msra.mxu0 0.0
        %5300 = vmatprep.subr.mxu0 0.0
        %5301 = vmatpush1.xpose.msra.mxu0 0.0
        %5302 = vmatprep.subr.mxu0 0.0
        %5303 = vmatpush1.xpose.msra.mxu0 0.0
        %5304 = vmatprep.subr.mxu0 0.0
        %5305 = vmatpush1.xpose.msra.mxu0 0.0
        %5306 = vmatprep.subr.mxu0 0.0
        %5307 = vmatpush1.xpose.msra.mxu0 0.0
        %5308 = vmatprep.subr.mxu0 0.0
        %5309 = vmatpush1.xpose.msra.mxu0 0.0
        %5310 = vmatprep.subr.mxu0 0.0
        %5311 = vmatpush1.xpose.msra.mxu0 0.0
        %5312 = vmatprep.subr.mxu0 0.0
        %5313 = vmatpush1.xpose.msra.mxu0 0.0
        %5314 = vmatprep.subr.mxu0 0.0
        %5315 = vmatpush1.xpose.msra.mxu0 0.0
        %5316 = vmatprep.subr.mxu0 0.0
        %5317 = vmatpush1.xpose.msra.mxu0 0.0
        %5318 = vmatprep.subr.mxu0 0.0
        %5319 = vmatpush1.xpose.msra.mxu0 0.0
        %5320 = vmatprep.subr.mxu0 0.0
        %5321 = vmatpush1.xpose.msra.mxu0 0.0
        %5322 = vmatprep.subr.mxu0 0.0
        %5323 = vmatpush1.xpose.msra.mxu0 0.0
        %5324 = vmatprep.subr.mxu0 0.0
        %5325 = vmatpush1.xpose.msra.mxu0 0.0
        %5326 = vmatprep.subr.mxu0 0.0
        %5327 = vmatpush1.xpose.msra.mxu0 0.0
        %5328 = vmatprep.mubr.f32.mxu0 0.0
        %5329 = vmatmul.mubr.f32.gmra.mrb[0].mxu0 %v5256
        %v5330 = vpop.f32.mrb[0].mxu0
        %v5331 = vadd.f32 0.0, %v5330
        %v5332 = vpop.f32.mrb[0].mxu0
        %5333 = vmatprep.mubr.f32.mxu0 0.0
        %5334 = vmatmul.mubr.f32.gmra.mrb[0].mxu0 %v5258
        %v5335 = vpop.f32.mrb[0].mxu0
        %v5336 = vadd.f32 0.0, %v5335
        %v5337 = vpop.f32.mrb[0].mxu0
        %5338 = vdwg.mxu0
        %v5339 = vmul.f32 %v5331, 0.35355338
        %v5340 = vmul.f32 %v5336, 0.35355338
        %v5341 = vadd.f32 %v5339, %v3081
        %v5342 = vadd.f32 %v5340, %v3081
        %v5343 = vsel %vm1349, %v5341, -inf
        %5344 = vmax.xlane.f32.xlu0 %v5343
        %v5345 = vpop.xlane.xlu0 %5344
        %v5346 = vsel %vm1349, %v5342, -inf
        %5347 = vmax.xlane.f32.xlu0 %v5346
        %v5348 = vpop.xlane.xlu0 %5347
        %v5349 = vsub.f32 %v5341, %v5345
        %v5350 = vsub.f32 %v5342, %v5348
        %v5351 = vmul.f32 %v5349, 1.442695
        %v5352 = vpow.pop %v5351
        %v5353 = vmul.f32 %v5350, 1.442695
        %v5354 = vpow.pop %v5353
        %v5355 = vsel %vm1349, %v5352, 0.0
        %5356 = vadd.xlane.f32.xlu0 %v5355
        %v5357 = vpop.xlane.xlu0 %5356
        %v5358 = vsel %vm1349, %v5354, 0.0
        %5359 = vadd.xlane.f32.xlu0 %v5358
        %v5360 = vpop.xlane.xlu0 %5359
        %v5361 = vrcp.pop %v5357
        %v5362 = vmul.f32 %v5352, %v5361
        %v5363 = vrcp.pop %v5360
        %v5364 = vmul.f32 %v5354, %v5363
        %5365 = vrot.lane.b32.xlu0 %v4840, 112
        %v5366 = vpop.permute.xlu0 %5365
        %5367 = vrot.lane.b32.xlu0 %v4845, 112
        %v5368 = vpop.permute.xlu0 %5367
        %v5372 = vsel %vm1349, %v5362, 0
        %v5375 = vsel %vm1349, %v5364, 0
        %5377 = vmatprep.subr.mxu0 0.0
        %5378 = vmatpush1.msra.mxu0 %v5366
        %5379 = vmatprep.subr.mxu0 0.0
        %5380 = vmatpush1.msra.mxu0 %v5368
        %5381 = vmatprep.subr.mxu0 0.0
        %5382 = vmatpush1.msra.mxu0 0.0
        %5383 = vmatprep.subr.mxu0 0.0
        %5384 = vmatpush1.msra.mxu0 0.0
        %5385 = vmatprep.subr.mxu0 0.0
        %5386 = vmatpush1.msra.mxu0 0.0
        %5387 = vmatprep.subr.mxu0 0.0
        %5388 = vmatpush1.msra.mxu0 0.0
        %5389 = vmatprep.subr.mxu0 0.0
        %5390 = vmatpush1.msra.mxu0 0.0
        %5391 = vmatprep.subr.mxu0 0.0
        %5392 = vmatpush1.msra.mxu0 0.0
        %5393 = vmatprep.subr.mxu0 0.0
        %5394 = vmatpush1.msra.mxu0 0.0
        %5395 = vmatprep.subr.mxu0 0.0
        %5396 = vmatpush1.msra.mxu0 0.0
        %5397 = vmatprep.subr.mxu0 0.0
        %5398 = vmatpush1.msra.mxu0 0.0
        %5399 = vmatprep.subr.mxu0 0.0
        %5400 = vmatpush1.msra.mxu0 0.0
        %5401 = vmatprep.subr.mxu0 0.0
        %5402 = vmatpush1.msra.mxu0 0.0
        %5403 = vmatprep.subr.mxu0 0.0
        %5404 = vmatpush1.msra.mxu0 0.0
        %5405 = vmatprep.subr.mxu0 0.0
        %5406 = vmatpush1.msra.mxu0 0.0
        %5407 = vmatprep.subr.mxu0 0.0
        %5408 = vmatpush1.msra.mxu0 0.0
        %5409 = vmatprep.subr.mxu0 0.0
        %5410 = vmatpush1.msra.mxu0 0.0
        %5411 = vmatprep.subr.mxu0 0.0
        %5412 = vmatpush1.msra.mxu0 0.0
        %5413 = vmatprep.subr.mxu0 0.0
        %5414 = vmatpush1.msra.mxu0 0.0
        %5415 = vmatprep.subr.mxu0 0.0
        %5416 = vmatpush1.msra.mxu0 0.0
        %5417 = vmatprep.subr.mxu0 0.0
        %5418 = vmatpush1.msra.mxu0 0.0
        %5419 = vmatprep.subr.mxu0 0.0
        %5420 = vmatpush1.msra.mxu0 0.0
        %5421 = vmatprep.subr.mxu0 0.0
        %5422 = vmatpush1.msra.mxu0 0.0
        %5423 = vmatprep.subr.mxu0 0.0
        %5424 = vmatpush1.msra.mxu0 0.0
        %5425 = vmatprep.subr.mxu0 0.0
        %5426 = vmatpush1.msra.mxu0 0.0
        %5427 = vmatprep.subr.mxu0 0.0
        %5428 = vmatpush1.msra.mxu0 0.0
        %5429 = vmatprep.subr.mxu0 0.0
        %5430 = vmatpush1.msra.mxu0 0.0
        %5431 = vmatprep.subr.mxu0 0.0
        %5432 = vmatpush1.msra.mxu0 0.0
        %5433 = vmatprep.subr.mxu0 0.0
        %5434 = vmatpush1.msra.mxu0 0.0
        %5435 = vmatprep.subr.mxu0 0.0
        %5436 = vmatpush1.msra.mxu0 0.0
        %5437 = vmatprep.subr.mxu0 0.0
        %5438 = vmatpush1.msra.mxu0 0.0
        %5439 = vmatprep.subr.mxu0 0.0
        %5440 = vmatpush1.msra.mxu0 0.0
        %5441 = vmatprep.mubr.f32.mxu0 0.0
        %5442 = vmatmul.mubr.f32.gmra.mrb[0].mxu0 %v5372
        %v5443 = vpop.f32.mrb[0].mxu0
        %v5444 = vadd.f32 0.0, %v5443
        %v5445 = vpop.f32.mrb[0].mxu0
        %5446 = vmatprep.mubr.f32.mxu0 0.0
        %5447 = vmatmul.mubr.f32.gmra.mrb[0].mxu0 %v5375
        %v5448 = vpop.f32.mrb[0].mxu0
        %v5449 = vadd.f32 0.0, %v5448
        %v5450 = vpop.f32.mrb[0].mxu0
        %5451 = vdwg.mxu0
        %5452 = vrot.lane.b32.xlu0 %v4672, 104
        %v5453 = vpop.permute.xlu0 %5452
        %5454 = vrot.lane.b32.xlu0 %v4677, 104
        %v5455 = vpop.permute.xlu0 %5454
        %5456 = vrot.lane.b32.xlu0 %v4756, 104
        %v5457 = vpop.permute.xlu0 %5456
        %5458 = vrot.lane.b32.xlu0 %v4761, 104
        %v5459 = vpop.permute.xlu0 %5458
        %v5460 = vsel %vm253, %v5453, 0
        %v5462 = vsel %vm253, %v5455, 0
        %v5464 = vsel %vm253, %v5457, 0
        %v5466 = vsel %vm253, %v5459, 0
        %5468 = vmatprep.subr.mxu0 0.0
        %5469 = vmatpush1.xpose.msra.mxu0 %v5464
        %5470 = vmatprep.subr.mxu0 0.0
        %5471 = vmatpush1.xpose.msra.mxu0 %v5466
        %5472 = vmatprep.subr.mxu0 0.0
        %5473 = vmatpush1.xpose.msra.mxu0 0.0
        %5474 = vmatprep.subr.mxu0 0.0
        %5475 = vmatpush1.xpose.msra.mxu0 0.0
        %5476 = vmatprep.subr.mxu0 0.0
        %5477 = vmatpush1.xpose.msra.mxu0 0.0
        %5478 = vmatprep.subr.mxu0 0.0
        %5479 = vmatpush1.xpose.msra.mxu0 0.0
        %5480 = vmatprep.subr.mxu0 0.0
        %5481 = vmatpush1.xpose.msra.mxu0 0.0
        %5482 = vmatprep.subr.mxu0 0.0
        %5483 = vmatpush1.xpose.msra.mxu0 0.0
        %5484 = vmatprep.subr.mxu0 0.0
        %5485 = vmatpush1.xpose.msra.mxu0 0.0
        %5486 = vmatprep.subr.mxu0 0.0
        %5487 = vmatpush1.xpose.msra.mxu0 0.0
        %5488 = vmatprep.subr.mxu0 0.0
        %5489 = vmatpush1.xpose.msra.mxu0 0.0
        %5490 = vmatprep.subr.mxu0 0.0
        %5491 = vmatpush1.xpose.msra.mxu0 0.0
        %5492 = vmatprep.subr.mxu0 0.0
        %5493 = vmatpush1.xpose.msra.mxu0 0.0
        %5494 = vmatprep.subr.mxu0 0.0
        %5495 = vmatpush1.xpose.msra.mxu0 0.0
        %5496 = vmatprep.subr.mxu0 0.0
        %5497 = vmatpush1.xpose.msra.mxu0 0.0
        %5498 = vmatprep.subr.mxu0 0.0
        %5499 = vmatpush1.xpose.msra.mxu0 0.0
        %5500 = vmatprep.subr.mxu0 0.0
        %5501 = vmatpush1.xpose.msra.mxu0 0.0
        %5502 = vmatprep.subr.mxu0 0.0
        %5503 = vmatpush1.xpose.msra.mxu0 0.0
        %5504 = vmatprep.subr.mxu0 0.0
        %5505 = vmatpush1.xpose.msra.mxu0 0.0
        %5506 = vmatprep.subr.mxu0 0.0
        %5507 = vmatpush1.xpose.msra.mxu0 0.0
        %5508 = vmatprep.subr.mxu0 0.0
        %5509 = vmatpush1.xpose.msra.mxu0 0.0
        %5510 = vmatprep.subr.mxu0 0.0
        %5511 = vmatpush1.xpose.msra.mxu0 0.0
        %5512 = vmatprep.subr.mxu0 0.0
        %5513 = vmatpush1.xpose.msra.mxu0 0.0
        %5514 = vmatprep.subr.mxu0 0.0
        %5515 = vmatpush1.xpose.msra.mxu0 0.0
        %5516 = vmatprep.subr.mxu0 0.0
        %5517 = vmatpush1.xpose.msra.mxu0 0.0
        %5518 = vmatprep.subr.mxu0 0.0
        %5519 = vmatpush1.xpose.msra.mxu0 0.0
        %5520 = vmatprep.subr.mxu0 0.0
        %5521 = vmatpush1.xpose.msra.mxu0 0.0
        %5522 = vmatprep.subr.mxu0 0.0
        %5523 = vmatpush1.xpose.msra.mxu0 0.0
        %5524 = vmatprep.subr.mxu0 0.0
        %5525 = vmatpush1.xpose.msra.mxu0 0.0
        %5526 = vmatprep.subr.mxu0 0.0
        %5527 = vmatpush1.xpose.msra.mxu0 0.0
        %5528 = vmatprep.subr.mxu0 0.0
        %5529 = vmatpush1.xpose.msra.mxu0 0.0
        %5530 = vmatprep.subr.mxu0 0.0
        %5531 = vmatpush1.xpose.msra.mxu0 0.0
        %5532 = vmatprep.mubr.f32.mxu0 0.0
        %5533 = vmatmul.mubr.f32.gmra.mrb[0].mxu0 %v5460
        %v5534 = vpop.f32.mrb[0].mxu0
        %v5535 = vadd.f32 0.0, %v5534
        %v5536 = vpop.f32.mrb[0].mxu0
        %5537 = vmatprep.mubr.f32.mxu0 0.0
        %5538 = vmatmul.mubr.f32.gmra.mrb[0].mxu0 %v5462
        %v5539 = vpop.f32.mrb[0].mxu0
        %v5540 = vadd.f32 0.0, %v5539
        %v5541 = vpop.f32.mrb[0].mxu0
        %5542 = vdwg.mxu0
        %v5543 = vmul.f32 %v5535, 0.35355338
        %v5544 = vmul.f32 %v5540, 0.35355338
        %v5545 = vadd.f32 %v5543, %v3081
        %v5546 = vadd.f32 %v5544, %v3081
        %v5547 = vsel %vm1349, %v5545, -inf
        %5548 = vmax.xlane.f32.xlu0 %v5547
        %v5549 = vpop.xlane.xlu0 %5548
        %v5550 = vsel %vm1349, %v5546, -inf
        %5551 = vmax.xlane.f32.xlu0 %v5550
        %v5552 = vpop.xlane.xlu0 %5551
        %v5553 = vsub.f32 %v5545, %v5549
        %v5554 = vsub.f32 %v5546, %v5552
        %v5555 = vmul.f32 %v5553, 1.442695
        %v5556 = vpow.pop %v5555
        %v5557 = vmul.f32 %v5554, 1.442695
        %v5558 = vpow.pop %v5557
        %v5559 = vsel %vm1349, %v5556, 0.0
        %5560 = vadd.xlane.f32.xlu0 %v5559
        %v5561 = vpop.xlane.xlu0 %5560
        %v5562 = vsel %vm1349, %v5558, 0.0
        %5563 = vadd.xlane.f32.xlu0 %v5562
        %v5564 = vpop.xlane.xlu0 %5563
        %v5565 = vrcp.pop %v5561
        %v5566 = vmul.f32 %v5556, %v5565
        %v5567 = vrcp.pop %v5564
        %v5568 = vmul.f32 %v5558, %v5567
        %5569 = vrot.lane.b32.xlu0 %v4840, 104
        %v5570 = vpop.permute.xlu0 %5569
        %5571 = vrot.lane.b32.xlu0 %v4845, 104
        %v5572 = vpop.permute.xlu0 %5571
        %v5576 = vsel %vm1349, %v5566, 0
        %v5579 = vsel %vm1349, %v5568, 0
        %5581 = vmatprep.subr.mxu0 0.0
        %5582 = vmatpush1.msra.mxu0 %v5570
        %5583 = vmatprep.subr.mxu0 0.0
        %5584 = vmatpush1.msra.mxu0 %v5572
        %5585 = vmatprep.subr.mxu0 0.0
        %5586 = vmatpush1.msra.mxu0 0.0
        %5587 = vmatprep.subr.mxu0 0.0
        %5588 = vmatpush1.msra.mxu0 0.0
        %5589 = vmatprep.subr.mxu0 0.0
        %5590 = vmatpush1.msra.mxu0 0.0
        %5591 = vmatprep.subr.mxu0 0.0
        %5592 = vmatpush1.msra.mxu0 0.0
        %5593 = vmatprep.subr.mxu0 0.0
        %5594 = vmatpush1.msra.mxu0 0.0
        %5595 = vmatprep.subr.mxu0 0.0
        %5596 = vmatpush1.msra.mxu0 0.0
        %5597 = vmatprep.subr.mxu0 0.0
        %5598 = vmatpush1.msra.mxu0 0.0
        %5599 = vmatprep.subr.mxu0 0.0
        %5600 = vmatpush1.msra.mxu0 0.0
        %5601 = vmatprep.subr.mxu0 0.0
        %5602 = vmatpush1.msra.mxu0 0.0
        %5603 = vmatprep.subr.mxu0 0.0
        %5604 = vmatpush1.msra.mxu0 0.0
        %5605 = vmatprep.subr.mxu0 0.0
        %5606 = vmatpush1.msra.mxu0 0.0
        %5607 = vmatprep.subr.mxu0 0.0
        %5608 = vmatpush1.msra.mxu0 0.0
        %5609 = vmatprep.subr.mxu0 0.0
        %5610 = vmatpush1.msra.mxu0 0.0
        %5611 = vmatprep.subr.mxu0 0.0
        %5612 = vmatpush1.msra.mxu0 0.0
        %5613 = vmatprep.subr.mxu0 0.0
        %5614 = vmatpush1.msra.mxu0 0.0
        %5615 = vmatprep.subr.mxu0 0.0
        %5616 = vmatpush1.msra.mxu0 0.0
        %5617 = vmatprep.subr.mxu0 0.0
        %5618 = vmatpush1.msra.mxu0 0.0
        %5619 = vmatprep.subr.mxu0 0.0
        %5620 = vmatpush1.msra.mxu0 0.0
        %5621 = vmatprep.subr.mxu0 0.0
        %5622 = vmatpush1.msra.mxu0 0.0
        %5623 = vmatprep.subr.mxu0 0.0
        %5624 = vmatpush1.msra.mxu0 0.0
        %5625 = vmatprep.subr.mxu0 0.0
        %5626 = vmatpush1.msra.mxu0 0.0
        %5627 = vmatprep.subr.mxu0 0.0
        %5628 = vmatpush1.msra.mxu0 0.0
        %5629 = vmatprep.subr.mxu0 0.0
        %5630 = vmatpush1.msra.mxu0 0.0
        %5631 = vmatprep.subr.mxu0 0.0
        %5632 = vmatpush1.msra.mxu0 0.0
        %5633 = vmatprep.subr.mxu0 0.0
        %5634 = vmatpush1.msra.mxu0 0.0
        %5635 = vmatprep.subr.mxu0 0.0
        %5636 = vmatpush1.msra.mxu0 0.0
        %5637 = vmatprep.subr.mxu0 0.0
        %5638 = vmatpush1.msra.mxu0 0.0
        %5639 = vmatprep.subr.mxu0 0.0
        %5640 = vmatpush1.msra.mxu0 0.0
        %5641 = vmatprep.subr.mxu0 0.0
        %5642 = vmatpush1.msra.mxu0 0.0
        %5643 = vmatprep.subr.mxu0 0.0
        %5644 = vmatpush1.msra.mxu0 0.0
        %5645 = vmatprep.mubr.f32.mxu0 0.0
        %5646 = vmatmul.mubr.f32.gmra.mrb[0].mxu0 %v5576
        %v5647 = vpop.f32.mrb[0].mxu0
        %v5648 = vadd.f32 0.0, %v5647
        %v5649 = vpop.f32.mrb[0].mxu0
        %5650 = vmatprep.mubr.f32.mxu0 0.0
        %5651 = vmatmul.mubr.f32.gmra.mrb[0].mxu0 %v5579
        %v5652 = vpop.f32.mrb[0].mxu0
        %v5653 = vadd.f32 0.0, %v5652
        %v5654 = vpop.f32.mrb[0].mxu0
        %5655 = vdwg.mxu0
        %5658 = vrot.lane.b32.xlu0 %v5240, 8
        %v5659 = vpop.permute.xlu0 %5658
        %5660 = vrot.lane.b32.xlu0 %v5245, 8
        %v5661 = vpop.permute.xlu0 %5660
        %5666 = vrot.lane.b32.xlu0 %v5444, 16
        %v5667 = vpop.permute.xlu0 %5666
        %5668 = vrot.lane.b32.xlu0 %v5449, 16
        %v5669 = vpop.permute.xlu0 %5668
        %5674 = vrot.lane.b32.xlu0 %v5648, 24
        %v5675 = vpop.permute.xlu0 %5674
        %5676 = vrot.lane.b32.xlu0 %v5653, 24
        %v5677 = vpop.permute.xlu0 %5676
        %v5680 = vsel %vm253, %v5034, %v5659
        %v5681 = vsel %vm253, %v5039, %v5661
        %v5682 = vsel %vm1349, %v5680, %v5667
        %v5683 = vsel %vm1349, %v5681, %v5669
        %v5684 = vsel %vm1351, %v5682, %v5675
        %v5685 = vsel %vm1351, %v5683, %v5677
        %v5686 = vld [vmem:[#allocation2 + $0x540] sm:$0xff]
        %v5687 = vld [vmem:[#allocation2 + $0x548] sm:$0xff]
        %v5688 = vld [vmem:[#allocation2 + $0x550] sm:$0xff]
        %v5689 = vld [vmem:[#allocation2 + $0x558] sm:$0xff]
        %v5691 = vsel %vm407, %v5684, 0
        %v5694 = vsel %vm407, %v5685, 0
        %5696 = vmatprep.subr.mxu0 0.0
        %5697 = vmatpush1.msra.mxu0 %v5686
        %5698 = vmatprep.subr.mxu0 0.0
        %5699 = vmatpush1.msra.mxu0 %v5687
        %5700 = vmatprep.subr.mxu0 0.0
        %5701 = vmatpush1.msra.mxu0 %v5688
        %5702 = vmatprep.subr.mxu0 0.0
        %5703 = vmatpush1.msra.mxu0 %v5689
        %5704 = vmatprep.subr.mxu0 0.0
        %5705 = vmatpush1.msra.mxu0 0.0
        %5706 = vmatprep.subr.mxu0 0.0
        %5707 = vmatpush1.msra.mxu0 0.0
        %5708 = vmatprep.subr.mxu0 0.0
        %5709 = vmatpush1.msra.mxu0 0.0
        %5710 = vmatprep.subr.mxu0 0.0
        %5711 = vmatpush1.msra.mxu0 0.0
        %5712 = vmatprep.subr.mxu0 0.0
        %5713 = vmatpush1.msra.mxu0 0.0
        %5714 = vmatprep.subr.mxu0 0.0
        %5715 = vmatpush1.msra.mxu0 0.0
        %5716 = vmatprep.subr.mxu0 0.0
        %5717 = vmatpush1.msra.mxu0 0.0
        %5718 = vmatprep.subr.mxu0 0.0
        %5719 = vmatpush1.msra.mxu0 0.0
        %5720 = vmatprep.subr.mxu0 0.0
        %5721 = vmatpush1.msra.mxu0 0.0
        %5722 = vmatprep.subr.mxu0 0.0
        %5723 = vmatpush1.msra.mxu0 0.0
        %5724 = vmatprep.subr.mxu0 0.0
        %5725 = vmatpush1.msra.mxu0 0.0
        %5726 = vmatprep.subr.mxu0 0.0
        %5727 = vmatpush1.msra.mxu0 0.0
        %5728 = vmatprep.subr.mxu0 0.0
        %5729 = vmatpush1.msra.mxu0 0.0
        %5730 = vmatprep.subr.mxu0 0.0
        %5731 = vmatpush1.msra.mxu0 0.0
        %5732 = vmatprep.subr.mxu0 0.0
        %5733 = vmatpush1.msra.mxu0 0.0
        %5734 = vmatprep.subr.mxu0 0.0
        %5735 = vmatpush1.msra.mxu0 0.0
        %5736 = vmatprep.subr.mxu0 0.0
        %5737 = vmatpush1.msra.mxu0 0.0
        %5738 = vmatprep.subr.mxu0 0.0
        %5739 = vmatpush1.msra.mxu0 0.0
        %5740 = vmatprep.subr.mxu0 0.0
        %5741 = vmatpush1.msra.mxu0 0.0
        %5742 = vmatprep.subr.mxu0 0.0
        %5743 = vmatpush1.msra.mxu0 0.0
        %5744 = vmatprep.subr.mxu0 0.0
        %5745 = vmatpush1.msra.mxu0 0.0
        %5746 = vmatprep.subr.mxu0 0.0
        %5747 = vmatpush1.msra.mxu0 0.0
        %5748 = vmatprep.subr.mxu0 0.0
        %5749 = vmatpush1.msra.mxu0 0.0
        %5750 = vmatprep.subr.mxu0 0.0
        %5751 = vmatpush1.msra.mxu0 0.0
        %5752 = vmatprep.subr.mxu0 0.0
        %5753 = vmatpush1.msra.mxu0 0.0
        %5754 = vmatprep.subr.mxu0 0.0
        %5755 = vmatpush1.msra.mxu0 0.0
        %5756 = vmatprep.subr.mxu0 0.0
        %5757 = vmatpush1.msra.mxu0 0.0
        %5758 = vmatprep.subr.mxu0 0.0
        %5759 = vmatpush1.msra.mxu0 0.0
        %5760 = vmatprep.mubr.f32.mxu0 0.0
        %5761 = vmatmul.mubr.f32.gmra.mrb[0].mxu0 %v5691
        %v5762 = vpop.f32.mrb[0].mxu0
        %v5763 = vadd.f32 0.0, %v5762
        %v5764 = vpop.f32.mrb[0].mxu0
        %5765 = vmatprep.mubr.f32.mxu0 0.0
        %5766 = vmatmul.mubr.f32.gmra.mrb[0].mxu0 %v5694
        %v5767 = vpop.f32.mrb[0].mxu0
        %v5768 = vadd.f32 0.0, %v5767
        %v5769 = vpop.f32.mrb[0].mxu0
        %5770 = vdwg.mxu0
        %v5771 = vadd.f32 %v4548, %v5763
        %v5772 = vadd.f32 %v4549, %v5768
        %v5773 = vld [vmem:[#allocation2 + $0x560] sm:$0x1]
        %v5774 = vlaneseq
        %v5775 = vshrl.u32 %v5774, 7
        %v5776 = vsub.s32 0, %v5775
        %v5777 = vrot.slane %v5773, %v5776
        %v5778 = vadd.f32 %v5771, %v5777
        %v5779 = vadd.f32 %v5772, %v5777
        %v5780 = vld [vmem:[#allocation2 + $0x568] sm:$0x1]
        %v5781 = vld [vmem:[#allocation2 + $0x570] sm:$0x1]
        %v5782 = vsel %vm407, %v5778, 0.0
        %5783 = vadd.xlane.f32.xlu0 %v5782
        %v5784 = vpop.xlane.xlu0 %5783
        %v5785 = vsel %vm407, %v5779, 0.0
        %5786 = vadd.xlane.f32.xlu0 %v5785
        %v5787 = vpop.xlane.xlu0 %5786
        %v5788 = vmul.f32 %v5784, %v411
        %v5789 = vmul.f32 %v5787, %v411
        %v5790 = vsub.f32 %v5778, %v5788
        %v5791 = vsub.f32 %v5779, %v5789
        %v5792 = vmul.f32 %v5790, %v5790
        %v5793 = vmul.f32 %v5791, %v5791
        %v5794 = vsel %vm407, %v5792, 0.0
        %5795 = vadd.xlane.f32.xlu0 %v5794
        %v5796 = vpop.xlane.xlu0 %5795
        %v5797 = vsel %vm407, %v5793, 0.0
        %5798 = vadd.xlane.f32.xlu0 %v5797
        %v5799 = vpop.xlane.xlu0 %5798
        %v5800 = vmul.f32 %v5796, %v411
        %v5801 = vmul.f32 %v5799, %v411
        %v5802 = vadd.f32 %v5800, 1e-06
        %v5803 = vadd.f32 %v5801, 1e-06
        %v5804 = vrsqrt.pop %v5802
        %v5805 = vrsqrt.pop %v5803
        %v5806 = vmul.f32 %v5790, %v5804
        %v5807 = vmul.f32 %v5791, %v5805
        %v5808 = vlaneseq
        %v5809 = vshrl.u32 %v5808, 7
        %v5810 = vsub.s32 0, %v5809
        %v5811 = vrot.slane %v5780, %v5810
        %v5812 = vmul.f32 %v5806, %v5811
        %v5813 = vmul.f32 %v5807, %v5811
        %v5814 = vlaneseq
        %v5815 = vshrl.u32 %v5814, 7
        %v5816 = vsub.s32 0, %v5815
        %v5817 = vrot.slane %v5781, %v5816
        %v5818 = vadd.f32 %v5812, %v5817
        %v5819 = vadd.f32 %v5813, %v5817
        %v5820 = vld [vmem:[#allocation2 + $0x578] sm:$0xff]
        %v5821 = vld [vmem:[#allocation2 + $0x580] sm:$0xff]
        %v5822 = vld [vmem:[#allocation2 + $0x588] sm:$0xff]
        %v5823 = vld [vmem:[#allocation2 + $0x590] sm:$0xff]
        %v5824 = vld [vmem:[#allocation2 + $0x598] sm:$0x1]
        %v5825 = vlaneseq
        %v5826 = vshrl.u32 %v5825, 7
        %v5827 = vsub.s32 0, %v5826
        %v5828 = vrot.slane %v5824, %v5827
        %v5830 = vsel %vm407, %v5818, 0
        %v5833 = vsel %vm407, %v5819, 0
        %5835 = vmatprep.subr.mxu0 0.0
        %5836 = vmatpush1.msra.mxu0 %v5820
        %5837 = vmatprep.subr.mxu0 0.0
        %5838 = vmatpush1.msra.mxu0 %v5821
        %5839 = vmatprep.subr.mxu0 0.0
        %5840 = vmatpush1.msra.mxu0 %v5822
        %5841 = vmatprep.subr.mxu0 0.0
        %5842 = vmatpush1.msra.mxu0 %v5823
        %5843 = vmatprep.subr.mxu0 0.0
        %5844 = vmatpush1.msra.mxu0 0.0
        %5845 = vmatprep.subr.mxu0 0.0
        %5846 = vmatpush1.msra.mxu0 0.0
        %5847 = vmatprep.subr.mxu0 0.0
        %5848 = vmatpush1.msra.mxu0 0.0
        %5849 = vmatprep.subr.mxu0 0.0
        %5850 = vmatpush1.msra.mxu0 0.0
        %5851 = vmatprep.subr.mxu0 0.0
        %5852 = vmatpush1.msra.mxu0 0.0
        %5853 = vmatprep.subr.mxu0 0.0
        %5854 = vmatpush1.msra.mxu0 0.0
        %5855 = vmatprep.subr.mxu0 0.0
        %5856 = vmatpush1.msra.mxu0 0.0
        %5857 = vmatprep.subr.mxu0 0.0
        %5858 = vmatpush1.msra.mxu0 0.0
        %5859 = vmatprep.subr.mxu0 0.0
        %5860 = vmatpush1.msra.mxu0 0.0
        %5861 = vmatprep.subr.mxu0 0.0
        %5862 = vmatpush1.msra.mxu0 0.0
        %5863 = vmatprep.subr.mxu0 0.0
        %5864 = vmatpush1.msra.mxu0 0.0
        %5865 = vmatprep.subr.mxu0 0.0
        %5866 = vmatpush1.msra.mxu0 0.0
        %5867 = vmatprep.subr.mxu0 0.0
        %5868 = vmatpush1.msra.mxu0 0.0
        %5869 = vmatprep.subr.mxu0 0.0
        %5870 = vmatpush1.msra.mxu0 0.0
        %5871 = vmatprep.subr.mxu0 0.0
        %5872 = vmatpush1.msra.mxu0 0.0
        %5873 = vmatprep.subr.mxu0 0.0
        %5874 = vmatpush1.msra.mxu0 0.0
        %5875 = vmatprep.subr.mxu0 0.0
        %5876 = vmatpush1.msra.mxu0 0.0
        %5877 = vmatprep.subr.mxu0 0.0
        %5878 = vmatpush1.msra.mxu0 0.0
        %5879 = vmatprep.subr.mxu0 0.0
        %5880 = vmatpush1.msra.mxu0 0.0
        %5881 = vmatprep.subr.mxu0 0.0
        %5882 = vmatpush1.msra.mxu0 0.0
        %5883 = vmatprep.subr.mxu0 0.0
        %5884 = vmatpush1.msra.mxu0 0.0
        %5885 = vmatprep.subr.mxu0 0.0
        %5886 = vmatpush1.msra.mxu0 0.0
        %5887 = vmatprep.subr.mxu0 0.0
        %5888 = vmatpush1.msra.mxu0 0.0
        %5889 = vmatprep.subr.mxu0 0.0
        %5890 = vmatpush1.msra.mxu0 0.0
        %5891 = vmatprep.subr.mxu0 0.0
        %5892 = vmatpush1.msra.mxu0 0.0
        %5893 = vmatprep.subr.mxu0 0.0
        %5894 = vmatpush1.msra.mxu0 0.0
        %5895 = vmatprep.subr.mxu0 0.0
        %5896 = vmatpush1.msra.mxu0 0.0
        %5897 = vmatprep.subr.mxu0 0.0
        %5898 = vmatpush1.msra.mxu0 0.0
        %5899 = vmatprep.mubr.f32.mxu0 0.0
        %5900 = vmatmul.mubr.f32.gmra.mrb[0].mxu0 %v5830
        %v5901 = vpop.f32.mrb[0].mxu0
        %v5902 = vadd.f32 %v5828, %v5901
        %v5903 = vpop.f32.mrb[0].mxu0
        %5904 = vmatprep.mubr.f32.mxu0 0.0
        %5905 = vmatmul.mubr.f32.gmra.mrb[0].mxu0 %v5833
        %v5906 = vpop.f32.mrb[0].mxu0
        %v5907 = vadd.f32 %v5828, %v5906
        %v5908 = vpop.f32.mrb[0].mxu0
        %5909 = vdwg.mxu0
        %v5910 = vmul.f32 %v5902, 0.5
        %v5911 = vmul.f32 %v5907, 0.5
        %v5912 = vmul.f32 %v5902, 0.70710677
        %v5913 = vmul.f32 %v5907, 0.70710677
        %v5914 = verf.f32.pop %v5912
        %v5915 = verf.f32.pop %v5913
        %v5916 = vadd.f32 %v5914, 1.0
        %v5917 = vadd.f32 %v5915, 1.0
        %v5918 = vmul.f32 %v5910, %v5916
        %v5919 = vmul.f32 %v5911, %v5917
        %v5920 = vld [vmem:[#allocation2 + $0x5a0] sm:$0xff]
        %v5921 = vld [vmem:[#allocation2 + $0x5a8] sm:$0xff]
        %v5922 = vld [vmem:[#allocation2 + $0x5b0] sm:$0xff]
        %v5923 = vld [vmem:[#allocation2 + $0x5b8] sm:$0xff]
        %v5924 = vld [vmem:[#allocation2 + $0x5c0] sm:$0xff]
        %v5925 = vld [vmem:[#allocation2 + $0x5c8] sm:$0xff]
        %v5926 = vld [vmem:[#allocation2 + $0x5d0] sm:$0xff]
        %v5927 = vld [vmem:[#allocation2 + $0x5d8] sm:$0xff]
        %v5928 = vld [vmem:[#allocation2 + $0x5e0] sm:$0xff]
        %v5929 = vld [vmem:[#allocation2 + $0x5e8] sm:$0xff]
        %v5930 = vld [vmem:[#allocation2 + $0x5f0] sm:$0xff]
        %v5931 = vld [vmem:[#allocation2 + $0x5f8] sm:$0xff]
        %v5932 = vld [vmem:[#allocation2 + $0x600] sm:$0xff]
        %v5933 = vld [vmem:[#allocation2 + $0x608] sm:$0xff]
        %v5934 = vld [vmem:[#allocation2 + $0x610] sm:$0xff]
        %v5935 = vld [vmem:[#allocation2 + $0x618] sm:$0xff]
        %v5936 = vld [vmem:[#allocation2 + $0x620] sm:$0x1]
        %v5937 = vlaneseq
        %v5938 = vshrl.u32 %v5937, 7
        %v5939 = vsub.s32 0, %v5938
        %v5940 = vrot.slane %v5936, %v5939
        %5941 = vmatprep.subr.mxu0 0.0
        %5942 = vmatpush1.msra.mxu0 %v5920
        %5943 = vmatprep.subr.mxu0 0.0
        %5944 = vmatpush1.msra.mxu0 %v5921
        %5945 = vmatprep.subr.mxu0 0.0
        %5946 = vmatpush1.msra.mxu0 %v5922
        %5947 = vmatprep.subr.mxu0 0.0
        %5948 = vmatpush1.msra.mxu0 %v5923
        %5949 = vmatprep.subr.mxu0 0.0
        %5950 = vmatpush1.msra.mxu0 %v5924
        %5951 = vmatprep.subr.mxu0 0.0
        %5952 = vmatpush1.msra.mxu0 %v5925
        %5953 = vmatprep.subr.mxu0 0.0
        %5954 = vmatpush1.msra.mxu0 %v5926
        %5955 = vmatprep.subr.mxu0 0.0
        %5956 = vmatpush1.msra.mxu0 %v5927
        %5957 = vmatprep.subr.mxu0 0.0
        %5958 = vmatpush1.msra.mxu0 %v5928
        %5959 = vmatprep.subr.mxu0 0.0
        %5960 = vmatpush1.msra.mxu0 %v5929
        %5961 = vmatprep.subr.mxu0 0.0
        %5962 = vmatpush1.msra.mxu0 %v5930
        %5963 = vmatprep.subr.mxu0 0.0
        %5964 = vmatpush1.msra.mxu0 %v5931
        %5965 = vmatprep.subr.mxu0 0.0
        %5966 = vmatpush1.msra.mxu0 %v5932
        %5967 = vmatprep.subr.mxu0 0.0
        %5968 = vmatpush1.msra.mxu0 %v5933
        %5969 = vmatprep.subr.mxu0 0.0
        %5970 = vmatpush1.msra.mxu0 %v5934
        %5971 = vmatprep.subr.mxu0 0.0
        %5972 = vmatpush1.msra.mxu0 %v5935
        %5973 = vmatprep.subr.mxu0 0.0
        %5974 = vmatpush1.msra.mxu0 0.0
        %5975 = vmatprep.subr.mxu0 0.0
        %5976 = vmatpush1.msra.mxu0 0.0
        %5977 = vmatprep.subr.mxu0 0.0
        %5978 = vmatpush1.msra.mxu0 0.0
        %5979 = vmatprep.subr.mxu0 0.0
        %5980 = vmatpush1.msra.mxu0 0.0
        %5981 = vmatprep.subr.mxu0 0.0
        %5982 = vmatpush1.msra.mxu0 0.0
        %5983 = vmatprep.subr.mxu0 0.0
        %5984 = vmatpush1.msra.mxu0 0.0
        %5985 = vmatprep.subr.mxu0 0.0
        %5986 = vmatpush1.msra.mxu0 0.0
        %5987 = vmatprep.subr.mxu0 0.0
        %5988 = vmatpush1.msra.mxu0 0.0
        %5989 = vmatprep.subr.mxu0 0.0
        %5990 = vmatpush1.msra.mxu0 0.0
        %5991 = vmatprep.subr.mxu0 0.0
        %5992 = vmatpush1.msra.mxu0 0.0
        %5993 = vmatprep.subr.mxu0 0.0
        %5994 = vmatpush1.msra.mxu0 0.0
        %5995 = vmatprep.subr.mxu0 0.0
        %5996 = vmatpush1.msra.mxu0 0.0
        %5997 = vmatprep.subr.mxu0 0.0
        %5998 = vmatpush1.msra.mxu0 0.0
        %5999 = vmatprep.subr.mxu0 0.0
        %6000 = vmatpush1.msra.mxu0 0.0
        %6001 = vmatprep.subr.mxu0 0.0
        %6002 = vmatpush1.msra.mxu0 0.0
        %6003 = vmatprep.subr.mxu0 0.0
        %6004 = vmatpush1.msra.mxu0 0.0
        %6005 = vmatprep.mubr.f32.mxu0 0.0
        %6006 = vmatmul.mubr.f32.gmra.mrb[0].mxu0 %v5918
        %v6007 = vpop.f32.mrb[0].mxu0
        %v6008 = vadd.f32 %v5940, %v6007
        %v6009 = vpop.f32.mrb[0].mxu0
        %6010 = vmatprep.mubr.f32.mxu0 0.0
        %6011 = vmatmul.mubr.f32.gmra.mrb[0].mxu0 %v5919
        %v6012 = vpop.f32.mrb[0].mxu0
        %v6013 = vadd.f32 %v5940, %v6012
        %v6014 = vpop.f32.mrb[0].mxu0
        %6015 = vdwg.mxu0
        %v6016 = vadd.f32 %v5778, %v6008
        %v6017 = vadd.f32 %v5779, %v6013
        %v6018 = vld [vmem:[#allocation2 + $0x628] sm:$0x1]
        %v6019 = vld [vmem:[#allocation2 + $0x630] sm:$0x1]
        %v6020 = vsel %vm407, %v6016, 0.0
        %6021 = vadd.xlane.f32.xlu0 %v6020
        %v6022 = vpop.xlane.xlu0 %6021
        %v6023 = vsel %vm407, %v6017, 0.0
        %6024 = vadd.xlane.f32.xlu0 %v6023
        %v6025 = vpop.xlane.xlu0 %6024
        %v6026 = vmul.f32 %v6022, %v411
        %v6027 = vmul.f32 %v6025, %v411
        %v6028 = vsub.f32 %v6016, %v6026
        %v6029 = vsub.f32 %v6017, %v6027
        %v6030 = vmul.f32 %v6028, %v6028
        %v6031 = vmul.f32 %v6029, %v6029
        %v6032 = vsel %vm407, %v6030, 0.0
        %6033 = vadd.xlane.f32.xlu0 %v6032
        %v6034 = vpop.xlane.xlu0 %6033
        %v6035 = vsel %vm407, %v6031, 0.0
        %6036 = vadd.xlane.f32.xlu0 %v6035
        %v6037 = vpop.xlane.xlu0 %6036
        %v6038 = vmul.f32 %v6034, %v411
        %v6039 = vmul.f32 %v6037, %v411
        %v6040 = vadd.f32 %v6038, 1e-06
        %v6041 = vadd.f32 %v6039, 1e-06
        %v6042 = vrsqrt.pop %v6040
        %v6043 = vrsqrt.pop %v6041
        %v6044 = vmul.f32 %v6028, %v6042
        %v6045 = vmul.f32 %v6029, %v6043
        %v6046 = vlaneseq
        %v6047 = vshrl.u32 %v6046, 7
        %v6048 = vsub.s32 0, %v6047
        %v6049 = vrot.slane %v6018, %v6048
        %v6050 = vmul.f32 %v6044, %v6049
        %v6051 = vmul.f32 %v6045, %v6049
        %v6052 = vlaneseq
        %v6053 = vshrl.u32 %v6052, 7
        %v6054 = vsub.s32 0, %v6053
        %v6055 = vrot.slane %v6019, %v6054
        %v6056 = vadd.f32 %v6050, %v6055
        %v6057 = vadd.f32 %v6051, %v6055
        %v6058 = vld [vmem:[#allocation2 + $0x638] sm:$0xff]
        %v6059 = vld [vmem:[#allocation2 + $0x640] sm:$0xff]
        %v6060 = vld [vmem:[#allocation2 + $0x648] sm:$0xff]
        %v6061 = vld [vmem:[#allocation2 + $0x650] sm:$0xff]
        %v6062 = vld [vmem:[#allocation2 + $0x658] sm:$0x1]
        %v6063 = vlaneseq
        %v6064 = vshrl.u32 %v6063, 7
        %v6065 = vsub.s32 0, %v6064
        %v6066 = vrot.slane %v6062, %v6065
        %v6068 = vsel %vm407, %v6056, 0
        %v6071 = vsel %vm407, %v6057, 0
        %6073 = vmatprep.subr.mxu0 0.0
        %6074 = vmatpush1.msra.mxu0 %v6058
        %6075 = vmatprep.subr.mxu0 0.0
        %6076 = vmatpush1.msra.mxu0 %v6059
        %6077 = vmatprep.subr.mxu0 0.0
        %6078 = vmatpush1.msra.mxu0 %v6060
        %6079 = vmatprep.subr.mxu0 0.0
        %6080 = vmatpush1.msra.mxu0 %v6061
        %6081 = vmatprep.subr.mxu0 0.0
        %6082 = vmatpush1.msra.mxu0 0.0
        %6083 = vmatprep.subr.mxu0 0.0
        %6084 = vmatpush1.msra.mxu0 0.0
        %6085 = vmatprep.subr.mxu0 0.0
        %6086 = vmatpush1.msra.mxu0 0.0
        %6087 = vmatprep.subr.mxu0 0.0
        %6088 = vmatpush1.msra.mxu0 0.0
        %6089 = vmatprep.subr.mxu0 0.0
        %6090 = vmatpush1.msra.mxu0 0.0
        %6091 = vmatprep.subr.mxu0 0.0
        %6092 = vmatpush1.msra.mxu0 0.0
        %6093 = vmatprep.subr.mxu0 0.0
        %6094 = vmatpush1.msra.mxu0 0.0
        %6095 = vmatprep.subr.mxu0 0.0
        %6096 = vmatpush1.msra.mxu0 0.0
        %6097 = vmatprep.subr.mxu0 0.0
        %6098 = vmatpush1.msra.mxu0 0.0
        %6099 = vmatprep.subr.mxu0 0.0
        %6100 = vmatpush1.msra.mxu0 0.0
        %6101 = vmatprep.subr.mxu0 0.0
        %6102 = vmatpush1.msra.mxu0 0.0
        %6103 = vmatprep.subr.mxu0 0.0
        %6104 = vmatpush1.msra.mxu0 0.0
        %6105 = vmatprep.subr.mxu0 0.0
        %6106 = vmatpush1.msra.mxu0 0.0
        %6107 = vmatprep.subr.mxu0 0.0
        %6108 = vmatpush1.msra.mxu0 0.0
        %6109 = vmatprep.subr.mxu0 0.0
        %6110 = vmatpush1.msra.mxu0 0.0
        %6111 = vmatprep.subr.mxu0 0.0
        %6112 = vmatpush1.msra.mxu0 0.0
        %6113 = vmatprep.subr.mxu0 0.0
        %6114 = vmatpush1.msra.mxu0 0.0
        %6115 = vmatprep.subr.mxu0 0.0
        %6116 = vmatpush1.msra.mxu0 0.0
        %6117 = vmatprep.subr.mxu0 0.0
        %6118 = vmatpush1.msra.mxu0 0.0
        %6119 = vmatprep.subr.mxu0 0.0
        %6120 = vmatpush1.msra.mxu0 0.0
        %6121 = vmatprep.subr.mxu0 0.0
        %6122 = vmatpush1.msra.mxu0 0.0
        %6123 = vmatprep.subr.mxu0 0.0
        %6124 = vmatpush1.msra.mxu0 0.0
        %6125 = vmatprep.subr.mxu0 0.0
        %6126 = vmatpush1.msra.mxu0 0.0
        %6127 = vmatprep.subr.mxu0 0.0
        %6128 = vmatpush1.msra.mxu0 0.0
        %6129 = vmatprep.subr.mxu0 0.0
        %6130 = vmatpush1.msra.mxu0 0.0
        %6131 = vmatprep.subr.mxu0 0.0
        %6132 = vmatpush1.msra.mxu0 0.0
        %6133 = vmatprep.subr.mxu0 0.0
        %6134 = vmatpush1.msra.mxu0 0.0
        %6135 = vmatprep.subr.mxu0 0.0
        %6136 = vmatpush1.msra.mxu0 0.0
        %6137 = vmatprep.mubr.f32.mxu0 0.0
        %6138 = vmatmul.mubr.f32.gmra.mrb[0].mxu0 %v6068
        %v6139 = vpop.f32.mrb[0].mxu0
        %v6140 = vadd.f32 %v6066, %v6139
        %v6141 = vpop.f32.mrb[0].mxu0
        %6142 = vmatprep.mubr.f32.mxu0 0.0
        %6143 = vmatmul.mubr.f32.gmra.mrb[0].mxu0 %v6071
        %v6144 = vpop.f32.mrb[0].mxu0
        %v6145 = vadd.f32 %v6066, %v6144
        %v6146 = vpop.f32.mrb[0].mxu0
        %6147 = vdwg.mxu0
        %v6148 = vrot.slane %v247, 7
        %v6150 = vsub.f32 %v6140, %v6148
        %v6151 = vsub.f32 %v6145, %v6148
        %v6152 = vmul.f32 %v6150, %v6150
        %v6153 = vmul.f32 %v6151, %v6151
        %vm6154 = vcmask 64513
        %v6155 = vsel %vm6154, %v6152, 0.0
        %6156 = vadd.xlane.f32.xlu0 %v6155
        %v6157 = vpop.xlane.xlu0 %6156
        %vm6158 = vcmask 57344
        %v6159 = vsel %vm6158, %v6153, 0.0
        %6160 = vadd.xlane.f32.xlu0 %v6159
        %v6161 = vpop.xlane.xlu0 %6160
        %v6162 = vrcp.pop 8.0
        %v6163 = vmul.f32 %v6157, %v6162
        %v6164 = vmul.f32 %v6161, %v6162
        %v6165 = vmul.f32 %v6163, %v2986
        %v6166 = vmul.f32 %v6164, %v2987
        %vm6169 = vcmask 1046528
        %v6170 = vrot.slane %v6165, 1
        %v6171 = vrot.slane %v6166, 1
        %v6172 = vsel %vm6169, %v6170, %v6171
        %v6174 = vrot.slane %v6172, 4
        %v6175 = vadd.f32 %v6172, %v6174
        %v6176 = vrot.slane %v6175, 2
        %v6177 = vadd.f32 %v6175, %v6176
        %v6178 = vrot.slane %v6177, 1
        %v6179 = vadd.f32 %v6177, %v6178
        %v6182 = vrot.slane %v2986, 1
        %v6183 = vrot.slane %v2987, 1
        %v6184 = vsel %vm6169, %v6182, %v6183
        %v6186 = vrot.slane %v6184, 4
        %v6187 = vadd.f32 %v6184, %v6186
        %v6188 = vrot.slane %v6187, 2
        %v6189 = vadd.f32 %v6187, %v6188
        %v6190 = vrot.slane %v6189, 1
        %v6191 = vadd.f32 %v6189, %v6190
        %vm6192 = vcmask 7168
        %v6193 = vsel %vm6192, %v6179, %v6191
        %vm6194 = vcmask 15360
        %v6195 = vsel %vm6194, %v6193, 0.0
        %vm6196 = vcmask 1040384
        %v6197 = vsel %vm6196, %v6195, 0.0
        %v6199 = vrot.slane %v6197, 7
        %6200 = vrot.lane.b32.xlu0 %v6199, 8
        %v6201 = vpop.permute.xlu0 %6200
        %v6203 = vsel %vm253, %v6140, %v6201
        %v6204 = vsel %vm253, %v6145, %v6201
        %6205 = vst [vmem:[%s246 - $0x1] sm:$0xfe] %v6203
        %6206 = vst [vmem:[%s246 + $0x7] sm:$0x1] %v6204
        %p6207 = scmp.lt.s32.totalorder %s16, 1
        %s6208 = scalar_select %p6207, %s16, 1
        %s6209 = smul.addr %s6208, 8
        %s6210 = scalar_lea.vmem %s4, %s6209
        // Predicated region
        $region41: #{mae_forward.1} parent=35 // pred_check
          %p6211 = pneg %p133
        $region42: #{mae_forward.1} parent=35 // pred_check_branch
          %6213 = sbr.rel (%p6211) target = $region44
        $region43: #{mae_forward.1} parent=35 // pred_region
          _
        $region44: #{mae_forward.1} parent=35 // pred_fallthru
          _
      $region36: #{mae_forward.1} parent=5 // pred_fallthru
        _
      %p6214 = scmp.le.s32.totalorder 2, %s11
      // Predicated region
      $region45: #{mae_forward.1} parent=5 // pred_check
        %p6215 = pneg %p6214
      $region46: #{mae_forward.1} parent=5 // pred_check_branch
        %6217 = sbr.rel (%p6215) target = $region48
      $region47: #{mae_forward.1} parent=5 // pred_region
        %s6218 = ssub.s32 %s11, 2
        // Predicated region
        $region49: #{mae_forward.1} parent=47 // pred_check
          %p6219 = pneg %p139
        $region50: #{mae_forward.1} parent=47 // pred_check_branch
          %6221 = sbr.rel (%p6219) target = $region52
        $region51: #{mae_forward.1} parent=47 // pred_region
          %p6222 = scmp.lt.s32.totalorder %s17, 1
          %s6223 = scalar_select %p6222, %s17, 1
          %s6224 = smul.addr %s6223, 8
          %s6225 = scalar_lea.vmem %s4, %s6224
        $region52: #{mae_forward.1} parent=47 // pred_fallthru
          _
      $region48: #{mae_forward.1} parent=5 // pred_fallthru
        _
    $region6: #{mae_forward.1} parent=1 // loop_footer
      %s15 = sadd.s32 1, %s11
    $region7: #{mae_forward.1} parent=1 // loop_footer_branch
      %10 = sbr.rel target = $region3
    $region8: #{mae_forward.1} parent=1 // loop_exit
      _
    %6226 = vsyncpa [#allocation3], 1
    %s6227 = scalar_lea.sflag [#allocation3], 1
    %6228 = vsyncpa %s6227, 1

</llo_original>
